<compile_context>
chip_gen: v6e
topology: v6e:2x2x1
jax: 0.10.0
libtpu: 0.0.40
codegen_flags: <defaults>
</compile_context>

<pallas_src>
import functools

import jax
import jax.numpy as jnp
from jax import lax
from jax.experimental import pallas as pl
from jax.experimental.pallas import tpu as pltpu

# Full-precision f32 matmuls everywhere (reference AND kernel) so the parity check is
# not polluted by TPU's default bf16-pass matmul demotion.
jax.config.update("jax_default_matmul_precision", "highest")


# ----------------------------- fused block kernel -----------------------------
def _attention_block_kernel(x_ref, n1_ref, n2_ref, wq_ref, wk_ref, wv_ref,
                            wo_ref, wgu_ref, wd_ref, cos_ref, sin_ref, o_ref,
                            *, Hq, Hkv, Dh, I, eps, cdt):
    f32 = jnp.float32
    x = x_ref[...]                                    # (S, D): rows of one batch
    S, D = x.shape
    group = Hq // Hkv
    half = Dh // 2
    scale = 1.0 / (Dh ** 0.5)

    cos = cos_ref[...]                                # (S, Dh) = [ cos | cos ]
    sin = sin_ref[...]                                # (S, Dh) = [-sin | sin ]

    def rms(v, w):                                    # RMSNorm (f32 elementwise)
        return v * lax.rsqrt(jnp.mean(v * v, axis=-1, keepdims=True) + eps) * w

    def rope(t):                                      # rotate-half RoPE (f32)
        # [t2 | t1] is a pure lane shuffle (== pltpu.roll(t, half, axis=-1)); no MXU.
        rot = jnp.concatenate([t[:, half:], t[:, :half]], axis=-1)
        return t * cos + rot * sin

    # ---- norm1 ----
    h = rms(x, n1_ref[...])
    hc = h.astype(cdt)                                # matmul-operand dtype

    # ---- GQA attention: outer loop over KV heads, inner loop over their q group ----
    acc = jnp.zeros((S, D), f32)                      # projected attention output
    for g in range(Hkv):
        # K RoPE / V computed ONCE per kv head (not once per q head)
        k = rope(jnp.dot(hc, wk_ref[g], preferred_element_type=f32))       # (S, Dh)
        v = jnp.dot(hc, wv_ref[g], preferred_element_type=f32).astype(cdt)
        kc = k.astype(cdt)
        for j in range(group):
            hq = g * group + j
            q = rope(jnp.dot(hc, wq_ref[hq], preferred_element_type=f32))  # (S, Dh)
            # scores: contract Dh of both operands (q @ k^T, no explicit transpose)
            s = lax.dot_general(q.astype(cdt), kc, (((1,), (1,)), ((), ())),
                                preferred_element_type=f32) * scale        # (S, S)
            m = jnp.max(s, axis=-1, keepdims=True)
            p = jnp.exp(s - m)                                             # f32
            den = jnp.sum(p, axis=-1, keepdims=True)
            o = jnp.dot(p.astype(cdt), v, preferred_element_type=f32) / den  # exact
            # fuse this head's output projection into the running (S, D) accumulator
            acc = acc + jnp.dot(o.astype(cdt), wo_ref[hq],
                                preferred_element_type=f32)

    # ---- residual + norm2 + SwiGLU FFN (NO residual around the FFN, per module) ----
    x2 = x + acc
    h2 = rms(x2, n2_ref[...]).astype(cdt)
    gu = jnp.dot(h2, wgu_ref[...], preferred_element_type=f32)             # (S, 2I)
    gate, up = gu[:, :I], gu[:, I:]
    act = (gate * jax.nn.sigmoid(gate) * up).astype(cdt)                   # SiLU*up
    o_ref[...] = jnp.dot(act, wd_ref[...],
                         preferred_element_type=f32).astype(o_ref.dtype)


# --------------------- one-time parameter preprocessing -----------------------
def prepare_block_params(params, audio_freq, cond_freq, *, num_heads_q,
                         num_heads_kv, compute_dtype=jnp.float32):
    """Weight reshapes / fusions / RoPE tables. Keep OUT of the jitted forward."""
    f32 = jnp.float32
    cdt = compute_dtype
    D = params["wq"].shape[0]
    Hq, Hkv = num_heads_q, num_heads_kv
    Dh = D // Hq

    # head-major slabs: every per-head access in the kernel is a lane-dense tile
    wq3 = params["wq"].reshape(D, Hq, Dh).transpose(1, 0, 2).astype(cdt)   # (Hq,D,Dh)
    wk3 = params["wk"].reshape(D, Hkv, Dh).transpose(1, 0, 2).astype(cdt)  # (Hkv,D,Dh)
    wv3 = params["wv"].reshape(D, Hkv, Dh).transpose(1, 0, 2).astype(cdt)  # (Hkv,D,Dh)
    wo3 = params["wo"].reshape(Hq, Dh, D).astype(cdt)                      # (Hq,Dh,D)
    wgu = jnp.concatenate([params["w_gate"], params["w_up"]],
                          axis=1).astype(cdt)                              # (D, 2I)
    wd = params["w_down"].astype(cdt)                                      # (I, D)

    # RoPE tables with the rotate-half sign pattern baked in
    ang = jnp.concatenate([audio_freq, cond_freq], axis=0).astype(f32)     # (S, Dh/2)
    cos_t = jnp.concatenate([jnp.cos(ang), jnp.cos(ang)], axis=-1)         # (S, Dh)
    sin_t = jnp.concatenate([-jnp.sin(ang), jnp.sin(ang)], axis=-1)        # (S, Dh)

    return {
        "n1": params["norm1_w"].reshape(1, D).astype(f32),
        "n2": params["norm2_w"].reshape(1, D).astype(f32),
        "wq3": wq3, "wk3": wk3, "wv3": wv3, "wo3": wo3,
        "wgu": wgu, "wd": wd, "cos": cos_t, "sin": sin_t,
    }


# ------------------------------- block wrapper --------------------------------
def attention_block(x, prep, *, num_heads_q, num_heads_kv, eps,
                    compute_dtype=jnp.float32):
    B, S, D = x.shape
    Hq, Hkv = num_heads_q, num_heads_kv
    Dh = D // Hq
    I = prep["wd"].shape[0]

    x2d = x.reshape(B * S, D)

    per_b_in = pl.BlockSpec((S, D), lambda b: (b, 0))        # rows of one batch
    per_b_out = pl.BlockSpec((S, D), lambda b: (b, 0))
    full2 = lambda a: pl.BlockSpec(a.shape, lambda b: (0, 0))
    full3 = lambda a: pl.BlockSpec(a.shape, lambda b: (0, 0, 0))

    kernel = functools.partial(_attention_block_kernel, Hq=Hq, Hkv=Hkv, Dh=Dh,
                               I=I, eps=eps, cdt=compute_dtype)
    out = pl.pallas_call(
        kernel,
        out_shape=jax.ShapeDtypeStruct((B * S, D), x.dtype),
        grid=(B,),
        in_specs=[per_b_in,
                  full2(prep["n1"]), full2(prep["n2"]),
                  full3(prep["wq3"]), full3(prep["wk3"]), full3(prep["wv3"]),
                  full3(prep["wo3"]),
                  full2(prep["wgu"]), full2(prep["wd"]),
                  full2(prep["cos"]), full2(prep["sin"])],
        out_specs=per_b_out,
        compiler_params=pltpu.CompilerParams(
            dimension_semantics=("parallel",)),   # v7x: 2 TCs split the batch grid
    )(x2d, prep["n1"], prep["n2"], prep["wq3"], prep["wk3"], prep["wv3"],
      prep["wo3"], prep["wgu"], prep["wd"], prep["cos"], prep["sin"])
    return out.reshape(B, S, D)


# --------------------------- pure-JAX reference --------------------------------
def _reference(x, audio_freq, cond_freq, params, *, num_heads_q, num_heads_kv, eps):
    B, S, D = x.shape
    Hq, Hkv = num_heads_q, num_heads_kv
    Dh = D // Hq
    group = Hq // Hkv

    def rms(v, w):
        return v * lax.rsqrt(jnp.mean(v * v, -1, keepdims=True) + eps) * w

    h = rms(x, params["norm1_w"])
    q = (h @ params["wq"]).reshape(B, S, Hq, Dh)
    k = (h @ params["wk"]).reshape(B, S, Hkv, Dh)
    v = (h @ params["wv"]).reshape(B, S, Hkv, Dh)

    ang = jnp.concatenate([audio_freq, cond_freq], 0)
    cos = jnp.cos(ang)[None, :, None, :]
    sin = jnp.sin(ang)[None, :, None, :]

    def rope(t):
        t1, t2 = jnp.split(t, 2, -1)
        return jnp.concatenate([t1 * cos - t2 * sin, t1 * sin + t2 * cos], -1)

    q, k = rope(q), rope(k)
    k = jnp.repeat(k, group, axis=2)
    v = jnp.repeat(v, group, axis=2)
    s = jnp.einsum("bqhd,bkhd->bhqk", q, k) / (Dh ** 0.5)
    p = jax.nn.softmax(s, axis=-1)
    o = jnp.einsum("bhqk,bkhd->bqhd", p, v).reshape(B, S, D)
    x = x + o @ params["wo"]
    h2 = rms(x, params["norm2_w"])
    return (jax.nn.silu(h2 @ params["w_gate"]) * (h2 @ params["w_up"])) @ params["w_down"]


# ---------------------------------- main ---------------------------------------
if __name__ == "__main__":
    # config
    B, S_audio, S_cond = 2, 5, 3
    S = S_audio + S_cond                    # seq_length = 8
    D = 32                                  # hidden_dims
    Hq, Hkv = 4, 2                          # num_heads_q, num_heads_kv
    Dh = D // Hq
    ffn_mult = 2
    I = D * ffn_mult
    eps = 1e-6

    key = jax.random.PRNGKey(0)
    ks = jax.random.split(key, 10)
    init = lambda k, shp: (0.2 * jax.random.normal(k, shp)).astype(jnp.float32)

    params = {
        "norm1_w": jnp.ones((D,), jnp.float32),
        "norm2_w": jnp.ones((D,), jnp.float32),
        "wq": init(ks[0], (D, Hq * Dh)),
        "wk": init(ks[1], (D, Hkv * Dh)),
        "wv": init(ks[2], (D, Hkv * Dh)),
        "wo": init(ks[3], (Hq * Dh, D)),
        "w_gate": init(ks[4], (D, I)),
        "w_up": init(ks[5], (D, I)),
        "w_down": init(ks[6], (I, D)),
    }

    x = jax.random.normal(ks[7], (B, S, D), jnp.float32)
    audio_freq = jax.random.uniform(ks[8], (S_audio, Dh // 2), jnp.float32) * 3.0
    cond_freq = jax.random.uniform(ks[9], (S_cond, Dh // 2), jnp.float32) * 3.0

    ref = _reference(x, audio_freq, cond_freq, params, num_heads_q=Hq,
                     num_heads_kv=Hkv, eps=eps)

    # ---- f32 matmul-operand path: strict parity check ----
    prep32 = prepare_block_params(params, audio_freq, cond_freq, num_heads_q=Hq,
                                  num_heads_kv=Hkv, compute_dtype=jnp.float32)
    run32 = jax.jit(functools.partial(attention_block, num_heads_q=Hq,
                                      num_heads_kv=Hkv, eps=eps,
                                      compute_dtype=jnp.float32))
    out32 = run32(x, prep32)
    jax.block_until_ready(out32)
    assert out32.shape == (B, S, D) and out32.dtype == jnp.float32
    err32 = float(jnp.max(jnp.abs(out32 - ref)))
    assert jnp.allclose(out32, ref, rtol=5e-3, atol=5e-4), f"f32 max_abs_err={err32}"

    # ---- bf16 matmul-operand path (production MXU dtype): loose sanity check ----
    prep16 = prepare_block_params(params, audio_freq, cond_freq, num_heads_q=Hq,
                                  num_heads_kv=Hkv, compute_dtype=jnp.bfloat16)
    run16 = jax.jit(functools.partial(attention_block, num_heads_q=Hq,
                                      num_heads_kv=Hkv, eps=eps,
                                      compute_dtype=jnp.bfloat16))
    out16 = run16(x, prep16)
    jax.block_until_ready(out16)
    err16 = float(jnp.max(jnp.abs(out16 - ref)))
    assert jnp.allclose(out16, ref, rtol=1e-1, atol=1e-1), f"bf16 max_abs_err={err16}"

    print("KERNEL_OK")
</pallas_src>

<mosaic_0001>
module attributes {stable_mosaic.version = 11 : i64} {
  func.func @_attention_block_kernel(%arg0: i32, %arg1: memref<8x32xf32, #tpu.memory_space<vmem>>, %arg2: memref<1x32xf32, #tpu.memory_space<vmem>>, %arg3: memref<1x32xf32, #tpu.memory_space<vmem>>, %arg4: memref<4x32x8xf32, #tpu.memory_space<vmem>>, %arg5: memref<2x32x8xf32, #tpu.memory_space<vmem>>, %arg6: memref<2x32x8xf32, #tpu.memory_space<vmem>>, %arg7: memref<4x8x32xf32, #tpu.memory_space<vmem>>, %arg8: memref<32x128xf32, #tpu.memory_space<vmem>>, %arg9: memref<64x32xf32, #tpu.memory_space<vmem>>, %arg10: memref<8x8xf32, #tpu.memory_space<vmem>>, %arg11: memref<8x8xf32, #tpu.memory_space<vmem>>, %arg12: memref<8x32xf32, #tpu.memory_space<vmem>>) attributes {dimension_semantics = [#tpu.dimension_semantics<parallel>], iteration_bounds = array<i64: 2>, scalar_prefetch = 0 : i64, scratch_operands = 0 : i64, tpu.core_type = #tpu.core_type<tc>, window_params = [{transform_indices = @transform_0, window_bounds = array<i64: 8, 32>}, {pipeline_mode = #tpu.pipeline_mode<synchronous>, transform_indices = @transform_1, window_bounds = array<i64: 1, 32>}, {pipeline_mode = #tpu.pipeline_mode<synchronous>, transform_indices = @transform_2, window_bounds = array<i64: 1, 32>}, {pipeline_mode = #tpu.pipeline_mode<synchronous>, transform_indices = @transform_3, window_bounds = array<i64: 4, 32, 8>}, {pipeline_mode = #tpu.pipeline_mode<synchronous>, transform_indices = @transform_4, window_bounds = array<i64: 2, 32, 8>}, {pipeline_mode = #tpu.pipeline_mode<synchronous>, transform_indices = @transform_5, window_bounds = array<i64: 2, 32, 8>}, {pipeline_mode = #tpu.pipeline_mode<synchronous>, transform_indices = @transform_6, window_bounds = array<i64: 4, 8, 32>}, {pipeline_mode = #tpu.pipeline_mode<synchronous>, transform_indices = @transform_7, window_bounds = array<i64: 32, 128>}, {pipeline_mode = #tpu.pipeline_mode<synchronous>, transform_indices = @transform_8, window_bounds = array<i64: 64, 32>}, {pipeline_mode = #tpu.pipeline_mode<synchronous>, transform_indices = @transform_9, window_bounds = array<i64: 8, 8>}, {pipeline_mode = #tpu.pipeline_mode<synchronous>, transform_indices = @transform_10, window_bounds = array<i64: 8, 8>}, {transform_indices = @transform_11, window_bounds = array<i64: 8, 32>}]} {
    %c0 = arith.constant 0 : index
    %c0_0 = arith.constant 0 : index
    %0 = vector.load %arg1[%c0, %c0_0] : memref<8x32xf32, #tpu.memory_space<vmem>>, vector<8x32xf32>
    %c0_1 = arith.constant 0 : index
    %c0_2 = arith.constant 0 : index
    %1 = vector.load %arg10[%c0_1, %c0_2] : memref<8x8xf32, #tpu.memory_space<vmem>>, vector<8x8xf32>
    %c0_3 = arith.constant 0 : index
    %c0_4 = arith.constant 0 : index
    %2 = vector.load %arg11[%c0_3, %c0_4] : memref<8x8xf32, #tpu.memory_space<vmem>>, vector<8x8xf32>
    %c0_5 = arith.constant 0 : index
    %c0_6 = arith.constant 0 : index
    %3 = vector.load %arg2[%c0_5, %c0_6] : memref<1x32xf32, #tpu.memory_space<vmem>>, vector<1x32xf32>
    %4 = arith.mulf %0, %0 : vector<8x32xf32>
    %cst = arith.constant dense<0.000000e+00> : vector<8xf32>
    %5 = vector.multi_reduction <add>, %4, %cst [1] : vector<8x32xf32> to vector<8xf32>
    %6 = vector.shape_cast %5 : vector<8xf32> to vector<8x1xf32>
    %cst_7 = arith.constant 3.200000e+01 : f32
    %7 = vector.broadcast %cst_7 : f32 to vector<8x1xf32>
    %8 = arith.divf %6, %7 : vector<8x1xf32>
    %cst_8 = arith.constant 9.99999997E-7 : f32
    %9 = vector.broadcast %cst_8 : f32 to vector<8x1xf32>
    %10 = arith.addf %8, %9 : vector<8x1xf32>
    %11 = math.rsqrt %10 : vector<8x1xf32>
    %12 = vector.broadcast %11 : vector<8x1xf32> to vector<8x32xf32>
    %13 = arith.mulf %0, %12 : vector<8x32xf32>
    %14 = vector.broadcast %3 : vector<1x32xf32> to vector<8x32xf32>
    %15 = arith.mulf %13, %14 : vector<8x32xf32>
    %cst_9 = arith.constant 0.000000e+00 : f32
    %16 = vector.broadcast %cst_9 : f32 to vector<8x32xf32>
    %c0_10 = arith.constant 0 : index
    %c0_11 = arith.constant 0 : index
    %c0_12 = arith.constant 0 : index
    %17 = vector.load %arg5[%c0_10, %c0_11, %c0_12] : memref<2x32x8xf32, #tpu.memory_space<vmem>>, vector<1x32x8xf32>
    %18 = vector.shape_cast %17 : vector<1x32x8xf32> to vector<32x8xf32>
    %cst_13 = arith.constant dense<0.000000e+00> : vector<8x8xf32>
    %19 = tpu.matmul %15, %18, %cst_13 {dimension_numbers = #tpu.dot_dimension_numbers<[1], [0], [0], [1], [0, 0, 1, 1], [], []>, precision = #tpu.contract_precision<fp32>} : vector<8x32xf32>, vector<32x8xf32>, vector<8x8xf32> -> vector<8x8xf32>
    %20 = vector.extract_strided_slice %19 {offsets = [0, 4], sizes = [8, 4], strides = [1, 1]} : vector<8x8xf32> to vector<8x4xf32>
    %21 = vector.extract_strided_slice %19 {offsets = [0, 0], sizes = [8, 4], strides = [1, 1]} : vector<8x8xf32> to vector<8x4xf32>
    %22 = tpu.concatenate %20, %21 in 1 : vector<8x4xf32>, vector<8x4xf32> -> vector<8x8xf32>
    %23 = arith.mulf %19, %1 : vector<8x8xf32>
    %24 = arith.mulf %22, %2 : vector<8x8xf32>
    %25 = arith.addf %23, %24 : vector<8x8xf32>
    %c0_14 = arith.constant 0 : index
    %c0_15 = arith.constant 0 : index
    %c0_16 = arith.constant 0 : index
    %26 = vector.load %arg6[%c0_14, %c0_15, %c0_16] : memref<2x32x8xf32, #tpu.memory_space<vmem>>, vector<1x32x8xf32>
    %27 = vector.shape_cast %26 : vector<1x32x8xf32> to vector<32x8xf32>
    %cst_17 = arith.constant dense<0.000000e+00> : vector<8x8xf32>
    %28 = tpu.matmul %15, %27, %cst_17 {dimension_numbers = #tpu.dot_dimension_numbers<[1], [0], [0], [1], [0, 0, 1, 1], [], []>, precision = #tpu.contract_precision<fp32>} : vector<8x32xf32>, vector<32x8xf32>, vector<8x8xf32> -> vector<8x8xf32>
    %c0_18 = arith.constant 0 : index
    %c0_19 = arith.constant 0 : index
    %c0_20 = arith.constant 0 : index
    %29 = vector.load %arg4[%c0_18, %c0_19, %c0_20] : memref<4x32x8xf32, #tpu.memory_space<vmem>>, vector<1x32x8xf32>
    %30 = vector.shape_cast %29 : vector<1x32x8xf32> to vector<32x8xf32>
    %cst_21 = arith.constant dense<0.000000e+00> : vector<8x8xf32>
    %31 = tpu.matmul %15, %30, %cst_21 {dimension_numbers = #tpu.dot_dimension_numbers<[1], [0], [0], [1], [0, 0, 1, 1], [], []>, precision = #tpu.contract_precision<fp32>} : vector<8x32xf32>, vector<32x8xf32>, vector<8x8xf32> -> vector<8x8xf32>
    %32 = vector.extract_strided_slice %31 {offsets = [0, 4], sizes = [8, 4], strides = [1, 1]} : vector<8x8xf32> to vector<8x4xf32>
    %33 = vector.extract_strided_slice %31 {offsets = [0, 0], sizes = [8, 4], strides = [1, 1]} : vector<8x8xf32> to vector<8x4xf32>
    %34 = tpu.concatenate %32, %33 in 1 : vector<8x4xf32>, vector<8x4xf32> -> vector<8x8xf32>
    %35 = arith.mulf %31, %1 : vector<8x8xf32>
    %36 = arith.mulf %34, %2 : vector<8x8xf32>
    %37 = arith.addf %35, %36 : vector<8x8xf32>
    %cst_22 = arith.constant dense<0.000000e+00> : vector<8x8xf32>
    %38 = tpu.matmul %37, %25, %cst_22 {dimension_numbers = #tpu.dot_dimension_numbers<[1], [1], [0], [0], [0, 0, 1, 0], [], []>, precision = #tpu.contract_precision<fp32>} : vector<8x8xf32>, vector<8x8xf32>, vector<8x8xf32> -> vector<8x8xf32>
    %cst_23 = arith.constant 0.353553385 : f32
    %39 = vector.broadcast %cst_23 : f32 to vector<8x8xf32>
    %40 = arith.mulf %38, %39 : vector<8x8xf32>
    %cst_24 = arith.constant dense<0xFF800000> : vector<8xf32>
    %41 = vector.multi_reduction <maximumf>, %40, %cst_24 [1] : vector<8x8xf32> to vector<8xf32>
    %42 = vector.shape_cast %41 : vector<8xf32> to vector<8x1xf32>
    %43 = vector.broadcast %42 : vector<8x1xf32> to vector<8x8xf32>
    %44 = arith.subf %40, %43 : vector<8x8xf32>
    %45 = math.exp %44 : vector<8x8xf32>
    %cst_25 = arith.constant dense<0.000000e+00> : vector<8xf32>
    %46 = vector.multi_reduction <add>, %45, %cst_25 [1] : vector<8x8xf32> to vector<8xf32>
    %47 = vector.shape_cast %46 : vector<8xf32> to vector<8x1xf32>
    %cst_26 = arith.constant dense<0.000000e+00> : vector<8x8xf32>
    %48 = tpu.matmul %45, %28, %cst_26 {dimension_numbers = #tpu.dot_dimension_numbers<[1], [0], [0], [1], [0, 0, 1, 1], [], []>, precision = #tpu.contract_precision<fp32>} : vector<8x8xf32>, vector<8x8xf32>, vector<8x8xf32> -> vector<8x8xf32>
    %49 = vector.broadcast %47 : vector<8x1xf32> to vector<8x8xf32>
    %50 = arith.divf %48, %49 : vector<8x8xf32>
    %c0_27 = arith.constant 0 : index
    %c0_28 = arith.constant 0 : index
    %c0_29 = arith.constant 0 : index
    %51 = vector.load %arg7[%c0_27, %c0_28, %c0_29] : memref<4x8x32xf32, #tpu.memory_space<vmem>>, vector<1x8x32xf32>
    %52 = vector.shape_cast %51 : vector<1x8x32xf32> to vector<8x32xf32>
    %cst_30 = arith.constant dense<0.000000e+00> : vector<8x32xf32>
    %53 = tpu.matmul %50, %52, %cst_30 {dimension_numbers = #tpu.dot_dimension_numbers<[1], [0], [0], [1], [0, 0, 1, 1], [], []>, precision = #tpu.contract_precision<fp32>} : vector<8x8xf32>, vector<8x32xf32>, vector<8x32xf32> -> vector<8x32xf32>
    %54 = arith.addf %16, %53 : vector<8x32xf32>
    %c1 = arith.constant 1 : index
    %c0_31 = arith.constant 0 : index
    %c0_32 = arith.constant 0 : index
    %55 = vector.load %arg4[%c1, %c0_31, %c0_32] : memref<4x32x8xf32, #tpu.memory_space<vmem>>, vector<1x32x8xf32>
    %56 = vector.shape_cast %55 : vector<1x32x8xf32> to vector<32x8xf32>
    %cst_33 = arith.constant dense<0.000000e+00> : vector<8x8xf32>
    %57 = tpu.matmul %15, %56, %cst_33 {dimension_numbers = #tpu.dot_dimension_numbers<[1], [0], [0], [1], [0, 0, 1, 1], [], []>, precision = #tpu.contract_precision<fp32>} : vector<8x32xf32>, vector<32x8xf32>, vector<8x8xf32> -> vector<8x8xf32>
    %58 = vector.extract_strided_slice %57 {offsets = [0, 4], sizes = [8, 4], strides = [1, 1]} : vector<8x8xf32> to vector<8x4xf32>
    %59 = vector.extract_strided_slice %57 {offsets = [0, 0], sizes = [8, 4], strides = [1, 1]} : vector<8x8xf32> to vector<8x4xf32>
    %60 = tpu.concatenate %58, %59 in 1 : vector<8x4xf32>, vector<8x4xf32> -> vector<8x8xf32>
    %61 = arith.mulf %57, %1 : vector<8x8xf32>
    %62 = arith.mulf %60, %2 : vector<8x8xf32>
    %63 = arith.addf %61, %62 : vector<8x8xf32>
    %cst_34 = arith.constant dense<0.000000e+00> : vector<8x8xf32>
    %64 = tpu.matmul %63, %25, %cst_34 {dimension_numbers = #tpu.dot_dimension_numbers<[1], [1], [0], [0], [0, 0, 1, 0], [], []>, precision = #tpu.contract_precision<fp32>} : vector<8x8xf32>, vector<8x8xf32>, vector<8x8xf32> -> vector<8x8xf32>
    %cst_35 = arith.constant 0.353553385 : f32
    %65 = vector.broadcast %cst_35 : f32 to vector<8x8xf32>
    %66 = arith.mulf %64, %65 : vector<8x8xf32>
    %cst_36 = arith.constant dense<0xFF800000> : vector<8xf32>
    %67 = vector.multi_reduction <maximumf>, %66, %cst_36 [1] : vector<8x8xf32> to vector<8xf32>
    %68 = vector.shape_cast %67 : vector<8xf32> to vector<8x1xf32>
    %69 = vector.broadcast %68 : vector<8x1xf32> to vector<8x8xf32>
    %70 = arith.subf %66, %69 : vector<8x8xf32>
    %71 = math.exp %70 : vector<8x8xf32>
    %cst_37 = arith.constant dense<0.000000e+00> : vector<8xf32>
    %72 = vector.multi_reduction <add>, %71, %cst_37 [1] : vector<8x8xf32> to vector<8xf32>
    %73 = vector.shape_cast %72 : vector<8xf32> to vector<8x1xf32>
    %cst_38 = arith.constant dense<0.000000e+00> : vector<8x8xf32>
    %74 = tpu.matmul %71, %28, %cst_38 {dimension_numbers = #tpu.dot_dimension_numbers<[1], [0], [0], [1], [0, 0, 1, 1], [], []>, precision = #tpu.contract_precision<fp32>} : vector<8x8xf32>, vector<8x8xf32>, vector<8x8xf32> -> vector<8x8xf32>
    %75 = vector.broadcast %73 : vector<8x1xf32> to vector<8x8xf32>
    %76 = arith.divf %74, %75 : vector<8x8xf32>
    %c1_39 = arith.constant 1 : index
    %c0_40 = arith.constant 0 : index
    %c0_41 = arith.constant 0 : index
    %77 = vector.load %arg7[%c1_39, %c0_40, %c0_41] : memref<4x8x32xf32, #tpu.memory_space<vmem>>, vector<1x8x32xf32>
    %78 = vector.shape_cast %77 : vector<1x8x32xf32> to vector<8x32xf32>
    %cst_42 = arith.constant dense<0.000000e+00> : vector<8x32xf32>
    %79 = tpu.matmul %76, %78, %cst_42 {dimension_numbers = #tpu.dot_dimension_numbers<[1], [0], [0], [1], [0, 0, 1, 1], [], []>, precision = #tpu.contract_precision<fp32>} : vector<8x8xf32>, vector<8x32xf32>, vector<8x32xf32> -> vector<8x32xf32>
    %80 = arith.addf %54, %79 : vector<8x32xf32>
    %c1_43 = arith.constant 1 : index
    %c0_44 = arith.constant 0 : index
    %c0_45 = arith.constant 0 : index
    %81 = vector.load %arg5[%c1_43, %c0_44, %c0_45] : memref<2x32x8xf32, #tpu.memory_space<vmem>>, vector<1x32x8xf32>
    %82 = vector.shape_cast %81 : vector<1x32x8xf32> to vector<32x8xf32>
    %cst_46 = arith.constant dense<0.000000e+00> : vector<8x8xf32>
    %83 = tpu.matmul %15, %82, %cst_46 {dimension_numbers = #tpu.dot_dimension_numbers<[1], [0], [0], [1], [0, 0, 1, 1], [], []>, precision = #tpu.contract_precision<fp32>} : vector<8x32xf32>, vector<32x8xf32>, vector<8x8xf32> -> vector<8x8xf32>
    %84 = vector.extract_strided_slice %83 {offsets = [0, 4], sizes = [8, 4], strides = [1, 1]} : vector<8x8xf32> to vector<8x4xf32>
    %85 = vector.extract_strided_slice %83 {offsets = [0, 0], sizes = [8, 4], strides = [1, 1]} : vector<8x8xf32> to vector<8x4xf32>
    %86 = tpu.concatenate %84, %85 in 1 : vector<8x4xf32>, vector<8x4xf32> -> vector<8x8xf32>
    %87 = arith.mulf %83, %1 : vector<8x8xf32>
    %88 = arith.mulf %86, %2 : vector<8x8xf32>
    %89 = arith.addf %87, %88 : vector<8x8xf32>
    %c1_47 = arith.constant 1 : index
    %c0_48 = arith.constant 0 : index
    %c0_49 = arith.constant 0 : index
    %90 = vector.load %arg6[%c1_47, %c0_48, %c0_49] : memref<2x32x8xf32, #tpu.memory_space<vmem>>, vector<1x32x8xf32>
    %91 = vector.shape_cast %90 : vector<1x32x8xf32> to vector<32x8xf32>
    %cst_50 = arith.constant dense<0.000000e+00> : vector<8x8xf32>
    %92 = tpu.matmul %15, %91, %cst_50 {dimension_numbers = #tpu.dot_dimension_numbers<[1], [0], [0], [1], [0, 0, 1, 1], [], []>, precision = #tpu.contract_precision<fp32>} : vector<8x32xf32>, vector<32x8xf32>, vector<8x8xf32> -> vector<8x8xf32>
    %c2 = arith.constant 2 : index
    %c0_51 = arith.constant 0 : index
    %c0_52 = arith.constant 0 : index
    %93 = vector.load %arg4[%c2, %c0_51, %c0_52] : memref<4x32x8xf32, #tpu.memory_space<vmem>>, vector<1x32x8xf32>
    %94 = vector.shape_cast %93 : vector<1x32x8xf32> to vector<32x8xf32>
    %cst_53 = arith.constant dense<0.000000e+00> : vector<8x8xf32>
    %95 = tpu.matmul %15, %94, %cst_53 {dimension_numbers = #tpu.dot_dimension_numbers<[1], [0], [0], [1], [0, 0, 1, 1], [], []>, precision = #tpu.contract_precision<fp32>} : vector<8x32xf32>, vector<32x8xf32>, vector<8x8xf32> -> vector<8x8xf32>
    %96 = vector.extract_strided_slice %95 {offsets = [0, 4], sizes = [8, 4], strides = [1, 1]} : vector<8x8xf32> to vector<8x4xf32>
    %97 = vector.extract_strided_slice %95 {offsets = [0, 0], sizes = [8, 4], strides = [1, 1]} : vector<8x8xf32> to vector<8x4xf32>
    %98 = tpu.concatenate %96, %97 in 1 : vector<8x4xf32>, vector<8x4xf32> -> vector<8x8xf32>
    %99 = arith.mulf %95, %1 : vector<8x8xf32>
    %100 = arith.mulf %98, %2 : vector<8x8xf32>
    %101 = arith.addf %99, %100 : vector<8x8xf32>
    %cst_54 = arith.constant dense<0.000000e+00> : vector<8x8xf32>
    %102 = tpu.matmul %101, %89, %cst_54 {dimension_numbers = #tpu.dot_dimension_numbers<[1], [1], [0], [0], [0, 0, 1, 0], [], []>, precision = #tpu.contract_precision<fp32>} : vector<8x8xf32>, vector<8x8xf32>, vector<8x8xf32> -> vector<8x8xf32>
    %cst_55 = arith.constant 0.353553385 : f32
    %103 = vector.broadcast %cst_55 : f32 to vector<8x8xf32>
    %104 = arith.mulf %102, %103 : vector<8x8xf32>
    %cst_56 = arith.constant dense<0xFF800000> : vector<8xf32>
    %105 = vector.multi_reduction <maximumf>, %104, %cst_56 [1] : vector<8x8xf32> to vector<8xf32>
    %106 = vector.shape_cast %105 : vector<8xf32> to vector<8x1xf32>
    %107 = vector.broadcast %106 : vector<8x1xf32> to vector<8x8xf32>
    %108 = arith.subf %104, %107 : vector<8x8xf32>
    %109 = math.exp %108 : vector<8x8xf32>
    %cst_57 = arith.constant dense<0.000000e+00> : vector<8xf32>
    %110 = vector.multi_reduction <add>, %109, %cst_57 [1] : vector<8x8xf32> to vector<8xf32>
    %111 = vector.shape_cast %110 : vector<8xf32> to vector<8x1xf32>
    %cst_58 = arith.constant dense<0.000000e+00> : vector<8x8xf32>
    %112 = tpu.matmul %109, %92, %cst_58 {dimension_numbers = #tpu.dot_dimension_numbers<[1], [0], [0], [1], [0, 0, 1, 1], [], []>, precision = #tpu.contract_precision<fp32>} : vector<8x8xf32>, vector<8x8xf32>, vector<8x8xf32> -> vector<8x8xf32>
    %113 = vector.broadcast %111 : vector<8x1xf32> to vector<8x8xf32>
    %114 = arith.divf %112, %113 : vector<8x8xf32>
    %c2_59 = arith.constant 2 : index
    %c0_60 = arith.constant 0 : index
    %c0_61 = arith.constant 0 : index
    %115 = vector.load %arg7[%c2_59, %c0_60, %c0_61] : memref<4x8x32xf32, #tpu.memory_space<vmem>>, vector<1x8x32xf32>
    %116 = vector.shape_cast %115 : vector<1x8x32xf32> to vector<8x32xf32>
    %cst_62 = arith.constant dense<0.000000e+00> : vector<8x32xf32>
    %117 = tpu.matmul %114, %116, %cst_62 {dimension_numbers = #tpu.dot_dimension_numbers<[1], [0], [0], [1], [0, 0, 1, 1], [], []>, precision = #tpu.contract_precision<fp32>} : vector<8x8xf32>, vector<8x32xf32>, vector<8x32xf32> -> vector<8x32xf32>
    %118 = arith.addf %80, %117 : vector<8x32xf32>
    %c3 = arith.constant 3 : index
    %c0_63 = arith.constant 0 : index
    %c0_64 = arith.constant 0 : index
    %119 = vector.load %arg4[%c3, %c0_63, %c0_64] : memref<4x32x8xf32, #tpu.memory_space<vmem>>, vector<1x32x8xf32>
    %120 = vector.shape_cast %119 : vector<1x32x8xf32> to vector<32x8xf32>
    %cst_65 = arith.constant dense<0.000000e+00> : vector<8x8xf32>
    %121 = tpu.matmul %15, %120, %cst_65 {dimension_numbers = #tpu.dot_dimension_numbers<[1], [0], [0], [1], [0, 0, 1, 1], [], []>, precision = #tpu.contract_precision<fp32>} : vector<8x32xf32>, vector<32x8xf32>, vector<8x8xf32> -> vector<8x8xf32>
    %122 = vector.extract_strided_slice %121 {offsets = [0, 4], sizes = [8, 4], strides = [1, 1]} : vector<8x8xf32> to vector<8x4xf32>
    %123 = vector.extract_strided_slice %121 {offsets = [0, 0], sizes = [8, 4], strides = [1, 1]} : vector<8x8xf32> to vector<8x4xf32>
    %124 = tpu.concatenate %122, %123 in 1 : vector<8x4xf32>, vector<8x4xf32> -> vector<8x8xf32>
    %125 = arith.mulf %121, %1 : vector<8x8xf32>
    %126 = arith.mulf %124, %2 : vector<8x8xf32>
    %127 = arith.addf %125, %126 : vector<8x8xf32>
    %cst_66 = arith.constant dense<0.000000e+00> : vector<8x8xf32>
    %128 = tpu.matmul %127, %89, %cst_66 {dimension_numbers = #tpu.dot_dimension_numbers<[1], [1], [0], [0], [0, 0, 1, 0], [], []>, precision = #tpu.contract_precision<fp32>} : vector<8x8xf32>, vector<8x8xf32>, vector<8x8xf32> -> vector<8x8xf32>
    %cst_67 = arith.constant 0.353553385 : f32
    %129 = vector.broadcast %cst_67 : f32 to vector<8x8xf32>
    %130 = arith.mulf %128, %129 : vector<8x8xf32>
    %cst_68 = arith.constant dense<0xFF800000> : vector<8xf32>
    %131 = vector.multi_reduction <maximumf>, %130, %cst_68 [1] : vector<8x8xf32> to vector<8xf32>
    %132 = vector.shape_cast %131 : vector<8xf32> to vector<8x1xf32>
    %133 = vector.broadcast %132 : vector<8x1xf32> to vector<8x8xf32>
    %134 = arith.subf %130, %133 : vector<8x8xf32>
    %135 = math.exp %134 : vector<8x8xf32>
    %cst_69 = arith.constant dense<0.000000e+00> : vector<8xf32>
    %136 = vector.multi_reduction <add>, %135, %cst_69 [1] : vector<8x8xf32> to vector<8xf32>
    %137 = vector.shape_cast %136 : vector<8xf32> to vector<8x1xf32>
    %cst_70 = arith.constant dense<0.000000e+00> : vector<8x8xf32>
    %138 = tpu.matmul %135, %92, %cst_70 {dimension_numbers = #tpu.dot_dimension_numbers<[1], [0], [0], [1], [0, 0, 1, 1], [], []>, precision = #tpu.contract_precision<fp32>} : vector<8x8xf32>, vector<8x8xf32>, vector<8x8xf32> -> vector<8x8xf32>
    %139 = vector.broadcast %137 : vector<8x1xf32> to vector<8x8xf32>
    %140 = arith.divf %138, %139 : vector<8x8xf32>
    %c3_71 = arith.constant 3 : index
    %c0_72 = arith.constant 0 : index
    %c0_73 = arith.constant 0 : index
    %141 = vector.load %arg7[%c3_71, %c0_72, %c0_73] : memref<4x8x32xf32, #tpu.memory_space<vmem>>, vector<1x8x32xf32>
    %142 = vector.shape_cast %141 : vector<1x8x32xf32> to vector<8x32xf32>
    %cst_74 = arith.constant dense<0.000000e+00> : vector<8x32xf32>
    %143 = tpu.matmul %140, %142, %cst_74 {dimension_numbers = #tpu.dot_dimension_numbers<[1], [0], [0], [1], [0, 0, 1, 1], [], []>, precision = #tpu.contract_precision<fp32>} : vector<8x8xf32>, vector<8x32xf32>, vector<8x32xf32> -> vector<8x32xf32>
    %144 = arith.addf %118, %143 : vector<8x32xf32>
    %145 = arith.addf %0, %144 : vector<8x32xf32>
    %c0_75 = arith.constant 0 : index
    %c0_76 = arith.constant 0 : index
    %146 = vector.load %arg3[%c0_75, %c0_76] : memref<1x32xf32, #tpu.memory_space<vmem>>, vector<1x32xf32>
    %147 = arith.mulf %145, %145 : vector<8x32xf32>
    %cst_77 = arith.constant dense<0.000000e+00> : vector<8xf32>
    %148 = vector.multi_reduction <add>, %147, %cst_77 [1] : vector<8x32xf32> to vector<8xf32>
    %149 = vector.shape_cast %148 : vector<8xf32> to vector<8x1xf32>
    %cst_78 = arith.constant 3.200000e+01 : f32
    %150 = vector.broadcast %cst_78 : f32 to vector<8x1xf32>
    %151 = arith.divf %149, %150 : vector<8x1xf32>
    %cst_79 = arith.constant 9.99999997E-7 : f32
    %152 = vector.broadcast %cst_79 : f32 to vector<8x1xf32>
    %153 = arith.addf %151, %152 : vector<8x1xf32>
    %154 = math.rsqrt %153 : vector<8x1xf32>
    %155 = vector.broadcast %154 : vector<8x1xf32> to vector<8x32xf32>
    %156 = arith.mulf %145, %155 : vector<8x32xf32>
    %157 = vector.broadcast %146 : vector<1x32xf32> to vector<8x32xf32>
    %158 = arith.mulf %156, %157 : vector<8x32xf32>
    %c0_80 = arith.constant 0 : index
    %c0_81 = arith.constant 0 : index
    %159 = vector.load %arg8[%c0_80, %c0_81] : memref<32x128xf32, #tpu.memory_space<vmem>>, vector<32x128xf32>
    %cst_82 = arith.constant dense<0.000000e+00> : vector<8x128xf32>
    %160 = tpu.matmul %158, %159, %cst_82 {dimension_numbers = #tpu.dot_dimension_numbers<[1], [0], [0], [1], [0, 0, 1, 1], [], []>, precision = #tpu.contract_precision<fp32>} : vector<8x32xf32>, vector<32x128xf32>, vector<8x128xf32> -> vector<8x128xf32>
    %161 = vector.extract_strided_slice %160 {offsets = [0, 0], sizes = [8, 64], strides = [1, 1]} : vector<8x128xf32> to vector<8x64xf32>
    %162 = vector.extract_strided_slice %160 {offsets = [0, 64], sizes = [8, 64], strides = [1, 1]} : vector<8x128xf32> to vector<8x64xf32>
    %163 = arith.negf %161 : vector<8x64xf32>
    %164 = math.exp %163 : vector<8x64xf32>
    %cst_83 = arith.constant 1.000000e+00 : f32
    %165 = vector.broadcast %cst_83 : f32 to vector<8x64xf32>
    %166 = arith.addf %165, %164 : vector<8x64xf32>
    %167 = arith.divf %165, %166 : vector<8x64xf32>
    %168 = arith.mulf %161, %167 : vector<8x64xf32>
    %169 = arith.mulf %168, %162 : vector<8x64xf32>
    %c0_84 = arith.constant 0 : index
    %c0_85 = arith.constant 0 : index
    %170 = vector.load %arg9[%c0_84, %c0_85] : memref<64x32xf32, #tpu.memory_space<vmem>>, vector<64x32xf32>
    %cst_86 = arith.constant dense<0.000000e+00> : vector<8x32xf32>
    %171 = tpu.matmul %169, %170, %cst_86 {dimension_numbers = #tpu.dot_dimension_numbers<[1], [0], [0], [1], [0, 0, 1, 1], [], []>, precision = #tpu.contract_precision<fp32>} : vector<8x64xf32>, vector<64x32xf32>, vector<8x32xf32> -> vector<8x32xf32>
    %c0_87 = arith.constant 0 : index
    %c0_88 = arith.constant 0 : index
    %172 = vector.load %arg12[%c0_87, %c0_88] : memref<8x32xf32, #tpu.memory_space<vmem>>, vector<8x32xf32>
    tpu.vector_store %arg12[%c0_87, %c0_88], %171 {strides = array<i32>} : memref<8x32xf32, #tpu.memory_space<vmem>>, vector<8x32xf32>,
    return
  }
  func.func @transform_0(%arg0: i32) -> (i32, i32) {
    %c0_i32 = arith.constant 0 : i32
    %c0_i32_0 = arith.constant 0 : i32
    return %arg0, %c0_i32 : i32, i32
  }
  func.func @transform_1(%arg0: i32) -> (i32, i32) {
    %c0_i32 = arith.constant 0 : i32
    %c0_i32_0 = arith.constant 0 : i32
    %c0_i32_1 = arith.constant 0 : i32
    return %c0_i32, %c0_i32_0 : i32, i32
  }
  func.func @transform_2(%arg0: i32) -> (i32, i32) {
    %c0_i32 = arith.constant 0 : i32
    %c0_i32_0 = arith.constant 0 : i32
    %c0_i32_1 = arith.constant 0 : i32
    return %c0_i32, %c0_i32_0 : i32, i32
  }
  func.func @transform_3(%arg0: i32) -> (i32, i32, i32) {
    %c0_i32 = arith.constant 0 : i32
    %c0_i32_0 = arith.constant 0 : i32
    %c0_i32_1 = arith.constant 0 : i32
    %c0_i32_2 = arith.constant 0 : i32
    return %c0_i32, %c0_i32_0, %c0_i32_1 : i32, i32, i32
  }
  func.func @transform_4(%arg0: i32) -> (i32, i32, i32) {
    %c0_i32 = arith.constant 0 : i32
    %c0_i32_0 = arith.constant 0 : i32
    %c0_i32_1 = arith.constant 0 : i32
    %c0_i32_2 = arith.constant 0 : i32
    return %c0_i32, %c0_i32_0, %c0_i32_1 : i32, i32, i32
  }
  func.func @transform_5(%arg0: i32) -> (i32, i32, i32) {
    %c0_i32 = arith.constant 0 : i32
    %c0_i32_0 = arith.constant 0 : i32
    %c0_i32_1 = arith.constant 0 : i32
    %c0_i32_2 = arith.constant 0 : i32
    return %c0_i32, %c0_i32_0, %c0_i32_1 : i32, i32, i32
  }
  func.func @transform_6(%arg0: i32) -> (i32, i32, i32) {
    %c0_i32 = arith.constant 0 : i32
    %c0_i32_0 = arith.constant 0 : i32
    %c0_i32_1 = arith.constant 0 : i32
    %c0_i32_2 = arith.constant 0 : i32
    return %c0_i32, %c0_i32_0, %c0_i32_1 : i32, i32, i32
  }
  func.func @transform_7(%arg0: i32) -> (i32, i32) {
    %c0_i32 = arith.constant 0 : i32
    %c0_i32_0 = arith.constant 0 : i32
    %c0_i32_1 = arith.constant 0 : i32
    return %c0_i32, %c0_i32_0 : i32, i32
  }
  func.func @transform_8(%arg0: i32) -> (i32, i32) {
    %c0_i32 = arith.constant 0 : i32
    %c0_i32_0 = arith.constant 0 : i32
    %c0_i32_1 = arith.constant 0 : i32
    return %c0_i32, %c0_i32_0 : i32, i32
  }
  func.func @transform_9(%arg0: i32) -> (i32, i32) {
    %c0_i32 = arith.constant 0 : i32
    %c0_i32_0 = arith.constant 0 : i32
    %c0_i32_1 = arith.constant 0 : i32
    return %c0_i32, %c0_i32_0 : i32, i32
  }
  func.func @transform_10(%arg0: i32) -> (i32, i32) {
    %c0_i32 = arith.constant 0 : i32
    %c0_i32_0 = arith.constant 0 : i32
    %c0_i32_1 = arith.constant 0 : i32
    return %c0_i32, %c0_i32_0 : i32, i32
  }
  func.func @transform_11(%arg0: i32) -> (i32, i32) {
    %c0_i32 = arith.constant 0 : i32
    %c0_i32_0 = arith.constant 0 : i32
    return %arg0, %c0_i32 : i32, i32
  }
}

</mosaic_0001>

<llo_original>
// kernel: attention_block.1
$region0: #{attention_block.1}
  #allocation0 [shape = 'u32[]', space=smem, size = 0x4, offset = 0x4, fixed_abs, tag = 'smem constant byte address 0x4 - core index']
  #allocation1 [shape = 'u32[144,128]{1,0:T(1,128)}', space=vmem, size = 0x12000, scoped, tag = 'internal scratch']
  %s0 = inlined_call_operand.vmem [shape: f32[16,32], index: 0, kind: input, shape index: {}]
  %s1 = inlined_call_operand.vmem [shape: f32[1,32], index: 1, kind: input, shape index: {}]
  %s2 = inlined_call_operand.vmem [shape: f32[1,32], index: 2, kind: input, shape index: {}]
  %s3 = inlined_call_operand.vmem [shape: f32[4,32,8], index: 3, kind: input, shape index: {}]
  %s4 = inlined_call_operand.vmem [shape: f32[2,32,8], index: 4, kind: input, shape index: {}]
  %s5 = inlined_call_operand.vmem [shape: f32[2,32,8], index: 5, kind: input, shape index: {}]
  %s6 = inlined_call_operand.vmem [shape: f32[4,8,32], index: 6, kind: input, shape index: {}]
  %s7 = inlined_call_operand.vmem [shape: f32[32,128], index: 7, kind: input, shape index: {}]
  %s8 = inlined_call_operand.vmem [shape: f32[64,32], index: 8, kind: input, shape index: {}]
  %s9 = inlined_call_operand.vmem [shape: f32[8,8], index: 9, kind: input, shape index: {}]
  %s10 = inlined_call_operand.vmem [shape: f32[8,8], index: 10, kind: input, shape index: {}]
  %s11 = inlined_call_operand.hbm [shape: f32[16,32], index: 11, kind: output, shape index: {}]
  %s12 = sld [smem:[#allocation0]]
  $region77: #{attention_block.1} parent=0
    _
  %s14 = ssub.s32 1, %s12
  %s15 = scalar_select 0, %s14, %s12
  $region1: #{attention_block.1} parent=0
    #allocation2 [shape = 'u8[8192]{0}', space=vmem, size = 0x2000, scoped, tag = 'output window, operand 0']
    #allocation3 [shape = 's32[2]{0}', space=sflag, size = 0x8, scoped, tag = 'scoped memory for attention_block.1']
    %16 = vsyncpa [#allocation3], 0
    %s17 = scalar_lea.sflag [#allocation3], 1
    %18 = vsyncpa %s17, 0
    loop: start=0, step=1, limit=4
    $region2: #{attention_block.1} parent=1 // loop_pre_header
      _
    $region3: #{attention_block.1} parent=1 // loop_header
      %s20 = sphi 0, %s24
      %p21 = scmp.ge.s32.totalorder %s20, 4
      %s30 = sphi 0, %s32
      %s33 = sphi 0, %s30
      %s34 = sphi 0, %s33
      %s50 = sphi 0, %s34
      %s54 = sphi 0, %s54
      %s56 = sphi 0, %s54
      %s57 = sphi 0, %s56
      %s71 = sphi 0, %s57
      %s75 = sphi 0, %s75
      %s77 = sphi 0, %s75
      %s78 = sphi 0, %s77
      %s92 = sphi 0, %s78
      %s96 = sphi 0, %s96
      %s98 = sphi 0, %s96
      %s99 = sphi 0, %s98
      %s113 = sphi 0, %s99
      %s117 = sphi 0, %s117
      %s119 = sphi 0, %s117
      %s120 = sphi 0, %s119
      %s134 = sphi 0, %s120
      %s138 = sphi 0, %s138
      %s140 = sphi 0, %s138
      %s141 = sphi 0, %s140
      %s155 = sphi 0, %s141
      %s159 = sphi 0, %s159
      %s161 = sphi 0, %s159
      %s162 = sphi 0, %s161
      %s176 = sphi 0, %s162
      %s180 = sphi 0, %s180
      %s182 = sphi 0, %s180
      %s183 = sphi 0, %s182
      %s197 = sphi 0, %s183
      %s201 = sphi 0, %s201
      %s203 = sphi 0, %s201
      %s204 = sphi 0, %s203
      %s218 = sphi 0, %s204
      %s222 = sphi 0, %s222
      %s224 = sphi 0, %s222
      %s225 = sphi 0, %s224
      %s239 = sphi 0, %s225
      %s243 = sphi 0, %s243
      %s245 = sphi 0, %s243
      %s246 = sphi 0, %s245
      %s260 = sphi 0, %s246
      %s266 = sphi 0, %s268
      %s269 = sphi 0, %s266
      %s270 = sphi 0, %s269
      %s286 = sphi 0, %s270
    $region4: #{attention_block.1} parent=1 // loop_header_branch
      %23 = sbr.rel (%p21) target = $region8
    $region5: #{attention_block.1} parent=1 // loop_body
      %s25 = ssub.s32 %s20, 1
      %s26 = ssub.s32 %s20, 2
      %s27 = sadd.s32 %s20, 1
      %s28 = ssub.s32 %s20, %s27
      %p29 = scmp.eq.s32.totalorder %s28, 0
      %s31 = sadd.s32 %s30, 1
      %s32 = scalar_select %p29, %s30, %s31
      %p35 = pneg %p29
      %p36 = scmp.eq.s32.totalorder %s20, 1
      %p37 = por %p35, %p36
      %p38 = scmp.ne.s32.totalorder %s30, %s33
      %p39 = scmp.eq.s32.totalorder %s20, 0
      %p40 = por %p38, %p39
      %p41 = scmp.ne.s32.totalorder %s30, %s33
      %p42 = scmp.eq.s32.totalorder %s25, 1
      %p43 = por %p41, %p42
      %p44 = scmp.ne.s32.totalorder %s33, %s34
      %p45 = scmp.eq.s32.totalorder %s25, 0
      %p46 = por %p44, %p45
      %p47 = scmp.ne.s32.totalorder %s33, %s34
      %p48 = scmp.eq.s32.totalorder %s26, 1
      %p49 = por %p47, %p48
      %p51 = scmp.ne.s32.totalorder %s34, %s50
      %p52 = scmp.eq.s32.totalorder %s26, 0
      %p53 = por %p51, %p52
      %s55 = sadd.s32 %s54, 1
      %p58 = scmp.eq.s32.totalorder %s20, 1
      %p59 = scmp.ne.s32.totalorder %s54, %s56
      %p60 = scmp.eq.s32.totalorder %s20, 0
      %p61 = por %p59, %p60
      %p62 = scmp.ne.s32.totalorder %s54, %s56
      %p63 = scmp.eq.s32.totalorder %s25, 1
      %p64 = por %p62, %p63
      %p65 = scmp.ne.s32.totalorder %s56, %s57
      %p66 = scmp.eq.s32.totalorder %s25, 0
      %p67 = por %p65, %p66
      %p68 = scmp.ne.s32.totalorder %s56, %s57
      %p69 = scmp.eq.s32.totalorder %s26, 1
      %p70 = por %p68, %p69
      %p72 = scmp.ne.s32.totalorder %s57, %s71
      %p73 = scmp.eq.s32.totalorder %s26, 0
      %p74 = por %p72, %p73
      %s76 = sadd.s32 %s75, 1
      %p79 = scmp.eq.s32.totalorder %s20, 1
      %p80 = scmp.ne.s32.totalorder %s75, %s77
      %p81 = scmp.eq.s32.totalorder %s20, 0
      %p82 = por %p80, %p81
      %p83 = scmp.ne.s32.totalorder %s75, %s77
      %p84 = scmp.eq.s32.totalorder %s25, 1
      %p85 = por %p83, %p84
      %p86 = scmp.ne.s32.totalorder %s77, %s78
      %p87 = scmp.eq.s32.totalorder %s25, 0
      %p88 = por %p86, %p87
      %p89 = scmp.ne.s32.totalorder %s77, %s78
      %p90 = scmp.eq.s32.totalorder %s26, 1
      %p91 = por %p89, %p90
      %p93 = scmp.ne.s32.totalorder %s78, %s92
      %p94 = scmp.eq.s32.totalorder %s26, 0
      %p95 = por %p93, %p94
      %s97 = sadd.s32 %s96, 1
      %p100 = scmp.eq.s32.totalorder %s20, 1
      %p101 = scmp.ne.s32.totalorder %s96, %s98
      %p102 = scmp.eq.s32.totalorder %s20, 0
      %p103 = por %p101, %p102
      %p104 = scmp.ne.s32.totalorder %s96, %s98
      %p105 = scmp.eq.s32.totalorder %s25, 1
      %p106 = por %p104, %p105
      %p107 = scmp.ne.s32.totalorder %s98, %s99
      %p108 = scmp.eq.s32.totalorder %s25, 0
      %p109 = por %p107, %p108
      %p110 = scmp.ne.s32.totalorder %s98, %s99
      %p111 = scmp.eq.s32.totalorder %s26, 1
      %p112 = por %p110, %p111
      %p114 = scmp.ne.s32.totalorder %s99, %s113
      %p115 = scmp.eq.s32.totalorder %s26, 0
      %p116 = por %p114, %p115
      %s118 = sadd.s32 %s117, 1
      %p121 = scmp.eq.s32.totalorder %s20, 1
      %p122 = scmp.ne.s32.totalorder %s117, %s119
      %p123 = scmp.eq.s32.totalorder %s20, 0
      %p124 = por %p122, %p123
      %p125 = scmp.ne.s32.totalorder %s117, %s119
      %p126 = scmp.eq.s32.totalorder %s25, 1
      %p127 = por %p125, %p126
      %p128 = scmp.ne.s32.totalorder %s119, %s120
      %p129 = scmp.eq.s32.totalorder %s25, 0
      %p130 = por %p128, %p129
      %p131 = scmp.ne.s32.totalorder %s119, %s120
      %p132 = scmp.eq.s32.totalorder %s26, 1
      %p133 = por %p131, %p132
      %p135 = scmp.ne.s32.totalorder %s120, %s134
      %p136 = scmp.eq.s32.totalorder %s26, 0
      %p137 = por %p135, %p136
      %s139 = sadd.s32 %s138, 1
      %p142 = scmp.eq.s32.totalorder %s20, 1
      %p143 = scmp.ne.s32.totalorder %s138, %s140
      %p144 = scmp.eq.s32.totalorder %s20, 0
      %p145 = por %p143, %p144
      %p146 = scmp.ne.s32.totalorder %s138, %s140
      %p147 = scmp.eq.s32.totalorder %s25, 1
      %p148 = por %p146, %p147
      %p149 = scmp.ne.s32.totalorder %s140, %s141
      %p150 = scmp.eq.s32.totalorder %s25, 0
      %p151 = por %p149, %p150
      %p152 = scmp.ne.s32.totalorder %s140, %s141
      %p153 = scmp.eq.s32.totalorder %s26, 1
      %p154 = por %p152, %p153
      %p156 = scmp.ne.s32.totalorder %s141, %s155
      %p157 = scmp.eq.s32.totalorder %s26, 0
      %p158 = por %p156, %p157
      %s160 = sadd.s32 %s159, 1
      %p163 = scmp.eq.s32.totalorder %s20, 1
      %p164 = scmp.ne.s32.totalorder %s159, %s161
      %p165 = scmp.eq.s32.totalorder %s20, 0
      %p166 = por %p164, %p165
      %p167 = scmp.ne.s32.totalorder %s159, %s161
      %p168 = scmp.eq.s32.totalorder %s25, 1
      %p169 = por %p167, %p168
      %p170 = scmp.ne.s32.totalorder %s161, %s162
      %p171 = scmp.eq.s32.totalorder %s25, 0
      %p172 = por %p170, %p171
      %p173 = scmp.ne.s32.totalorder %s161, %s162
      %p174 = scmp.eq.s32.totalorder %s26, 1
      %p175 = por %p173, %p174
      %p177 = scmp.ne.s32.totalorder %s162, %s176
      %p178 = scmp.eq.s32.totalorder %s26, 0
      %p179 = por %p177, %p178
      %s181 = sadd.s32 %s180, 1
      %p184 = scmp.eq.s32.totalorder %s20, 1
      %p185 = scmp.ne.s32.totalorder %s180, %s182
      %p186 = scmp.eq.s32.totalorder %s20, 0
      %p187 = por %p185, %p186
      %p188 = scmp.ne.s32.totalorder %s180, %s182
      %p189 = scmp.eq.s32.totalorder %s25, 1
      %p190 = por %p188, %p189
      %p191 = scmp.ne.s32.totalorder %s182, %s183
      %p192 = scmp.eq.s32.totalorder %s25, 0
      %p193 = por %p191, %p192
      %p194 = scmp.ne.s32.totalorder %s182, %s183
      %p195 = scmp.eq.s32.totalorder %s26, 1
      %p196 = por %p194, %p195
      %p198 = scmp.ne.s32.totalorder %s183, %s197
      %p199 = scmp.eq.s32.totalorder %s26, 0
      %p200 = por %p198, %p199
      %s202 = sadd.s32 %s201, 1
      %p205 = scmp.eq.s32.totalorder %s20, 1
      %p206 = scmp.ne.s32.totalorder %s201, %s203
      %p207 = scmp.eq.s32.totalorder %s20, 0
      %p208 = por %p206, %p207
      %p209 = scmp.ne.s32.totalorder %s201, %s203
      %p210 = scmp.eq.s32.totalorder %s25, 1
      %p211 = por %p209, %p210
      %p212 = scmp.ne.s32.totalorder %s203, %s204
      %p213 = scmp.eq.s32.totalorder %s25, 0
      %p214 = por %p212, %p213
      %p215 = scmp.ne.s32.totalorder %s203, %s204
      %p216 = scmp.eq.s32.totalorder %s26, 1
      %p217 = por %p215, %p216
      %p219 = scmp.ne.s32.totalorder %s204, %s218
      %p220 = scmp.eq.s32.totalorder %s26, 0
      %p221 = por %p219, %p220
      %s223 = sadd.s32 %s222, 1
      %p226 = scmp.eq.s32.totalorder %s20, 1
      %p227 = scmp.ne.s32.totalorder %s222, %s224
      %p228 = scmp.eq.s32.totalorder %s20, 0
      %p229 = por %p227, %p228
      %p230 = scmp.ne.s32.totalorder %s222, %s224
      %p231 = scmp.eq.s32.totalorder %s25, 1
      %p232 = por %p230, %p231
      %p233 = scmp.ne.s32.totalorder %s224, %s225
      %p234 = scmp.eq.s32.totalorder %s25, 0
      %p235 = por %p233, %p234
      %p236 = scmp.ne.s32.totalorder %s224, %s225
      %p237 = scmp.eq.s32.totalorder %s26, 1
      %p238 = por %p236, %p237
      %p240 = scmp.ne.s32.totalorder %s225, %s239
      %p241 = scmp.eq.s32.totalorder %s26, 0
      %p242 = por %p240, %p241
      %s244 = sadd.s32 %s243, 1
      %p247 = scmp.eq.s32.totalorder %s20, 1
      %p248 = scmp.ne.s32.totalorder %s243, %s245
      %p249 = scmp.eq.s32.totalorder %s20, 0
      %p250 = por %p248, %p249
      %p251 = scmp.ne.s32.totalorder %s243, %s245
      %p252 = scmp.eq.s32.totalorder %s25, 1
      %p253 = por %p251, %p252
      %p254 = scmp.ne.s32.totalorder %s245, %s246
      %p255 = scmp.eq.s32.totalorder %s25, 0
      %p256 = por %p254, %p255
      %p257 = scmp.ne.s32.totalorder %s245, %s246
      %p258 = scmp.eq.s32.totalorder %s26, 1
      %p259 = por %p257, %p258
      %p261 = scmp.ne.s32.totalorder %s246, %s260
      %p262 = scmp.eq.s32.totalorder %s26, 0
      %p263 = por %p261, %p262
      %s264 = ssub.s32 %s20, %s27
      %p265 = scmp.eq.s32.totalorder %s264, 0
      %s267 = sadd.s32 %s266, 1
      %s268 = scalar_select %p265, %s266, %s267
      %p271 = pneg %p265
      %p272 = scmp.eq.s32.totalorder %s20, 1
      %p273 = por %p271, %p272
      %p274 = scmp.ne.s32.totalorder %s266, %s269
      %p275 = scmp.eq.s32.totalorder %s20, 0
      %p276 = por %p274, %p275
      %p277 = scmp.ne.s32.totalorder %s266, %s269
      %p278 = scmp.eq.s32.totalorder %s25, 1
      %p279 = por %p277, %p278
      %p280 = scmp.ne.s32.totalorder %s269, %s270
      %p281 = scmp.eq.s32.totalorder %s25, 0
      %p282 = por %p280, %p281
      %p283 = scmp.ne.s32.totalorder %s269, %s270
      %p284 = scmp.eq.s32.totalorder %s26, 1
      %p285 = por %p283, %p284
      %p287 = scmp.ne.s32.totalorder %s270, %s286
      %p288 = scmp.eq.s32.totalorder %s26, 0
      %p289 = por %p287, %p288
      %p290 = scmp.le.s32.totalorder 1, %s20
      %p291 = scmp.lt.s32.totalorder %s20, 3
      %p292 = pnand %p290, %p291
      %p293 = pneg %p292
      // Predicated region
      $region9: #{attention_block.1} parent=5 // pred_check
        _
      $region10: #{attention_block.1} parent=5 // pred_check_branch
        %295 = sbr.rel (%p292) target = $region12
      $region11: #{attention_block.1} parent=5 // pred_region
        %s296 = ssub.s32 %s20, 1
        // Predicated region
        $region13: #{attention_block.1} parent=11 // pred_check
          %p297 = pneg %p67
        $region14: #{attention_block.1} parent=11 // pred_check_branch
          %299 = sbr.rel (%p297) target = $region16
        $region15: #{attention_block.1} parent=11 // pred_region
          _
        $region16: #{attention_block.1} parent=11 // pred_fallthru
          _
        // Predicated region
        $region17: #{attention_block.1} parent=11 // pred_check
          %p300 = pneg %p88
        $region18: #{attention_block.1} parent=11 // pred_check_branch
          %302 = sbr.rel (%p300) target = $region20
        $region19: #{attention_block.1} parent=11 // pred_region
          _
        $region20: #{attention_block.1} parent=11 // pred_fallthru
          _
        // Predicated region
        $region21: #{attention_block.1} parent=11 // pred_check
          %p303 = pneg %p109
        $region22: #{attention_block.1} parent=11 // pred_check_branch
          %305 = sbr.rel (%p303) target = $region24
        $region23: #{attention_block.1} parent=11 // pred_region
          _
        $region24: #{attention_block.1} parent=11 // pred_fallthru
          _
        // Predicated region
        $region25: #{attention_block.1} parent=11 // pred_check
          %p306 = pneg %p130
        $region26: #{attention_block.1} parent=11 // pred_check_branch
          %308 = sbr.rel (%p306) target = $region28
        $region27: #{attention_block.1} parent=11 // pred_region
          _
        $region28: #{attention_block.1} parent=11 // pred_fallthru
          _
        // Predicated region
        $region29: #{attention_block.1} parent=11 // pred_check
          %p309 = pneg %p151
        $region30: #{attention_block.1} parent=11 // pred_check_branch
          %311 = sbr.rel (%p309) target = $region32
        $region31: #{attention_block.1} parent=11 // pred_region
          _
        $region32: #{attention_block.1} parent=11 // pred_fallthru
          _
        // Predicated region
        $region33: #{attention_block.1} parent=11 // pred_check
          %p312 = pneg %p172
        $region34: #{attention_block.1} parent=11 // pred_check_branch
          %314 = sbr.rel (%p312) target = $region36
        $region35: #{attention_block.1} parent=11 // pred_region
          _
        $region36: #{attention_block.1} parent=11 // pred_fallthru
          _
        // Predicated region
        $region37: #{attention_block.1} parent=11 // pred_check
          %p315 = pneg %p193
        $region38: #{attention_block.1} parent=11 // pred_check_branch
          %317 = sbr.rel (%p315) target = $region40
        $region39: #{attention_block.1} parent=11 // pred_region
          _
        $region40: #{attention_block.1} parent=11 // pred_fallthru
          _
        // Predicated region
        $region41: #{attention_block.1} parent=11 // pred_check
          %p318 = pneg %p214
        $region42: #{attention_block.1} parent=11 // pred_check_branch
          %320 = sbr.rel (%p318) target = $region44
        $region43: #{attention_block.1} parent=11 // pred_region
          _
        $region44: #{attention_block.1} parent=11 // pred_fallthru
          _
        // Predicated region
        $region45: #{attention_block.1} parent=11 // pred_check
          %p321 = pneg %p235
        $region46: #{attention_block.1} parent=11 // pred_check_branch
          %323 = sbr.rel (%p321) target = $region48
        $region47: #{attention_block.1} parent=11 // pred_region
          _
        $region48: #{attention_block.1} parent=11 // pred_fallthru
          _
        // Predicated region
        $region49: #{attention_block.1} parent=11 // pred_check
          %p324 = pneg %p256
        $region50: #{attention_block.1} parent=11 // pred_check_branch
          %326 = sbr.rel (%p324) target = $region52
        $region51: #{attention_block.1} parent=11 // pred_region
          _
        $region52: #{attention_block.1} parent=11 // pred_fallthru
          _
      $region12: #{attention_block.1} parent=5 // pred_fallthru
        _
      %p327 = scmp.lt.s32.totalorder %s20, 2
      // Predicated region
      $region53: #{attention_block.1} parent=5 // pred_check
        %p328 = pneg %p327
      $region54: #{attention_block.1} parent=5 // pred_check_branch
        %330 = sbr.rel (%p328) target = $region56
      $region55: #{attention_block.1} parent=5 // pred_region
        // Predicated region
        $region57: #{attention_block.1} parent=55 // pred_check
          %p331 = pneg %p40
        $region58: #{attention_block.1} parent=55 // pred_check_branch
          %333 = sbr.rel (%p331) target = $region60
        $region59: #{attention_block.1} parent=55 // pred_region
          %p334 = scmp.lt.s32.totalorder %s20, 1
          %s335 = scalar_select %p334, %s20, 1
          %s336 = smul.addr %s335, 8
          %s337 = scalar_lea.vmem %s0, %s336
        $region60: #{attention_block.1} parent=55 // pred_fallthru
          _
      $region56: #{attention_block.1} parent=5 // pred_fallthru
        _
      %p338 = scmp.le.s32.totalorder 1, %s20
      %p339 = scmp.lt.s32.totalorder %s20, 3
      %p340 = pnand %p338, %p339
      %p341 = pneg %p340
      // Predicated region
      $region61: #{attention_block.1} parent=5 // pred_check
        _
      $region62: #{attention_block.1} parent=5 // pred_check_branch
        %343 = sbr.rel (%p340) target = $region64
      $region63: #{attention_block.1} parent=5 // pred_region
        %s344 = ssub.s32 %s20, 1
        %p345 = scmp.lt.s32.totalorder %s25, 1
        %s346 = scalar_select %p345, %s25, 1
        %s347 = smul.addr %s346, 8
        %s348 = scalar_lea.vmem %s0, %s347
        %p349 = pneg %p46
        %p350 = pneg %p43
        %p351 = pneg %p67
        %p352 = pneg %p64
        %p353 = pneg %p88
        %p354 = pneg %p85
        %p355 = pneg %p109
        %p356 = pneg %p106
        %p357 = pneg %p130
        %p358 = pneg %p127
        %p359 = pneg %p151
        %p360 = pneg %p148
        %p361 = pneg %p172
        %p362 = pneg %p169
        %p363 = pneg %p193
        %p364 = pneg %p190
        %p365 = pneg %p214
        %p366 = pneg %p211
        %p367 = pneg %p235
        %p368 = pneg %p232
        %p369 = pneg %p256
        %p370 = pneg %p253
        %p371 = pneg %p282
        %p372 = pneg %p279
        %s373 = sand.u32 %s269, 1
        %s374 = scalar_lea.sflag [#allocation3], %s373
        %s375 = sand.u32 %s269, 1
        %s376 = smul.addr %s375, 8
        %s377 = scalar_lea.vmem [#allocation2], %s376
        %p378 = scmp.lt.s32.totalorder %s25, 1
        %s379 = scalar_select %p378, %s25, 1
        %s380 = smul.addr %s379, 8
        %s381 = scalar_lea.vmem %s0, %s380
        %v382 = vld [vmem:[%s381] sm:$0xff]
        %v383 = vld [vmem:[%s9] sm:$0xff]
        %v384 = vld [vmem:[%s10] sm:$0xff]
        %v385 = vld [vmem:[%s1] sm:$0x1]
        %v386 = vmul.f32 %v382, %v382
        %vm387 = vcmask 261120
        %v388 = vsel %vm387, %v386, 0.0
        %389 = vadd.xlane.f32.xlu0 %v388
        %v390 = vpop.xlane.xlu0 %389
        %v391 = vrcp.pop 32.0
        %v392 = vmul.f32 %v390, %v391
        %v393 = vadd.f32 %v392, 1e-06
        %v394 = vrsqrt.pop %v393
        %v395 = vmul.f32 %v382, %v394
        %v397 = vlaneseq
        %v398 = vshrl.u32 %v397, 7
        %v399 = vsub.s32 0, %v398
        %v400 = vrot.slane %v385, %v399
        %v402 = vmul.f32 %v395, %v400
        %v403 = vld [vmem:[%s4] sm:$0xff]
        %v404 = vld [vmem:[%s4 + $0x8] sm:$0xff]
        %v405 = vld [vmem:[%s4 + $0x10] sm:$0xff]
        %v406 = vld [vmem:[%s4 + $0x18] sm:$0xff]
        %v408 = vsel %vm387, %v402, 0
        %410 = vmatprep.subr.mxu0 0.0
        %411 = vmatpush1.msra.mxu0 0.0
        %412 = vmatprep.subr.mxu0 0.0
        %413 = vmatpush1.msra.mxu0 0.0
        %414 = vmatprep.subr.mxu0 0.0
        %415 = vmatpush1.msra.mxu0 0.0
        %416 = vmatprep.subr.mxu0 0.0
        %417 = vmatpush1.msra.mxu0 0.0
        %418 = vmatprep.subr.mxu0 0.0
        %419 = vmatpush1.msra.mxu0 0.0
        %420 = vmatprep.subr.mxu0 0.0
        %421 = vmatpush1.msra.mxu0 0.0
        %422 = vmatprep.subr.mxu0 0.0
        %423 = vmatpush1.msra.mxu0 0.0
        %424 = vmatprep.subr.mxu0 0.0
        %425 = vmatpush1.msra.mxu0 0.0
        %426 = vmatprep.subr.mxu0 0.0
        %427 = vmatpush1.msra.mxu0 0.0
        %428 = vmatprep.subr.mxu0 0.0
        %429 = vmatpush1.msra.mxu0 0.0
        %430 = vmatprep.subr.mxu0 0.0
        %431 = vmatpush1.msra.mxu0 0.0
        %432 = vmatprep.subr.mxu0 0.0
        %433 = vmatpush1.msra.mxu0 0.0
        %434 = vmatprep.subr.mxu0 0.0
        %v435 = vand.u32 %v406, 4294901760
        %436 = vmatpush1.msra.mxu0 %v435
        %437 = vmatprep.subr.mxu0 0.0
        %v438 = vand.u32 %v405, 4294901760
        %439 = vmatpush1.msra.mxu0 %v438
        %440 = vmatprep.subr.mxu0 0.0
        %v441 = vand.u32 %v404, 4294901760
        %442 = vmatpush1.msra.mxu0 %v441
        %443 = vmatprep.subr.mxu0 0.0
        %v444 = vand.u32 %v403, 4294901760
        %445 = vmatpush1.msra.mxu0 %v444
        %446 = vmatprep.subr.mxu0 0.0
        %447 = vmatpush2.msra.mxu0 0.0
        %448 = vmatprep.subr.mxu0 0.0
        %449 = vmatpush2.msra.mxu0 0.0
        %450 = vmatprep.subr.mxu0 0.0
        %451 = vmatpush2.msra.mxu0 0.0
        %452 = vmatprep.subr.mxu0 0.0
        %453 = vmatpush2.msra.mxu0 0.0
        %454 = vmatprep.subr.mxu0 0.0
        %455 = vmatpush2.msra.mxu0 0.0
        %456 = vmatprep.subr.mxu0 0.0
        %457 = vmatpush2.msra.mxu0 0.0
        %458 = vmatprep.subr.mxu0 0.0
        %459 = vmatpush2.msra.mxu0 0.0
        %460 = vmatprep.subr.mxu0 0.0
        %461 = vmatpush2.msra.mxu0 0.0
        %462 = vmatprep.subr.mxu0 0.0
        %463 = vmatpush2.msra.mxu0 0.0
        %464 = vmatprep.subr.mxu0 0.0
        %465 = vmatpush2.msra.mxu0 0.0
        %466 = vmatprep.subr.mxu0 0.0
        %467 = vmatpush2.msra.mxu0 0.0
        %468 = vmatprep.subr.mxu0 0.0
        %469 = vmatpush2.msra.mxu0 0.0
        %470 = vmatprep.subr.mxu0 0.0
        %471 = vmatpush2.msra.mxu0 0.0
        %472 = vmatprep.subr.mxu0 0.0
        %473 = vmatpush2.msra.mxu0 0.0
        %474 = vmatprep.subr.mxu0 0.0
        %475 = vmatpush2.msra.mxu0 0.0
        %476 = vmatprep.subr.mxu0 0.0
        %477 = vmatpush2.msra.mxu0 0.0
        %478 = vmatprep.mubr.f32.mxu0 0.0
        %v479 = vand.u32 %v408, 4294901760
        %v480 = vsub.f32 %v408, %v479
        %v481 = vand.u32 %v480, 4294901760
        %v482 = vsub.f32 %v480, %v481
        %v483 = vand.u32 %v482, 4294901760
        %484 = vmatmul.mubr.f32.gmra.mxu0 %v483
        %v485 = vpop.f32.mrf.mxu0
        %v486 = vadd.f32 0.0, %v485
        %v487 = vpop.f32.mrf.mxu0
        %488 = vdwg.mxu0
        %489 = vmatprep.subr.mxu0 0.0
        %490 = vmatpush1.msra.mxu0 0.0
        %491 = vmatprep.subr.mxu0 0.0
        %492 = vmatpush1.msra.mxu0 0.0
        %493 = vmatprep.subr.mxu0 0.0
        %494 = vmatpush1.msra.mxu0 0.0
        %495 = vmatprep.subr.mxu0 0.0
        %496 = vmatpush1.msra.mxu0 0.0
        %497 = vmatprep.subr.mxu0 0.0
        %498 = vmatpush1.msra.mxu0 0.0
        %499 = vmatprep.subr.mxu0 0.0
        %500 = vmatpush1.msra.mxu0 0.0
        %501 = vmatprep.subr.mxu0 0.0
        %502 = vmatpush1.msra.mxu0 0.0
        %503 = vmatprep.subr.mxu0 0.0
        %504 = vmatpush1.msra.mxu0 0.0
        %505 = vmatprep.subr.mxu0 0.0
        %506 = vmatpush1.msra.mxu0 0.0
        %507 = vmatprep.subr.mxu0 0.0
        %508 = vmatpush1.msra.mxu0 0.0
        %509 = vmatprep.subr.mxu0 0.0
        %510 = vmatpush1.msra.mxu0 0.0
        %511 = vmatprep.subr.mxu0 0.0
        %512 = vmatpush1.msra.mxu0 0.0
        %513 = vmatprep.subr.mxu0 0.0
        %v514 = vand.u32 %v406, 4294901760
        %v515 = vsub.f32 %v406, %v514
        %v516 = vand.u32 %v515, 4294901760
        %v517 = vsub.f32 %v515, %v516
        %v518 = vand.u32 %v517, 4294901760
        %519 = vmatpush1.msra.mxu0 %v518
        %520 = vmatprep.subr.mxu0 0.0
        %v521 = vand.u32 %v405, 4294901760
        %v522 = vsub.f32 %v405, %v521
        %v523 = vand.u32 %v522, 4294901760
        %v524 = vsub.f32 %v522, %v523
        %v525 = vand.u32 %v524, 4294901760
        %526 = vmatpush1.msra.mxu0 %v525
        %527 = vmatprep.subr.mxu0 0.0
        %v528 = vand.u32 %v404, 4294901760
        %v529 = vsub.f32 %v404, %v528
        %v530 = vand.u32 %v529, 4294901760
        %v531 = vsub.f32 %v529, %v530
        %v532 = vand.u32 %v531, 4294901760
        %533 = vmatpush1.msra.mxu0 %v532
        %534 = vmatprep.subr.mxu0 0.0
        %v535 = vand.u32 %v403, 4294901760
        %v536 = vsub.f32 %v403, %v535
        %v537 = vand.u32 %v536, 4294901760
        %v538 = vsub.f32 %v536, %v537
        %v539 = vand.u32 %v538, 4294901760
        %540 = vmatpush1.msra.mxu0 %v539
        %541 = vmatprep.subr.mxu0 0.0
        %542 = vmatpush2.msra.mxu0 0.0
        %543 = vmatprep.subr.mxu0 0.0
        %544 = vmatpush2.msra.mxu0 0.0
        %545 = vmatprep.subr.mxu0 0.0
        %546 = vmatpush2.msra.mxu0 0.0
        %547 = vmatprep.subr.mxu0 0.0
        %548 = vmatpush2.msra.mxu0 0.0
        %549 = vmatprep.subr.mxu0 0.0
        %550 = vmatpush2.msra.mxu0 0.0
        %551 = vmatprep.subr.mxu0 0.0
        %552 = vmatpush2.msra.mxu0 0.0
        %553 = vmatprep.subr.mxu0 0.0
        %554 = vmatpush2.msra.mxu0 0.0
        %555 = vmatprep.subr.mxu0 0.0
        %556 = vmatpush2.msra.mxu0 0.0
        %557 = vmatprep.subr.mxu0 0.0
        %558 = vmatpush2.msra.mxu0 0.0
        %559 = vmatprep.subr.mxu0 0.0
        %560 = vmatpush2.msra.mxu0 0.0
        %561 = vmatprep.subr.mxu0 0.0
        %562 = vmatpush2.msra.mxu0 0.0
        %563 = vmatprep.subr.mxu0 0.0
        %564 = vmatpush2.msra.mxu0 0.0
        %565 = vmatprep.subr.mxu0 0.0
        %566 = vmatpush2.msra.mxu0 0.0
        %567 = vmatprep.subr.mxu0 0.0
        %568 = vmatpush2.msra.mxu0 0.0
        %569 = vmatprep.subr.mxu0 0.0
        %570 = vmatpush2.msra.mxu0 0.0
        %571 = vmatprep.subr.mxu0 0.0
        %572 = vmatpush2.msra.mxu0 0.0
        %573 = vmatprep.mubr.f32.mxu0 0.0
        %v574 = vand.u32 %v408, 4294901760
        %575 = vmatmul.mubr.f32.gmra.mxu0 %v574
        %v576 = vpop.f32.mrf.mxu0
        %v577 = vadd.f32 %v486, %v576
        %v578 = vpop.f32.mrf.mxu0
        %579 = vdwg.mxu0
        %580 = vmatprep.subr.mxu0 0.0
        %581 = vmatpush1.msra.mxu0 0.0
        %582 = vmatprep.subr.mxu0 0.0
        %583 = vmatpush1.msra.mxu0 0.0
        %584 = vmatprep.subr.mxu0 0.0
        %585 = vmatpush1.msra.mxu0 0.0
        %586 = vmatprep.subr.mxu0 0.0
        %587 = vmatpush1.msra.mxu0 0.0
        %588 = vmatprep.subr.mxu0 0.0
        %589 = vmatpush1.msra.mxu0 0.0
        %590 = vmatprep.subr.mxu0 0.0
        %591 = vmatpush1.msra.mxu0 0.0
        %592 = vmatprep.subr.mxu0 0.0
        %593 = vmatpush1.msra.mxu0 0.0
        %594 = vmatprep.subr.mxu0 0.0
        %595 = vmatpush1.msra.mxu0 0.0
        %596 = vmatprep.subr.mxu0 0.0
        %597 = vmatpush1.msra.mxu0 0.0
        %598 = vmatprep.subr.mxu0 0.0
        %599 = vmatpush1.msra.mxu0 0.0
        %600 = vmatprep.subr.mxu0 0.0
        %601 = vmatpush1.msra.mxu0 0.0
        %602 = vmatprep.subr.mxu0 0.0
        %603 = vmatpush1.msra.mxu0 0.0
        %604 = vmatprep.subr.mxu0 0.0
        %v605 = vand.u32 %v406, 4294901760
        %v606 = vsub.f32 %v406, %v605
        %607 = vmatpush1.msra.mxu0 %v606
        %608 = vmatprep.subr.mxu0 0.0
        %v609 = vand.u32 %v405, 4294901760
        %v610 = vsub.f32 %v405, %v609
        %611 = vmatpush1.msra.mxu0 %v610
        %612 = vmatprep.subr.mxu0 0.0
        %v613 = vand.u32 %v404, 4294901760
        %v614 = vsub.f32 %v404, %v613
        %615 = vmatpush1.msra.mxu0 %v614
        %616 = vmatprep.subr.mxu0 0.0
        %v617 = vand.u32 %v403, 4294901760
        %v618 = vsub.f32 %v403, %v617
        %619 = vmatpush1.msra.mxu0 %v618
        %620 = vmatprep.subr.mxu0 0.0
        %621 = vmatpush2.msra.mxu0 0.0
        %622 = vmatprep.subr.mxu0 0.0
        %623 = vmatpush2.msra.mxu0 0.0
        %624 = vmatprep.subr.mxu0 0.0
        %625 = vmatpush2.msra.mxu0 0.0
        %626 = vmatprep.subr.mxu0 0.0
        %627 = vmatpush2.msra.mxu0 0.0
        %628 = vmatprep.subr.mxu0 0.0
        %629 = vmatpush2.msra.mxu0 0.0
        %630 = vmatprep.subr.mxu0 0.0
        %631 = vmatpush2.msra.mxu0 0.0
        %632 = vmatprep.subr.mxu0 0.0
        %633 = vmatpush2.msra.mxu0 0.0
        %634 = vmatprep.subr.mxu0 0.0
        %635 = vmatpush2.msra.mxu0 0.0
        %636 = vmatprep.subr.mxu0 0.0
        %637 = vmatpush2.msra.mxu0 0.0
        %638 = vmatprep.subr.mxu0 0.0
        %639 = vmatpush2.msra.mxu0 0.0
        %640 = vmatprep.subr.mxu0 0.0
        %641 = vmatpush2.msra.mxu0 0.0
        %642 = vmatprep.subr.mxu0 0.0
        %643 = vmatpush2.msra.mxu0 0.0
        %644 = vmatprep.subr.mxu0 0.0
        %645 = vmatpush2.msra.mxu0 0.0
        %646 = vmatprep.subr.mxu0 0.0
        %647 = vmatpush2.msra.mxu0 0.0
        %648 = vmatprep.subr.mxu0 0.0
        %649 = vmatpush2.msra.mxu0 0.0
        %650 = vmatprep.subr.mxu0 0.0
        %651 = vmatpush2.msra.mxu0 0.0
        %652 = vmatprep.mubr.f32.mxu0 0.0
        %v653 = vand.u32 %v408, 4294901760
        %v654 = vsub.f32 %v408, %v653
        %655 = vmatmul.mubr.f32.gmra.mxu0 %v654
        %v656 = vpop.f32.mrf.mxu0
        %v657 = vadd.f32 %v577, %v656
        %v658 = vpop.f32.mrf.mxu0
        %659 = vdwg.mxu0
        %660 = vmatprep.subr.mxu0 0.0
        %661 = vmatpush1.msra.mxu0 0.0
        %662 = vmatprep.subr.mxu0 0.0
        %663 = vmatpush1.msra.mxu0 0.0
        %664 = vmatprep.subr.mxu0 0.0
        %665 = vmatpush1.msra.mxu0 0.0
        %666 = vmatprep.subr.mxu0 0.0
        %667 = vmatpush1.msra.mxu0 0.0
        %668 = vmatprep.subr.mxu0 0.0
        %669 = vmatpush1.msra.mxu0 0.0
        %670 = vmatprep.subr.mxu0 0.0
        %671 = vmatpush1.msra.mxu0 0.0
        %672 = vmatprep.subr.mxu0 0.0
        %673 = vmatpush1.msra.mxu0 0.0
        %674 = vmatprep.subr.mxu0 0.0
        %675 = vmatpush1.msra.mxu0 0.0
        %676 = vmatprep.subr.mxu0 0.0
        %677 = vmatpush1.msra.mxu0 0.0
        %678 = vmatprep.subr.mxu0 0.0
        %679 = vmatpush1.msra.mxu0 0.0
        %680 = vmatprep.subr.mxu0 0.0
        %681 = vmatpush1.msra.mxu0 0.0
        %682 = vmatprep.subr.mxu0 0.0
        %683 = vmatpush1.msra.mxu0 0.0
        %684 = vmatprep.subr.mxu0 0.0
        %v685 = vand.u32 %v406, 4294901760
        %686 = vmatpush1.msra.mxu0 %v685
        %687 = vmatprep.subr.mxu0 0.0
        %v688 = vand.u32 %v405, 4294901760
        %689 = vmatpush1.msra.mxu0 %v688
        %690 = vmatprep.subr.mxu0 0.0
        %v691 = vand.u32 %v404, 4294901760
        %692 = vmatpush1.msra.mxu0 %v691
        %693 = vmatprep.subr.mxu0 0.0
        %v694 = vand.u32 %v403, 4294901760
        %695 = vmatpush1.msra.mxu0 %v694
        %696 = vmatprep.subr.mxu0 0.0
        %697 = vmatpush2.msra.mxu0 0.0
        %698 = vmatprep.subr.mxu0 0.0
        %699 = vmatpush2.msra.mxu0 0.0
        %700 = vmatprep.subr.mxu0 0.0
        %701 = vmatpush2.msra.mxu0 0.0
        %702 = vmatprep.subr.mxu0 0.0
        %703 = vmatpush2.msra.mxu0 0.0
        %704 = vmatprep.subr.mxu0 0.0
        %705 = vmatpush2.msra.mxu0 0.0
        %706 = vmatprep.subr.mxu0 0.0
        %707 = vmatpush2.msra.mxu0 0.0
        %708 = vmatprep.subr.mxu0 0.0
        %709 = vmatpush2.msra.mxu0 0.0
        %710 = vmatprep.subr.mxu0 0.0
        %711 = vmatpush2.msra.mxu0 0.0
        %712 = vmatprep.subr.mxu0 0.0
        %713 = vmatpush2.msra.mxu0 0.0
        %714 = vmatprep.subr.mxu0 0.0
        %715 = vmatpush2.msra.mxu0 0.0
        %716 = vmatprep.subr.mxu0 0.0
        %717 = vmatpush2.msra.mxu0 0.0
        %718 = vmatprep.subr.mxu0 0.0
        %719 = vmatpush2.msra.mxu0 0.0
        %720 = vmatprep.subr.mxu0 0.0
        %721 = vmatpush2.msra.mxu0 0.0
        %722 = vmatprep.subr.mxu0 0.0
        %723 = vmatpush2.msra.mxu0 0.0
        %724 = vmatprep.subr.mxu0 0.0
        %725 = vmatpush2.msra.mxu0 0.0
        %726 = vmatprep.subr.mxu0 0.0
        %727 = vmatpush2.msra.mxu0 0.0
        %728 = vmatprep.mubr.f32.mxu0 0.0
        %v729 = vand.u32 %v408, 4294901760
        %v730 = vsub.f32 %v408, %v729
        %v731 = vand.u32 %v730, 4294901760
        %732 = vmatmul.mubr.f32.gmra.mxu0 %v731
        %v733 = vpop.f32.mrf.mxu0
        %v734 = vadd.f32 %v657, %v733
        %v735 = vpop.f32.mrf.mxu0
        %736 = vdwg.mxu0
        %737 = vmatprep.subr.mxu0 0.0
        %738 = vmatpush1.msra.mxu0 0.0
        %739 = vmatprep.subr.mxu0 0.0
        %740 = vmatpush1.msra.mxu0 0.0
        %741 = vmatprep.subr.mxu0 0.0
        %742 = vmatpush1.msra.mxu0 0.0
        %743 = vmatprep.subr.mxu0 0.0
        %744 = vmatpush1.msra.mxu0 0.0
        %745 = vmatprep.subr.mxu0 0.0
        %746 = vmatpush1.msra.mxu0 0.0
        %747 = vmatprep.subr.mxu0 0.0
        %748 = vmatpush1.msra.mxu0 0.0
        %749 = vmatprep.subr.mxu0 0.0
        %750 = vmatpush1.msra.mxu0 0.0
        %751 = vmatprep.subr.mxu0 0.0
        %752 = vmatpush1.msra.mxu0 0.0
        %753 = vmatprep.subr.mxu0 0.0
        %754 = vmatpush1.msra.mxu0 0.0
        %755 = vmatprep.subr.mxu0 0.0
        %756 = vmatpush1.msra.mxu0 0.0
        %757 = vmatprep.subr.mxu0 0.0
        %758 = vmatpush1.msra.mxu0 0.0
        %759 = vmatprep.subr.mxu0 0.0
        %760 = vmatpush1.msra.mxu0 0.0
        %761 = vmatprep.subr.mxu0 0.0
        %v762 = vand.u32 %v406, 4294901760
        %v763 = vsub.f32 %v406, %v762
        %v764 = vand.u32 %v763, 4294901760
        %765 = vmatpush1.msra.mxu0 %v764
        %766 = vmatprep.subr.mxu0 0.0
        %v767 = vand.u32 %v405, 4294901760
        %v768 = vsub.f32 %v405, %v767
        %v769 = vand.u32 %v768, 4294901760
        %770 = vmatpush1.msra.mxu0 %v769
        %771 = vmatprep.subr.mxu0 0.0
        %v772 = vand.u32 %v404, 4294901760
        %v773 = vsub.f32 %v404, %v772
        %v774 = vand.u32 %v773, 4294901760
        %775 = vmatpush1.msra.mxu0 %v774
        %776 = vmatprep.subr.mxu0 0.0
        %v777 = vand.u32 %v403, 4294901760
        %v778 = vsub.f32 %v403, %v777
        %v779 = vand.u32 %v778, 4294901760
        %780 = vmatpush1.msra.mxu0 %v779
        %781 = vmatprep.subr.mxu0 0.0
        %782 = vmatpush2.msra.mxu0 0.0
        %783 = vmatprep.subr.mxu0 0.0
        %784 = vmatpush2.msra.mxu0 0.0
        %785 = vmatprep.subr.mxu0 0.0
        %786 = vmatpush2.msra.mxu0 0.0
        %787 = vmatprep.subr.mxu0 0.0
        %788 = vmatpush2.msra.mxu0 0.0
        %789 = vmatprep.subr.mxu0 0.0
        %790 = vmatpush2.msra.mxu0 0.0
        %791 = vmatprep.subr.mxu0 0.0
        %792 = vmatpush2.msra.mxu0 0.0
        %793 = vmatprep.subr.mxu0 0.0
        %794 = vmatpush2.msra.mxu0 0.0
        %795 = vmatprep.subr.mxu0 0.0
        %796 = vmatpush2.msra.mxu0 0.0
        %797 = vmatprep.subr.mxu0 0.0
        %798 = vmatpush2.msra.mxu0 0.0
        %799 = vmatprep.subr.mxu0 0.0
        %800 = vmatpush2.msra.mxu0 0.0
        %801 = vmatprep.subr.mxu0 0.0
        %802 = vmatpush2.msra.mxu0 0.0
        %803 = vmatprep.subr.mxu0 0.0
        %804 = vmatpush2.msra.mxu0 0.0
        %805 = vmatprep.subr.mxu0 0.0
        %806 = vmatpush2.msra.mxu0 0.0
        %807 = vmatprep.subr.mxu0 0.0
        %808 = vmatpush2.msra.mxu0 0.0
        %809 = vmatprep.subr.mxu0 0.0
        %810 = vmatpush2.msra.mxu0 0.0
        %811 = vmatprep.subr.mxu0 0.0
        %812 = vmatpush2.msra.mxu0 0.0
        %813 = vmatprep.mubr.f32.mxu0 0.0
        %v814 = vand.u32 %v408, 4294901760
        %815 = vmatmul.mubr.f32.gmra.mxu0 %v814
        %v816 = vpop.f32.mrf.mxu0
        %v817 = vadd.f32 %v734, %v816
        %v818 = vpop.f32.mrf.mxu0
        %819 = vdwg.mxu0
        %820 = vmatprep.subr.mxu0 0.0
        %821 = vmatpush1.msra.mxu0 0.0
        %822 = vmatprep.subr.mxu0 0.0
        %823 = vmatpush1.msra.mxu0 0.0
        %824 = vmatprep.subr.mxu0 0.0
        %825 = vmatpush1.msra.mxu0 0.0
        %826 = vmatprep.subr.mxu0 0.0
        %827 = vmatpush1.msra.mxu0 0.0
        %828 = vmatprep.subr.mxu0 0.0
        %829 = vmatpush1.msra.mxu0 0.0
        %830 = vmatprep.subr.mxu0 0.0
        %831 = vmatpush1.msra.mxu0 0.0
        %832 = vmatprep.subr.mxu0 0.0
        %833 = vmatpush1.msra.mxu0 0.0
        %834 = vmatprep.subr.mxu0 0.0
        %835 = vmatpush1.msra.mxu0 0.0
        %836 = vmatprep.subr.mxu0 0.0
        %837 = vmatpush1.msra.mxu0 0.0
        %838 = vmatprep.subr.mxu0 0.0
        %839 = vmatpush1.msra.mxu0 0.0
        %840 = vmatprep.subr.mxu0 0.0
        %841 = vmatpush1.msra.mxu0 0.0
        %842 = vmatprep.subr.mxu0 0.0
        %843 = vmatpush1.msra.mxu0 0.0
        %844 = vmatprep.subr.mxu0 0.0
        %v845 = vand.u32 %v406, 4294901760
        %846 = vmatpush1.msra.mxu0 %v845
        %847 = vmatprep.subr.mxu0 0.0
        %v848 = vand.u32 %v405, 4294901760
        %849 = vmatpush1.msra.mxu0 %v848
        %850 = vmatprep.subr.mxu0 0.0
        %v851 = vand.u32 %v404, 4294901760
        %852 = vmatpush1.msra.mxu0 %v851
        %853 = vmatprep.subr.mxu0 0.0
        %v854 = vand.u32 %v403, 4294901760
        %855 = vmatpush1.msra.mxu0 %v854
        %856 = vmatprep.subr.mxu0 0.0
        %857 = vmatpush2.msra.mxu0 0.0
        %858 = vmatprep.subr.mxu0 0.0
        %859 = vmatpush2.msra.mxu0 0.0
        %860 = vmatprep.subr.mxu0 0.0
        %861 = vmatpush2.msra.mxu0 0.0
        %862 = vmatprep.subr.mxu0 0.0
        %863 = vmatpush2.msra.mxu0 0.0
        %864 = vmatprep.subr.mxu0 0.0
        %865 = vmatpush2.msra.mxu0 0.0
        %866 = vmatprep.subr.mxu0 0.0
        %867 = vmatpush2.msra.mxu0 0.0
        %868 = vmatprep.subr.mxu0 0.0
        %869 = vmatpush2.msra.mxu0 0.0
        %870 = vmatprep.subr.mxu0 0.0
        %871 = vmatpush2.msra.mxu0 0.0
        %872 = vmatprep.subr.mxu0 0.0
        %873 = vmatpush2.msra.mxu0 0.0
        %874 = vmatprep.subr.mxu0 0.0
        %875 = vmatpush2.msra.mxu0 0.0
        %876 = vmatprep.subr.mxu0 0.0
        %877 = vmatpush2.msra.mxu0 0.0
        %878 = vmatprep.subr.mxu0 0.0
        %879 = vmatpush2.msra.mxu0 0.0
        %880 = vmatprep.subr.mxu0 0.0
        %881 = vmatpush2.msra.mxu0 0.0
        %882 = vmatprep.subr.mxu0 0.0
        %883 = vmatpush2.msra.mxu0 0.0
        %884 = vmatprep.subr.mxu0 0.0
        %885 = vmatpush2.msra.mxu0 0.0
        %886 = vmatprep.subr.mxu0 0.0
        %887 = vmatpush2.msra.mxu0 0.0
        %888 = vmatprep.mubr.f32.mxu0 0.0
        %v889 = vand.u32 %v408, 4294901760
        %890 = vmatmul.mubr.f32.gmra.mxu0 %v889
        %v891 = vpop.f32.mrf.mxu0
        %v892 = vadd.f32 %v817, %v891
        %v893 = vpop.f32.mrf.mxu0
        %894 = vdwg.mxu0
        %896 = vrot.lane.b32.xlu0 %v892, 124
        %v897 = vpop.permute.xlu0 %896
        %899 = vrot.lane.b32.xlu0 %v892, 4
        %v900 = vpop.permute.xlu0 %899
        %vm902 = vcmask 31744
        %v903 = vsel %vm902, %v897, %v900
        %v904 = vmul.f32 %v892, %v383
        %v905 = vmul.f32 %v903, %v384
        %v906 = vadd.f32 %v904, %v905
        %v907 = vld [vmem:[%s5] sm:$0xff]
        %v908 = vld [vmem:[%s5 + $0x8] sm:$0xff]
        %v909 = vld [vmem:[%s5 + $0x10] sm:$0xff]
        %v910 = vld [vmem:[%s5 + $0x18] sm:$0xff]
        %911 = vmatprep.subr.mxu0 0.0
        %912 = vmatpush1.msra.mxu0 0.0
        %913 = vmatprep.subr.mxu0 0.0
        %914 = vmatpush1.msra.mxu0 0.0
        %915 = vmatprep.subr.mxu0 0.0
        %916 = vmatpush1.msra.mxu0 0.0
        %917 = vmatprep.subr.mxu0 0.0
        %918 = vmatpush1.msra.mxu0 0.0
        %919 = vmatprep.subr.mxu0 0.0
        %920 = vmatpush1.msra.mxu0 0.0
        %921 = vmatprep.subr.mxu0 0.0
        %922 = vmatpush1.msra.mxu0 0.0
        %923 = vmatprep.subr.mxu0 0.0
        %924 = vmatpush1.msra.mxu0 0.0
        %925 = vmatprep.subr.mxu0 0.0
        %926 = vmatpush1.msra.mxu0 0.0
        %927 = vmatprep.subr.mxu0 0.0
        %928 = vmatpush1.msra.mxu0 0.0
        %929 = vmatprep.subr.mxu0 0.0
        %930 = vmatpush1.msra.mxu0 0.0
        %931 = vmatprep.subr.mxu0 0.0
        %932 = vmatpush1.msra.mxu0 0.0
        %933 = vmatprep.subr.mxu0 0.0
        %934 = vmatpush1.msra.mxu0 0.0
        %935 = vmatprep.subr.mxu0 0.0
        %v936 = vand.u32 %v910, 4294901760
        %937 = vmatpush1.msra.mxu0 %v936
        %938 = vmatprep.subr.mxu0 0.0
        %v939 = vand.u32 %v909, 4294901760
        %940 = vmatpush1.msra.mxu0 %v939
        %941 = vmatprep.subr.mxu0 0.0
        %v942 = vand.u32 %v908, 4294901760
        %943 = vmatpush1.msra.mxu0 %v942
        %944 = vmatprep.subr.mxu0 0.0
        %v945 = vand.u32 %v907, 4294901760
        %946 = vmatpush1.msra.mxu0 %v945
        %947 = vmatprep.subr.mxu0 0.0
        %948 = vmatpush2.msra.mxu0 0.0
        %949 = vmatprep.subr.mxu0 0.0
        %950 = vmatpush2.msra.mxu0 0.0
        %951 = vmatprep.subr.mxu0 0.0
        %952 = vmatpush2.msra.mxu0 0.0
        %953 = vmatprep.subr.mxu0 0.0
        %954 = vmatpush2.msra.mxu0 0.0
        %955 = vmatprep.subr.mxu0 0.0
        %956 = vmatpush2.msra.mxu0 0.0
        %957 = vmatprep.subr.mxu0 0.0
        %958 = vmatpush2.msra.mxu0 0.0
        %959 = vmatprep.subr.mxu0 0.0
        %960 = vmatpush2.msra.mxu0 0.0
        %961 = vmatprep.subr.mxu0 0.0
        %962 = vmatpush2.msra.mxu0 0.0
        %963 = vmatprep.subr.mxu0 0.0
        %964 = vmatpush2.msra.mxu0 0.0
        %965 = vmatprep.subr.mxu0 0.0
        %966 = vmatpush2.msra.mxu0 0.0
        %967 = vmatprep.subr.mxu0 0.0
        %968 = vmatpush2.msra.mxu0 0.0
        %969 = vmatprep.subr.mxu0 0.0
        %970 = vmatpush2.msra.mxu0 0.0
        %971 = vmatprep.subr.mxu0 0.0
        %972 = vmatpush2.msra.mxu0 0.0
        %973 = vmatprep.subr.mxu0 0.0
        %974 = vmatpush2.msra.mxu0 0.0
        %975 = vmatprep.subr.mxu0 0.0
        %976 = vmatpush2.msra.mxu0 0.0
        %977 = vmatprep.subr.mxu0 0.0
        %978 = vmatpush2.msra.mxu0 0.0
        %979 = vmatprep.mubr.f32.mxu0 0.0
        %v980 = vand.u32 %v408, 4294901760
        %v981 = vsub.f32 %v408, %v980
        %v982 = vand.u32 %v981, 4294901760
        %v983 = vsub.f32 %v981, %v982
        %v984 = vand.u32 %v983, 4294901760
        %985 = vmatmul.mubr.f32.gmra.mxu0 %v984
        %v986 = vpop.f32.mrf.mxu0
        %v987 = vadd.f32 0.0, %v986
        %v988 = vpop.f32.mrf.mxu0
        %989 = vdwg.mxu0
        %990 = vmatprep.subr.mxu0 0.0
        %991 = vmatpush1.msra.mxu0 0.0
        %992 = vmatprep.subr.mxu0 0.0
        %993 = vmatpush1.msra.mxu0 0.0
        %994 = vmatprep.subr.mxu0 0.0
        %995 = vmatpush1.msra.mxu0 0.0
        %996 = vmatprep.subr.mxu0 0.0
        %997 = vmatpush1.msra.mxu0 0.0
        %998 = vmatprep.subr.mxu0 0.0
        %999 = vmatpush1.msra.mxu0 0.0
        %1000 = vmatprep.subr.mxu0 0.0
        %1001 = vmatpush1.msra.mxu0 0.0
        %1002 = vmatprep.subr.mxu0 0.0
        %1003 = vmatpush1.msra.mxu0 0.0
        %1004 = vmatprep.subr.mxu0 0.0
        %1005 = vmatpush1.msra.mxu0 0.0
        %1006 = vmatprep.subr.mxu0 0.0
        %1007 = vmatpush1.msra.mxu0 0.0
        %1008 = vmatprep.subr.mxu0 0.0
        %1009 = vmatpush1.msra.mxu0 0.0
        %1010 = vmatprep.subr.mxu0 0.0
        %1011 = vmatpush1.msra.mxu0 0.0
        %1012 = vmatprep.subr.mxu0 0.0
        %1013 = vmatpush1.msra.mxu0 0.0
        %1014 = vmatprep.subr.mxu0 0.0
        %v1015 = vand.u32 %v910, 4294901760
        %v1016 = vsub.f32 %v910, %v1015
        %v1017 = vand.u32 %v1016, 4294901760
        %v1018 = vsub.f32 %v1016, %v1017
        %v1019 = vand.u32 %v1018, 4294901760
        %1020 = vmatpush1.msra.mxu0 %v1019
        %1021 = vmatprep.subr.mxu0 0.0
        %v1022 = vand.u32 %v909, 4294901760
        %v1023 = vsub.f32 %v909, %v1022
        %v1024 = vand.u32 %v1023, 4294901760
        %v1025 = vsub.f32 %v1023, %v1024
        %v1026 = vand.u32 %v1025, 4294901760
        %1027 = vmatpush1.msra.mxu0 %v1026
        %1028 = vmatprep.subr.mxu0 0.0
        %v1029 = vand.u32 %v908, 4294901760
        %v1030 = vsub.f32 %v908, %v1029
        %v1031 = vand.u32 %v1030, 4294901760
        %v1032 = vsub.f32 %v1030, %v1031
        %v1033 = vand.u32 %v1032, 4294901760
        %1034 = vmatpush1.msra.mxu0 %v1033
        %1035 = vmatprep.subr.mxu0 0.0
        %v1036 = vand.u32 %v907, 4294901760
        %v1037 = vsub.f32 %v907, %v1036
        %v1038 = vand.u32 %v1037, 4294901760
        %v1039 = vsub.f32 %v1037, %v1038
        %v1040 = vand.u32 %v1039, 4294901760
        %1041 = vmatpush1.msra.mxu0 %v1040
        %1042 = vmatprep.subr.mxu0 0.0
        %1043 = vmatpush2.msra.mxu0 0.0
        %1044 = vmatprep.subr.mxu0 0.0
        %1045 = vmatpush2.msra.mxu0 0.0
        %1046 = vmatprep.subr.mxu0 0.0
        %1047 = vmatpush2.msra.mxu0 0.0
        %1048 = vmatprep.subr.mxu0 0.0
        %1049 = vmatpush2.msra.mxu0 0.0
        %1050 = vmatprep.subr.mxu0 0.0
        %1051 = vmatpush2.msra.mxu0 0.0
        %1052 = vmatprep.subr.mxu0 0.0
        %1053 = vmatpush2.msra.mxu0 0.0
        %1054 = vmatprep.subr.mxu0 0.0
        %1055 = vmatpush2.msra.mxu0 0.0
        %1056 = vmatprep.subr.mxu0 0.0
        %1057 = vmatpush2.msra.mxu0 0.0
        %1058 = vmatprep.subr.mxu0 0.0
        %1059 = vmatpush2.msra.mxu0 0.0
        %1060 = vmatprep.subr.mxu0 0.0
        %1061 = vmatpush2.msra.mxu0 0.0
        %1062 = vmatprep.subr.mxu0 0.0
        %1063 = vmatpush2.msra.mxu0 0.0
        %1064 = vmatprep.subr.mxu0 0.0
        %1065 = vmatpush2.msra.mxu0 0.0
        %1066 = vmatprep.subr.mxu0 0.0
        %1067 = vmatpush2.msra.mxu0 0.0
        %1068 = vmatprep.subr.mxu0 0.0
        %1069 = vmatpush2.msra.mxu0 0.0
        %1070 = vmatprep.subr.mxu0 0.0
        %1071 = vmatpush2.msra.mxu0 0.0
        %1072 = vmatprep.subr.mxu0 0.0
        %1073 = vmatpush2.msra.mxu0 0.0
        %1074 = vmatprep.mubr.f32.mxu0 0.0
        %v1075 = vand.u32 %v408, 4294901760
        %1076 = vmatmul.mubr.f32.gmra.mxu0 %v1075
        %v1077 = vpop.f32.mrf.mxu0
        %v1078 = vadd.f32 %v987, %v1077
        %v1079 = vpop.f32.mrf.mxu0
        %1080 = vdwg.mxu0
        %1081 = vmatprep.subr.mxu0 0.0
        %1082 = vmatpush1.msra.mxu0 0.0
        %1083 = vmatprep.subr.mxu0 0.0
        %1084 = vmatpush1.msra.mxu0 0.0
        %1085 = vmatprep.subr.mxu0 0.0
        %1086 = vmatpush1.msra.mxu0 0.0
        %1087 = vmatprep.subr.mxu0 0.0
        %1088 = vmatpush1.msra.mxu0 0.0
        %1089 = vmatprep.subr.mxu0 0.0
        %1090 = vmatpush1.msra.mxu0 0.0
        %1091 = vmatprep.subr.mxu0 0.0
        %1092 = vmatpush1.msra.mxu0 0.0
        %1093 = vmatprep.subr.mxu0 0.0
        %1094 = vmatpush1.msra.mxu0 0.0
        %1095 = vmatprep.subr.mxu0 0.0
        %1096 = vmatpush1.msra.mxu0 0.0
        %1097 = vmatprep.subr.mxu0 0.0
        %1098 = vmatpush1.msra.mxu0 0.0
        %1099 = vmatprep.subr.mxu0 0.0
        %1100 = vmatpush1.msra.mxu0 0.0
        %1101 = vmatprep.subr.mxu0 0.0
        %1102 = vmatpush1.msra.mxu0 0.0
        %1103 = vmatprep.subr.mxu0 0.0
        %1104 = vmatpush1.msra.mxu0 0.0
        %1105 = vmatprep.subr.mxu0 0.0
        %v1106 = vand.u32 %v910, 4294901760
        %v1107 = vsub.f32 %v910, %v1106
        %1108 = vmatpush1.msra.mxu0 %v1107
        %1109 = vmatprep.subr.mxu0 0.0
        %v1110 = vand.u32 %v909, 4294901760
        %v1111 = vsub.f32 %v909, %v1110
        %1112 = vmatpush1.msra.mxu0 %v1111
        %1113 = vmatprep.subr.mxu0 0.0
        %v1114 = vand.u32 %v908, 4294901760
        %v1115 = vsub.f32 %v908, %v1114
        %1116 = vmatpush1.msra.mxu0 %v1115
        %1117 = vmatprep.subr.mxu0 0.0
        %v1118 = vand.u32 %v907, 4294901760
        %v1119 = vsub.f32 %v907, %v1118
        %1120 = vmatpush1.msra.mxu0 %v1119
        %1121 = vmatprep.subr.mxu0 0.0
        %1122 = vmatpush2.msra.mxu0 0.0
        %1123 = vmatprep.subr.mxu0 0.0
        %1124 = vmatpush2.msra.mxu0 0.0
        %1125 = vmatprep.subr.mxu0 0.0
        %1126 = vmatpush2.msra.mxu0 0.0
        %1127 = vmatprep.subr.mxu0 0.0
        %1128 = vmatpush2.msra.mxu0 0.0
        %1129 = vmatprep.subr.mxu0 0.0
        %1130 = vmatpush2.msra.mxu0 0.0
        %1131 = vmatprep.subr.mxu0 0.0
        %1132 = vmatpush2.msra.mxu0 0.0
        %1133 = vmatprep.subr.mxu0 0.0
        %1134 = vmatpush2.msra.mxu0 0.0
        %1135 = vmatprep.subr.mxu0 0.0
        %1136 = vmatpush2.msra.mxu0 0.0
        %1137 = vmatprep.subr.mxu0 0.0
        %1138 = vmatpush2.msra.mxu0 0.0
        %1139 = vmatprep.subr.mxu0 0.0
        %1140 = vmatpush2.msra.mxu0 0.0
        %1141 = vmatprep.subr.mxu0 0.0
        %1142 = vmatpush2.msra.mxu0 0.0
        %1143 = vmatprep.subr.mxu0 0.0
        %1144 = vmatpush2.msra.mxu0 0.0
        %1145 = vmatprep.subr.mxu0 0.0
        %1146 = vmatpush2.msra.mxu0 0.0
        %1147 = vmatprep.subr.mxu0 0.0
        %1148 = vmatpush2.msra.mxu0 0.0
        %1149 = vmatprep.subr.mxu0 0.0
        %1150 = vmatpush2.msra.mxu0 0.0
        %1151 = vmatprep.subr.mxu0 0.0
        %1152 = vmatpush2.msra.mxu0 0.0
        %1153 = vmatprep.mubr.f32.mxu0 0.0
        %v1154 = vand.u32 %v408, 4294901760
        %v1155 = vsub.f32 %v408, %v1154
        %1156 = vmatmul.mubr.f32.gmra.mxu0 %v1155
        %v1157 = vpop.f32.mrf.mxu0
        %v1158 = vadd.f32 %v1078, %v1157
        %v1159 = vpop.f32.mrf.mxu0
        %1160 = vdwg.mxu0
        %1161 = vmatprep.subr.mxu0 0.0
        %1162 = vmatpush1.msra.mxu0 0.0
        %1163 = vmatprep.subr.mxu0 0.0
        %1164 = vmatpush1.msra.mxu0 0.0
        %1165 = vmatprep.subr.mxu0 0.0
        %1166 = vmatpush1.msra.mxu0 0.0
        %1167 = vmatprep.subr.mxu0 0.0
        %1168 = vmatpush1.msra.mxu0 0.0
        %1169 = vmatprep.subr.mxu0 0.0
        %1170 = vmatpush1.msra.mxu0 0.0
        %1171 = vmatprep.subr.mxu0 0.0
        %1172 = vmatpush1.msra.mxu0 0.0
        %1173 = vmatprep.subr.mxu0 0.0
        %1174 = vmatpush1.msra.mxu0 0.0
        %1175 = vmatprep.subr.mxu0 0.0
        %1176 = vmatpush1.msra.mxu0 0.0
        %1177 = vmatprep.subr.mxu0 0.0
        %1178 = vmatpush1.msra.mxu0 0.0
        %1179 = vmatprep.subr.mxu0 0.0
        %1180 = vmatpush1.msra.mxu0 0.0
        %1181 = vmatprep.subr.mxu0 0.0
        %1182 = vmatpush1.msra.mxu0 0.0
        %1183 = vmatprep.subr.mxu0 0.0
        %1184 = vmatpush1.msra.mxu0 0.0
        %1185 = vmatprep.subr.mxu0 0.0
        %v1186 = vand.u32 %v910, 4294901760
        %1187 = vmatpush1.msra.mxu0 %v1186
        %1188 = vmatprep.subr.mxu0 0.0
        %v1189 = vand.u32 %v909, 4294901760
        %1190 = vmatpush1.msra.mxu0 %v1189
        %1191 = vmatprep.subr.mxu0 0.0
        %v1192 = vand.u32 %v908, 4294901760
        %1193 = vmatpush1.msra.mxu0 %v1192
        %1194 = vmatprep.subr.mxu0 0.0
        %v1195 = vand.u32 %v907, 4294901760
        %1196 = vmatpush1.msra.mxu0 %v1195
        %1197 = vmatprep.subr.mxu0 0.0
        %1198 = vmatpush2.msra.mxu0 0.0
        %1199 = vmatprep.subr.mxu0 0.0
        %1200 = vmatpush2.msra.mxu0 0.0
        %1201 = vmatprep.subr.mxu0 0.0
        %1202 = vmatpush2.msra.mxu0 0.0
        %1203 = vmatprep.subr.mxu0 0.0
        %1204 = vmatpush2.msra.mxu0 0.0
        %1205 = vmatprep.subr.mxu0 0.0
        %1206 = vmatpush2.msra.mxu0 0.0
        %1207 = vmatprep.subr.mxu0 0.0
        %1208 = vmatpush2.msra.mxu0 0.0
        %1209 = vmatprep.subr.mxu0 0.0
        %1210 = vmatpush2.msra.mxu0 0.0
        %1211 = vmatprep.subr.mxu0 0.0
        %1212 = vmatpush2.msra.mxu0 0.0
        %1213 = vmatprep.subr.mxu0 0.0
        %1214 = vmatpush2.msra.mxu0 0.0
        %1215 = vmatprep.subr.mxu0 0.0
        %1216 = vmatpush2.msra.mxu0 0.0
        %1217 = vmatprep.subr.mxu0 0.0
        %1218 = vmatpush2.msra.mxu0 0.0
        %1219 = vmatprep.subr.mxu0 0.0
        %1220 = vmatpush2.msra.mxu0 0.0
        %1221 = vmatprep.subr.mxu0 0.0
        %1222 = vmatpush2.msra.mxu0 0.0
        %1223 = vmatprep.subr.mxu0 0.0
        %1224 = vmatpush2.msra.mxu0 0.0
        %1225 = vmatprep.subr.mxu0 0.0
        %1226 = vmatpush2.msra.mxu0 0.0
        %1227 = vmatprep.subr.mxu0 0.0
        %1228 = vmatpush2.msra.mxu0 0.0
        %1229 = vmatprep.mubr.f32.mxu0 0.0
        %v1230 = vand.u32 %v408, 4294901760
        %v1231 = vsub.f32 %v408, %v1230
        %v1232 = vand.u32 %v1231, 4294901760
        %1233 = vmatmul.mubr.f32.gmra.mxu0 %v1232
        %v1234 = vpop.f32.mrf.mxu0
        %v1235 = vadd.f32 %v1158, %v1234
        %v1236 = vpop.f32.mrf.mxu0
        %1237 = vdwg.mxu0
        %1238 = vmatprep.subr.mxu0 0.0
        %1239 = vmatpush1.msra.mxu0 0.0
        %1240 = vmatprep.subr.mxu0 0.0
        %1241 = vmatpush1.msra.mxu0 0.0
        %1242 = vmatprep.subr.mxu0 0.0
        %1243 = vmatpush1.msra.mxu0 0.0
        %1244 = vmatprep.subr.mxu0 0.0
        %1245 = vmatpush1.msra.mxu0 0.0
        %1246 = vmatprep.subr.mxu0 0.0
        %1247 = vmatpush1.msra.mxu0 0.0
        %1248 = vmatprep.subr.mxu0 0.0
        %1249 = vmatpush1.msra.mxu0 0.0
        %1250 = vmatprep.subr.mxu0 0.0
        %1251 = vmatpush1.msra.mxu0 0.0
        %1252 = vmatprep.subr.mxu0 0.0
        %1253 = vmatpush1.msra.mxu0 0.0
        %1254 = vmatprep.subr.mxu0 0.0
        %1255 = vmatpush1.msra.mxu0 0.0
        %1256 = vmatprep.subr.mxu0 0.0
        %1257 = vmatpush1.msra.mxu0 0.0
        %1258 = vmatprep.subr.mxu0 0.0
        %1259 = vmatpush1.msra.mxu0 0.0
        %1260 = vmatprep.subr.mxu0 0.0
        %1261 = vmatpush1.msra.mxu0 0.0
        %1262 = vmatprep.subr.mxu0 0.0
        %v1263 = vand.u32 %v910, 4294901760
        %v1264 = vsub.f32 %v910, %v1263
        %v1265 = vand.u32 %v1264, 4294901760
        %1266 = vmatpush1.msra.mxu0 %v1265
        %1267 = vmatprep.subr.mxu0 0.0
        %v1268 = vand.u32 %v909, 4294901760
        %v1269 = vsub.f32 %v909, %v1268
        %v1270 = vand.u32 %v1269, 4294901760
        %1271 = vmatpush1.msra.mxu0 %v1270
        %1272 = vmatprep.subr.mxu0 0.0
        %v1273 = vand.u32 %v908, 4294901760
        %v1274 = vsub.f32 %v908, %v1273
        %v1275 = vand.u32 %v1274, 4294901760
        %1276 = vmatpush1.msra.mxu0 %v1275
        %1277 = vmatprep.subr.mxu0 0.0
        %v1278 = vand.u32 %v907, 4294901760
        %v1279 = vsub.f32 %v907, %v1278
        %v1280 = vand.u32 %v1279, 4294901760
        %1281 = vmatpush1.msra.mxu0 %v1280
        %1282 = vmatprep.subr.mxu0 0.0
        %1283 = vmatpush2.msra.mxu0 0.0
        %1284 = vmatprep.subr.mxu0 0.0
        %1285 = vmatpush2.msra.mxu0 0.0
        %1286 = vmatprep.subr.mxu0 0.0
        %1287 = vmatpush2.msra.mxu0 0.0
        %1288 = vmatprep.subr.mxu0 0.0
        %1289 = vmatpush2.msra.mxu0 0.0
        %1290 = vmatprep.subr.mxu0 0.0
        %1291 = vmatpush2.msra.mxu0 0.0
        %1292 = vmatprep.subr.mxu0 0.0
        %1293 = vmatpush2.msra.mxu0 0.0
        %1294 = vmatprep.subr.mxu0 0.0
        %1295 = vmatpush2.msra.mxu0 0.0
        %1296 = vmatprep.subr.mxu0 0.0
        %1297 = vmatpush2.msra.mxu0 0.0
        %1298 = vmatprep.subr.mxu0 0.0
        %1299 = vmatpush2.msra.mxu0 0.0
        %1300 = vmatprep.subr.mxu0 0.0
        %1301 = vmatpush2.msra.mxu0 0.0
        %1302 = vmatprep.subr.mxu0 0.0
        %1303 = vmatpush2.msra.mxu0 0.0
        %1304 = vmatprep.subr.mxu0 0.0
        %1305 = vmatpush2.msra.mxu0 0.0
        %1306 = vmatprep.subr.mxu0 0.0
        %1307 = vmatpush2.msra.mxu0 0.0
        %1308 = vmatprep.subr.mxu0 0.0
        %1309 = vmatpush2.msra.mxu0 0.0
        %1310 = vmatprep.subr.mxu0 0.0
        %1311 = vmatpush2.msra.mxu0 0.0
        %1312 = vmatprep.subr.mxu0 0.0
        %1313 = vmatpush2.msra.mxu0 0.0
        %1314 = vmatprep.mubr.f32.mxu0 0.0
        %v1315 = vand.u32 %v408, 4294901760
        %1316 = vmatmul.mubr.f32.gmra.mxu0 %v1315
        %v1317 = vpop.f32.mrf.mxu0
        %v1318 = vadd.f32 %v1235, %v1317
        %v1319 = vpop.f32.mrf.mxu0
        %1320 = vdwg.mxu0
        %1321 = vmatprep.subr.mxu0 0.0
        %1322 = vmatpush1.msra.mxu0 0.0
        %1323 = vmatprep.subr.mxu0 0.0
        %1324 = vmatpush1.msra.mxu0 0.0
        %1325 = vmatprep.subr.mxu0 0.0
        %1326 = vmatpush1.msra.mxu0 0.0
        %1327 = vmatprep.subr.mxu0 0.0
        %1328 = vmatpush1.msra.mxu0 0.0
        %1329 = vmatprep.subr.mxu0 0.0
        %1330 = vmatpush1.msra.mxu0 0.0
        %1331 = vmatprep.subr.mxu0 0.0
        %1332 = vmatpush1.msra.mxu0 0.0
        %1333 = vmatprep.subr.mxu0 0.0
        %1334 = vmatpush1.msra.mxu0 0.0
        %1335 = vmatprep.subr.mxu0 0.0
        %1336 = vmatpush1.msra.mxu0 0.0
        %1337 = vmatprep.subr.mxu0 0.0
        %1338 = vmatpush1.msra.mxu0 0.0
        %1339 = vmatprep.subr.mxu0 0.0
        %1340 = vmatpush1.msra.mxu0 0.0
        %1341 = vmatprep.subr.mxu0 0.0
        %1342 = vmatpush1.msra.mxu0 0.0
        %1343 = vmatprep.subr.mxu0 0.0
        %1344 = vmatpush1.msra.mxu0 0.0
        %1345 = vmatprep.subr.mxu0 0.0
        %v1346 = vand.u32 %v910, 4294901760
        %1347 = vmatpush1.msra.mxu0 %v1346
        %1348 = vmatprep.subr.mxu0 0.0
        %v1349 = vand.u32 %v909, 4294901760
        %1350 = vmatpush1.msra.mxu0 %v1349
        %1351 = vmatprep.subr.mxu0 0.0
        %v1352 = vand.u32 %v908, 4294901760
        %1353 = vmatpush1.msra.mxu0 %v1352
        %1354 = vmatprep.subr.mxu0 0.0
        %v1355 = vand.u32 %v907, 4294901760
        %1356 = vmatpush1.msra.mxu0 %v1355
        %1357 = vmatprep.subr.mxu0 0.0
        %1358 = vmatpush2.msra.mxu0 0.0
        %1359 = vmatprep.subr.mxu0 0.0
        %1360 = vmatpush2.msra.mxu0 0.0
        %1361 = vmatprep.subr.mxu0 0.0
        %1362 = vmatpush2.msra.mxu0 0.0
        %1363 = vmatprep.subr.mxu0 0.0
        %1364 = vmatpush2.msra.mxu0 0.0
        %1365 = vmatprep.subr.mxu0 0.0
        %1366 = vmatpush2.msra.mxu0 0.0
        %1367 = vmatprep.subr.mxu0 0.0
        %1368 = vmatpush2.msra.mxu0 0.0
        %1369 = vmatprep.subr.mxu0 0.0
        %1370 = vmatpush2.msra.mxu0 0.0
        %1371 = vmatprep.subr.mxu0 0.0
        %1372 = vmatpush2.msra.mxu0 0.0
        %1373 = vmatprep.subr.mxu0 0.0
        %1374 = vmatpush2.msra.mxu0 0.0
        %1375 = vmatprep.subr.mxu0 0.0
        %1376 = vmatpush2.msra.mxu0 0.0
        %1377 = vmatprep.subr.mxu0 0.0
        %1378 = vmatpush2.msra.mxu0 0.0
        %1379 = vmatprep.subr.mxu0 0.0
        %1380 = vmatpush2.msra.mxu0 0.0
        %1381 = vmatprep.subr.mxu0 0.0
        %1382 = vmatpush2.msra.mxu0 0.0
        %1383 = vmatprep.subr.mxu0 0.0
        %1384 = vmatpush2.msra.mxu0 0.0
        %1385 = vmatprep.subr.mxu0 0.0
        %1386 = vmatpush2.msra.mxu0 0.0
        %1387 = vmatprep.subr.mxu0 0.0
        %1388 = vmatpush2.msra.mxu0 0.0
        %1389 = vmatprep.mubr.f32.mxu0 0.0
        %v1390 = vand.u32 %v408, 4294901760
        %1391 = vmatmul.mubr.f32.gmra.mxu0 %v1390
        %v1392 = vpop.f32.mrf.mxu0
        %v1393 = vadd.f32 %v1318, %v1392
        %v1394 = vpop.f32.mrf.mxu0
        %1395 = vdwg.mxu0
        %v1396 = vld [vmem:[%s3] sm:$0xff]
        %v1397 = vld [vmem:[%s3 + $0x8] sm:$0xff]
        %v1398 = vld [vmem:[%s3 + $0x10] sm:$0xff]
        %v1399 = vld [vmem:[%s3 + $0x18] sm:$0xff]
        %1400 = vmatprep.subr.mxu0 0.0
        %1401 = vmatpush1.msra.mxu0 0.0
        %1402 = vmatprep.subr.mxu0 0.0
        %1403 = vmatpush1.msra.mxu0 0.0
        %1404 = vmatprep.subr.mxu0 0.0
        %1405 = vmatpush1.msra.mxu0 0.0
        %1406 = vmatprep.subr.mxu0 0.0
        %1407 = vmatpush1.msra.mxu0 0.0
        %1408 = vmatprep.subr.mxu0 0.0
        %1409 = vmatpush1.msra.mxu0 0.0
        %1410 = vmatprep.subr.mxu0 0.0
        %1411 = vmatpush1.msra.mxu0 0.0
        %1412 = vmatprep.subr.mxu0 0.0
        %1413 = vmatpush1.msra.mxu0 0.0
        %1414 = vmatprep.subr.mxu0 0.0
        %1415 = vmatpush1.msra.mxu0 0.0
        %1416 = vmatprep.subr.mxu0 0.0
        %1417 = vmatpush1.msra.mxu0 0.0
        %1418 = vmatprep.subr.mxu0 0.0
        %1419 = vmatpush1.msra.mxu0 0.0
        %1420 = vmatprep.subr.mxu0 0.0
        %1421 = vmatpush1.msra.mxu0 0.0
        %1422 = vmatprep.subr.mxu0 0.0
        %1423 = vmatpush1.msra.mxu0 0.0
        %1424 = vmatprep.subr.mxu0 0.0
        %v1425 = vand.u32 %v1399, 4294901760
        %1426 = vmatpush1.msra.mxu0 %v1425
        %1427 = vmatprep.subr.mxu0 0.0
        %v1428 = vand.u32 %v1398, 4294901760
        %1429 = vmatpush1.msra.mxu0 %v1428
        %1430 = vmatprep.subr.mxu0 0.0
        %v1431 = vand.u32 %v1397, 4294901760
        %1432 = vmatpush1.msra.mxu0 %v1431
        %1433 = vmatprep.subr.mxu0 0.0
        %v1434 = vand.u32 %v1396, 4294901760
        %1435 = vmatpush1.msra.mxu0 %v1434
        %1436 = vmatprep.subr.mxu0 0.0
        %1437 = vmatpush2.msra.mxu0 0.0
        %1438 = vmatprep.subr.mxu0 0.0
        %1439 = vmatpush2.msra.mxu0 0.0
        %1440 = vmatprep.subr.mxu0 0.0
        %1441 = vmatpush2.msra.mxu0 0.0
        %1442 = vmatprep.subr.mxu0 0.0
        %1443 = vmatpush2.msra.mxu0 0.0
        %1444 = vmatprep.subr.mxu0 0.0
        %1445 = vmatpush2.msra.mxu0 0.0
        %1446 = vmatprep.subr.mxu0 0.0
        %1447 = vmatpush2.msra.mxu0 0.0
        %1448 = vmatprep.subr.mxu0 0.0
        %1449 = vmatpush2.msra.mxu0 0.0
        %1450 = vmatprep.subr.mxu0 0.0
        %1451 = vmatpush2.msra.mxu0 0.0
        %1452 = vmatprep.subr.mxu0 0.0
        %1453 = vmatpush2.msra.mxu0 0.0
        %1454 = vmatprep.subr.mxu0 0.0
        %1455 = vmatpush2.msra.mxu0 0.0
        %1456 = vmatprep.subr.mxu0 0.0
        %1457 = vmatpush2.msra.mxu0 0.0
        %1458 = vmatprep.subr.mxu0 0.0
        %1459 = vmatpush2.msra.mxu0 0.0
        %1460 = vmatprep.subr.mxu0 0.0
        %1461 = vmatpush2.msra.mxu0 0.0
        %1462 = vmatprep.subr.mxu0 0.0
        %1463 = vmatpush2.msra.mxu0 0.0
        %1464 = vmatprep.subr.mxu0 0.0
        %1465 = vmatpush2.msra.mxu0 0.0
        %1466 = vmatprep.subr.mxu0 0.0
        %1467 = vmatpush2.msra.mxu0 0.0
        %1468 = vmatprep.mubr.f32.mxu0 0.0
        %v1469 = vand.u32 %v408, 4294901760
        %v1470 = vsub.f32 %v408, %v1469
        %v1471 = vand.u32 %v1470, 4294901760
        %v1472 = vsub.f32 %v1470, %v1471
        %v1473 = vand.u32 %v1472, 4294901760
        %1474 = vmatmul.mubr.f32.gmra.mxu0 %v1473
        %v1475 = vpop.f32.mrf.mxu0
        %v1476 = vadd.f32 0.0, %v1475
        %v1477 = vpop.f32.mrf.mxu0
        %1478 = vdwg.mxu0
        %1479 = vmatprep.subr.mxu0 0.0
        %1480 = vmatpush1.msra.mxu0 0.0
        %1481 = vmatprep.subr.mxu0 0.0
        %1482 = vmatpush1.msra.mxu0 0.0
        %1483 = vmatprep.subr.mxu0 0.0
        %1484 = vmatpush1.msra.mxu0 0.0
        %1485 = vmatprep.subr.mxu0 0.0
        %1486 = vmatpush1.msra.mxu0 0.0
        %1487 = vmatprep.subr.mxu0 0.0
        %1488 = vmatpush1.msra.mxu0 0.0
        %1489 = vmatprep.subr.mxu0 0.0
        %1490 = vmatpush1.msra.mxu0 0.0
        %1491 = vmatprep.subr.mxu0 0.0
        %1492 = vmatpush1.msra.mxu0 0.0
        %1493 = vmatprep.subr.mxu0 0.0
        %1494 = vmatpush1.msra.mxu0 0.0
        %1495 = vmatprep.subr.mxu0 0.0
        %1496 = vmatpush1.msra.mxu0 0.0
        %1497 = vmatprep.subr.mxu0 0.0
        %1498 = vmatpush1.msra.mxu0 0.0
        %1499 = vmatprep.subr.mxu0 0.0
        %1500 = vmatpush1.msra.mxu0 0.0
        %1501 = vmatprep.subr.mxu0 0.0
        %1502 = vmatpush1.msra.mxu0 0.0
        %1503 = vmatprep.subr.mxu0 0.0
        %v1504 = vand.u32 %v1399, 4294901760
        %v1505 = vsub.f32 %v1399, %v1504
        %v1506 = vand.u32 %v1505, 4294901760
        %v1507 = vsub.f32 %v1505, %v1506
        %v1508 = vand.u32 %v1507, 4294901760
        %1509 = vmatpush1.msra.mxu0 %v1508
        %1510 = vmatprep.subr.mxu0 0.0
        %v1511 = vand.u32 %v1398, 4294901760
        %v1512 = vsub.f32 %v1398, %v1511
        %v1513 = vand.u32 %v1512, 4294901760
        %v1514 = vsub.f32 %v1512, %v1513
        %v1515 = vand.u32 %v1514, 4294901760
        %1516 = vmatpush1.msra.mxu0 %v1515
        %1517 = vmatprep.subr.mxu0 0.0
        %v1518 = vand.u32 %v1397, 4294901760
        %v1519 = vsub.f32 %v1397, %v1518
        %v1520 = vand.u32 %v1519, 4294901760
        %v1521 = vsub.f32 %v1519, %v1520
        %v1522 = vand.u32 %v1521, 4294901760
        %1523 = vmatpush1.msra.mxu0 %v1522
        %1524 = vmatprep.subr.mxu0 0.0
        %v1525 = vand.u32 %v1396, 4294901760
        %v1526 = vsub.f32 %v1396, %v1525
        %v1527 = vand.u32 %v1526, 4294901760
        %v1528 = vsub.f32 %v1526, %v1527
        %v1529 = vand.u32 %v1528, 4294901760
        %1530 = vmatpush1.msra.mxu0 %v1529
        %1531 = vmatprep.subr.mxu0 0.0
        %1532 = vmatpush2.msra.mxu0 0.0
        %1533 = vmatprep.subr.mxu0 0.0
        %1534 = vmatpush2.msra.mxu0 0.0
        %1535 = vmatprep.subr.mxu0 0.0
        %1536 = vmatpush2.msra.mxu0 0.0
        %1537 = vmatprep.subr.mxu0 0.0
        %1538 = vmatpush2.msra.mxu0 0.0
        %1539 = vmatprep.subr.mxu0 0.0
        %1540 = vmatpush2.msra.mxu0 0.0
        %1541 = vmatprep.subr.mxu0 0.0
        %1542 = vmatpush2.msra.mxu0 0.0
        %1543 = vmatprep.subr.mxu0 0.0
        %1544 = vmatpush2.msra.mxu0 0.0
        %1545 = vmatprep.subr.mxu0 0.0
        %1546 = vmatpush2.msra.mxu0 0.0
        %1547 = vmatprep.subr.mxu0 0.0
        %1548 = vmatpush2.msra.mxu0 0.0
        %1549 = vmatprep.subr.mxu0 0.0
        %1550 = vmatpush2.msra.mxu0 0.0
        %1551 = vmatprep.subr.mxu0 0.0
        %1552 = vmatpush2.msra.mxu0 0.0
        %1553 = vmatprep.subr.mxu0 0.0
        %1554 = vmatpush2.msra.mxu0 0.0
        %1555 = vmatprep.subr.mxu0 0.0
        %1556 = vmatpush2.msra.mxu0 0.0
        %1557 = vmatprep.subr.mxu0 0.0
        %1558 = vmatpush2.msra.mxu0 0.0
        %1559 = vmatprep.subr.mxu0 0.0
        %1560 = vmatpush2.msra.mxu0 0.0
        %1561 = vmatprep.subr.mxu0 0.0
        %1562 = vmatpush2.msra.mxu0 0.0
        %1563 = vmatprep.mubr.f32.mxu0 0.0
        %v1564 = vand.u32 %v408, 4294901760
        %1565 = vmatmul.mubr.f32.gmra.mxu0 %v1564
        %v1566 = vpop.f32.mrf.mxu0
        %v1567 = vadd.f32 %v1476, %v1566
        %v1568 = vpop.f32.mrf.mxu0
        %1569 = vdwg.mxu0
        %1570 = vmatprep.subr.mxu0 0.0
        %1571 = vmatpush1.msra.mxu0 0.0
        %1572 = vmatprep.subr.mxu0 0.0
        %1573 = vmatpush1.msra.mxu0 0.0
        %1574 = vmatprep.subr.mxu0 0.0
        %1575 = vmatpush1.msra.mxu0 0.0
        %1576 = vmatprep.subr.mxu0 0.0
        %1577 = vmatpush1.msra.mxu0 0.0
        %1578 = vmatprep.subr.mxu0 0.0
        %1579 = vmatpush1.msra.mxu0 0.0
        %1580 = vmatprep.subr.mxu0 0.0
        %1581 = vmatpush1.msra.mxu0 0.0
        %1582 = vmatprep.subr.mxu0 0.0
        %1583 = vmatpush1.msra.mxu0 0.0
        %1584 = vmatprep.subr.mxu0 0.0
        %1585 = vmatpush1.msra.mxu0 0.0
        %1586 = vmatprep.subr.mxu0 0.0
        %1587 = vmatpush1.msra.mxu0 0.0
        %1588 = vmatprep.subr.mxu0 0.0
        %1589 = vmatpush1.msra.mxu0 0.0
        %1590 = vmatprep.subr.mxu0 0.0
        %1591 = vmatpush1.msra.mxu0 0.0
        %1592 = vmatprep.subr.mxu0 0.0
        %1593 = vmatpush1.msra.mxu0 0.0
        %1594 = vmatprep.subr.mxu0 0.0
        %v1595 = vand.u32 %v1399, 4294901760
        %v1596 = vsub.f32 %v1399, %v1595
        %1597 = vmatpush1.msra.mxu0 %v1596
        %1598 = vmatprep.subr.mxu0 0.0
        %v1599 = vand.u32 %v1398, 4294901760
        %v1600 = vsub.f32 %v1398, %v1599
        %1601 = vmatpush1.msra.mxu0 %v1600
        %1602 = vmatprep.subr.mxu0 0.0
        %v1603 = vand.u32 %v1397, 4294901760
        %v1604 = vsub.f32 %v1397, %v1603
        %1605 = vmatpush1.msra.mxu0 %v1604
        %1606 = vmatprep.subr.mxu0 0.0
        %v1607 = vand.u32 %v1396, 4294901760
        %v1608 = vsub.f32 %v1396, %v1607
        %1609 = vmatpush1.msra.mxu0 %v1608
        %1610 = vmatprep.subr.mxu0 0.0
        %1611 = vmatpush2.msra.mxu0 0.0
        %1612 = vmatprep.subr.mxu0 0.0
        %1613 = vmatpush2.msra.mxu0 0.0
        %1614 = vmatprep.subr.mxu0 0.0
        %1615 = vmatpush2.msra.mxu0 0.0
        %1616 = vmatprep.subr.mxu0 0.0
        %1617 = vmatpush2.msra.mxu0 0.0
        %1618 = vmatprep.subr.mxu0 0.0
        %1619 = vmatpush2.msra.mxu0 0.0
        %1620 = vmatprep.subr.mxu0 0.0
        %1621 = vmatpush2.msra.mxu0 0.0
        %1622 = vmatprep.subr.mxu0 0.0
        %1623 = vmatpush2.msra.mxu0 0.0
        %1624 = vmatprep.subr.mxu0 0.0
        %1625 = vmatpush2.msra.mxu0 0.0
        %1626 = vmatprep.subr.mxu0 0.0
        %1627 = vmatpush2.msra.mxu0 0.0
        %1628 = vmatprep.subr.mxu0 0.0
        %1629 = vmatpush2.msra.mxu0 0.0
        %1630 = vmatprep.subr.mxu0 0.0
        %1631 = vmatpush2.msra.mxu0 0.0
        %1632 = vmatprep.subr.mxu0 0.0
        %1633 = vmatpush2.msra.mxu0 0.0
        %1634 = vmatprep.subr.mxu0 0.0
        %1635 = vmatpush2.msra.mxu0 0.0
        %1636 = vmatprep.subr.mxu0 0.0
        %1637 = vmatpush2.msra.mxu0 0.0
        %1638 = vmatprep.subr.mxu0 0.0
        %1639 = vmatpush2.msra.mxu0 0.0
        %1640 = vmatprep.subr.mxu0 0.0
        %1641 = vmatpush2.msra.mxu0 0.0
        %1642 = vmatprep.mubr.f32.mxu0 0.0
        %v1643 = vand.u32 %v408, 4294901760
        %v1644 = vsub.f32 %v408, %v1643
        %1645 = vmatmul.mubr.f32.gmra.mxu0 %v1644
        %v1646 = vpop.f32.mrf.mxu0
        %v1647 = vadd.f32 %v1567, %v1646
        %v1648 = vpop.f32.mrf.mxu0
        %1649 = vdwg.mxu0
        %1650 = vmatprep.subr.mxu0 0.0
        %1651 = vmatpush1.msra.mxu0 0.0
        %1652 = vmatprep.subr.mxu0 0.0
        %1653 = vmatpush1.msra.mxu0 0.0
        %1654 = vmatprep.subr.mxu0 0.0
        %1655 = vmatpush1.msra.mxu0 0.0
        %1656 = vmatprep.subr.mxu0 0.0
        %1657 = vmatpush1.msra.mxu0 0.0
        %1658 = vmatprep.subr.mxu0 0.0
        %1659 = vmatpush1.msra.mxu0 0.0
        %1660 = vmatprep.subr.mxu0 0.0
        %1661 = vmatpush1.msra.mxu0 0.0
        %1662 = vmatprep.subr.mxu0 0.0
        %1663 = vmatpush1.msra.mxu0 0.0
        %1664 = vmatprep.subr.mxu0 0.0
        %1665 = vmatpush1.msra.mxu0 0.0
        %1666 = vmatprep.subr.mxu0 0.0
        %1667 = vmatpush1.msra.mxu0 0.0
        %1668 = vmatprep.subr.mxu0 0.0
        %1669 = vmatpush1.msra.mxu0 0.0
        %1670 = vmatprep.subr.mxu0 0.0
        %1671 = vmatpush1.msra.mxu0 0.0
        %1672 = vmatprep.subr.mxu0 0.0
        %1673 = vmatpush1.msra.mxu0 0.0
        %1674 = vmatprep.subr.mxu0 0.0
        %v1675 = vand.u32 %v1399, 4294901760
        %1676 = vmatpush1.msra.mxu0 %v1675
        %1677 = vmatprep.subr.mxu0 0.0
        %v1678 = vand.u32 %v1398, 4294901760
        %1679 = vmatpush1.msra.mxu0 %v1678
        %1680 = vmatprep.subr.mxu0 0.0
        %v1681 = vand.u32 %v1397, 4294901760
        %1682 = vmatpush1.msra.mxu0 %v1681
        %1683 = vmatprep.subr.mxu0 0.0
        %v1684 = vand.u32 %v1396, 4294901760
        %1685 = vmatpush1.msra.mxu0 %v1684
        %1686 = vmatprep.subr.mxu0 0.0
        %1687 = vmatpush2.msra.mxu0 0.0
        %1688 = vmatprep.subr.mxu0 0.0
        %1689 = vmatpush2.msra.mxu0 0.0
        %1690 = vmatprep.subr.mxu0 0.0
        %1691 = vmatpush2.msra.mxu0 0.0
        %1692 = vmatprep.subr.mxu0 0.0
        %1693 = vmatpush2.msra.mxu0 0.0
        %1694 = vmatprep.subr.mxu0 0.0
        %1695 = vmatpush2.msra.mxu0 0.0
        %1696 = vmatprep.subr.mxu0 0.0
        %1697 = vmatpush2.msra.mxu0 0.0
        %1698 = vmatprep.subr.mxu0 0.0
        %1699 = vmatpush2.msra.mxu0 0.0
        %1700 = vmatprep.subr.mxu0 0.0
        %1701 = vmatpush2.msra.mxu0 0.0
        %1702 = vmatprep.subr.mxu0 0.0
        %1703 = vmatpush2.msra.mxu0 0.0
        %1704 = vmatprep.subr.mxu0 0.0
        %1705 = vmatpush2.msra.mxu0 0.0
        %1706 = vmatprep.subr.mxu0 0.0
        %1707 = vmatpush2.msra.mxu0 0.0
        %1708 = vmatprep.subr.mxu0 0.0
        %1709 = vmatpush2.msra.mxu0 0.0
        %1710 = vmatprep.subr.mxu0 0.0
        %1711 = vmatpush2.msra.mxu0 0.0
        %1712 = vmatprep.subr.mxu0 0.0
        %1713 = vmatpush2.msra.mxu0 0.0
        %1714 = vmatprep.subr.mxu0 0.0
        %1715 = vmatpush2.msra.mxu0 0.0
        %1716 = vmatprep.subr.mxu0 0.0
        %1717 = vmatpush2.msra.mxu0 0.0
        %1718 = vmatprep.mubr.f32.mxu0 0.0
        %v1719 = vand.u32 %v408, 4294901760
        %v1720 = vsub.f32 %v408, %v1719
        %v1721 = vand.u32 %v1720, 4294901760
        %1722 = vmatmul.mubr.f32.gmra.mxu0 %v1721
        %v1723 = vpop.f32.mrf.mxu0
        %v1724 = vadd.f32 %v1647, %v1723
        %v1725 = vpop.f32.mrf.mxu0
        %1726 = vdwg.mxu0
        %1727 = vmatprep.subr.mxu0 0.0
        %1728 = vmatpush1.msra.mxu0 0.0
        %1729 = vmatprep.subr.mxu0 0.0
        %1730 = vmatpush1.msra.mxu0 0.0
        %1731 = vmatprep.subr.mxu0 0.0
        %1732 = vmatpush1.msra.mxu0 0.0
        %1733 = vmatprep.subr.mxu0 0.0
        %1734 = vmatpush1.msra.mxu0 0.0
        %1735 = vmatprep.subr.mxu0 0.0
        %1736 = vmatpush1.msra.mxu0 0.0
        %1737 = vmatprep.subr.mxu0 0.0
        %1738 = vmatpush1.msra.mxu0 0.0
        %1739 = vmatprep.subr.mxu0 0.0
        %1740 = vmatpush1.msra.mxu0 0.0
        %1741 = vmatprep.subr.mxu0 0.0
        %1742 = vmatpush1.msra.mxu0 0.0
        %1743 = vmatprep.subr.mxu0 0.0
        %1744 = vmatpush1.msra.mxu0 0.0
        %1745 = vmatprep.subr.mxu0 0.0
        %1746 = vmatpush1.msra.mxu0 0.0
        %1747 = vmatprep.subr.mxu0 0.0
        %1748 = vmatpush1.msra.mxu0 0.0
        %1749 = vmatprep.subr.mxu0 0.0
        %1750 = vmatpush1.msra.mxu0 0.0
        %1751 = vmatprep.subr.mxu0 0.0
        %v1752 = vand.u32 %v1399, 4294901760
        %v1753 = vsub.f32 %v1399, %v1752
        %v1754 = vand.u32 %v1753, 4294901760
        %1755 = vmatpush1.msra.mxu0 %v1754
        %1756 = vmatprep.subr.mxu0 0.0
        %v1757 = vand.u32 %v1398, 4294901760
        %v1758 = vsub.f32 %v1398, %v1757
        %v1759 = vand.u32 %v1758, 4294901760
        %1760 = vmatpush1.msra.mxu0 %v1759
        %1761 = vmatprep.subr.mxu0 0.0
        %v1762 = vand.u32 %v1397, 4294901760
        %v1763 = vsub.f32 %v1397, %v1762
        %v1764 = vand.u32 %v1763, 4294901760
        %1765 = vmatpush1.msra.mxu0 %v1764
        %1766 = vmatprep.subr.mxu0 0.0
        %v1767 = vand.u32 %v1396, 4294901760
        %v1768 = vsub.f32 %v1396, %v1767
        %v1769 = vand.u32 %v1768, 4294901760
        %1770 = vmatpush1.msra.mxu0 %v1769
        %1771 = vmatprep.subr.mxu0 0.0
        %1772 = vmatpush2.msra.mxu0 0.0
        %1773 = vmatprep.subr.mxu0 0.0
        %1774 = vmatpush2.msra.mxu0 0.0
        %1775 = vmatprep.subr.mxu0 0.0
        %1776 = vmatpush2.msra.mxu0 0.0
        %1777 = vmatprep.subr.mxu0 0.0
        %1778 = vmatpush2.msra.mxu0 0.0
        %1779 = vmatprep.subr.mxu0 0.0
        %1780 = vmatpush2.msra.mxu0 0.0
        %1781 = vmatprep.subr.mxu0 0.0
        %1782 = vmatpush2.msra.mxu0 0.0
        %1783 = vmatprep.subr.mxu0 0.0
        %1784 = vmatpush2.msra.mxu0 0.0
        %1785 = vmatprep.subr.mxu0 0.0
        %1786 = vmatpush2.msra.mxu0 0.0
        %1787 = vmatprep.subr.mxu0 0.0
        %1788 = vmatpush2.msra.mxu0 0.0
        %1789 = vmatprep.subr.mxu0 0.0
        %1790 = vmatpush2.msra.mxu0 0.0
        %1791 = vmatprep.subr.mxu0 0.0
        %1792 = vmatpush2.msra.mxu0 0.0
        %1793 = vmatprep.subr.mxu0 0.0
        %1794 = vmatpush2.msra.mxu0 0.0
        %1795 = vmatprep.subr.mxu0 0.0
        %1796 = vmatpush2.msra.mxu0 0.0
        %1797 = vmatprep.subr.mxu0 0.0
        %1798 = vmatpush2.msra.mxu0 0.0
        %1799 = vmatprep.subr.mxu0 0.0
        %1800 = vmatpush2.msra.mxu0 0.0
        %1801 = vmatprep.subr.mxu0 0.0
        %1802 = vmatpush2.msra.mxu0 0.0
        %1803 = vmatprep.mubr.f32.mxu0 0.0
        %v1804 = vand.u32 %v408, 4294901760
        %1805 = vmatmul.mubr.f32.gmra.mxu0 %v1804
        %v1806 = vpop.f32.mrf.mxu0
        %v1807 = vadd.f32 %v1724, %v1806
        %v1808 = vpop.f32.mrf.mxu0
        %1809 = vdwg.mxu0
        %1810 = vmatprep.subr.mxu0 0.0
        %1811 = vmatpush1.msra.mxu0 0.0
        %1812 = vmatprep.subr.mxu0 0.0
        %1813 = vmatpush1.msra.mxu0 0.0
        %1814 = vmatprep.subr.mxu0 0.0
        %1815 = vmatpush1.msra.mxu0 0.0
        %1816 = vmatprep.subr.mxu0 0.0
        %1817 = vmatpush1.msra.mxu0 0.0
        %1818 = vmatprep.subr.mxu0 0.0
        %1819 = vmatpush1.msra.mxu0 0.0
        %1820 = vmatprep.subr.mxu0 0.0
        %1821 = vmatpush1.msra.mxu0 0.0
        %1822 = vmatprep.subr.mxu0 0.0
        %1823 = vmatpush1.msra.mxu0 0.0
        %1824 = vmatprep.subr.mxu0 0.0
        %1825 = vmatpush1.msra.mxu0 0.0
        %1826 = vmatprep.subr.mxu0 0.0
        %1827 = vmatpush1.msra.mxu0 0.0
        %1828 = vmatprep.subr.mxu0 0.0
        %1829 = vmatpush1.msra.mxu0 0.0
        %1830 = vmatprep.subr.mxu0 0.0
        %1831 = vmatpush1.msra.mxu0 0.0
        %1832 = vmatprep.subr.mxu0 0.0
        %1833 = vmatpush1.msra.mxu0 0.0
        %1834 = vmatprep.subr.mxu0 0.0
        %v1835 = vand.u32 %v1399, 4294901760
        %1836 = vmatpush1.msra.mxu0 %v1835
        %1837 = vmatprep.subr.mxu0 0.0
        %v1838 = vand.u32 %v1398, 4294901760
        %1839 = vmatpush1.msra.mxu0 %v1838
        %1840 = vmatprep.subr.mxu0 0.0
        %v1841 = vand.u32 %v1397, 4294901760
        %1842 = vmatpush1.msra.mxu0 %v1841
        %1843 = vmatprep.subr.mxu0 0.0
        %v1844 = vand.u32 %v1396, 4294901760
        %1845 = vmatpush1.msra.mxu0 %v1844
        %1846 = vmatprep.subr.mxu0 0.0
        %1847 = vmatpush2.msra.mxu0 0.0
        %1848 = vmatprep.subr.mxu0 0.0
        %1849 = vmatpush2.msra.mxu0 0.0
        %1850 = vmatprep.subr.mxu0 0.0
        %1851 = vmatpush2.msra.mxu0 0.0
        %1852 = vmatprep.subr.mxu0 0.0
        %1853 = vmatpush2.msra.mxu0 0.0
        %1854 = vmatprep.subr.mxu0 0.0
        %1855 = vmatpush2.msra.mxu0 0.0
        %1856 = vmatprep.subr.mxu0 0.0
        %1857 = vmatpush2.msra.mxu0 0.0
        %1858 = vmatprep.subr.mxu0 0.0
        %1859 = vmatpush2.msra.mxu0 0.0
        %1860 = vmatprep.subr.mxu0 0.0
        %1861 = vmatpush2.msra.mxu0 0.0
        %1862 = vmatprep.subr.mxu0 0.0
        %1863 = vmatpush2.msra.mxu0 0.0
        %1864 = vmatprep.subr.mxu0 0.0
        %1865 = vmatpush2.msra.mxu0 0.0
        %1866 = vmatprep.subr.mxu0 0.0
        %1867 = vmatpush2.msra.mxu0 0.0
        %1868 = vmatprep.subr.mxu0 0.0
        %1869 = vmatpush2.msra.mxu0 0.0
        %1870 = vmatprep.subr.mxu0 0.0
        %1871 = vmatpush2.msra.mxu0 0.0
        %1872 = vmatprep.subr.mxu0 0.0
        %1873 = vmatpush2.msra.mxu0 0.0
        %1874 = vmatprep.subr.mxu0 0.0
        %1875 = vmatpush2.msra.mxu0 0.0
        %1876 = vmatprep.subr.mxu0 0.0
        %1877 = vmatpush2.msra.mxu0 0.0
        %1878 = vmatprep.mubr.f32.mxu0 0.0
        %v1879 = vand.u32 %v408, 4294901760
        %1880 = vmatmul.mubr.f32.gmra.mxu0 %v1879
        %v1881 = vpop.f32.mrf.mxu0
        %v1882 = vadd.f32 %v1807, %v1881
        %v1883 = vpop.f32.mrf.mxu0
        %1884 = vdwg.mxu0
        %1886 = vrot.lane.b32.xlu0 %v1882, 124
        %v1887 = vpop.permute.xlu0 %1886
        %1889 = vrot.lane.b32.xlu0 %v1882, 4
        %v1890 = vpop.permute.xlu0 %1889
        %v1892 = vsel %vm902, %v1887, %v1890
        %v1893 = vmul.f32 %v1882, %v383
        %v1894 = vmul.f32 %v1892, %v384
        %v1895 = vadd.f32 %v1893, %v1894
        %vm1896 = vcmask 64512
        %v1898 = vsel %vm1896, %v1895, 0
        %v1901 = vsel %vm1896, %v906, 0
        %1903 = vmatprep.subr.mxu0 0.0
        %1904 = vmatpush1.xpose.msra.mxu0 0.0
        %1905 = vmatprep.subr.mxu0 0.0
        %1906 = vmatpush1.xpose.msra.mxu0 0.0
        %1907 = vmatprep.subr.mxu0 0.0
        %1908 = vmatpush1.xpose.msra.mxu0 0.0
        %1909 = vmatprep.subr.mxu0 0.0
        %1910 = vmatpush1.xpose.msra.mxu0 0.0
        %1911 = vmatprep.subr.mxu0 0.0
        %1912 = vmatpush1.xpose.msra.mxu0 0.0
        %1913 = vmatprep.subr.mxu0 0.0
        %1914 = vmatpush1.xpose.msra.mxu0 0.0
        %1915 = vmatprep.subr.mxu0 0.0
        %1916 = vmatpush1.xpose.msra.mxu0 0.0
        %1917 = vmatprep.subr.mxu0 0.0
        %1918 = vmatpush1.xpose.msra.mxu0 0.0
        %1919 = vmatprep.subr.mxu0 0.0
        %1920 = vmatpush1.xpose.msra.mxu0 0.0
        %1921 = vmatprep.subr.mxu0 0.0
        %1922 = vmatpush1.xpose.msra.mxu0 0.0
        %1923 = vmatprep.subr.mxu0 0.0
        %1924 = vmatpush1.xpose.msra.mxu0 0.0
        %1925 = vmatprep.subr.mxu0 0.0
        %1926 = vmatpush1.xpose.msra.mxu0 0.0
        %1927 = vmatprep.subr.mxu0 0.0
        %1928 = vmatpush1.xpose.msra.mxu0 0.0
        %1929 = vmatprep.subr.mxu0 0.0
        %1930 = vmatpush1.xpose.msra.mxu0 0.0
        %1931 = vmatprep.subr.mxu0 0.0
        %1932 = vmatpush1.xpose.msra.mxu0 0.0
        %1933 = vmatprep.subr.mxu0 0.0
        %v1934 = vand.u32 %v1901, 4294901760
        %1935 = vmatpush1.xpose.msra.mxu0 %v1934
        %1936 = vmatprep.subr.mxu0 0.0
        %1937 = vmatpush2.xpose.msra.mxu0 0.0
        %1938 = vmatprep.subr.mxu0 0.0
        %1939 = vmatpush2.xpose.msra.mxu0 0.0
        %1940 = vmatprep.subr.mxu0 0.0
        %1941 = vmatpush2.xpose.msra.mxu0 0.0
        %1942 = vmatprep.subr.mxu0 0.0
        %1943 = vmatpush2.xpose.msra.mxu0 0.0
        %1944 = vmatprep.subr.mxu0 0.0
        %1945 = vmatpush2.xpose.msra.mxu0 0.0
        %1946 = vmatprep.subr.mxu0 0.0
        %1947 = vmatpush2.xpose.msra.mxu0 0.0
        %1948 = vmatprep.subr.mxu0 0.0
        %1949 = vmatpush2.xpose.msra.mxu0 0.0
        %1950 = vmatprep.subr.mxu0 0.0
        %1951 = vmatpush2.xpose.msra.mxu0 0.0
        %1952 = vmatprep.subr.mxu0 0.0
        %1953 = vmatpush2.xpose.msra.mxu0 0.0
        %1954 = vmatprep.subr.mxu0 0.0
        %1955 = vmatpush2.xpose.msra.mxu0 0.0
        %1956 = vmatprep.subr.mxu0 0.0
        %1957 = vmatpush2.xpose.msra.mxu0 0.0
        %1958 = vmatprep.subr.mxu0 0.0
        %1959 = vmatpush2.xpose.msra.mxu0 0.0
        %1960 = vmatprep.subr.mxu0 0.0
        %1961 = vmatpush2.xpose.msra.mxu0 0.0
        %1962 = vmatprep.subr.mxu0 0.0
        %1963 = vmatpush2.xpose.msra.mxu0 0.0
        %1964 = vmatprep.subr.mxu0 0.0
        %1965 = vmatpush2.xpose.msra.mxu0 0.0
        %1966 = vmatprep.subr.mxu0 0.0
        %1967 = vmatpush2.xpose.msra.mxu0 0.0
        %1968 = vmatprep.mubr.f32.mxu0 0.0
        %v1969 = vand.u32 %v1898, 4294901760
        %v1970 = vsub.f32 %v1898, %v1969
        %v1971 = vand.u32 %v1970, 4294901760
        %v1972 = vsub.f32 %v1970, %v1971
        %v1973 = vand.u32 %v1972, 4294901760
        %1974 = vmatmul.mubr.f32.gmra.mxu0 %v1973
        %v1975 = vpop.f32.mrf.mxu0
        %v1976 = vadd.f32 0.0, %v1975
        %v1977 = vpop.f32.mrf.mxu0
        %1978 = vdwg.mxu0
        %1979 = vmatprep.subr.mxu0 0.0
        %1980 = vmatpush1.xpose.msra.mxu0 0.0
        %1981 = vmatprep.subr.mxu0 0.0
        %1982 = vmatpush1.xpose.msra.mxu0 0.0
        %1983 = vmatprep.subr.mxu0 0.0
        %1984 = vmatpush1.xpose.msra.mxu0 0.0
        %1985 = vmatprep.subr.mxu0 0.0
        %1986 = vmatpush1.xpose.msra.mxu0 0.0
        %1987 = vmatprep.subr.mxu0 0.0
        %1988 = vmatpush1.xpose.msra.mxu0 0.0
        %1989 = vmatprep.subr.mxu0 0.0
        %1990 = vmatpush1.xpose.msra.mxu0 0.0
        %1991 = vmatprep.subr.mxu0 0.0
        %1992 = vmatpush1.xpose.msra.mxu0 0.0
        %1993 = vmatprep.subr.mxu0 0.0
        %1994 = vmatpush1.xpose.msra.mxu0 0.0
        %1995 = vmatprep.subr.mxu0 0.0
        %1996 = vmatpush1.xpose.msra.mxu0 0.0
        %1997 = vmatprep.subr.mxu0 0.0
        %1998 = vmatpush1.xpose.msra.mxu0 0.0
        %1999 = vmatprep.subr.mxu0 0.0
        %2000 = vmatpush1.xpose.msra.mxu0 0.0
        %2001 = vmatprep.subr.mxu0 0.0
        %2002 = vmatpush1.xpose.msra.mxu0 0.0
        %2003 = vmatprep.subr.mxu0 0.0
        %2004 = vmatpush1.xpose.msra.mxu0 0.0
        %2005 = vmatprep.subr.mxu0 0.0
        %2006 = vmatpush1.xpose.msra.mxu0 0.0
        %2007 = vmatprep.subr.mxu0 0.0
        %2008 = vmatpush1.xpose.msra.mxu0 0.0
        %2009 = vmatprep.subr.mxu0 0.0
        %v2010 = vand.u32 %v1901, 4294901760
        %v2011 = vsub.f32 %v1901, %v2010
        %v2012 = vand.u32 %v2011, 4294901760
        %v2013 = vsub.f32 %v2011, %v2012
        %v2014 = vand.u32 %v2013, 4294901760
        %2015 = vmatpush1.xpose.msra.mxu0 %v2014
        %2016 = vmatprep.subr.mxu0 0.0
        %2017 = vmatpush2.xpose.msra.mxu0 0.0
        %2018 = vmatprep.subr.mxu0 0.0
        %2019 = vmatpush2.xpose.msra.mxu0 0.0
        %2020 = vmatprep.subr.mxu0 0.0
        %2021 = vmatpush2.xpose.msra.mxu0 0.0
        %2022 = vmatprep.subr.mxu0 0.0
        %2023 = vmatpush2.xpose.msra.mxu0 0.0
        %2024 = vmatprep.subr.mxu0 0.0
        %2025 = vmatpush2.xpose.msra.mxu0 0.0
        %2026 = vmatprep.subr.mxu0 0.0
        %2027 = vmatpush2.xpose.msra.mxu0 0.0
        %2028 = vmatprep.subr.mxu0 0.0
        %2029 = vmatpush2.xpose.msra.mxu0 0.0
        %2030 = vmatprep.subr.mxu0 0.0
        %2031 = vmatpush2.xpose.msra.mxu0 0.0
        %2032 = vmatprep.subr.mxu0 0.0
        %2033 = vmatpush2.xpose.msra.mxu0 0.0
        %2034 = vmatprep.subr.mxu0 0.0
        %2035 = vmatpush2.xpose.msra.mxu0 0.0
        %2036 = vmatprep.subr.mxu0 0.0
        %2037 = vmatpush2.xpose.msra.mxu0 0.0
        %2038 = vmatprep.subr.mxu0 0.0
        %2039 = vmatpush2.xpose.msra.mxu0 0.0
        %2040 = vmatprep.subr.mxu0 0.0
        %2041 = vmatpush2.xpose.msra.mxu0 0.0
        %2042 = vmatprep.subr.mxu0 0.0
        %2043 = vmatpush2.xpose.msra.mxu0 0.0
        %2044 = vmatprep.subr.mxu0 0.0
        %2045 = vmatpush2.xpose.msra.mxu0 0.0
        %2046 = vmatprep.subr.mxu0 0.0
        %2047 = vmatpush2.xpose.msra.mxu0 0.0
        %2048 = vmatprep.mubr.f32.mxu0 0.0
        %v2049 = vand.u32 %v1898, 4294901760
        %2050 = vmatmul.mubr.f32.gmra.mxu0 %v2049
        %v2051 = vpop.f32.mrf.mxu0
        %v2052 = vadd.f32 %v1976, %v2051
        %v2053 = vpop.f32.mrf.mxu0
        %2054 = vdwg.mxu0
        %2055 = vmatprep.subr.mxu0 0.0
        %2056 = vmatpush1.xpose.msra.mxu0 0.0
        %2057 = vmatprep.subr.mxu0 0.0
        %2058 = vmatpush1.xpose.msra.mxu0 0.0
        %2059 = vmatprep.subr.mxu0 0.0
        %2060 = vmatpush1.xpose.msra.mxu0 0.0
        %2061 = vmatprep.subr.mxu0 0.0
        %2062 = vmatpush1.xpose.msra.mxu0 0.0
        %2063 = vmatprep.subr.mxu0 0.0
        %2064 = vmatpush1.xpose.msra.mxu0 0.0
        %2065 = vmatprep.subr.mxu0 0.0
        %2066 = vmatpush1.xpose.msra.mxu0 0.0
        %2067 = vmatprep.subr.mxu0 0.0
        %2068 = vmatpush1.xpose.msra.mxu0 0.0
        %2069 = vmatprep.subr.mxu0 0.0
        %2070 = vmatpush1.xpose.msra.mxu0 0.0
        %2071 = vmatprep.subr.mxu0 0.0
        %2072 = vmatpush1.xpose.msra.mxu0 0.0
        %2073 = vmatprep.subr.mxu0 0.0
        %2074 = vmatpush1.xpose.msra.mxu0 0.0
        %2075 = vmatprep.subr.mxu0 0.0
        %2076 = vmatpush1.xpose.msra.mxu0 0.0
        %2077 = vmatprep.subr.mxu0 0.0
        %2078 = vmatpush1.xpose.msra.mxu0 0.0
        %2079 = vmatprep.subr.mxu0 0.0
        %2080 = vmatpush1.xpose.msra.mxu0 0.0
        %2081 = vmatprep.subr.mxu0 0.0
        %2082 = vmatpush1.xpose.msra.mxu0 0.0
        %2083 = vmatprep.subr.mxu0 0.0
        %2084 = vmatpush1.xpose.msra.mxu0 0.0
        %2085 = vmatprep.subr.mxu0 0.0
        %v2086 = vand.u32 %v1901, 4294901760
        %v2087 = vsub.f32 %v1901, %v2086
        %2088 = vmatpush1.xpose.msra.mxu0 %v2087
        %2089 = vmatprep.subr.mxu0 0.0
        %2090 = vmatpush2.xpose.msra.mxu0 0.0
        %2091 = vmatprep.subr.mxu0 0.0
        %2092 = vmatpush2.xpose.msra.mxu0 0.0
        %2093 = vmatprep.subr.mxu0 0.0
        %2094 = vmatpush2.xpose.msra.mxu0 0.0
        %2095 = vmatprep.subr.mxu0 0.0
        %2096 = vmatpush2.xpose.msra.mxu0 0.0
        %2097 = vmatprep.subr.mxu0 0.0
        %2098 = vmatpush2.xpose.msra.mxu0 0.0
        %2099 = vmatprep.subr.mxu0 0.0
        %2100 = vmatpush2.xpose.msra.mxu0 0.0
        %2101 = vmatprep.subr.mxu0 0.0
        %2102 = vmatpush2.xpose.msra.mxu0 0.0
        %2103 = vmatprep.subr.mxu0 0.0
        %2104 = vmatpush2.xpose.msra.mxu0 0.0
        %2105 = vmatprep.subr.mxu0 0.0
        %2106 = vmatpush2.xpose.msra.mxu0 0.0
        %2107 = vmatprep.subr.mxu0 0.0
        %2108 = vmatpush2.xpose.msra.mxu0 0.0
        %2109 = vmatprep.subr.mxu0 0.0
        %2110 = vmatpush2.xpose.msra.mxu0 0.0
        %2111 = vmatprep.subr.mxu0 0.0
        %2112 = vmatpush2.xpose.msra.mxu0 0.0
        %2113 = vmatprep.subr.mxu0 0.0
        %2114 = vmatpush2.xpose.msra.mxu0 0.0
        %2115 = vmatprep.subr.mxu0 0.0
        %2116 = vmatpush2.xpose.msra.mxu0 0.0
        %2117 = vmatprep.subr.mxu0 0.0
        %2118 = vmatpush2.xpose.msra.mxu0 0.0
        %2119 = vmatprep.subr.mxu0 0.0
        %2120 = vmatpush2.xpose.msra.mxu0 0.0
        %2121 = vmatprep.mubr.f32.mxu0 0.0
        %v2122 = vand.u32 %v1898, 4294901760
        %v2123 = vsub.f32 %v1898, %v2122
        %2124 = vmatmul.mubr.f32.gmra.mxu0 %v2123
        %v2125 = vpop.f32.mrf.mxu0
        %v2126 = vadd.f32 %v2052, %v2125
        %v2127 = vpop.f32.mrf.mxu0
        %2128 = vdwg.mxu0
        %2129 = vmatprep.subr.mxu0 0.0
        %2130 = vmatpush1.xpose.msra.mxu0 0.0
        %2131 = vmatprep.subr.mxu0 0.0
        %2132 = vmatpush1.xpose.msra.mxu0 0.0
        %2133 = vmatprep.subr.mxu0 0.0
        %2134 = vmatpush1.xpose.msra.mxu0 0.0
        %2135 = vmatprep.subr.mxu0 0.0
        %2136 = vmatpush1.xpose.msra.mxu0 0.0
        %2137 = vmatprep.subr.mxu0 0.0
        %2138 = vmatpush1.xpose.msra.mxu0 0.0
        %2139 = vmatprep.subr.mxu0 0.0
        %2140 = vmatpush1.xpose.msra.mxu0 0.0
        %2141 = vmatprep.subr.mxu0 0.0
        %2142 = vmatpush1.xpose.msra.mxu0 0.0
        %2143 = vmatprep.subr.mxu0 0.0
        %2144 = vmatpush1.xpose.msra.mxu0 0.0
        %2145 = vmatprep.subr.mxu0 0.0
        %2146 = vmatpush1.xpose.msra.mxu0 0.0
        %2147 = vmatprep.subr.mxu0 0.0
        %2148 = vmatpush1.xpose.msra.mxu0 0.0
        %2149 = vmatprep.subr.mxu0 0.0
        %2150 = vmatpush1.xpose.msra.mxu0 0.0
        %2151 = vmatprep.subr.mxu0 0.0
        %2152 = vmatpush1.xpose.msra.mxu0 0.0
        %2153 = vmatprep.subr.mxu0 0.0
        %2154 = vmatpush1.xpose.msra.mxu0 0.0
        %2155 = vmatprep.subr.mxu0 0.0
        %2156 = vmatpush1.xpose.msra.mxu0 0.0
        %2157 = vmatprep.subr.mxu0 0.0
        %2158 = vmatpush1.xpose.msra.mxu0 0.0
        %2159 = vmatprep.subr.mxu0 0.0
        %v2160 = vand.u32 %v1901, 4294901760
        %2161 = vmatpush1.xpose.msra.mxu0 %v2160
        %2162 = vmatprep.subr.mxu0 0.0
        %2163 = vmatpush2.xpose.msra.mxu0 0.0
        %2164 = vmatprep.subr.mxu0 0.0
        %2165 = vmatpush2.xpose.msra.mxu0 0.0
        %2166 = vmatprep.subr.mxu0 0.0
        %2167 = vmatpush2.xpose.msra.mxu0 0.0
        %2168 = vmatprep.subr.mxu0 0.0
        %2169 = vmatpush2.xpose.msra.mxu0 0.0
        %2170 = vmatprep.subr.mxu0 0.0
        %2171 = vmatpush2.xpose.msra.mxu0 0.0
        %2172 = vmatprep.subr.mxu0 0.0
        %2173 = vmatpush2.xpose.msra.mxu0 0.0
        %2174 = vmatprep.subr.mxu0 0.0
        %2175 = vmatpush2.xpose.msra.mxu0 0.0
        %2176 = vmatprep.subr.mxu0 0.0
        %2177 = vmatpush2.xpose.msra.mxu0 0.0
        %2178 = vmatprep.subr.mxu0 0.0
        %2179 = vmatpush2.xpose.msra.mxu0 0.0
        %2180 = vmatprep.subr.mxu0 0.0
        %2181 = vmatpush2.xpose.msra.mxu0 0.0
        %2182 = vmatprep.subr.mxu0 0.0
        %2183 = vmatpush2.xpose.msra.mxu0 0.0
        %2184 = vmatprep.subr.mxu0 0.0
        %2185 = vmatpush2.xpose.msra.mxu0 0.0
        %2186 = vmatprep.subr.mxu0 0.0
        %2187 = vmatpush2.xpose.msra.mxu0 0.0
        %2188 = vmatprep.subr.mxu0 0.0
        %2189 = vmatpush2.xpose.msra.mxu0 0.0
        %2190 = vmatprep.subr.mxu0 0.0
        %2191 = vmatpush2.xpose.msra.mxu0 0.0
        %2192 = vmatprep.subr.mxu0 0.0
        %2193 = vmatpush2.xpose.msra.mxu0 0.0
        %2194 = vmatprep.mubr.f32.mxu0 0.0
        %v2195 = vand.u32 %v1898, 4294901760
        %v2196 = vsub.f32 %v1898, %v2195
        %v2197 = vand.u32 %v2196, 4294901760
        %2198 = vmatmul.mubr.f32.gmra.mxu0 %v2197
        %v2199 = vpop.f32.mrf.mxu0
        %v2200 = vadd.f32 %v2126, %v2199
        %v2201 = vpop.f32.mrf.mxu0
        %2202 = vdwg.mxu0
        %2203 = vmatprep.subr.mxu0 0.0
        %2204 = vmatpush1.xpose.msra.mxu0 0.0
        %2205 = vmatprep.subr.mxu0 0.0
        %2206 = vmatpush1.xpose.msra.mxu0 0.0
        %2207 = vmatprep.subr.mxu0 0.0
        %2208 = vmatpush1.xpose.msra.mxu0 0.0
        %2209 = vmatprep.subr.mxu0 0.0
        %2210 = vmatpush1.xpose.msra.mxu0 0.0
        %2211 = vmatprep.subr.mxu0 0.0
        %2212 = vmatpush1.xpose.msra.mxu0 0.0
        %2213 = vmatprep.subr.mxu0 0.0
        %2214 = vmatpush1.xpose.msra.mxu0 0.0
        %2215 = vmatprep.subr.mxu0 0.0
        %2216 = vmatpush1.xpose.msra.mxu0 0.0
        %2217 = vmatprep.subr.mxu0 0.0
        %2218 = vmatpush1.xpose.msra.mxu0 0.0
        %2219 = vmatprep.subr.mxu0 0.0
        %2220 = vmatpush1.xpose.msra.mxu0 0.0
        %2221 = vmatprep.subr.mxu0 0.0
        %2222 = vmatpush1.xpose.msra.mxu0 0.0
        %2223 = vmatprep.subr.mxu0 0.0
        %2224 = vmatpush1.xpose.msra.mxu0 0.0
        %2225 = vmatprep.subr.mxu0 0.0
        %2226 = vmatpush1.xpose.msra.mxu0 0.0
        %2227 = vmatprep.subr.mxu0 0.0
        %2228 = vmatpush1.xpose.msra.mxu0 0.0
        %2229 = vmatprep.subr.mxu0 0.0
        %2230 = vmatpush1.xpose.msra.mxu0 0.0
        %2231 = vmatprep.subr.mxu0 0.0
        %2232 = vmatpush1.xpose.msra.mxu0 0.0
        %2233 = vmatprep.subr.mxu0 0.0
        %v2234 = vand.u32 %v1901, 4294901760
        %v2235 = vsub.f32 %v1901, %v2234
        %v2236 = vand.u32 %v2235, 4294901760
        %2237 = vmatpush1.xpose.msra.mxu0 %v2236
        %2238 = vmatprep.subr.mxu0 0.0
        %2239 = vmatpush2.xpose.msra.mxu0 0.0
        %2240 = vmatprep.subr.mxu0 0.0
        %2241 = vmatpush2.xpose.msra.mxu0 0.0
        %2242 = vmatprep.subr.mxu0 0.0
        %2243 = vmatpush2.xpose.msra.mxu0 0.0
        %2244 = vmatprep.subr.mxu0 0.0
        %2245 = vmatpush2.xpose.msra.mxu0 0.0
        %2246 = vmatprep.subr.mxu0 0.0
        %2247 = vmatpush2.xpose.msra.mxu0 0.0
        %2248 = vmatprep.subr.mxu0 0.0
        %2249 = vmatpush2.xpose.msra.mxu0 0.0
        %2250 = vmatprep.subr.mxu0 0.0
        %2251 = vmatpush2.xpose.msra.mxu0 0.0
        %2252 = vmatprep.subr.mxu0 0.0
        %2253 = vmatpush2.xpose.msra.mxu0 0.0
        %2254 = vmatprep.subr.mxu0 0.0
        %2255 = vmatpush2.xpose.msra.mxu0 0.0
        %2256 = vmatprep.subr.mxu0 0.0
        %2257 = vmatpush2.xpose.msra.mxu0 0.0
        %2258 = vmatprep.subr.mxu0 0.0
        %2259 = vmatpush2.xpose.msra.mxu0 0.0
        %2260 = vmatprep.subr.mxu0 0.0
        %2261 = vmatpush2.xpose.msra.mxu0 0.0
        %2262 = vmatprep.subr.mxu0 0.0
        %2263 = vmatpush2.xpose.msra.mxu0 0.0
        %2264 = vmatprep.subr.mxu0 0.0
        %2265 = vmatpush2.xpose.msra.mxu0 0.0
        %2266 = vmatprep.subr.mxu0 0.0
        %2267 = vmatpush2.xpose.msra.mxu0 0.0
        %2268 = vmatprep.subr.mxu0 0.0
        %2269 = vmatpush2.xpose.msra.mxu0 0.0
        %2270 = vmatprep.mubr.f32.mxu0 0.0
        %v2271 = vand.u32 %v1898, 4294901760
        %2272 = vmatmul.mubr.f32.gmra.mxu0 %v2271
        %v2273 = vpop.f32.mrf.mxu0
        %v2274 = vadd.f32 %v2200, %v2273
        %v2275 = vpop.f32.mrf.mxu0
        %2276 = vdwg.mxu0
        %2277 = vmatprep.subr.mxu0 0.0
        %2278 = vmatpush1.xpose.msra.mxu0 0.0
        %2279 = vmatprep.subr.mxu0 0.0
        %2280 = vmatpush1.xpose.msra.mxu0 0.0
        %2281 = vmatprep.subr.mxu0 0.0
        %2282 = vmatpush1.xpose.msra.mxu0 0.0
        %2283 = vmatprep.subr.mxu0 0.0
        %2284 = vmatpush1.xpose.msra.mxu0 0.0
        %2285 = vmatprep.subr.mxu0 0.0
        %2286 = vmatpush1.xpose.msra.mxu0 0.0
        %2287 = vmatprep.subr.mxu0 0.0
        %2288 = vmatpush1.xpose.msra.mxu0 0.0
        %2289 = vmatprep.subr.mxu0 0.0
        %2290 = vmatpush1.xpose.msra.mxu0 0.0
        %2291 = vmatprep.subr.mxu0 0.0
        %2292 = vmatpush1.xpose.msra.mxu0 0.0
        %2293 = vmatprep.subr.mxu0 0.0
        %2294 = vmatpush1.xpose.msra.mxu0 0.0
        %2295 = vmatprep.subr.mxu0 0.0
        %2296 = vmatpush1.xpose.msra.mxu0 0.0
        %2297 = vmatprep.subr.mxu0 0.0
        %2298 = vmatpush1.xpose.msra.mxu0 0.0
        %2299 = vmatprep.subr.mxu0 0.0
        %2300 = vmatpush1.xpose.msra.mxu0 0.0
        %2301 = vmatprep.subr.mxu0 0.0
        %2302 = vmatpush1.xpose.msra.mxu0 0.0
        %2303 = vmatprep.subr.mxu0 0.0
        %2304 = vmatpush1.xpose.msra.mxu0 0.0
        %2305 = vmatprep.subr.mxu0 0.0
        %2306 = vmatpush1.xpose.msra.mxu0 0.0
        %2307 = vmatprep.subr.mxu0 0.0
        %v2308 = vand.u32 %v1901, 4294901760
        %2309 = vmatpush1.xpose.msra.mxu0 %v2308
        %2310 = vmatprep.subr.mxu0 0.0
        %2311 = vmatpush2.xpose.msra.mxu0 0.0
        %2312 = vmatprep.subr.mxu0 0.0
        %2313 = vmatpush2.xpose.msra.mxu0 0.0
        %2314 = vmatprep.subr.mxu0 0.0
        %2315 = vmatpush2.xpose.msra.mxu0 0.0
        %2316 = vmatprep.subr.mxu0 0.0
        %2317 = vmatpush2.xpose.msra.mxu0 0.0
        %2318 = vmatprep.subr.mxu0 0.0
        %2319 = vmatpush2.xpose.msra.mxu0 0.0
        %2320 = vmatprep.subr.mxu0 0.0
        %2321 = vmatpush2.xpose.msra.mxu0 0.0
        %2322 = vmatprep.subr.mxu0 0.0
        %2323 = vmatpush2.xpose.msra.mxu0 0.0
        %2324 = vmatprep.subr.mxu0 0.0
        %2325 = vmatpush2.xpose.msra.mxu0 0.0
        %2326 = vmatprep.subr.mxu0 0.0
        %2327 = vmatpush2.xpose.msra.mxu0 0.0
        %2328 = vmatprep.subr.mxu0 0.0
        %2329 = vmatpush2.xpose.msra.mxu0 0.0
        %2330 = vmatprep.subr.mxu0 0.0
        %2331 = vmatpush2.xpose.msra.mxu0 0.0
        %2332 = vmatprep.subr.mxu0 0.0
        %2333 = vmatpush2.xpose.msra.mxu0 0.0
        %2334 = vmatprep.subr.mxu0 0.0
        %2335 = vmatpush2.xpose.msra.mxu0 0.0
        %2336 = vmatprep.subr.mxu0 0.0
        %2337 = vmatpush2.xpose.msra.mxu0 0.0
        %2338 = vmatprep.subr.mxu0 0.0
        %2339 = vmatpush2.xpose.msra.mxu0 0.0
        %2340 = vmatprep.subr.mxu0 0.0
        %2341 = vmatpush2.xpose.msra.mxu0 0.0
        %2342 = vmatprep.mubr.f32.mxu0 0.0
        %v2343 = vand.u32 %v1898, 4294901760
        %2344 = vmatmul.mubr.f32.gmra.mxu0 %v2343
        %v2345 = vpop.f32.mrf.mxu0
        %v2346 = vadd.f32 %v2274, %v2345
        %v2347 = vpop.f32.mrf.mxu0
        %2348 = vdwg.mxu0
        %v2349 = vmul.f32 %v2346, 0.35355338
        %v2350 = vsel %vm1896, %v2349, -inf
        %2351 = vmax.xlane.f32.xlu0 %v2350
        %v2352 = vpop.xlane.xlu0 %2351
        %v2353 = vsub.f32 %v2349, %v2352
        %v2354 = vmul.f32 %v2353, 1.442695
        %v2355 = vpow.pop %v2354
        %v2356 = vsel %vm1896, %v2355, 0.0
        %2357 = vadd.xlane.f32.xlu0 %v2356
        %v2358 = vpop.xlane.xlu0 %2357
        %v2360 = vsel %vm1896, %v2355, 0
        %2362 = vmatprep.subr.mxu0 0.0
        %2363 = vmatpush1.msra.mxu0 0.0
        %2364 = vmatprep.subr.mxu0 0.0
        %2365 = vmatpush1.msra.mxu0 0.0
        %2366 = vmatprep.subr.mxu0 0.0
        %2367 = vmatpush1.msra.mxu0 0.0
        %2368 = vmatprep.subr.mxu0 0.0
        %2369 = vmatpush1.msra.mxu0 0.0
        %2370 = vmatprep.subr.mxu0 0.0
        %2371 = vmatpush1.msra.mxu0 0.0
        %2372 = vmatprep.subr.mxu0 0.0
        %2373 = vmatpush1.msra.mxu0 0.0
        %2374 = vmatprep.subr.mxu0 0.0
        %2375 = vmatpush1.msra.mxu0 0.0
        %2376 = vmatprep.subr.mxu0 0.0
        %2377 = vmatpush1.msra.mxu0 0.0
        %2378 = vmatprep.subr.mxu0 0.0
        %2379 = vmatpush1.msra.mxu0 0.0
        %2380 = vmatprep.subr.mxu0 0.0
        %2381 = vmatpush1.msra.mxu0 0.0
        %2382 = vmatprep.subr.mxu0 0.0
        %2383 = vmatpush1.msra.mxu0 0.0
        %2384 = vmatprep.subr.mxu0 0.0
        %2385 = vmatpush1.msra.mxu0 0.0
        %2386 = vmatprep.subr.mxu0 0.0
        %2387 = vmatpush1.msra.mxu0 0.0
        %2388 = vmatprep.subr.mxu0 0.0
        %2389 = vmatpush1.msra.mxu0 0.0
        %2390 = vmatprep.subr.mxu0 0.0
        %2391 = vmatpush1.msra.mxu0 0.0
        %2392 = vmatprep.subr.mxu0 0.0
        %v2393 = vand.u32 %v1393, 4294901760
        %2394 = vmatpush1.msra.mxu0 %v2393
        %2395 = vmatprep.subr.mxu0 0.0
        %2396 = vmatpush2.msra.mxu0 0.0
        %2397 = vmatprep.subr.mxu0 0.0
        %2398 = vmatpush2.msra.mxu0 0.0
        %2399 = vmatprep.subr.mxu0 0.0
        %2400 = vmatpush2.msra.mxu0 0.0
        %2401 = vmatprep.subr.mxu0 0.0
        %2402 = vmatpush2.msra.mxu0 0.0
        %2403 = vmatprep.subr.mxu0 0.0
        %2404 = vmatpush2.msra.mxu0 0.0
        %2405 = vmatprep.subr.mxu0 0.0
        %2406 = vmatpush2.msra.mxu0 0.0
        %2407 = vmatprep.subr.mxu0 0.0
        %2408 = vmatpush2.msra.mxu0 0.0
        %2409 = vmatprep.subr.mxu0 0.0
        %2410 = vmatpush2.msra.mxu0 0.0
        %2411 = vmatprep.subr.mxu0 0.0
        %2412 = vmatpush2.msra.mxu0 0.0
        %2413 = vmatprep.subr.mxu0 0.0
        %2414 = vmatpush2.msra.mxu0 0.0
        %2415 = vmatprep.subr.mxu0 0.0
        %2416 = vmatpush2.msra.mxu0 0.0
        %2417 = vmatprep.subr.mxu0 0.0
        %2418 = vmatpush2.msra.mxu0 0.0
        %2419 = vmatprep.subr.mxu0 0.0
        %2420 = vmatpush2.msra.mxu0 0.0
        %2421 = vmatprep.subr.mxu0 0.0
        %2422 = vmatpush2.msra.mxu0 0.0
        %2423 = vmatprep.subr.mxu0 0.0
        %2424 = vmatpush2.msra.mxu0 0.0
        %2425 = vmatprep.subr.mxu0 0.0
        %2426 = vmatpush2.msra.mxu0 0.0
        %2427 = vmatprep.mubr.f32.mxu0 0.0
        %v2428 = vand.u32 %v2360, 4294901760
        %v2429 = vsub.f32 %v2360, %v2428
        %v2430 = vand.u32 %v2429, 4294901760
        %v2431 = vsub.f32 %v2429, %v2430
        %v2432 = vand.u32 %v2431, 4294901760
        %2433 = vmatmul.mubr.f32.gmra.mxu0 %v2432
        %v2434 = vpop.f32.mrf.mxu0
        %v2435 = vadd.f32 0.0, %v2434
        %v2436 = vpop.f32.mrf.mxu0
        %2437 = vdwg.mxu0
        %2438 = vmatprep.subr.mxu0 0.0
        %2439 = vmatpush1.msra.mxu0 0.0
        %2440 = vmatprep.subr.mxu0 0.0
        %2441 = vmatpush1.msra.mxu0 0.0
        %2442 = vmatprep.subr.mxu0 0.0
        %2443 = vmatpush1.msra.mxu0 0.0
        %2444 = vmatprep.subr.mxu0 0.0
        %2445 = vmatpush1.msra.mxu0 0.0
        %2446 = vmatprep.subr.mxu0 0.0
        %2447 = vmatpush1.msra.mxu0 0.0
        %2448 = vmatprep.subr.mxu0 0.0
        %2449 = vmatpush1.msra.mxu0 0.0
        %2450 = vmatprep.subr.mxu0 0.0
        %2451 = vmatpush1.msra.mxu0 0.0
        %2452 = vmatprep.subr.mxu0 0.0
        %2453 = vmatpush1.msra.mxu0 0.0
        %2454 = vmatprep.subr.mxu0 0.0
        %2455 = vmatpush1.msra.mxu0 0.0
        %2456 = vmatprep.subr.mxu0 0.0
        %2457 = vmatpush1.msra.mxu0 0.0
        %2458 = vmatprep.subr.mxu0 0.0
        %2459 = vmatpush1.msra.mxu0 0.0
        %2460 = vmatprep.subr.mxu0 0.0
        %2461 = vmatpush1.msra.mxu0 0.0
        %2462 = vmatprep.subr.mxu0 0.0
        %2463 = vmatpush1.msra.mxu0 0.0
        %2464 = vmatprep.subr.mxu0 0.0
        %2465 = vmatpush1.msra.mxu0 0.0
        %2466 = vmatprep.subr.mxu0 0.0
        %2467 = vmatpush1.msra.mxu0 0.0
        %2468 = vmatprep.subr.mxu0 0.0
        %v2469 = vand.u32 %v1393, 4294901760
        %v2470 = vsub.f32 %v1393, %v2469
        %v2471 = vand.u32 %v2470, 4294901760
        %v2472 = vsub.f32 %v2470, %v2471
        %v2473 = vand.u32 %v2472, 4294901760
        %2474 = vmatpush1.msra.mxu0 %v2473
        %2475 = vmatprep.subr.mxu0 0.0
        %2476 = vmatpush2.msra.mxu0 0.0
        %2477 = vmatprep.subr.mxu0 0.0
        %2478 = vmatpush2.msra.mxu0 0.0
        %2479 = vmatprep.subr.mxu0 0.0
        %2480 = vmatpush2.msra.mxu0 0.0
        %2481 = vmatprep.subr.mxu0 0.0
        %2482 = vmatpush2.msra.mxu0 0.0
        %2483 = vmatprep.subr.mxu0 0.0
        %2484 = vmatpush2.msra.mxu0 0.0
        %2485 = vmatprep.subr.mxu0 0.0
        %2486 = vmatpush2.msra.mxu0 0.0
        %2487 = vmatprep.subr.mxu0 0.0
        %2488 = vmatpush2.msra.mxu0 0.0
        %2489 = vmatprep.subr.mxu0 0.0
        %2490 = vmatpush2.msra.mxu0 0.0
        %2491 = vmatprep.subr.mxu0 0.0
        %2492 = vmatpush2.msra.mxu0 0.0
        %2493 = vmatprep.subr.mxu0 0.0
        %2494 = vmatpush2.msra.mxu0 0.0
        %2495 = vmatprep.subr.mxu0 0.0
        %2496 = vmatpush2.msra.mxu0 0.0
        %2497 = vmatprep.subr.mxu0 0.0
        %2498 = vmatpush2.msra.mxu0 0.0
        %2499 = vmatprep.subr.mxu0 0.0
        %2500 = vmatpush2.msra.mxu0 0.0
        %2501 = vmatprep.subr.mxu0 0.0
        %2502 = vmatpush2.msra.mxu0 0.0
        %2503 = vmatprep.subr.mxu0 0.0
        %2504 = vmatpush2.msra.mxu0 0.0
        %2505 = vmatprep.subr.mxu0 0.0
        %2506 = vmatpush2.msra.mxu0 0.0
        %2507 = vmatprep.mubr.f32.mxu0 0.0
        %v2508 = vand.u32 %v2360, 4294901760
        %2509 = vmatmul.mubr.f32.gmra.mxu0 %v2508
        %v2510 = vpop.f32.mrf.mxu0
        %v2511 = vadd.f32 %v2435, %v2510
        %v2512 = vpop.f32.mrf.mxu0
        %2513 = vdwg.mxu0
        %2514 = vmatprep.subr.mxu0 0.0
        %2515 = vmatpush1.msra.mxu0 0.0
        %2516 = vmatprep.subr.mxu0 0.0
        %2517 = vmatpush1.msra.mxu0 0.0
        %2518 = vmatprep.subr.mxu0 0.0
        %2519 = vmatpush1.msra.mxu0 0.0
        %2520 = vmatprep.subr.mxu0 0.0
        %2521 = vmatpush1.msra.mxu0 0.0
        %2522 = vmatprep.subr.mxu0 0.0
        %2523 = vmatpush1.msra.mxu0 0.0
        %2524 = vmatprep.subr.mxu0 0.0
        %2525 = vmatpush1.msra.mxu0 0.0
        %2526 = vmatprep.subr.mxu0 0.0
        %2527 = vmatpush1.msra.mxu0 0.0
        %2528 = vmatprep.subr.mxu0 0.0
        %2529 = vmatpush1.msra.mxu0 0.0
        %2530 = vmatprep.subr.mxu0 0.0
        %2531 = vmatpush1.msra.mxu0 0.0
        %2532 = vmatprep.subr.mxu0 0.0
        %2533 = vmatpush1.msra.mxu0 0.0
        %2534 = vmatprep.subr.mxu0 0.0
        %2535 = vmatpush1.msra.mxu0 0.0
        %2536 = vmatprep.subr.mxu0 0.0
        %2537 = vmatpush1.msra.mxu0 0.0
        %2538 = vmatprep.subr.mxu0 0.0
        %2539 = vmatpush1.msra.mxu0 0.0
        %2540 = vmatprep.subr.mxu0 0.0
        %2541 = vmatpush1.msra.mxu0 0.0
        %2542 = vmatprep.subr.mxu0 0.0
        %2543 = vmatpush1.msra.mxu0 0.0
        %2544 = vmatprep.subr.mxu0 0.0
        %v2545 = vand.u32 %v1393, 4294901760
        %v2546 = vsub.f32 %v1393, %v2545
        %2547 = vmatpush1.msra.mxu0 %v2546
        %2548 = vmatprep.subr.mxu0 0.0
        %2549 = vmatpush2.msra.mxu0 0.0
        %2550 = vmatprep.subr.mxu0 0.0
        %2551 = vmatpush2.msra.mxu0 0.0
        %2552 = vmatprep.subr.mxu0 0.0
        %2553 = vmatpush2.msra.mxu0 0.0
        %2554 = vmatprep.subr.mxu0 0.0
        %2555 = vmatpush2.msra.mxu0 0.0
        %2556 = vmatprep.subr.mxu0 0.0
        %2557 = vmatpush2.msra.mxu0 0.0
        %2558 = vmatprep.subr.mxu0 0.0
        %2559 = vmatpush2.msra.mxu0 0.0
        %2560 = vmatprep.subr.mxu0 0.0
        %2561 = vmatpush2.msra.mxu0 0.0
        %2562 = vmatprep.subr.mxu0 0.0
        %2563 = vmatpush2.msra.mxu0 0.0
        %2564 = vmatprep.subr.mxu0 0.0
        %2565 = vmatpush2.msra.mxu0 0.0
        %2566 = vmatprep.subr.mxu0 0.0
        %2567 = vmatpush2.msra.mxu0 0.0
        %2568 = vmatprep.subr.mxu0 0.0
        %2569 = vmatpush2.msra.mxu0 0.0
        %2570 = vmatprep.subr.mxu0 0.0
        %2571 = vmatpush2.msra.mxu0 0.0
        %2572 = vmatprep.subr.mxu0 0.0
        %2573 = vmatpush2.msra.mxu0 0.0
        %2574 = vmatprep.subr.mxu0 0.0
        %2575 = vmatpush2.msra.mxu0 0.0
        %2576 = vmatprep.subr.mxu0 0.0
        %2577 = vmatpush2.msra.mxu0 0.0
        %2578 = vmatprep.subr.mxu0 0.0
        %2579 = vmatpush2.msra.mxu0 0.0
        %2580 = vmatprep.mubr.f32.mxu0 0.0
        %v2581 = vand.u32 %v2360, 4294901760
        %v2582 = vsub.f32 %v2360, %v2581
        %2583 = vmatmul.mubr.f32.gmra.mxu0 %v2582
        %v2584 = vpop.f32.mrf.mxu0
        %v2585 = vadd.f32 %v2511, %v2584
        %v2586 = vpop.f32.mrf.mxu0
        %2587 = vdwg.mxu0
        %2588 = vmatprep.subr.mxu0 0.0
        %2589 = vmatpush1.msra.mxu0 0.0
        %2590 = vmatprep.subr.mxu0 0.0
        %2591 = vmatpush1.msra.mxu0 0.0
        %2592 = vmatprep.subr.mxu0 0.0
        %2593 = vmatpush1.msra.mxu0 0.0
        %2594 = vmatprep.subr.mxu0 0.0
        %2595 = vmatpush1.msra.mxu0 0.0
        %2596 = vmatprep.subr.mxu0 0.0
        %2597 = vmatpush1.msra.mxu0 0.0
        %2598 = vmatprep.subr.mxu0 0.0
        %2599 = vmatpush1.msra.mxu0 0.0
        %2600 = vmatprep.subr.mxu0 0.0
        %2601 = vmatpush1.msra.mxu0 0.0
        %2602 = vmatprep.subr.mxu0 0.0
        %2603 = vmatpush1.msra.mxu0 0.0
        %2604 = vmatprep.subr.mxu0 0.0
        %2605 = vmatpush1.msra.mxu0 0.0
        %2606 = vmatprep.subr.mxu0 0.0
        %2607 = vmatpush1.msra.mxu0 0.0
        %2608 = vmatprep.subr.mxu0 0.0
        %2609 = vmatpush1.msra.mxu0 0.0
        %2610 = vmatprep.subr.mxu0 0.0
        %2611 = vmatpush1.msra.mxu0 0.0
        %2612 = vmatprep.subr.mxu0 0.0
        %2613 = vmatpush1.msra.mxu0 0.0
        %2614 = vmatprep.subr.mxu0 0.0
        %2615 = vmatpush1.msra.mxu0 0.0
        %2616 = vmatprep.subr.mxu0 0.0
        %2617 = vmatpush1.msra.mxu0 0.0
        %2618 = vmatprep.subr.mxu0 0.0
        %v2619 = vand.u32 %v1393, 4294901760
        %2620 = vmatpush1.msra.mxu0 %v2619
        %2621 = vmatprep.subr.mxu0 0.0
        %2622 = vmatpush2.msra.mxu0 0.0
        %2623 = vmatprep.subr.mxu0 0.0
        %2624 = vmatpush2.msra.mxu0 0.0
        %2625 = vmatprep.subr.mxu0 0.0
        %2626 = vmatpush2.msra.mxu0 0.0
        %2627 = vmatprep.subr.mxu0 0.0
        %2628 = vmatpush2.msra.mxu0 0.0
        %2629 = vmatprep.subr.mxu0 0.0
        %2630 = vmatpush2.msra.mxu0 0.0
        %2631 = vmatprep.subr.mxu0 0.0
        %2632 = vmatpush2.msra.mxu0 0.0
        %2633 = vmatprep.subr.mxu0 0.0
        %2634 = vmatpush2.msra.mxu0 0.0
        %2635 = vmatprep.subr.mxu0 0.0
        %2636 = vmatpush2.msra.mxu0 0.0
        %2637 = vmatprep.subr.mxu0 0.0
        %2638 = vmatpush2.msra.mxu0 0.0
        %2639 = vmatprep.subr.mxu0 0.0
        %2640 = vmatpush2.msra.mxu0 0.0
        %2641 = vmatprep.subr.mxu0 0.0
        %2642 = vmatpush2.msra.mxu0 0.0
        %2643 = vmatprep.subr.mxu0 0.0
        %2644 = vmatpush2.msra.mxu0 0.0
        %2645 = vmatprep.subr.mxu0 0.0
        %2646 = vmatpush2.msra.mxu0 0.0
        %2647 = vmatprep.subr.mxu0 0.0
        %2648 = vmatpush2.msra.mxu0 0.0
        %2649 = vmatprep.subr.mxu0 0.0
        %2650 = vmatpush2.msra.mxu0 0.0
        %2651 = vmatprep.subr.mxu0 0.0
        %2652 = vmatpush2.msra.mxu0 0.0
        %2653 = vmatprep.mubr.f32.mxu0 0.0
        %v2654 = vand.u32 %v2360, 4294901760
        %v2655 = vsub.f32 %v2360, %v2654
        %v2656 = vand.u32 %v2655, 4294901760
        %2657 = vmatmul.mubr.f32.gmra.mxu0 %v2656
        %v2658 = vpop.f32.mrf.mxu0
        %v2659 = vadd.f32 %v2585, %v2658
        %v2660 = vpop.f32.mrf.mxu0
        %2661 = vdwg.mxu0
        %2662 = vmatprep.subr.mxu0 0.0
        %2663 = vmatpush1.msra.mxu0 0.0
        %2664 = vmatprep.subr.mxu0 0.0
        %2665 = vmatpush1.msra.mxu0 0.0
        %2666 = vmatprep.subr.mxu0 0.0
        %2667 = vmatpush1.msra.mxu0 0.0
        %2668 = vmatprep.subr.mxu0 0.0
        %2669 = vmatpush1.msra.mxu0 0.0
        %2670 = vmatprep.subr.mxu0 0.0
        %2671 = vmatpush1.msra.mxu0 0.0
        %2672 = vmatprep.subr.mxu0 0.0
        %2673 = vmatpush1.msra.mxu0 0.0
        %2674 = vmatprep.subr.mxu0 0.0
        %2675 = vmatpush1.msra.mxu0 0.0
        %2676 = vmatprep.subr.mxu0 0.0
        %2677 = vmatpush1.msra.mxu0 0.0
        %2678 = vmatprep.subr.mxu0 0.0
        %2679 = vmatpush1.msra.mxu0 0.0
        %2680 = vmatprep.subr.mxu0 0.0
        %2681 = vmatpush1.msra.mxu0 0.0
        %2682 = vmatprep.subr.mxu0 0.0
        %2683 = vmatpush1.msra.mxu0 0.0
        %2684 = vmatprep.subr.mxu0 0.0
        %2685 = vmatpush1.msra.mxu0 0.0
        %2686 = vmatprep.subr.mxu0 0.0
        %2687 = vmatpush1.msra.mxu0 0.0
        %2688 = vmatprep.subr.mxu0 0.0
        %2689 = vmatpush1.msra.mxu0 0.0
        %2690 = vmatprep.subr.mxu0 0.0
        %2691 = vmatpush1.msra.mxu0 0.0
        %2692 = vmatprep.subr.mxu0 0.0
        %v2693 = vand.u32 %v1393, 4294901760
        %v2694 = vsub.f32 %v1393, %v2693
        %v2695 = vand.u32 %v2694, 4294901760
        %2696 = vmatpush1.msra.mxu0 %v2695
        %2697 = vmatprep.subr.mxu0 0.0
        %2698 = vmatpush2.msra.mxu0 0.0
        %2699 = vmatprep.subr.mxu0 0.0
        %2700 = vmatpush2.msra.mxu0 0.0
        %2701 = vmatprep.subr.mxu0 0.0
        %2702 = vmatpush2.msra.mxu0 0.0
        %2703 = vmatprep.subr.mxu0 0.0
        %2704 = vmatpush2.msra.mxu0 0.0
        %2705 = vmatprep.subr.mxu0 0.0
        %2706 = vmatpush2.msra.mxu0 0.0
        %2707 = vmatprep.subr.mxu0 0.0
        %2708 = vmatpush2.msra.mxu0 0.0
        %2709 = vmatprep.subr.mxu0 0.0
        %2710 = vmatpush2.msra.mxu0 0.0
        %2711 = vmatprep.subr.mxu0 0.0
        %2712 = vmatpush2.msra.mxu0 0.0
        %2713 = vmatprep.subr.mxu0 0.0
        %2714 = vmatpush2.msra.mxu0 0.0
        %2715 = vmatprep.subr.mxu0 0.0
        %2716 = vmatpush2.msra.mxu0 0.0
        %2717 = vmatprep.subr.mxu0 0.0
        %2718 = vmatpush2.msra.mxu0 0.0
        %2719 = vmatprep.subr.mxu0 0.0
        %2720 = vmatpush2.msra.mxu0 0.0
        %2721 = vmatprep.subr.mxu0 0.0
        %2722 = vmatpush2.msra.mxu0 0.0
        %2723 = vmatprep.subr.mxu0 0.0
        %2724 = vmatpush2.msra.mxu0 0.0
        %2725 = vmatprep.subr.mxu0 0.0
        %2726 = vmatpush2.msra.mxu0 0.0
        %2727 = vmatprep.subr.mxu0 0.0
        %2728 = vmatpush2.msra.mxu0 0.0
        %2729 = vmatprep.mubr.f32.mxu0 0.0
        %v2730 = vand.u32 %v2360, 4294901760
        %2731 = vmatmul.mubr.f32.gmra.mxu0 %v2730
        %v2732 = vpop.f32.mrf.mxu0
        %v2733 = vadd.f32 %v2659, %v2732
        %v2734 = vpop.f32.mrf.mxu0
        %2735 = vdwg.mxu0
        %2736 = vmatprep.subr.mxu0 0.0
        %2737 = vmatpush1.msra.mxu0 0.0
        %2738 = vmatprep.subr.mxu0 0.0
        %2739 = vmatpush1.msra.mxu0 0.0
        %2740 = vmatprep.subr.mxu0 0.0
        %2741 = vmatpush1.msra.mxu0 0.0
        %2742 = vmatprep.subr.mxu0 0.0
        %2743 = vmatpush1.msra.mxu0 0.0
        %2744 = vmatprep.subr.mxu0 0.0
        %2745 = vmatpush1.msra.mxu0 0.0
        %2746 = vmatprep.subr.mxu0 0.0
        %2747 = vmatpush1.msra.mxu0 0.0
        %2748 = vmatprep.subr.mxu0 0.0
        %2749 = vmatpush1.msra.mxu0 0.0
        %2750 = vmatprep.subr.mxu0 0.0
        %2751 = vmatpush1.msra.mxu0 0.0
        %2752 = vmatprep.subr.mxu0 0.0
        %2753 = vmatpush1.msra.mxu0 0.0
        %2754 = vmatprep.subr.mxu0 0.0
        %2755 = vmatpush1.msra.mxu0 0.0
        %2756 = vmatprep.subr.mxu0 0.0
        %2757 = vmatpush1.msra.mxu0 0.0
        %2758 = vmatprep.subr.mxu0 0.0
        %2759 = vmatpush1.msra.mxu0 0.0
        %2760 = vmatprep.subr.mxu0 0.0
        %2761 = vmatpush1.msra.mxu0 0.0
        %2762 = vmatprep.subr.mxu0 0.0
        %2763 = vmatpush1.msra.mxu0 0.0
        %2764 = vmatprep.subr.mxu0 0.0
        %2765 = vmatpush1.msra.mxu0 0.0
        %2766 = vmatprep.subr.mxu0 0.0
        %v2767 = vand.u32 %v1393, 4294901760
        %2768 = vmatpush1.msra.mxu0 %v2767
        %2769 = vmatprep.subr.mxu0 0.0
        %2770 = vmatpush2.msra.mxu0 0.0
        %2771 = vmatprep.subr.mxu0 0.0
        %2772 = vmatpush2.msra.mxu0 0.0
        %2773 = vmatprep.subr.mxu0 0.0
        %2774 = vmatpush2.msra.mxu0 0.0
        %2775 = vmatprep.subr.mxu0 0.0
        %2776 = vmatpush2.msra.mxu0 0.0
        %2777 = vmatprep.subr.mxu0 0.0
        %2778 = vmatpush2.msra.mxu0 0.0
        %2779 = vmatprep.subr.mxu0 0.0
        %2780 = vmatpush2.msra.mxu0 0.0
        %2781 = vmatprep.subr.mxu0 0.0
        %2782 = vmatpush2.msra.mxu0 0.0
        %2783 = vmatprep.subr.mxu0 0.0
        %2784 = vmatpush2.msra.mxu0 0.0
        %2785 = vmatprep.subr.mxu0 0.0
        %2786 = vmatpush2.msra.mxu0 0.0
        %2787 = vmatprep.subr.mxu0 0.0
        %2788 = vmatpush2.msra.mxu0 0.0
        %2789 = vmatprep.subr.mxu0 0.0
        %2790 = vmatpush2.msra.mxu0 0.0
        %2791 = vmatprep.subr.mxu0 0.0
        %2792 = vmatpush2.msra.mxu0 0.0
        %2793 = vmatprep.subr.mxu0 0.0
        %2794 = vmatpush2.msra.mxu0 0.0
        %2795 = vmatprep.subr.mxu0 0.0
        %2796 = vmatpush2.msra.mxu0 0.0
        %2797 = vmatprep.subr.mxu0 0.0
        %2798 = vmatpush2.msra.mxu0 0.0
        %2799 = vmatprep.subr.mxu0 0.0
        %2800 = vmatpush2.msra.mxu0 0.0
        %2801 = vmatprep.mubr.f32.mxu0 0.0
        %v2802 = vand.u32 %v2360, 4294901760
        %2803 = vmatmul.mubr.f32.gmra.mxu0 %v2802
        %v2804 = vpop.f32.mrf.mxu0
        %v2805 = vadd.f32 %v2733, %v2804
        %v2806 = vpop.f32.mrf.mxu0
        %2807 = vdwg.mxu0
        %v2808 = vrcp.pop %v2358
        %v2809 = vmul.f32 %v2805, %v2808
        %v2810 = vld [vmem:[%s6] sm:$0xff]
        %s2811 = scalar_lea.vmem %s3, 32
        %v2812 = vld [vmem:[%s2811] sm:$0xff]
        %v2813 = vld [vmem:[%s2811 + $0x8] sm:$0xff]
        %v2814 = vld [vmem:[%s2811 + $0x10] sm:$0xff]
        %v2815 = vld [vmem:[%s2811 + $0x18] sm:$0xff]
        %2816 = vmatprep.subr.mxu0 0.0
        %2817 = vmatpush1.msra.mxu0 0.0
        %2818 = vmatprep.subr.mxu0 0.0
        %2819 = vmatpush1.msra.mxu0 0.0
        %2820 = vmatprep.subr.mxu0 0.0
        %2821 = vmatpush1.msra.mxu0 0.0
        %2822 = vmatprep.subr.mxu0 0.0
        %2823 = vmatpush1.msra.mxu0 0.0
        %2824 = vmatprep.subr.mxu0 0.0
        %2825 = vmatpush1.msra.mxu0 0.0
        %2826 = vmatprep.subr.mxu0 0.0
        %2827 = vmatpush1.msra.mxu0 0.0
        %2828 = vmatprep.subr.mxu0 0.0
        %2829 = vmatpush1.msra.mxu0 0.0
        %2830 = vmatprep.subr.mxu0 0.0
        %2831 = vmatpush1.msra.mxu0 0.0
        %2832 = vmatprep.subr.mxu0 0.0
        %2833 = vmatpush1.msra.mxu0 0.0
        %2834 = vmatprep.subr.mxu0 0.0
        %2835 = vmatpush1.msra.mxu0 0.0
        %2836 = vmatprep.subr.mxu0 0.0
        %2837 = vmatpush1.msra.mxu0 0.0
        %2838 = vmatprep.subr.mxu0 0.0
        %2839 = vmatpush1.msra.mxu0 0.0
        %2840 = vmatprep.subr.mxu0 0.0
        %v2841 = vand.u32 %v2815, 4294901760
        %2842 = vmatpush1.msra.mxu0 %v2841
        %2843 = vmatprep.subr.mxu0 0.0
        %v2844 = vand.u32 %v2814, 4294901760
        %2845 = vmatpush1.msra.mxu0 %v2844
        %2846 = vmatprep.subr.mxu0 0.0
        %v2847 = vand.u32 %v2813, 4294901760
        %2848 = vmatpush1.msra.mxu0 %v2847
        %2849 = vmatprep.subr.mxu0 0.0
        %v2850 = vand.u32 %v2812, 4294901760
        %2851 = vmatpush1.msra.mxu0 %v2850
        %2852 = vmatprep.subr.mxu0 0.0
        %2853 = vmatpush2.msra.mxu0 0.0
        %2854 = vmatprep.subr.mxu0 0.0
        %2855 = vmatpush2.msra.mxu0 0.0
        %2856 = vmatprep.subr.mxu0 0.0
        %2857 = vmatpush2.msra.mxu0 0.0
        %2858 = vmatprep.subr.mxu0 0.0
        %2859 = vmatpush2.msra.mxu0 0.0
        %2860 = vmatprep.subr.mxu0 0.0
        %2861 = vmatpush2.msra.mxu0 0.0
        %2862 = vmatprep.subr.mxu0 0.0
        %2863 = vmatpush2.msra.mxu0 0.0
        %2864 = vmatprep.subr.mxu0 0.0
        %2865 = vmatpush2.msra.mxu0 0.0
        %2866 = vmatprep.subr.mxu0 0.0
        %2867 = vmatpush2.msra.mxu0 0.0
        %2868 = vmatprep.subr.mxu0 0.0
        %2869 = vmatpush2.msra.mxu0 0.0
        %2870 = vmatprep.subr.mxu0 0.0
        %2871 = vmatpush2.msra.mxu0 0.0
        %2872 = vmatprep.subr.mxu0 0.0
        %2873 = vmatpush2.msra.mxu0 0.0
        %2874 = vmatprep.subr.mxu0 0.0
        %2875 = vmatpush2.msra.mxu0 0.0
        %2876 = vmatprep.subr.mxu0 0.0
        %2877 = vmatpush2.msra.mxu0 0.0
        %2878 = vmatprep.subr.mxu0 0.0
        %2879 = vmatpush2.msra.mxu0 0.0
        %2880 = vmatprep.subr.mxu0 0.0
        %2881 = vmatpush2.msra.mxu0 0.0
        %2882 = vmatprep.subr.mxu0 0.0
        %2883 = vmatpush2.msra.mxu0 0.0
        %2884 = vmatprep.mubr.f32.mxu0 0.0
        %v2885 = vand.u32 %v408, 4294901760
        %v2886 = vsub.f32 %v408, %v2885
        %v2887 = vand.u32 %v2886, 4294901760
        %v2888 = vsub.f32 %v2886, %v2887
        %v2889 = vand.u32 %v2888, 4294901760
        %2890 = vmatmul.mubr.f32.gmra.mxu0 %v2889
        %v2891 = vpop.f32.mrf.mxu0
        %v2892 = vadd.f32 0.0, %v2891
        %v2893 = vpop.f32.mrf.mxu0
        %2894 = vdwg.mxu0
        %2895 = vmatprep.subr.mxu0 0.0
        %2896 = vmatpush1.msra.mxu0 0.0
        %2897 = vmatprep.subr.mxu0 0.0
        %2898 = vmatpush1.msra.mxu0 0.0
        %2899 = vmatprep.subr.mxu0 0.0
        %2900 = vmatpush1.msra.mxu0 0.0
        %2901 = vmatprep.subr.mxu0 0.0
        %2902 = vmatpush1.msra.mxu0 0.0
        %2903 = vmatprep.subr.mxu0 0.0
        %2904 = vmatpush1.msra.mxu0 0.0
        %2905 = vmatprep.subr.mxu0 0.0
        %2906 = vmatpush1.msra.mxu0 0.0
        %2907 = vmatprep.subr.mxu0 0.0
        %2908 = vmatpush1.msra.mxu0 0.0
        %2909 = vmatprep.subr.mxu0 0.0
        %2910 = vmatpush1.msra.mxu0 0.0
        %2911 = vmatprep.subr.mxu0 0.0
        %2912 = vmatpush1.msra.mxu0 0.0
        %2913 = vmatprep.subr.mxu0 0.0
        %2914 = vmatpush1.msra.mxu0 0.0
        %2915 = vmatprep.subr.mxu0 0.0
        %2916 = vmatpush1.msra.mxu0 0.0
        %2917 = vmatprep.subr.mxu0 0.0
        %2918 = vmatpush1.msra.mxu0 0.0
        %2919 = vmatprep.subr.mxu0 0.0
        %v2920 = vand.u32 %v2815, 4294901760
        %v2921 = vsub.f32 %v2815, %v2920
        %v2922 = vand.u32 %v2921, 4294901760
        %v2923 = vsub.f32 %v2921, %v2922
        %v2924 = vand.u32 %v2923, 4294901760
        %2925 = vmatpush1.msra.mxu0 %v2924
        %2926 = vmatprep.subr.mxu0 0.0
        %v2927 = vand.u32 %v2814, 4294901760
        %v2928 = vsub.f32 %v2814, %v2927
        %v2929 = vand.u32 %v2928, 4294901760
        %v2930 = vsub.f32 %v2928, %v2929
        %v2931 = vand.u32 %v2930, 4294901760
        %2932 = vmatpush1.msra.mxu0 %v2931
        %2933 = vmatprep.subr.mxu0 0.0
        %v2934 = vand.u32 %v2813, 4294901760
        %v2935 = vsub.f32 %v2813, %v2934
        %v2936 = vand.u32 %v2935, 4294901760
        %v2937 = vsub.f32 %v2935, %v2936
        %v2938 = vand.u32 %v2937, 4294901760
        %2939 = vmatpush1.msra.mxu0 %v2938
        %2940 = vmatprep.subr.mxu0 0.0
        %v2941 = vand.u32 %v2812, 4294901760
        %v2942 = vsub.f32 %v2812, %v2941
        %v2943 = vand.u32 %v2942, 4294901760
        %v2944 = vsub.f32 %v2942, %v2943
        %v2945 = vand.u32 %v2944, 4294901760
        %2946 = vmatpush1.msra.mxu0 %v2945
        %2947 = vmatprep.subr.mxu0 0.0
        %2948 = vmatpush2.msra.mxu0 0.0
        %2949 = vmatprep.subr.mxu0 0.0
        %2950 = vmatpush2.msra.mxu0 0.0
        %2951 = vmatprep.subr.mxu0 0.0
        %2952 = vmatpush2.msra.mxu0 0.0
        %2953 = vmatprep.subr.mxu0 0.0
        %2954 = vmatpush2.msra.mxu0 0.0
        %2955 = vmatprep.subr.mxu0 0.0
        %2956 = vmatpush2.msra.mxu0 0.0
        %2957 = vmatprep.subr.mxu0 0.0
        %2958 = vmatpush2.msra.mxu0 0.0
        %2959 = vmatprep.subr.mxu0 0.0
        %2960 = vmatpush2.msra.mxu0 0.0
        %2961 = vmatprep.subr.mxu0 0.0
        %2962 = vmatpush2.msra.mxu0 0.0
        %2963 = vmatprep.subr.mxu0 0.0
        %2964 = vmatpush2.msra.mxu0 0.0
        %2965 = vmatprep.subr.mxu0 0.0
        %2966 = vmatpush2.msra.mxu0 0.0
        %2967 = vmatprep.subr.mxu0 0.0
        %2968 = vmatpush2.msra.mxu0 0.0
        %2969 = vmatprep.subr.mxu0 0.0
        %2970 = vmatpush2.msra.mxu0 0.0
        %2971 = vmatprep.subr.mxu0 0.0
        %2972 = vmatpush2.msra.mxu0 0.0
        %2973 = vmatprep.subr.mxu0 0.0
        %2974 = vmatpush2.msra.mxu0 0.0
        %2975 = vmatprep.subr.mxu0 0.0
        %2976 = vmatpush2.msra.mxu0 0.0
        %2977 = vmatprep.subr.mxu0 0.0
        %2978 = vmatpush2.msra.mxu0 0.0
        %2979 = vmatprep.mubr.f32.mxu0 0.0
        %v2980 = vand.u32 %v408, 4294901760
        %2981 = vmatmul.mubr.f32.gmra.mxu0 %v2980
        %v2982 = vpop.f32.mrf.mxu0
        %v2983 = vadd.f32 %v2892, %v2982
        %v2984 = vpop.f32.mrf.mxu0
        %2985 = vdwg.mxu0
        %2986 = vmatprep.subr.mxu0 0.0
        %2987 = vmatpush1.msra.mxu0 0.0
        %2988 = vmatprep.subr.mxu0 0.0
        %2989 = vmatpush1.msra.mxu0 0.0
        %2990 = vmatprep.subr.mxu0 0.0
        %2991 = vmatpush1.msra.mxu0 0.0
        %2992 = vmatprep.subr.mxu0 0.0
        %2993 = vmatpush1.msra.mxu0 0.0
        %2994 = vmatprep.subr.mxu0 0.0
        %2995 = vmatpush1.msra.mxu0 0.0
        %2996 = vmatprep.subr.mxu0 0.0
        %2997 = vmatpush1.msra.mxu0 0.0
        %2998 = vmatprep.subr.mxu0 0.0
        %2999 = vmatpush1.msra.mxu0 0.0
        %3000 = vmatprep.subr.mxu0 0.0
        %3001 = vmatpush1.msra.mxu0 0.0
        %3002 = vmatprep.subr.mxu0 0.0
        %3003 = vmatpush1.msra.mxu0 0.0
        %3004 = vmatprep.subr.mxu0 0.0
        %3005 = vmatpush1.msra.mxu0 0.0
        %3006 = vmatprep.subr.mxu0 0.0
        %3007 = vmatpush1.msra.mxu0 0.0
        %3008 = vmatprep.subr.mxu0 0.0
        %3009 = vmatpush1.msra.mxu0 0.0
        %3010 = vmatprep.subr.mxu0 0.0
        %v3011 = vand.u32 %v2815, 4294901760
        %v3012 = vsub.f32 %v2815, %v3011
        %3013 = vmatpush1.msra.mxu0 %v3012
        %3014 = vmatprep.subr.mxu0 0.0
        %v3015 = vand.u32 %v2814, 4294901760
        %v3016 = vsub.f32 %v2814, %v3015
        %3017 = vmatpush1.msra.mxu0 %v3016
        %3018 = vmatprep.subr.mxu0 0.0
        %v3019 = vand.u32 %v2813, 4294901760
        %v3020 = vsub.f32 %v2813, %v3019
        %3021 = vmatpush1.msra.mxu0 %v3020
        %3022 = vmatprep.subr.mxu0 0.0
        %v3023 = vand.u32 %v2812, 4294901760
        %v3024 = vsub.f32 %v2812, %v3023
        %3025 = vmatpush1.msra.mxu0 %v3024
        %3026 = vmatprep.subr.mxu0 0.0
        %3027 = vmatpush2.msra.mxu0 0.0
        %3028 = vmatprep.subr.mxu0 0.0
        %3029 = vmatpush2.msra.mxu0 0.0
        %3030 = vmatprep.subr.mxu0 0.0
        %3031 = vmatpush2.msra.mxu0 0.0
        %3032 = vmatprep.subr.mxu0 0.0
        %3033 = vmatpush2.msra.mxu0 0.0
        %3034 = vmatprep.subr.mxu0 0.0
        %3035 = vmatpush2.msra.mxu0 0.0
        %3036 = vmatprep.subr.mxu0 0.0
        %3037 = vmatpush2.msra.mxu0 0.0
        %3038 = vmatprep.subr.mxu0 0.0
        %3039 = vmatpush2.msra.mxu0 0.0
        %3040 = vmatprep.subr.mxu0 0.0
        %3041 = vmatpush2.msra.mxu0 0.0
        %3042 = vmatprep.subr.mxu0 0.0
        %3043 = vmatpush2.msra.mxu0 0.0
        %3044 = vmatprep.subr.mxu0 0.0
        %3045 = vmatpush2.msra.mxu0 0.0
        %3046 = vmatprep.subr.mxu0 0.0
        %3047 = vmatpush2.msra.mxu0 0.0
        %3048 = vmatprep.subr.mxu0 0.0
        %3049 = vmatpush2.msra.mxu0 0.0
        %3050 = vmatprep.subr.mxu0 0.0
        %3051 = vmatpush2.msra.mxu0 0.0
        %3052 = vmatprep.subr.mxu0 0.0
        %3053 = vmatpush2.msra.mxu0 0.0
        %3054 = vmatprep.subr.mxu0 0.0
        %3055 = vmatpush2.msra.mxu0 0.0
        %3056 = vmatprep.subr.mxu0 0.0
        %3057 = vmatpush2.msra.mxu0 0.0
        %3058 = vmatprep.mubr.f32.mxu0 0.0
        %v3059 = vand.u32 %v408, 4294901760
        %v3060 = vsub.f32 %v408, %v3059
        %3061 = vmatmul.mubr.f32.gmra.mxu0 %v3060
        %v3062 = vpop.f32.mrf.mxu0
        %v3063 = vadd.f32 %v2983, %v3062
        %v3064 = vpop.f32.mrf.mxu0
        %3065 = vdwg.mxu0
        %3066 = vmatprep.subr.mxu0 0.0
        %3067 = vmatpush1.msra.mxu0 0.0
        %3068 = vmatprep.subr.mxu0 0.0
        %3069 = vmatpush1.msra.mxu0 0.0
        %3070 = vmatprep.subr.mxu0 0.0
        %3071 = vmatpush1.msra.mxu0 0.0
        %3072 = vmatprep.subr.mxu0 0.0
        %3073 = vmatpush1.msra.mxu0 0.0
        %3074 = vmatprep.subr.mxu0 0.0
        %3075 = vmatpush1.msra.mxu0 0.0
        %3076 = vmatprep.subr.mxu0 0.0
        %3077 = vmatpush1.msra.mxu0 0.0
        %3078 = vmatprep.subr.mxu0 0.0
        %3079 = vmatpush1.msra.mxu0 0.0
        %3080 = vmatprep.subr.mxu0 0.0
        %3081 = vmatpush1.msra.mxu0 0.0
        %3082 = vmatprep.subr.mxu0 0.0
        %3083 = vmatpush1.msra.mxu0 0.0
        %3084 = vmatprep.subr.mxu0 0.0
        %3085 = vmatpush1.msra.mxu0 0.0
        %3086 = vmatprep.subr.mxu0 0.0
        %3087 = vmatpush1.msra.mxu0 0.0
        %3088 = vmatprep.subr.mxu0 0.0
        %3089 = vmatpush1.msra.mxu0 0.0
        %3090 = vmatprep.subr.mxu0 0.0
        %v3091 = vand.u32 %v2815, 4294901760
        %3092 = vmatpush1.msra.mxu0 %v3091
        %3093 = vmatprep.subr.mxu0 0.0
        %v3094 = vand.u32 %v2814, 4294901760
        %3095 = vmatpush1.msra.mxu0 %v3094
        %3096 = vmatprep.subr.mxu0 0.0
        %v3097 = vand.u32 %v2813, 4294901760
        %3098 = vmatpush1.msra.mxu0 %v3097
        %3099 = vmatprep.subr.mxu0 0.0
        %v3100 = vand.u32 %v2812, 4294901760
        %3101 = vmatpush1.msra.mxu0 %v3100
        %3102 = vmatprep.subr.mxu0 0.0
        %3103 = vmatpush2.msra.mxu0 0.0
        %3104 = vmatprep.subr.mxu0 0.0
        %3105 = vmatpush2.msra.mxu0 0.0
        %3106 = vmatprep.subr.mxu0 0.0
        %3107 = vmatpush2.msra.mxu0 0.0
        %3108 = vmatprep.subr.mxu0 0.0
        %3109 = vmatpush2.msra.mxu0 0.0
        %3110 = vmatprep.subr.mxu0 0.0
        %3111 = vmatpush2.msra.mxu0 0.0
        %3112 = vmatprep.subr.mxu0 0.0
        %3113 = vmatpush2.msra.mxu0 0.0
        %3114 = vmatprep.subr.mxu0 0.0
        %3115 = vmatpush2.msra.mxu0 0.0
        %3116 = vmatprep.subr.mxu0 0.0
        %3117 = vmatpush2.msra.mxu0 0.0
        %3118 = vmatprep.subr.mxu0 0.0
        %3119 = vmatpush2.msra.mxu0 0.0
        %3120 = vmatprep.subr.mxu0 0.0
        %3121 = vmatpush2.msra.mxu0 0.0
        %3122 = vmatprep.subr.mxu0 0.0
        %3123 = vmatpush2.msra.mxu0 0.0
        %3124 = vmatprep.subr.mxu0 0.0
        %3125 = vmatpush2.msra.mxu0 0.0
        %3126 = vmatprep.subr.mxu0 0.0
        %3127 = vmatpush2.msra.mxu0 0.0
        %3128 = vmatprep.subr.mxu0 0.0
        %3129 = vmatpush2.msra.mxu0 0.0
        %3130 = vmatprep.subr.mxu0 0.0
        %3131 = vmatpush2.msra.mxu0 0.0
        %3132 = vmatprep.subr.mxu0 0.0
        %3133 = vmatpush2.msra.mxu0 0.0
        %3134 = vmatprep.mubr.f32.mxu0 0.0
        %v3135 = vand.u32 %v408, 4294901760
        %v3136 = vsub.f32 %v408, %v3135
        %v3137 = vand.u32 %v3136, 4294901760
        %3138 = vmatmul.mubr.f32.gmra.mxu0 %v3137
        %v3139 = vpop.f32.mrf.mxu0
        %v3140 = vadd.f32 %v3063, %v3139
        %v3141 = vpop.f32.mrf.mxu0
        %3142 = vdwg.mxu0
        %3143 = vmatprep.subr.mxu0 0.0
        %3144 = vmatpush1.msra.mxu0 0.0
        %3145 = vmatprep.subr.mxu0 0.0
        %3146 = vmatpush1.msra.mxu0 0.0
        %3147 = vmatprep.subr.mxu0 0.0
        %3148 = vmatpush1.msra.mxu0 0.0
        %3149 = vmatprep.subr.mxu0 0.0
        %3150 = vmatpush1.msra.mxu0 0.0
        %3151 = vmatprep.subr.mxu0 0.0
        %3152 = vmatpush1.msra.mxu0 0.0
        %3153 = vmatprep.subr.mxu0 0.0
        %3154 = vmatpush1.msra.mxu0 0.0
        %3155 = vmatprep.subr.mxu0 0.0
        %3156 = vmatpush1.msra.mxu0 0.0
        %3157 = vmatprep.subr.mxu0 0.0
        %3158 = vmatpush1.msra.mxu0 0.0
        %3159 = vmatprep.subr.mxu0 0.0
        %3160 = vmatpush1.msra.mxu0 0.0
        %3161 = vmatprep.subr.mxu0 0.0
        %3162 = vmatpush1.msra.mxu0 0.0
        %3163 = vmatprep.subr.mxu0 0.0
        %3164 = vmatpush1.msra.mxu0 0.0
        %3165 = vmatprep.subr.mxu0 0.0
        %3166 = vmatpush1.msra.mxu0 0.0
        %3167 = vmatprep.subr.mxu0 0.0
        %v3168 = vand.u32 %v2815, 4294901760
        %v3169 = vsub.f32 %v2815, %v3168
        %v3170 = vand.u32 %v3169, 4294901760
        %3171 = vmatpush1.msra.mxu0 %v3170
        %3172 = vmatprep.subr.mxu0 0.0
        %v3173 = vand.u32 %v2814, 4294901760
        %v3174 = vsub.f32 %v2814, %v3173
        %v3175 = vand.u32 %v3174, 4294901760
        %3176 = vmatpush1.msra.mxu0 %v3175
        %3177 = vmatprep.subr.mxu0 0.0
        %v3178 = vand.u32 %v2813, 4294901760
        %v3179 = vsub.f32 %v2813, %v3178
        %v3180 = vand.u32 %v3179, 4294901760
        %3181 = vmatpush1.msra.mxu0 %v3180
        %3182 = vmatprep.subr.mxu0 0.0
        %v3183 = vand.u32 %v2812, 4294901760
        %v3184 = vsub.f32 %v2812, %v3183
        %v3185 = vand.u32 %v3184, 4294901760
        %3186 = vmatpush1.msra.mxu0 %v3185
        %3187 = vmatprep.subr.mxu0 0.0
        %3188 = vmatpush2.msra.mxu0 0.0
        %3189 = vmatprep.subr.mxu0 0.0
        %3190 = vmatpush2.msra.mxu0 0.0
        %3191 = vmatprep.subr.mxu0 0.0
        %3192 = vmatpush2.msra.mxu0 0.0
        %3193 = vmatprep.subr.mxu0 0.0
        %3194 = vmatpush2.msra.mxu0 0.0
        %3195 = vmatprep.subr.mxu0 0.0
        %3196 = vmatpush2.msra.mxu0 0.0
        %3197 = vmatprep.subr.mxu0 0.0
        %3198 = vmatpush2.msra.mxu0 0.0
        %3199 = vmatprep.subr.mxu0 0.0
        %3200 = vmatpush2.msra.mxu0 0.0
        %3201 = vmatprep.subr.mxu0 0.0
        %3202 = vmatpush2.msra.mxu0 0.0
        %3203 = vmatprep.subr.mxu0 0.0
        %3204 = vmatpush2.msra.mxu0 0.0
        %3205 = vmatprep.subr.mxu0 0.0
        %3206 = vmatpush2.msra.mxu0 0.0
        %3207 = vmatprep.subr.mxu0 0.0
        %3208 = vmatpush2.msra.mxu0 0.0
        %3209 = vmatprep.subr.mxu0 0.0
        %3210 = vmatpush2.msra.mxu0 0.0
        %3211 = vmatprep.subr.mxu0 0.0
        %3212 = vmatpush2.msra.mxu0 0.0
        %3213 = vmatprep.subr.mxu0 0.0
        %3214 = vmatpush2.msra.mxu0 0.0
        %3215 = vmatprep.subr.mxu0 0.0
        %3216 = vmatpush2.msra.mxu0 0.0
        %3217 = vmatprep.subr.mxu0 0.0
        %3218 = vmatpush2.msra.mxu0 0.0
        %3219 = vmatprep.mubr.f32.mxu0 0.0
        %v3220 = vand.u32 %v408, 4294901760
        %3221 = vmatmul.mubr.f32.gmra.mxu0 %v3220
        %v3222 = vpop.f32.mrf.mxu0
        %v3223 = vadd.f32 %v3140, %v3222
        %v3224 = vpop.f32.mrf.mxu0
        %3225 = vdwg.mxu0
        %3226 = vmatprep.subr.mxu0 0.0
        %3227 = vmatpush1.msra.mxu0 0.0
        %3228 = vmatprep.subr.mxu0 0.0
        %3229 = vmatpush1.msra.mxu0 0.0
        %3230 = vmatprep.subr.mxu0 0.0
        %3231 = vmatpush1.msra.mxu0 0.0
        %3232 = vmatprep.subr.mxu0 0.0
        %3233 = vmatpush1.msra.mxu0 0.0
        %3234 = vmatprep.subr.mxu0 0.0
        %3235 = vmatpush1.msra.mxu0 0.0
        %3236 = vmatprep.subr.mxu0 0.0
        %3237 = vmatpush1.msra.mxu0 0.0
        %3238 = vmatprep.subr.mxu0 0.0
        %3239 = vmatpush1.msra.mxu0 0.0
        %3240 = vmatprep.subr.mxu0 0.0
        %3241 = vmatpush1.msra.mxu0 0.0
        %3242 = vmatprep.subr.mxu0 0.0
        %3243 = vmatpush1.msra.mxu0 0.0
        %3244 = vmatprep.subr.mxu0 0.0
        %3245 = vmatpush1.msra.mxu0 0.0
        %3246 = vmatprep.subr.mxu0 0.0
        %3247 = vmatpush1.msra.mxu0 0.0
        %3248 = vmatprep.subr.mxu0 0.0
        %3249 = vmatpush1.msra.mxu0 0.0
        %3250 = vmatprep.subr.mxu0 0.0
        %v3251 = vand.u32 %v2815, 4294901760
        %3252 = vmatpush1.msra.mxu0 %v3251
        %3253 = vmatprep.subr.mxu0 0.0
        %v3254 = vand.u32 %v2814, 4294901760
        %3255 = vmatpush1.msra.mxu0 %v3254
        %3256 = vmatprep.subr.mxu0 0.0
        %v3257 = vand.u32 %v2813, 4294901760
        %3258 = vmatpush1.msra.mxu0 %v3257
        %3259 = vmatprep.subr.mxu0 0.0
        %v3260 = vand.u32 %v2812, 4294901760
        %3261 = vmatpush1.msra.mxu0 %v3260
        %3262 = vmatprep.subr.mxu0 0.0
        %3263 = vmatpush2.msra.mxu0 0.0
        %3264 = vmatprep.subr.mxu0 0.0
        %3265 = vmatpush2.msra.mxu0 0.0
        %3266 = vmatprep.subr.mxu0 0.0
        %3267 = vmatpush2.msra.mxu0 0.0
        %3268 = vmatprep.subr.mxu0 0.0
        %3269 = vmatpush2.msra.mxu0 0.0
        %3270 = vmatprep.subr.mxu0 0.0
        %3271 = vmatpush2.msra.mxu0 0.0
        %3272 = vmatprep.subr.mxu0 0.0
        %3273 = vmatpush2.msra.mxu0 0.0
        %3274 = vmatprep.subr.mxu0 0.0
        %3275 = vmatpush2.msra.mxu0 0.0
        %3276 = vmatprep.subr.mxu0 0.0
        %3277 = vmatpush2.msra.mxu0 0.0
        %3278 = vmatprep.subr.mxu0 0.0
        %3279 = vmatpush2.msra.mxu0 0.0
        %3280 = vmatprep.subr.mxu0 0.0
        %3281 = vmatpush2.msra.mxu0 0.0
        %3282 = vmatprep.subr.mxu0 0.0
        %3283 = vmatpush2.msra.mxu0 0.0
        %3284 = vmatprep.subr.mxu0 0.0
        %3285 = vmatpush2.msra.mxu0 0.0
        %3286 = vmatprep.subr.mxu0 0.0
        %3287 = vmatpush2.msra.mxu0 0.0
        %3288 = vmatprep.subr.mxu0 0.0
        %3289 = vmatpush2.msra.mxu0 0.0
        %3290 = vmatprep.subr.mxu0 0.0
        %3291 = vmatpush2.msra.mxu0 0.0
        %3292 = vmatprep.subr.mxu0 0.0
        %3293 = vmatpush2.msra.mxu0 0.0
        %3294 = vmatprep.mubr.f32.mxu0 0.0
        %v3295 = vand.u32 %v408, 4294901760
        %3296 = vmatmul.mubr.f32.gmra.mxu0 %v3295
        %v3297 = vpop.f32.mrf.mxu0
        %v3298 = vadd.f32 %v3223, %v3297
        %v3299 = vpop.f32.mrf.mxu0
        %3300 = vdwg.mxu0
        %3302 = vrot.lane.b32.xlu0 %v3298, 124
        %v3303 = vpop.permute.xlu0 %3302
        %3305 = vrot.lane.b32.xlu0 %v3298, 4
        %v3306 = vpop.permute.xlu0 %3305
        %v3308 = vsel %vm902, %v3303, %v3306
        %v3309 = vmul.f32 %v3298, %v383
        %v3310 = vmul.f32 %v3308, %v384
        %v3311 = vadd.f32 %v3309, %v3310
        %v3313 = vsel %vm1896, %v3311, 0
        %3315 = vmatprep.subr.mxu0 0.0
        %3316 = vmatpush1.xpose.msra.mxu0 0.0
        %3317 = vmatprep.subr.mxu0 0.0
        %3318 = vmatpush1.xpose.msra.mxu0 0.0
        %3319 = vmatprep.subr.mxu0 0.0
        %3320 = vmatpush1.xpose.msra.mxu0 0.0
        %3321 = vmatprep.subr.mxu0 0.0
        %3322 = vmatpush1.xpose.msra.mxu0 0.0
        %3323 = vmatprep.subr.mxu0 0.0
        %3324 = vmatpush1.xpose.msra.mxu0 0.0
        %3325 = vmatprep.subr.mxu0 0.0
        %3326 = vmatpush1.xpose.msra.mxu0 0.0
        %3327 = vmatprep.subr.mxu0 0.0
        %3328 = vmatpush1.xpose.msra.mxu0 0.0
        %3329 = vmatprep.subr.mxu0 0.0
        %3330 = vmatpush1.xpose.msra.mxu0 0.0
        %3331 = vmatprep.subr.mxu0 0.0
        %3332 = vmatpush1.xpose.msra.mxu0 0.0
        %3333 = vmatprep.subr.mxu0 0.0
        %3334 = vmatpush1.xpose.msra.mxu0 0.0
        %3335 = vmatprep.subr.mxu0 0.0
        %3336 = vmatpush1.xpose.msra.mxu0 0.0
        %3337 = vmatprep.subr.mxu0 0.0
        %3338 = vmatpush1.xpose.msra.mxu0 0.0
        %3339 = vmatprep.subr.mxu0 0.0
        %3340 = vmatpush1.xpose.msra.mxu0 0.0
        %3341 = vmatprep.subr.mxu0 0.0
        %3342 = vmatpush1.xpose.msra.mxu0 0.0
        %3343 = vmatprep.subr.mxu0 0.0
        %3344 = vmatpush1.xpose.msra.mxu0 0.0
        %3345 = vmatprep.subr.mxu0 0.0
        %v3346 = vand.u32 %v1901, 4294901760
        %3347 = vmatpush1.xpose.msra.mxu0 %v3346
        %3348 = vmatprep.subr.mxu0 0.0
        %3349 = vmatpush2.xpose.msra.mxu0 0.0
        %3350 = vmatprep.subr.mxu0 0.0
        %3351 = vmatpush2.xpose.msra.mxu0 0.0
        %3352 = vmatprep.subr.mxu0 0.0
        %3353 = vmatpush2.xpose.msra.mxu0 0.0
        %3354 = vmatprep.subr.mxu0 0.0
        %3355 = vmatpush2.xpose.msra.mxu0 0.0
        %3356 = vmatprep.subr.mxu0 0.0
        %3357 = vmatpush2.xpose.msra.mxu0 0.0
        %3358 = vmatprep.subr.mxu0 0.0
        %3359 = vmatpush2.xpose.msra.mxu0 0.0
        %3360 = vmatprep.subr.mxu0 0.0
        %3361 = vmatpush2.xpose.msra.mxu0 0.0
        %3362 = vmatprep.subr.mxu0 0.0
        %3363 = vmatpush2.xpose.msra.mxu0 0.0
        %3364 = vmatprep.subr.mxu0 0.0
        %3365 = vmatpush2.xpose.msra.mxu0 0.0
        %3366 = vmatprep.subr.mxu0 0.0
        %3367 = vmatpush2.xpose.msra.mxu0 0.0
        %3368 = vmatprep.subr.mxu0 0.0
        %3369 = vmatpush2.xpose.msra.mxu0 0.0
        %3370 = vmatprep.subr.mxu0 0.0
        %3371 = vmatpush2.xpose.msra.mxu0 0.0
        %3372 = vmatprep.subr.mxu0 0.0
        %3373 = vmatpush2.xpose.msra.mxu0 0.0
        %3374 = vmatprep.subr.mxu0 0.0
        %3375 = vmatpush2.xpose.msra.mxu0 0.0
        %3376 = vmatprep.subr.mxu0 0.0
        %3377 = vmatpush2.xpose.msra.mxu0 0.0
        %3378 = vmatprep.subr.mxu0 0.0
        %3379 = vmatpush2.xpose.msra.mxu0 0.0
        %3380 = vmatprep.mubr.f32.mxu0 0.0
        %v3381 = vand.u32 %v3313, 4294901760
        %v3382 = vsub.f32 %v3313, %v3381
        %v3383 = vand.u32 %v3382, 4294901760
        %v3384 = vsub.f32 %v3382, %v3383
        %v3385 = vand.u32 %v3384, 4294901760
        %3386 = vmatmul.mubr.f32.gmra.mxu0 %v3385
        %v3387 = vpop.f32.mrf.mxu0
        %v3388 = vadd.f32 0.0, %v3387
        %v3389 = vpop.f32.mrf.mxu0
        %3390 = vdwg.mxu0
        %3391 = vmatprep.subr.mxu0 0.0
        %3392 = vmatpush1.xpose.msra.mxu0 0.0
        %3393 = vmatprep.subr.mxu0 0.0
        %3394 = vmatpush1.xpose.msra.mxu0 0.0
        %3395 = vmatprep.subr.mxu0 0.0
        %3396 = vmatpush1.xpose.msra.mxu0 0.0
        %3397 = vmatprep.subr.mxu0 0.0
        %3398 = vmatpush1.xpose.msra.mxu0 0.0
        %3399 = vmatprep.subr.mxu0 0.0
        %3400 = vmatpush1.xpose.msra.mxu0 0.0
        %3401 = vmatprep.subr.mxu0 0.0
        %3402 = vmatpush1.xpose.msra.mxu0 0.0
        %3403 = vmatprep.subr.mxu0 0.0
        %3404 = vmatpush1.xpose.msra.mxu0 0.0
        %3405 = vmatprep.subr.mxu0 0.0
        %3406 = vmatpush1.xpose.msra.mxu0 0.0
        %3407 = vmatprep.subr.mxu0 0.0
        %3408 = vmatpush1.xpose.msra.mxu0 0.0
        %3409 = vmatprep.subr.mxu0 0.0
        %3410 = vmatpush1.xpose.msra.mxu0 0.0
        %3411 = vmatprep.subr.mxu0 0.0
        %3412 = vmatpush1.xpose.msra.mxu0 0.0
        %3413 = vmatprep.subr.mxu0 0.0
        %3414 = vmatpush1.xpose.msra.mxu0 0.0
        %3415 = vmatprep.subr.mxu0 0.0
        %3416 = vmatpush1.xpose.msra.mxu0 0.0
        %3417 = vmatprep.subr.mxu0 0.0
        %3418 = vmatpush1.xpose.msra.mxu0 0.0
        %3419 = vmatprep.subr.mxu0 0.0
        %3420 = vmatpush1.xpose.msra.mxu0 0.0
        %3421 = vmatprep.subr.mxu0 0.0
        %v3422 = vand.u32 %v1901, 4294901760
        %v3423 = vsub.f32 %v1901, %v3422
        %v3424 = vand.u32 %v3423, 4294901760
        %v3425 = vsub.f32 %v3423, %v3424
        %v3426 = vand.u32 %v3425, 4294901760
        %3427 = vmatpush1.xpose.msra.mxu0 %v3426
        %3428 = vmatprep.subr.mxu0 0.0
        %3429 = vmatpush2.xpose.msra.mxu0 0.0
        %3430 = vmatprep.subr.mxu0 0.0
        %3431 = vmatpush2.xpose.msra.mxu0 0.0
        %3432 = vmatprep.subr.mxu0 0.0
        %3433 = vmatpush2.xpose.msra.mxu0 0.0
        %3434 = vmatprep.subr.mxu0 0.0
        %3435 = vmatpush2.xpose.msra.mxu0 0.0
        %3436 = vmatprep.subr.mxu0 0.0
        %3437 = vmatpush2.xpose.msra.mxu0 0.0
        %3438 = vmatprep.subr.mxu0 0.0
        %3439 = vmatpush2.xpose.msra.mxu0 0.0
        %3440 = vmatprep.subr.mxu0 0.0
        %3441 = vmatpush2.xpose.msra.mxu0 0.0
        %3442 = vmatprep.subr.mxu0 0.0
        %3443 = vmatpush2.xpose.msra.mxu0 0.0
        %3444 = vmatprep.subr.mxu0 0.0
        %3445 = vmatpush2.xpose.msra.mxu0 0.0
        %3446 = vmatprep.subr.mxu0 0.0
        %3447 = vmatpush2.xpose.msra.mxu0 0.0
        %3448 = vmatprep.subr.mxu0 0.0
        %3449 = vmatpush2.xpose.msra.mxu0 0.0
        %3450 = vmatprep.subr.mxu0 0.0
        %3451 = vmatpush2.xpose.msra.mxu0 0.0
        %3452 = vmatprep.subr.mxu0 0.0
        %3453 = vmatpush2.xpose.msra.mxu0 0.0
        %3454 = vmatprep.subr.mxu0 0.0
        %3455 = vmatpush2.xpose.msra.mxu0 0.0
        %3456 = vmatprep.subr.mxu0 0.0
        %3457 = vmatpush2.xpose.msra.mxu0 0.0
        %3458 = vmatprep.subr.mxu0 0.0
        %3459 = vmatpush2.xpose.msra.mxu0 0.0
        %3460 = vmatprep.mubr.f32.mxu0 0.0
        %v3461 = vand.u32 %v3313, 4294901760
        %3462 = vmatmul.mubr.f32.gmra.mxu0 %v3461
        %v3463 = vpop.f32.mrf.mxu0
        %v3464 = vadd.f32 %v3388, %v3463
        %v3465 = vpop.f32.mrf.mxu0
        %3466 = vdwg.mxu0
        %3467 = vmatprep.subr.mxu0 0.0
        %3468 = vmatpush1.xpose.msra.mxu0 0.0
        %3469 = vmatprep.subr.mxu0 0.0
        %3470 = vmatpush1.xpose.msra.mxu0 0.0
        %3471 = vmatprep.subr.mxu0 0.0
        %3472 = vmatpush1.xpose.msra.mxu0 0.0
        %3473 = vmatprep.subr.mxu0 0.0
        %3474 = vmatpush1.xpose.msra.mxu0 0.0
        %3475 = vmatprep.subr.mxu0 0.0
        %3476 = vmatpush1.xpose.msra.mxu0 0.0
        %3477 = vmatprep.subr.mxu0 0.0
        %3478 = vmatpush1.xpose.msra.mxu0 0.0
        %3479 = vmatprep.subr.mxu0 0.0
        %3480 = vmatpush1.xpose.msra.mxu0 0.0
        %3481 = vmatprep.subr.mxu0 0.0
        %3482 = vmatpush1.xpose.msra.mxu0 0.0
        %3483 = vmatprep.subr.mxu0 0.0
        %3484 = vmatpush1.xpose.msra.mxu0 0.0
        %3485 = vmatprep.subr.mxu0 0.0
        %3486 = vmatpush1.xpose.msra.mxu0 0.0
        %3487 = vmatprep.subr.mxu0 0.0
        %3488 = vmatpush1.xpose.msra.mxu0 0.0
        %3489 = vmatprep.subr.mxu0 0.0
        %3490 = vmatpush1.xpose.msra.mxu0 0.0
        %3491 = vmatprep.subr.mxu0 0.0
        %3492 = vmatpush1.xpose.msra.mxu0 0.0
        %3493 = vmatprep.subr.mxu0 0.0
        %3494 = vmatpush1.xpose.msra.mxu0 0.0
        %3495 = vmatprep.subr.mxu0 0.0
        %3496 = vmatpush1.xpose.msra.mxu0 0.0
        %3497 = vmatprep.subr.mxu0 0.0
        %v3498 = vand.u32 %v1901, 4294901760
        %v3499 = vsub.f32 %v1901, %v3498
        %3500 = vmatpush1.xpose.msra.mxu0 %v3499
        %3501 = vmatprep.subr.mxu0 0.0
        %3502 = vmatpush2.xpose.msra.mxu0 0.0
        %3503 = vmatprep.subr.mxu0 0.0
        %3504 = vmatpush2.xpose.msra.mxu0 0.0
        %3505 = vmatprep.subr.mxu0 0.0
        %3506 = vmatpush2.xpose.msra.mxu0 0.0
        %3507 = vmatprep.subr.mxu0 0.0
        %3508 = vmatpush2.xpose.msra.mxu0 0.0
        %3509 = vmatprep.subr.mxu0 0.0
        %3510 = vmatpush2.xpose.msra.mxu0 0.0
        %3511 = vmatprep.subr.mxu0 0.0
        %3512 = vmatpush2.xpose.msra.mxu0 0.0
        %3513 = vmatprep.subr.mxu0 0.0
        %3514 = vmatpush2.xpose.msra.mxu0 0.0
        %3515 = vmatprep.subr.mxu0 0.0
        %3516 = vmatpush2.xpose.msra.mxu0 0.0
        %3517 = vmatprep.subr.mxu0 0.0
        %3518 = vmatpush2.xpose.msra.mxu0 0.0
        %3519 = vmatprep.subr.mxu0 0.0
        %3520 = vmatpush2.xpose.msra.mxu0 0.0
        %3521 = vmatprep.subr.mxu0 0.0
        %3522 = vmatpush2.xpose.msra.mxu0 0.0
        %3523 = vmatprep.subr.mxu0 0.0
        %3524 = vmatpush2.xpose.msra.mxu0 0.0
        %3525 = vmatprep.subr.mxu0 0.0
        %3526 = vmatpush2.xpose.msra.mxu0 0.0
        %3527 = vmatprep.subr.mxu0 0.0
        %3528 = vmatpush2.xpose.msra.mxu0 0.0
        %3529 = vmatprep.subr.mxu0 0.0
        %3530 = vmatpush2.xpose.msra.mxu0 0.0
        %3531 = vmatprep.subr.mxu0 0.0
        %3532 = vmatpush2.xpose.msra.mxu0 0.0
        %3533 = vmatprep.mubr.f32.mxu0 0.0
        %v3534 = vand.u32 %v3313, 4294901760
        %v3535 = vsub.f32 %v3313, %v3534
        %3536 = vmatmul.mubr.f32.gmra.mxu0 %v3535
        %v3537 = vpop.f32.mrf.mxu0
        %v3538 = vadd.f32 %v3464, %v3537
        %v3539 = vpop.f32.mrf.mxu0
        %3540 = vdwg.mxu0
        %3541 = vmatprep.subr.mxu0 0.0
        %3542 = vmatpush1.xpose.msra.mxu0 0.0
        %3543 = vmatprep.subr.mxu0 0.0
        %3544 = vmatpush1.xpose.msra.mxu0 0.0
        %3545 = vmatprep.subr.mxu0 0.0
        %3546 = vmatpush1.xpose.msra.mxu0 0.0
        %3547 = vmatprep.subr.mxu0 0.0
        %3548 = vmatpush1.xpose.msra.mxu0 0.0
        %3549 = vmatprep.subr.mxu0 0.0
        %3550 = vmatpush1.xpose.msra.mxu0 0.0
        %3551 = vmatprep.subr.mxu0 0.0
        %3552 = vmatpush1.xpose.msra.mxu0 0.0
        %3553 = vmatprep.subr.mxu0 0.0
        %3554 = vmatpush1.xpose.msra.mxu0 0.0
        %3555 = vmatprep.subr.mxu0 0.0
        %3556 = vmatpush1.xpose.msra.mxu0 0.0
        %3557 = vmatprep.subr.mxu0 0.0
        %3558 = vmatpush1.xpose.msra.mxu0 0.0
        %3559 = vmatprep.subr.mxu0 0.0
        %3560 = vmatpush1.xpose.msra.mxu0 0.0
        %3561 = vmatprep.subr.mxu0 0.0
        %3562 = vmatpush1.xpose.msra.mxu0 0.0
        %3563 = vmatprep.subr.mxu0 0.0
        %3564 = vmatpush1.xpose.msra.mxu0 0.0
        %3565 = vmatprep.subr.mxu0 0.0
        %3566 = vmatpush1.xpose.msra.mxu0 0.0
        %3567 = vmatprep.subr.mxu0 0.0
        %3568 = vmatpush1.xpose.msra.mxu0 0.0
        %3569 = vmatprep.subr.mxu0 0.0
        %3570 = vmatpush1.xpose.msra.mxu0 0.0
        %3571 = vmatprep.subr.mxu0 0.0
        %v3572 = vand.u32 %v1901, 4294901760
        %3573 = vmatpush1.xpose.msra.mxu0 %v3572
        %3574 = vmatprep.subr.mxu0 0.0
        %3575 = vmatpush2.xpose.msra.mxu0 0.0
        %3576 = vmatprep.subr.mxu0 0.0
        %3577 = vmatpush2.xpose.msra.mxu0 0.0
        %3578 = vmatprep.subr.mxu0 0.0
        %3579 = vmatpush2.xpose.msra.mxu0 0.0
        %3580 = vmatprep.subr.mxu0 0.0
        %3581 = vmatpush2.xpose.msra.mxu0 0.0
        %3582 = vmatprep.subr.mxu0 0.0
        %3583 = vmatpush2.xpose.msra.mxu0 0.0
        %3584 = vmatprep.subr.mxu0 0.0
        %3585 = vmatpush2.xpose.msra.mxu0 0.0
        %3586 = vmatprep.subr.mxu0 0.0
        %3587 = vmatpush2.xpose.msra.mxu0 0.0
        %3588 = vmatprep.subr.mxu0 0.0
        %3589 = vmatpush2.xpose.msra.mxu0 0.0
        %3590 = vmatprep.subr.mxu0 0.0
        %3591 = vmatpush2.xpose.msra.mxu0 0.0
        %3592 = vmatprep.subr.mxu0 0.0
        %3593 = vmatpush2.xpose.msra.mxu0 0.0
        %3594 = vmatprep.subr.mxu0 0.0
        %3595 = vmatpush2.xpose.msra.mxu0 0.0
        %3596 = vmatprep.subr.mxu0 0.0
        %3597 = vmatpush2.xpose.msra.mxu0 0.0
        %3598 = vmatprep.subr.mxu0 0.0
        %3599 = vmatpush2.xpose.msra.mxu0 0.0
        %3600 = vmatprep.subr.mxu0 0.0
        %3601 = vmatpush2.xpose.msra.mxu0 0.0
        %3602 = vmatprep.subr.mxu0 0.0
        %3603 = vmatpush2.xpose.msra.mxu0 0.0
        %3604 = vmatprep.subr.mxu0 0.0
        %3605 = vmatpush2.xpose.msra.mxu0 0.0
        %3606 = vmatprep.mubr.f32.mxu0 0.0
        %v3607 = vand.u32 %v3313, 4294901760
        %v3608 = vsub.f32 %v3313, %v3607
        %v3609 = vand.u32 %v3608, 4294901760
        %3610 = vmatmul.mubr.f32.gmra.mxu0 %v3609
        %v3611 = vpop.f32.mrf.mxu0
        %v3612 = vadd.f32 %v3538, %v3611
        %v3613 = vpop.f32.mrf.mxu0
        %3614 = vdwg.mxu0
        %3615 = vmatprep.subr.mxu0 0.0
        %3616 = vmatpush1.xpose.msra.mxu0 0.0
        %3617 = vmatprep.subr.mxu0 0.0
        %3618 = vmatpush1.xpose.msra.mxu0 0.0
        %3619 = vmatprep.subr.mxu0 0.0
        %3620 = vmatpush1.xpose.msra.mxu0 0.0
        %3621 = vmatprep.subr.mxu0 0.0
        %3622 = vmatpush1.xpose.msra.mxu0 0.0
        %3623 = vmatprep.subr.mxu0 0.0
        %3624 = vmatpush1.xpose.msra.mxu0 0.0
        %3625 = vmatprep.subr.mxu0 0.0
        %3626 = vmatpush1.xpose.msra.mxu0 0.0
        %3627 = vmatprep.subr.mxu0 0.0
        %3628 = vmatpush1.xpose.msra.mxu0 0.0
        %3629 = vmatprep.subr.mxu0 0.0
        %3630 = vmatpush1.xpose.msra.mxu0 0.0
        %3631 = vmatprep.subr.mxu0 0.0
        %3632 = vmatpush1.xpose.msra.mxu0 0.0
        %3633 = vmatprep.subr.mxu0 0.0
        %3634 = vmatpush1.xpose.msra.mxu0 0.0
        %3635 = vmatprep.subr.mxu0 0.0
        %3636 = vmatpush1.xpose.msra.mxu0 0.0
        %3637 = vmatprep.subr.mxu0 0.0
        %3638 = vmatpush1.xpose.msra.mxu0 0.0
        %3639 = vmatprep.subr.mxu0 0.0
        %3640 = vmatpush1.xpose.msra.mxu0 0.0
        %3641 = vmatprep.subr.mxu0 0.0
        %3642 = vmatpush1.xpose.msra.mxu0 0.0
        %3643 = vmatprep.subr.mxu0 0.0
        %3644 = vmatpush1.xpose.msra.mxu0 0.0
        %3645 = vmatprep.subr.mxu0 0.0
        %v3646 = vand.u32 %v1901, 4294901760
        %v3647 = vsub.f32 %v1901, %v3646
        %v3648 = vand.u32 %v3647, 4294901760
        %3649 = vmatpush1.xpose.msra.mxu0 %v3648
        %3650 = vmatprep.subr.mxu0 0.0
        %3651 = vmatpush2.xpose.msra.mxu0 0.0
        %3652 = vmatprep.subr.mxu0 0.0
        %3653 = vmatpush2.xpose.msra.mxu0 0.0
        %3654 = vmatprep.subr.mxu0 0.0
        %3655 = vmatpush2.xpose.msra.mxu0 0.0
        %3656 = vmatprep.subr.mxu0 0.0
        %3657 = vmatpush2.xpose.msra.mxu0 0.0
        %3658 = vmatprep.subr.mxu0 0.0
        %3659 = vmatpush2.xpose.msra.mxu0 0.0
        %3660 = vmatprep.subr.mxu0 0.0
        %3661 = vmatpush2.xpose.msra.mxu0 0.0
        %3662 = vmatprep.subr.mxu0 0.0
        %3663 = vmatpush2.xpose.msra.mxu0 0.0
        %3664 = vmatprep.subr.mxu0 0.0
        %3665 = vmatpush2.xpose.msra.mxu0 0.0
        %3666 = vmatprep.subr.mxu0 0.0
        %3667 = vmatpush2.xpose.msra.mxu0 0.0
        %3668 = vmatprep.subr.mxu0 0.0
        %3669 = vmatpush2.xpose.msra.mxu0 0.0
        %3670 = vmatprep.subr.mxu0 0.0
        %3671 = vmatpush2.xpose.msra.mxu0 0.0
        %3672 = vmatprep.subr.mxu0 0.0
        %3673 = vmatpush2.xpose.msra.mxu0 0.0
        %3674 = vmatprep.subr.mxu0 0.0
        %3675 = vmatpush2.xpose.msra.mxu0 0.0
        %3676 = vmatprep.subr.mxu0 0.0
        %3677 = vmatpush2.xpose.msra.mxu0 0.0
        %3678 = vmatprep.subr.mxu0 0.0
        %3679 = vmatpush2.xpose.msra.mxu0 0.0
        %3680 = vmatprep.subr.mxu0 0.0
        %3681 = vmatpush2.xpose.msra.mxu0 0.0
        %3682 = vmatprep.mubr.f32.mxu0 0.0
        %v3683 = vand.u32 %v3313, 4294901760
        %3684 = vmatmul.mubr.f32.gmra.mxu0 %v3683
        %v3685 = vpop.f32.mrf.mxu0
        %v3686 = vadd.f32 %v3612, %v3685
        %v3687 = vpop.f32.mrf.mxu0
        %3688 = vdwg.mxu0
        %3689 = vmatprep.subr.mxu0 0.0
        %3690 = vmatpush1.xpose.msra.mxu0 0.0
        %3691 = vmatprep.subr.mxu0 0.0
        %3692 = vmatpush1.xpose.msra.mxu0 0.0
        %3693 = vmatprep.subr.mxu0 0.0
        %3694 = vmatpush1.xpose.msra.mxu0 0.0
        %3695 = vmatprep.subr.mxu0 0.0
        %3696 = vmatpush1.xpose.msra.mxu0 0.0
        %3697 = vmatprep.subr.mxu0 0.0
        %3698 = vmatpush1.xpose.msra.mxu0 0.0
        %3699 = vmatprep.subr.mxu0 0.0
        %3700 = vmatpush1.xpose.msra.mxu0 0.0
        %3701 = vmatprep.subr.mxu0 0.0
        %3702 = vmatpush1.xpose.msra.mxu0 0.0
        %3703 = vmatprep.subr.mxu0 0.0
        %3704 = vmatpush1.xpose.msra.mxu0 0.0
        %3705 = vmatprep.subr.mxu0 0.0
        %3706 = vmatpush1.xpose.msra.mxu0 0.0
        %3707 = vmatprep.subr.mxu0 0.0
        %3708 = vmatpush1.xpose.msra.mxu0 0.0
        %3709 = vmatprep.subr.mxu0 0.0
        %3710 = vmatpush1.xpose.msra.mxu0 0.0
        %3711 = vmatprep.subr.mxu0 0.0
        %3712 = vmatpush1.xpose.msra.mxu0 0.0
        %3713 = vmatprep.subr.mxu0 0.0
        %3714 = vmatpush1.xpose.msra.mxu0 0.0
        %3715 = vmatprep.subr.mxu0 0.0
        %3716 = vmatpush1.xpose.msra.mxu0 0.0
        %3717 = vmatprep.subr.mxu0 0.0
        %3718 = vmatpush1.xpose.msra.mxu0 0.0
        %3719 = vmatprep.subr.mxu0 0.0
        %v3720 = vand.u32 %v1901, 4294901760
        %3721 = vmatpush1.xpose.msra.mxu0 %v3720
        %3722 = vmatprep.subr.mxu0 0.0
        %3723 = vmatpush2.xpose.msra.mxu0 0.0
        %3724 = vmatprep.subr.mxu0 0.0
        %3725 = vmatpush2.xpose.msra.mxu0 0.0
        %3726 = vmatprep.subr.mxu0 0.0
        %3727 = vmatpush2.xpose.msra.mxu0 0.0
        %3728 = vmatprep.subr.mxu0 0.0
        %3729 = vmatpush2.xpose.msra.mxu0 0.0
        %3730 = vmatprep.subr.mxu0 0.0
        %3731 = vmatpush2.xpose.msra.mxu0 0.0
        %3732 = vmatprep.subr.mxu0 0.0
        %3733 = vmatpush2.xpose.msra.mxu0 0.0
        %3734 = vmatprep.subr.mxu0 0.0
        %3735 = vmatpush2.xpose.msra.mxu0 0.0
        %3736 = vmatprep.subr.mxu0 0.0
        %3737 = vmatpush2.xpose.msra.mxu0 0.0
        %3738 = vmatprep.subr.mxu0 0.0
        %3739 = vmatpush2.xpose.msra.mxu0 0.0
        %3740 = vmatprep.subr.mxu0 0.0
        %3741 = vmatpush2.xpose.msra.mxu0 0.0
        %3742 = vmatprep.subr.mxu0 0.0
        %3743 = vmatpush2.xpose.msra.mxu0 0.0
        %3744 = vmatprep.subr.mxu0 0.0
        %3745 = vmatpush2.xpose.msra.mxu0 0.0
        %3746 = vmatprep.subr.mxu0 0.0
        %3747 = vmatpush2.xpose.msra.mxu0 0.0
        %3748 = vmatprep.subr.mxu0 0.0
        %3749 = vmatpush2.xpose.msra.mxu0 0.0
        %3750 = vmatprep.subr.mxu0 0.0
        %3751 = vmatpush2.xpose.msra.mxu0 0.0
        %3752 = vmatprep.subr.mxu0 0.0
        %3753 = vmatpush2.xpose.msra.mxu0 0.0
        %3754 = vmatprep.mubr.f32.mxu0 0.0
        %v3755 = vand.u32 %v3313, 4294901760
        %3756 = vmatmul.mubr.f32.gmra.mxu0 %v3755
        %v3757 = vpop.f32.mrf.mxu0
        %v3758 = vadd.f32 %v3686, %v3757
        %v3759 = vpop.f32.mrf.mxu0
        %3760 = vdwg.mxu0
        %v3761 = vmul.f32 %v3758, 0.35355338
        %v3762 = vsel %vm1896, %v3761, -inf
        %3763 = vmax.xlane.f32.xlu0 %v3762
        %v3764 = vpop.xlane.xlu0 %3763
        %v3765 = vsub.f32 %v3761, %v3764
        %v3766 = vmul.f32 %v3765, 1.442695
        %v3767 = vpow.pop %v3766
        %v3768 = vsel %vm1896, %v3767, 0.0
        %3769 = vadd.xlane.f32.xlu0 %v3768
        %v3770 = vpop.xlane.xlu0 %3769
        %v3772 = vsel %vm1896, %v3767, 0
        %3774 = vmatprep.subr.mxu0 0.0
        %3775 = vmatpush1.msra.mxu0 0.0
        %3776 = vmatprep.subr.mxu0 0.0
        %3777 = vmatpush1.msra.mxu0 0.0
        %3778 = vmatprep.subr.mxu0 0.0
        %3779 = vmatpush1.msra.mxu0 0.0
        %3780 = vmatprep.subr.mxu0 0.0
        %3781 = vmatpush1.msra.mxu0 0.0
        %3782 = vmatprep.subr.mxu0 0.0
        %3783 = vmatpush1.msra.mxu0 0.0
        %3784 = vmatprep.subr.mxu0 0.0
        %3785 = vmatpush1.msra.mxu0 0.0
        %3786 = vmatprep.subr.mxu0 0.0
        %3787 = vmatpush1.msra.mxu0 0.0
        %3788 = vmatprep.subr.mxu0 0.0
        %3789 = vmatpush1.msra.mxu0 0.0
        %3790 = vmatprep.subr.mxu0 0.0
        %3791 = vmatpush1.msra.mxu0 0.0
        %3792 = vmatprep.subr.mxu0 0.0
        %3793 = vmatpush1.msra.mxu0 0.0
        %3794 = vmatprep.subr.mxu0 0.0
        %3795 = vmatpush1.msra.mxu0 0.0
        %3796 = vmatprep.subr.mxu0 0.0
        %3797 = vmatpush1.msra.mxu0 0.0
        %3798 = vmatprep.subr.mxu0 0.0
        %3799 = vmatpush1.msra.mxu0 0.0
        %3800 = vmatprep.subr.mxu0 0.0
        %3801 = vmatpush1.msra.mxu0 0.0
        %3802 = vmatprep.subr.mxu0 0.0
        %3803 = vmatpush1.msra.mxu0 0.0
        %3804 = vmatprep.subr.mxu0 0.0
        %v3805 = vand.u32 %v1393, 4294901760
        %3806 = vmatpush1.msra.mxu0 %v3805
        %3807 = vmatprep.subr.mxu0 0.0
        %3808 = vmatpush2.msra.mxu0 0.0
        %3809 = vmatprep.subr.mxu0 0.0
        %3810 = vmatpush2.msra.mxu0 0.0
        %3811 = vmatprep.subr.mxu0 0.0
        %3812 = vmatpush2.msra.mxu0 0.0
        %3813 = vmatprep.subr.mxu0 0.0
        %3814 = vmatpush2.msra.mxu0 0.0
        %3815 = vmatprep.subr.mxu0 0.0
        %3816 = vmatpush2.msra.mxu0 0.0
        %3817 = vmatprep.subr.mxu0 0.0
        %3818 = vmatpush2.msra.mxu0 0.0
        %3819 = vmatprep.subr.mxu0 0.0
        %3820 = vmatpush2.msra.mxu0 0.0
        %3821 = vmatprep.subr.mxu0 0.0
        %3822 = vmatpush2.msra.mxu0 0.0
        %3823 = vmatprep.subr.mxu0 0.0
        %3824 = vmatpush2.msra.mxu0 0.0
        %3825 = vmatprep.subr.mxu0 0.0
        %3826 = vmatpush2.msra.mxu0 0.0
        %3827 = vmatprep.subr.mxu0 0.0
        %3828 = vmatpush2.msra.mxu0 0.0
        %3829 = vmatprep.subr.mxu0 0.0
        %3830 = vmatpush2.msra.mxu0 0.0
        %3831 = vmatprep.subr.mxu0 0.0
        %3832 = vmatpush2.msra.mxu0 0.0
        %3833 = vmatprep.subr.mxu0 0.0
        %3834 = vmatpush2.msra.mxu0 0.0
        %3835 = vmatprep.subr.mxu0 0.0
        %3836 = vmatpush2.msra.mxu0 0.0
        %3837 = vmatprep.subr.mxu0 0.0
        %3838 = vmatpush2.msra.mxu0 0.0
        %3839 = vmatprep.mubr.f32.mxu0 0.0
        %v3840 = vand.u32 %v3772, 4294901760
        %v3841 = vsub.f32 %v3772, %v3840
        %v3842 = vand.u32 %v3841, 4294901760
        %v3843 = vsub.f32 %v3841, %v3842
        %v3844 = vand.u32 %v3843, 4294901760
        %3845 = vmatmul.mubr.f32.gmra.mxu0 %v3844
        %v3846 = vpop.f32.mrf.mxu0
        %v3847 = vadd.f32 0.0, %v3846
        %v3848 = vpop.f32.mrf.mxu0
        %3849 = vdwg.mxu0
        %3850 = vmatprep.subr.mxu0 0.0
        %3851 = vmatpush1.msra.mxu0 0.0
        %3852 = vmatprep.subr.mxu0 0.0
        %3853 = vmatpush1.msra.mxu0 0.0
        %3854 = vmatprep.subr.mxu0 0.0
        %3855 = vmatpush1.msra.mxu0 0.0
        %3856 = vmatprep.subr.mxu0 0.0
        %3857 = vmatpush1.msra.mxu0 0.0
        %3858 = vmatprep.subr.mxu0 0.0
        %3859 = vmatpush1.msra.mxu0 0.0
        %3860 = vmatprep.subr.mxu0 0.0
        %3861 = vmatpush1.msra.mxu0 0.0
        %3862 = vmatprep.subr.mxu0 0.0
        %3863 = vmatpush1.msra.mxu0 0.0
        %3864 = vmatprep.subr.mxu0 0.0
        %3865 = vmatpush1.msra.mxu0 0.0
        %3866 = vmatprep.subr.mxu0 0.0
        %3867 = vmatpush1.msra.mxu0 0.0
        %3868 = vmatprep.subr.mxu0 0.0
        %3869 = vmatpush1.msra.mxu0 0.0
        %3870 = vmatprep.subr.mxu0 0.0
        %3871 = vmatpush1.msra.mxu0 0.0
        %3872 = vmatprep.subr.mxu0 0.0
        %3873 = vmatpush1.msra.mxu0 0.0
        %3874 = vmatprep.subr.mxu0 0.0
        %3875 = vmatpush1.msra.mxu0 0.0
        %3876 = vmatprep.subr.mxu0 0.0
        %3877 = vmatpush1.msra.mxu0 0.0
        %3878 = vmatprep.subr.mxu0 0.0
        %3879 = vmatpush1.msra.mxu0 0.0
        %3880 = vmatprep.subr.mxu0 0.0
        %v3881 = vand.u32 %v1393, 4294901760
        %v3882 = vsub.f32 %v1393, %v3881
        %v3883 = vand.u32 %v3882, 4294901760
        %v3884 = vsub.f32 %v3882, %v3883
        %v3885 = vand.u32 %v3884, 4294901760
        %3886 = vmatpush1.msra.mxu0 %v3885
        %3887 = vmatprep.subr.mxu0 0.0
        %3888 = vmatpush2.msra.mxu0 0.0
        %3889 = vmatprep.subr.mxu0 0.0
        %3890 = vmatpush2.msra.mxu0 0.0
        %3891 = vmatprep.subr.mxu0 0.0
        %3892 = vmatpush2.msra.mxu0 0.0
        %3893 = vmatprep.subr.mxu0 0.0
        %3894 = vmatpush2.msra.mxu0 0.0
        %3895 = vmatprep.subr.mxu0 0.0
        %3896 = vmatpush2.msra.mxu0 0.0
        %3897 = vmatprep.subr.mxu0 0.0
        %3898 = vmatpush2.msra.mxu0 0.0
        %3899 = vmatprep.subr.mxu0 0.0
        %3900 = vmatpush2.msra.mxu0 0.0
        %3901 = vmatprep.subr.mxu0 0.0
        %3902 = vmatpush2.msra.mxu0 0.0
        %3903 = vmatprep.subr.mxu0 0.0
        %3904 = vmatpush2.msra.mxu0 0.0
        %3905 = vmatprep.subr.mxu0 0.0
        %3906 = vmatpush2.msra.mxu0 0.0
        %3907 = vmatprep.subr.mxu0 0.0
        %3908 = vmatpush2.msra.mxu0 0.0
        %3909 = vmatprep.subr.mxu0 0.0
        %3910 = vmatpush2.msra.mxu0 0.0
        %3911 = vmatprep.subr.mxu0 0.0
        %3912 = vmatpush2.msra.mxu0 0.0
        %3913 = vmatprep.subr.mxu0 0.0
        %3914 = vmatpush2.msra.mxu0 0.0
        %3915 = vmatprep.subr.mxu0 0.0
        %3916 = vmatpush2.msra.mxu0 0.0
        %3917 = vmatprep.subr.mxu0 0.0
        %3918 = vmatpush2.msra.mxu0 0.0
        %3919 = vmatprep.mubr.f32.mxu0 0.0
        %v3920 = vand.u32 %v3772, 4294901760
        %3921 = vmatmul.mubr.f32.gmra.mxu0 %v3920
        %v3922 = vpop.f32.mrf.mxu0
        %v3923 = vadd.f32 %v3847, %v3922
        %v3924 = vpop.f32.mrf.mxu0
        %3925 = vdwg.mxu0
        %3926 = vmatprep.subr.mxu0 0.0
        %3927 = vmatpush1.msra.mxu0 0.0
        %3928 = vmatprep.subr.mxu0 0.0
        %3929 = vmatpush1.msra.mxu0 0.0
        %3930 = vmatprep.subr.mxu0 0.0
        %3931 = vmatpush1.msra.mxu0 0.0
        %3932 = vmatprep.subr.mxu0 0.0
        %3933 = vmatpush1.msra.mxu0 0.0
        %3934 = vmatprep.subr.mxu0 0.0
        %3935 = vmatpush1.msra.mxu0 0.0
        %3936 = vmatprep.subr.mxu0 0.0
        %3937 = vmatpush1.msra.mxu0 0.0
        %3938 = vmatprep.subr.mxu0 0.0
        %3939 = vmatpush1.msra.mxu0 0.0
        %3940 = vmatprep.subr.mxu0 0.0
        %3941 = vmatpush1.msra.mxu0 0.0
        %3942 = vmatprep.subr.mxu0 0.0
        %3943 = vmatpush1.msra.mxu0 0.0
        %3944 = vmatprep.subr.mxu0 0.0
        %3945 = vmatpush1.msra.mxu0 0.0
        %3946 = vmatprep.subr.mxu0 0.0
        %3947 = vmatpush1.msra.mxu0 0.0
        %3948 = vmatprep.subr.mxu0 0.0
        %3949 = vmatpush1.msra.mxu0 0.0
        %3950 = vmatprep.subr.mxu0 0.0
        %3951 = vmatpush1.msra.mxu0 0.0
        %3952 = vmatprep.subr.mxu0 0.0
        %3953 = vmatpush1.msra.mxu0 0.0
        %3954 = vmatprep.subr.mxu0 0.0
        %3955 = vmatpush1.msra.mxu0 0.0
        %3956 = vmatprep.subr.mxu0 0.0
        %v3957 = vand.u32 %v1393, 4294901760
        %v3958 = vsub.f32 %v1393, %v3957
        %3959 = vmatpush1.msra.mxu0 %v3958
        %3960 = vmatprep.subr.mxu0 0.0
        %3961 = vmatpush2.msra.mxu0 0.0
        %3962 = vmatprep.subr.mxu0 0.0
        %3963 = vmatpush2.msra.mxu0 0.0
        %3964 = vmatprep.subr.mxu0 0.0
        %3965 = vmatpush2.msra.mxu0 0.0
        %3966 = vmatprep.subr.mxu0 0.0
        %3967 = vmatpush2.msra.mxu0 0.0
        %3968 = vmatprep.subr.mxu0 0.0
        %3969 = vmatpush2.msra.mxu0 0.0
        %3970 = vmatprep.subr.mxu0 0.0
        %3971 = vmatpush2.msra.mxu0 0.0
        %3972 = vmatprep.subr.mxu0 0.0
        %3973 = vmatpush2.msra.mxu0 0.0
        %3974 = vmatprep.subr.mxu0 0.0
        %3975 = vmatpush2.msra.mxu0 0.0
        %3976 = vmatprep.subr.mxu0 0.0
        %3977 = vmatpush2.msra.mxu0 0.0
        %3978 = vmatprep.subr.mxu0 0.0
        %3979 = vmatpush2.msra.mxu0 0.0
        %3980 = vmatprep.subr.mxu0 0.0
        %3981 = vmatpush2.msra.mxu0 0.0
        %3982 = vmatprep.subr.mxu0 0.0
        %3983 = vmatpush2.msra.mxu0 0.0
        %3984 = vmatprep.subr.mxu0 0.0
        %3985 = vmatpush2.msra.mxu0 0.0
        %3986 = vmatprep.subr.mxu0 0.0
        %3987 = vmatpush2.msra.mxu0 0.0
        %3988 = vmatprep.subr.mxu0 0.0
        %3989 = vmatpush2.msra.mxu0 0.0
        %3990 = vmatprep.subr.mxu0 0.0
        %3991 = vmatpush2.msra.mxu0 0.0
        %3992 = vmatprep.mubr.f32.mxu0 0.0
        %v3993 = vand.u32 %v3772, 4294901760
        %v3994 = vsub.f32 %v3772, %v3993
        %3995 = vmatmul.mubr.f32.gmra.mxu0 %v3994
        %v3996 = vpop.f32.mrf.mxu0
        %v3997 = vadd.f32 %v3923, %v3996
        %v3998 = vpop.f32.mrf.mxu0
        %3999 = vdwg.mxu0
        %4000 = vmatprep.subr.mxu0 0.0
        %4001 = vmatpush1.msra.mxu0 0.0
        %4002 = vmatprep.subr.mxu0 0.0
        %4003 = vmatpush1.msra.mxu0 0.0
        %4004 = vmatprep.subr.mxu0 0.0
        %4005 = vmatpush1.msra.mxu0 0.0
        %4006 = vmatprep.subr.mxu0 0.0
        %4007 = vmatpush1.msra.mxu0 0.0
        %4008 = vmatprep.subr.mxu0 0.0
        %4009 = vmatpush1.msra.mxu0 0.0
        %4010 = vmatprep.subr.mxu0 0.0
        %4011 = vmatpush1.msra.mxu0 0.0
        %4012 = vmatprep.subr.mxu0 0.0
        %4013 = vmatpush1.msra.mxu0 0.0
        %4014 = vmatprep.subr.mxu0 0.0
        %4015 = vmatpush1.msra.mxu0 0.0
        %4016 = vmatprep.subr.mxu0 0.0
        %4017 = vmatpush1.msra.mxu0 0.0
        %4018 = vmatprep.subr.mxu0 0.0
        %4019 = vmatpush1.msra.mxu0 0.0
        %4020 = vmatprep.subr.mxu0 0.0
        %4021 = vmatpush1.msra.mxu0 0.0
        %4022 = vmatprep.subr.mxu0 0.0
        %4023 = vmatpush1.msra.mxu0 0.0
        %4024 = vmatprep.subr.mxu0 0.0
        %4025 = vmatpush1.msra.mxu0 0.0
        %4026 = vmatprep.subr.mxu0 0.0
        %4027 = vmatpush1.msra.mxu0 0.0
        %4028 = vmatprep.subr.mxu0 0.0
        %4029 = vmatpush1.msra.mxu0 0.0
        %4030 = vmatprep.subr.mxu0 0.0
        %v4031 = vand.u32 %v1393, 4294901760
        %4032 = vmatpush1.msra.mxu0 %v4031
        %4033 = vmatprep.subr.mxu0 0.0
        %4034 = vmatpush2.msra.mxu0 0.0
        %4035 = vmatprep.subr.mxu0 0.0
        %4036 = vmatpush2.msra.mxu0 0.0
        %4037 = vmatprep.subr.mxu0 0.0
        %4038 = vmatpush2.msra.mxu0 0.0
        %4039 = vmatprep.subr.mxu0 0.0
        %4040 = vmatpush2.msra.mxu0 0.0
        %4041 = vmatprep.subr.mxu0 0.0
        %4042 = vmatpush2.msra.mxu0 0.0
        %4043 = vmatprep.subr.mxu0 0.0
        %4044 = vmatpush2.msra.mxu0 0.0
        %4045 = vmatprep.subr.mxu0 0.0
        %4046 = vmatpush2.msra.mxu0 0.0
        %4047 = vmatprep.subr.mxu0 0.0
        %4048 = vmatpush2.msra.mxu0 0.0
        %4049 = vmatprep.subr.mxu0 0.0
        %4050 = vmatpush2.msra.mxu0 0.0
        %4051 = vmatprep.subr.mxu0 0.0
        %4052 = vmatpush2.msra.mxu0 0.0
        %4053 = vmatprep.subr.mxu0 0.0
        %4054 = vmatpush2.msra.mxu0 0.0
        %4055 = vmatprep.subr.mxu0 0.0
        %4056 = vmatpush2.msra.mxu0 0.0
        %4057 = vmatprep.subr.mxu0 0.0
        %4058 = vmatpush2.msra.mxu0 0.0
        %4059 = vmatprep.subr.mxu0 0.0
        %4060 = vmatpush2.msra.mxu0 0.0
        %4061 = vmatprep.subr.mxu0 0.0
        %4062 = vmatpush2.msra.mxu0 0.0
        %4063 = vmatprep.subr.mxu0 0.0
        %4064 = vmatpush2.msra.mxu0 0.0
        %4065 = vmatprep.mubr.f32.mxu0 0.0
        %v4066 = vand.u32 %v3772, 4294901760
        %v4067 = vsub.f32 %v3772, %v4066
        %v4068 = vand.u32 %v4067, 4294901760
        %4069 = vmatmul.mubr.f32.gmra.mxu0 %v4068
        %v4070 = vpop.f32.mrf.mxu0
        %v4071 = vadd.f32 %v3997, %v4070
        %v4072 = vpop.f32.mrf.mxu0
        %4073 = vdwg.mxu0
        %4074 = vmatprep.subr.mxu0 0.0
        %4075 = vmatpush1.msra.mxu0 0.0
        %4076 = vmatprep.subr.mxu0 0.0
        %4077 = vmatpush1.msra.mxu0 0.0
        %4078 = vmatprep.subr.mxu0 0.0
        %4079 = vmatpush1.msra.mxu0 0.0
        %4080 = vmatprep.subr.mxu0 0.0
        %4081 = vmatpush1.msra.mxu0 0.0
        %4082 = vmatprep.subr.mxu0 0.0
        %4083 = vmatpush1.msra.mxu0 0.0
        %4084 = vmatprep.subr.mxu0 0.0
        %4085 = vmatpush1.msra.mxu0 0.0
        %4086 = vmatprep.subr.mxu0 0.0
        %4087 = vmatpush1.msra.mxu0 0.0
        %4088 = vmatprep.subr.mxu0 0.0
        %4089 = vmatpush1.msra.mxu0 0.0
        %4090 = vmatprep.subr.mxu0 0.0
        %4091 = vmatpush1.msra.mxu0 0.0
        %4092 = vmatprep.subr.mxu0 0.0
        %4093 = vmatpush1.msra.mxu0 0.0
        %4094 = vmatprep.subr.mxu0 0.0
        %4095 = vmatpush1.msra.mxu0 0.0
        %4096 = vmatprep.subr.mxu0 0.0
        %4097 = vmatpush1.msra.mxu0 0.0
        %4098 = vmatprep.subr.mxu0 0.0
        %4099 = vmatpush1.msra.mxu0 0.0
        %4100 = vmatprep.subr.mxu0 0.0
        %4101 = vmatpush1.msra.mxu0 0.0
        %4102 = vmatprep.subr.mxu0 0.0
        %4103 = vmatpush1.msra.mxu0 0.0
        %4104 = vmatprep.subr.mxu0 0.0
        %v4105 = vand.u32 %v1393, 4294901760
        %v4106 = vsub.f32 %v1393, %v4105
        %v4107 = vand.u32 %v4106, 4294901760
        %4108 = vmatpush1.msra.mxu0 %v4107
        %4109 = vmatprep.subr.mxu0 0.0
        %4110 = vmatpush2.msra.mxu0 0.0
        %4111 = vmatprep.subr.mxu0 0.0
        %4112 = vmatpush2.msra.mxu0 0.0
        %4113 = vmatprep.subr.mxu0 0.0
        %4114 = vmatpush2.msra.mxu0 0.0
        %4115 = vmatprep.subr.mxu0 0.0
        %4116 = vmatpush2.msra.mxu0 0.0
        %4117 = vmatprep.subr.mxu0 0.0
        %4118 = vmatpush2.msra.mxu0 0.0
        %4119 = vmatprep.subr.mxu0 0.0
        %4120 = vmatpush2.msra.mxu0 0.0
        %4121 = vmatprep.subr.mxu0 0.0
        %4122 = vmatpush2.msra.mxu0 0.0
        %4123 = vmatprep.subr.mxu0 0.0
        %4124 = vmatpush2.msra.mxu0 0.0
        %4125 = vmatprep.subr.mxu0 0.0
        %4126 = vmatpush2.msra.mxu0 0.0
        %4127 = vmatprep.subr.mxu0 0.0
        %4128 = vmatpush2.msra.mxu0 0.0
        %4129 = vmatprep.subr.mxu0 0.0
        %4130 = vmatpush2.msra.mxu0 0.0
        %4131 = vmatprep.subr.mxu0 0.0
        %4132 = vmatpush2.msra.mxu0 0.0
        %4133 = vmatprep.subr.mxu0 0.0
        %4134 = vmatpush2.msra.mxu0 0.0
        %4135 = vmatprep.subr.mxu0 0.0
        %4136 = vmatpush2.msra.mxu0 0.0
        %4137 = vmatprep.subr.mxu0 0.0
        %4138 = vmatpush2.msra.mxu0 0.0
        %4139 = vmatprep.subr.mxu0 0.0
        %4140 = vmatpush2.msra.mxu0 0.0
        %4141 = vmatprep.mubr.f32.mxu0 0.0
        %v4142 = vand.u32 %v3772, 4294901760
        %4143 = vmatmul.mubr.f32.gmra.mxu0 %v4142
        %v4144 = vpop.f32.mrf.mxu0
        %v4145 = vadd.f32 %v4071, %v4144
        %v4146 = vpop.f32.mrf.mxu0
        %4147 = vdwg.mxu0
        %4148 = vmatprep.subr.mxu0 0.0
        %4149 = vmatpush1.msra.mxu0 0.0
        %4150 = vmatprep.subr.mxu0 0.0
        %4151 = vmatpush1.msra.mxu0 0.0
        %4152 = vmatprep.subr.mxu0 0.0
        %4153 = vmatpush1.msra.mxu0 0.0
        %4154 = vmatprep.subr.mxu0 0.0
        %4155 = vmatpush1.msra.mxu0 0.0
        %4156 = vmatprep.subr.mxu0 0.0
        %4157 = vmatpush1.msra.mxu0 0.0
        %4158 = vmatprep.subr.mxu0 0.0
        %4159 = vmatpush1.msra.mxu0 0.0
        %4160 = vmatprep.subr.mxu0 0.0
        %4161 = vmatpush1.msra.mxu0 0.0
        %4162 = vmatprep.subr.mxu0 0.0
        %4163 = vmatpush1.msra.mxu0 0.0
        %4164 = vmatprep.subr.mxu0 0.0
        %4165 = vmatpush1.msra.mxu0 0.0
        %4166 = vmatprep.subr.mxu0 0.0
        %4167 = vmatpush1.msra.mxu0 0.0
        %4168 = vmatprep.subr.mxu0 0.0
        %4169 = vmatpush1.msra.mxu0 0.0
        %4170 = vmatprep.subr.mxu0 0.0
        %4171 = vmatpush1.msra.mxu0 0.0
        %4172 = vmatprep.subr.mxu0 0.0
        %4173 = vmatpush1.msra.mxu0 0.0
        %4174 = vmatprep.subr.mxu0 0.0
        %4175 = vmatpush1.msra.mxu0 0.0
        %4176 = vmatprep.subr.mxu0 0.0
        %4177 = vmatpush1.msra.mxu0 0.0
        %4178 = vmatprep.subr.mxu0 0.0
        %v4179 = vand.u32 %v1393, 4294901760
        %4180 = vmatpush1.msra.mxu0 %v4179
        %4181 = vmatprep.subr.mxu0 0.0
        %4182 = vmatpush2.msra.mxu0 0.0
        %4183 = vmatprep.subr.mxu0 0.0
        %4184 = vmatpush2.msra.mxu0 0.0
        %4185 = vmatprep.subr.mxu0 0.0
        %4186 = vmatpush2.msra.mxu0 0.0
        %4187 = vmatprep.subr.mxu0 0.0
        %4188 = vmatpush2.msra.mxu0 0.0
        %4189 = vmatprep.subr.mxu0 0.0
        %4190 = vmatpush2.msra.mxu0 0.0
        %4191 = vmatprep.subr.mxu0 0.0
        %4192 = vmatpush2.msra.mxu0 0.0
        %4193 = vmatprep.subr.mxu0 0.0
        %4194 = vmatpush2.msra.mxu0 0.0
        %4195 = vmatprep.subr.mxu0 0.0
        %4196 = vmatpush2.msra.mxu0 0.0
        %4197 = vmatprep.subr.mxu0 0.0
        %4198 = vmatpush2.msra.mxu0 0.0
        %4199 = vmatprep.subr.mxu0 0.0
        %4200 = vmatpush2.msra.mxu0 0.0
        %4201 = vmatprep.subr.mxu0 0.0
        %4202 = vmatpush2.msra.mxu0 0.0
        %4203 = vmatprep.subr.mxu0 0.0
        %4204 = vmatpush2.msra.mxu0 0.0
        %4205 = vmatprep.subr.mxu0 0.0
        %4206 = vmatpush2.msra.mxu0 0.0
        %4207 = vmatprep.subr.mxu0 0.0
        %4208 = vmatpush2.msra.mxu0 0.0
        %4209 = vmatprep.subr.mxu0 0.0
        %4210 = vmatpush2.msra.mxu0 0.0
        %4211 = vmatprep.subr.mxu0 0.0
        %4212 = vmatpush2.msra.mxu0 0.0
        %4213 = vmatprep.mubr.f32.mxu0 0.0
        %v4214 = vand.u32 %v3772, 4294901760
        %4215 = vmatmul.mubr.f32.gmra.mxu0 %v4214
        %v4216 = vpop.f32.mrf.mxu0
        %v4217 = vadd.f32 %v4145, %v4216
        %v4218 = vpop.f32.mrf.mxu0
        %4219 = vdwg.mxu0
        %v4220 = vrcp.pop %v3770
        %v4221 = vmul.f32 %v4217, %v4220
        %s4222 = scalar_lea.vmem %s6, 8
        %v4223 = vld [vmem:[%s4222] sm:$0xff]
        %v4225 = vsel %vm1896, %v4221, 0
        %4227 = vmatprep.subr.mxu0 0.0
        %4228 = vmatpush1.msra.mxu0 0.0
        %4229 = vmatprep.subr.mxu0 0.0
        %4230 = vmatpush1.msra.mxu0 0.0
        %4231 = vmatprep.subr.mxu0 0.0
        %4232 = vmatpush1.msra.mxu0 0.0
        %4233 = vmatprep.subr.mxu0 0.0
        %4234 = vmatpush1.msra.mxu0 0.0
        %4235 = vmatprep.subr.mxu0 0.0
        %4236 = vmatpush1.msra.mxu0 0.0
        %4237 = vmatprep.subr.mxu0 0.0
        %4238 = vmatpush1.msra.mxu0 0.0
        %4239 = vmatprep.subr.mxu0 0.0
        %4240 = vmatpush1.msra.mxu0 0.0
        %4241 = vmatprep.subr.mxu0 0.0
        %4242 = vmatpush1.msra.mxu0 0.0
        %4243 = vmatprep.subr.mxu0 0.0
        %4244 = vmatpush1.msra.mxu0 0.0
        %4245 = vmatprep.subr.mxu0 0.0
        %4246 = vmatpush1.msra.mxu0 0.0
        %4247 = vmatprep.subr.mxu0 0.0
        %4248 = vmatpush1.msra.mxu0 0.0
        %4249 = vmatprep.subr.mxu0 0.0
        %4250 = vmatpush1.msra.mxu0 0.0
        %4251 = vmatprep.subr.mxu0 0.0
        %4252 = vmatpush1.msra.mxu0 0.0
        %4253 = vmatprep.subr.mxu0 0.0
        %4254 = vmatpush1.msra.mxu0 0.0
        %4255 = vmatprep.subr.mxu0 0.0
        %4256 = vmatpush1.msra.mxu0 0.0
        %4257 = vmatprep.subr.mxu0 0.0
        %v4258 = vand.u32 %v4223, 4294901760
        %4259 = vmatpush1.msra.mxu0 %v4258
        %4260 = vmatprep.subr.mxu0 0.0
        %4261 = vmatpush2.msra.mxu0 0.0
        %4262 = vmatprep.subr.mxu0 0.0
        %4263 = vmatpush2.msra.mxu0 0.0
        %4264 = vmatprep.subr.mxu0 0.0
        %4265 = vmatpush2.msra.mxu0 0.0
        %4266 = vmatprep.subr.mxu0 0.0
        %4267 = vmatpush2.msra.mxu0 0.0
        %4268 = vmatprep.subr.mxu0 0.0
        %4269 = vmatpush2.msra.mxu0 0.0
        %4270 = vmatprep.subr.mxu0 0.0
        %4271 = vmatpush2.msra.mxu0 0.0
        %4272 = vmatprep.subr.mxu0 0.0
        %4273 = vmatpush2.msra.mxu0 0.0
        %4274 = vmatprep.subr.mxu0 0.0
        %4275 = vmatpush2.msra.mxu0 0.0
        %4276 = vmatprep.subr.mxu0 0.0
        %4277 = vmatpush2.msra.mxu0 0.0
        %4278 = vmatprep.subr.mxu0 0.0
        %4279 = vmatpush2.msra.mxu0 0.0
        %4280 = vmatprep.subr.mxu0 0.0
        %4281 = vmatpush2.msra.mxu0 0.0
        %4282 = vmatprep.subr.mxu0 0.0
        %4283 = vmatpush2.msra.mxu0 0.0
        %4284 = vmatprep.subr.mxu0 0.0
        %4285 = vmatpush2.msra.mxu0 0.0
        %4286 = vmatprep.subr.mxu0 0.0
        %4287 = vmatpush2.msra.mxu0 0.0
        %4288 = vmatprep.subr.mxu0 0.0
        %4289 = vmatpush2.msra.mxu0 0.0
        %4290 = vmatprep.subr.mxu0 0.0
        %4291 = vmatpush2.msra.mxu0 0.0
        %4292 = vmatprep.mubr.f32.mxu0 0.0
        %v4293 = vand.u32 %v4225, 4294901760
        %v4294 = vsub.f32 %v4225, %v4293
        %v4295 = vand.u32 %v4294, 4294901760
        %v4296 = vsub.f32 %v4294, %v4295
        %v4297 = vand.u32 %v4296, 4294901760
        %4298 = vmatmul.mubr.f32.gmra.mxu0 %v4297
        %v4299 = vpop.f32.mrf.mxu0
        %v4300 = vadd.f32 0.0, %v4299
        %v4301 = vpop.f32.mrf.mxu0
        %4302 = vdwg.mxu0
        %4303 = vmatprep.subr.mxu0 0.0
        %4304 = vmatpush1.msra.mxu0 0.0
        %4305 = vmatprep.subr.mxu0 0.0
        %4306 = vmatpush1.msra.mxu0 0.0
        %4307 = vmatprep.subr.mxu0 0.0
        %4308 = vmatpush1.msra.mxu0 0.0
        %4309 = vmatprep.subr.mxu0 0.0
        %4310 = vmatpush1.msra.mxu0 0.0
        %4311 = vmatprep.subr.mxu0 0.0
        %4312 = vmatpush1.msra.mxu0 0.0
        %4313 = vmatprep.subr.mxu0 0.0
        %4314 = vmatpush1.msra.mxu0 0.0
        %4315 = vmatprep.subr.mxu0 0.0
        %4316 = vmatpush1.msra.mxu0 0.0
        %4317 = vmatprep.subr.mxu0 0.0
        %4318 = vmatpush1.msra.mxu0 0.0
        %4319 = vmatprep.subr.mxu0 0.0
        %4320 = vmatpush1.msra.mxu0 0.0
        %4321 = vmatprep.subr.mxu0 0.0
        %4322 = vmatpush1.msra.mxu0 0.0
        %4323 = vmatprep.subr.mxu0 0.0
        %4324 = vmatpush1.msra.mxu0 0.0
        %4325 = vmatprep.subr.mxu0 0.0
        %4326 = vmatpush1.msra.mxu0 0.0
        %4327 = vmatprep.subr.mxu0 0.0
        %4328 = vmatpush1.msra.mxu0 0.0
        %4329 = vmatprep.subr.mxu0 0.0
        %4330 = vmatpush1.msra.mxu0 0.0
        %4331 = vmatprep.subr.mxu0 0.0
        %4332 = vmatpush1.msra.mxu0 0.0
        %4333 = vmatprep.subr.mxu0 0.0
        %v4334 = vand.u32 %v4223, 4294901760
        %v4335 = vsub.f32 %v4223, %v4334
        %v4336 = vand.u32 %v4335, 4294901760
        %v4337 = vsub.f32 %v4335, %v4336
        %v4338 = vand.u32 %v4337, 4294901760
        %4339 = vmatpush1.msra.mxu0 %v4338
        %4340 = vmatprep.subr.mxu0 0.0
        %4341 = vmatpush2.msra.mxu0 0.0
        %4342 = vmatprep.subr.mxu0 0.0
        %4343 = vmatpush2.msra.mxu0 0.0
        %4344 = vmatprep.subr.mxu0 0.0
        %4345 = vmatpush2.msra.mxu0 0.0
        %4346 = vmatprep.subr.mxu0 0.0
        %4347 = vmatpush2.msra.mxu0 0.0
        %4348 = vmatprep.subr.mxu0 0.0
        %4349 = vmatpush2.msra.mxu0 0.0
        %4350 = vmatprep.subr.mxu0 0.0
        %4351 = vmatpush2.msra.mxu0 0.0
        %4352 = vmatprep.subr.mxu0 0.0
        %4353 = vmatpush2.msra.mxu0 0.0
        %4354 = vmatprep.subr.mxu0 0.0
        %4355 = vmatpush2.msra.mxu0 0.0
        %4356 = vmatprep.subr.mxu0 0.0
        %4357 = vmatpush2.msra.mxu0 0.0
        %4358 = vmatprep.subr.mxu0 0.0
        %4359 = vmatpush2.msra.mxu0 0.0
        %4360 = vmatprep.subr.mxu0 0.0
        %4361 = vmatpush2.msra.mxu0 0.0
        %4362 = vmatprep.subr.mxu0 0.0
        %4363 = vmatpush2.msra.mxu0 0.0
        %4364 = vmatprep.subr.mxu0 0.0
        %4365 = vmatpush2.msra.mxu0 0.0
        %4366 = vmatprep.subr.mxu0 0.0
        %4367 = vmatpush2.msra.mxu0 0.0
        %4368 = vmatprep.subr.mxu0 0.0
        %4369 = vmatpush2.msra.mxu0 0.0
        %4370 = vmatprep.subr.mxu0 0.0
        %4371 = vmatpush2.msra.mxu0 0.0
        %4372 = vmatprep.mubr.f32.mxu0 0.0
        %v4373 = vand.u32 %v4225, 4294901760
        %4374 = vmatmul.mubr.f32.gmra.mxu0 %v4373
        %v4375 = vpop.f32.mrf.mxu0
        %v4376 = vadd.f32 %v4300, %v4375
        %v4377 = vpop.f32.mrf.mxu0
        %4378 = vdwg.mxu0
        %4379 = vmatprep.subr.mxu0 0.0
        %4380 = vmatpush1.msra.mxu0 0.0
        %4381 = vmatprep.subr.mxu0 0.0
        %4382 = vmatpush1.msra.mxu0 0.0
        %4383 = vmatprep.subr.mxu0 0.0
        %4384 = vmatpush1.msra.mxu0 0.0
        %4385 = vmatprep.subr.mxu0 0.0
        %4386 = vmatpush1.msra.mxu0 0.0
        %4387 = vmatprep.subr.mxu0 0.0
        %4388 = vmatpush1.msra.mxu0 0.0
        %4389 = vmatprep.subr.mxu0 0.0
        %4390 = vmatpush1.msra.mxu0 0.0
        %4391 = vmatprep.subr.mxu0 0.0
        %4392 = vmatpush1.msra.mxu0 0.0
        %4393 = vmatprep.subr.mxu0 0.0
        %4394 = vmatpush1.msra.mxu0 0.0
        %4395 = vmatprep.subr.mxu0 0.0
        %4396 = vmatpush1.msra.mxu0 0.0
        %4397 = vmatprep.subr.mxu0 0.0
        %4398 = vmatpush1.msra.mxu0 0.0
        %4399 = vmatprep.subr.mxu0 0.0
        %4400 = vmatpush1.msra.mxu0 0.0
        %4401 = vmatprep.subr.mxu0 0.0
        %4402 = vmatpush1.msra.mxu0 0.0
        %4403 = vmatprep.subr.mxu0 0.0
        %4404 = vmatpush1.msra.mxu0 0.0
        %4405 = vmatprep.subr.mxu0 0.0
        %4406 = vmatpush1.msra.mxu0 0.0
        %4407 = vmatprep.subr.mxu0 0.0
        %4408 = vmatpush1.msra.mxu0 0.0
        %4409 = vmatprep.subr.mxu0 0.0
        %v4410 = vand.u32 %v4223, 4294901760
        %v4411 = vsub.f32 %v4223, %v4410
        %4412 = vmatpush1.msra.mxu0 %v4411
        %4413 = vmatprep.subr.mxu0 0.0
        %4414 = vmatpush2.msra.mxu0 0.0
        %4415 = vmatprep.subr.mxu0 0.0
        %4416 = vmatpush2.msra.mxu0 0.0
        %4417 = vmatprep.subr.mxu0 0.0
        %4418 = vmatpush2.msra.mxu0 0.0
        %4419 = vmatprep.subr.mxu0 0.0
        %4420 = vmatpush2.msra.mxu0 0.0
        %4421 = vmatprep.subr.mxu0 0.0
        %4422 = vmatpush2.msra.mxu0 0.0
        %4423 = vmatprep.subr.mxu0 0.0
        %4424 = vmatpush2.msra.mxu0 0.0
        %4425 = vmatprep.subr.mxu0 0.0
        %4426 = vmatpush2.msra.mxu0 0.0
        %4427 = vmatprep.subr.mxu0 0.0
        %4428 = vmatpush2.msra.mxu0 0.0
        %4429 = vmatprep.subr.mxu0 0.0
        %4430 = vmatpush2.msra.mxu0 0.0
        %4431 = vmatprep.subr.mxu0 0.0
        %4432 = vmatpush2.msra.mxu0 0.0
        %4433 = vmatprep.subr.mxu0 0.0
        %4434 = vmatpush2.msra.mxu0 0.0
        %4435 = vmatprep.subr.mxu0 0.0
        %4436 = vmatpush2.msra.mxu0 0.0
        %4437 = vmatprep.subr.mxu0 0.0
        %4438 = vmatpush2.msra.mxu0 0.0
        %4439 = vmatprep.subr.mxu0 0.0
        %4440 = vmatpush2.msra.mxu0 0.0
        %4441 = vmatprep.subr.mxu0 0.0
        %4442 = vmatpush2.msra.mxu0 0.0
        %4443 = vmatprep.subr.mxu0 0.0
        %4444 = vmatpush2.msra.mxu0 0.0
        %4445 = vmatprep.mubr.f32.mxu0 0.0
        %v4446 = vand.u32 %v4225, 4294901760
        %v4447 = vsub.f32 %v4225, %v4446
        %4448 = vmatmul.mubr.f32.gmra.mxu0 %v4447
        %v4449 = vpop.f32.mrf.mxu0
        %v4450 = vadd.f32 %v4376, %v4449
        %v4451 = vpop.f32.mrf.mxu0
        %4452 = vdwg.mxu0
        %4453 = vmatprep.subr.mxu0 0.0
        %4454 = vmatpush1.msra.mxu0 0.0
        %4455 = vmatprep.subr.mxu0 0.0
        %4456 = vmatpush1.msra.mxu0 0.0
        %4457 = vmatprep.subr.mxu0 0.0
        %4458 = vmatpush1.msra.mxu0 0.0
        %4459 = vmatprep.subr.mxu0 0.0
        %4460 = vmatpush1.msra.mxu0 0.0
        %4461 = vmatprep.subr.mxu0 0.0
        %4462 = vmatpush1.msra.mxu0 0.0
        %4463 = vmatprep.subr.mxu0 0.0
        %4464 = vmatpush1.msra.mxu0 0.0
        %4465 = vmatprep.subr.mxu0 0.0
        %4466 = vmatpush1.msra.mxu0 0.0
        %4467 = vmatprep.subr.mxu0 0.0
        %4468 = vmatpush1.msra.mxu0 0.0
        %4469 = vmatprep.subr.mxu0 0.0
        %4470 = vmatpush1.msra.mxu0 0.0
        %4471 = vmatprep.subr.mxu0 0.0
        %4472 = vmatpush1.msra.mxu0 0.0
        %4473 = vmatprep.subr.mxu0 0.0
        %4474 = vmatpush1.msra.mxu0 0.0
        %4475 = vmatprep.subr.mxu0 0.0
        %4476 = vmatpush1.msra.mxu0 0.0
        %4477 = vmatprep.subr.mxu0 0.0
        %4478 = vmatpush1.msra.mxu0 0.0
        %4479 = vmatprep.subr.mxu0 0.0
        %4480 = vmatpush1.msra.mxu0 0.0
        %4481 = vmatprep.subr.mxu0 0.0
        %4482 = vmatpush1.msra.mxu0 0.0
        %4483 = vmatprep.subr.mxu0 0.0
        %v4484 = vand.u32 %v4223, 4294901760
        %4485 = vmatpush1.msra.mxu0 %v4484
        %4486 = vmatprep.subr.mxu0 0.0
        %4487 = vmatpush2.msra.mxu0 0.0
        %4488 = vmatprep.subr.mxu0 0.0
        %4489 = vmatpush2.msra.mxu0 0.0
        %4490 = vmatprep.subr.mxu0 0.0
        %4491 = vmatpush2.msra.mxu0 0.0
        %4492 = vmatprep.subr.mxu0 0.0
        %4493 = vmatpush2.msra.mxu0 0.0
        %4494 = vmatprep.subr.mxu0 0.0
        %4495 = vmatpush2.msra.mxu0 0.0
        %4496 = vmatprep.subr.mxu0 0.0
        %4497 = vmatpush2.msra.mxu0 0.0
        %4498 = vmatprep.subr.mxu0 0.0
        %4499 = vmatpush2.msra.mxu0 0.0
        %4500 = vmatprep.subr.mxu0 0.0
        %4501 = vmatpush2.msra.mxu0 0.0
        %4502 = vmatprep.subr.mxu0 0.0
        %4503 = vmatpush2.msra.mxu0 0.0
        %4504 = vmatprep.subr.mxu0 0.0
        %4505 = vmatpush2.msra.mxu0 0.0
        %4506 = vmatprep.subr.mxu0 0.0
        %4507 = vmatpush2.msra.mxu0 0.0
        %4508 = vmatprep.subr.mxu0 0.0
        %4509 = vmatpush2.msra.mxu0 0.0
        %4510 = vmatprep.subr.mxu0 0.0
        %4511 = vmatpush2.msra.mxu0 0.0
        %4512 = vmatprep.subr.mxu0 0.0
        %4513 = vmatpush2.msra.mxu0 0.0
        %4514 = vmatprep.subr.mxu0 0.0
        %4515 = vmatpush2.msra.mxu0 0.0
        %4516 = vmatprep.subr.mxu0 0.0
        %4517 = vmatpush2.msra.mxu0 0.0
        %4518 = vmatprep.mubr.f32.mxu0 0.0
        %v4519 = vand.u32 %v4225, 4294901760
        %v4520 = vsub.f32 %v4225, %v4519
        %v4521 = vand.u32 %v4520, 4294901760
        %4522 = vmatmul.mubr.f32.gmra.mxu0 %v4521
        %v4523 = vpop.f32.mrf.mxu0
        %v4524 = vadd.f32 %v4450, %v4523
        %v4525 = vpop.f32.mrf.mxu0
        %4526 = vdwg.mxu0
        %4527 = vmatprep.subr.mxu0 0.0
        %4528 = vmatpush1.msra.mxu0 0.0
        %4529 = vmatprep.subr.mxu0 0.0
        %4530 = vmatpush1.msra.mxu0 0.0
        %4531 = vmatprep.subr.mxu0 0.0
        %4532 = vmatpush1.msra.mxu0 0.0
        %4533 = vmatprep.subr.mxu0 0.0
        %4534 = vmatpush1.msra.mxu0 0.0
        %4535 = vmatprep.subr.mxu0 0.0
        %4536 = vmatpush1.msra.mxu0 0.0
        %4537 = vmatprep.subr.mxu0 0.0
        %4538 = vmatpush1.msra.mxu0 0.0
        %4539 = vmatprep.subr.mxu0 0.0
        %4540 = vmatpush1.msra.mxu0 0.0
        %4541 = vmatprep.subr.mxu0 0.0
        %4542 = vmatpush1.msra.mxu0 0.0
        %4543 = vmatprep.subr.mxu0 0.0
        %4544 = vmatpush1.msra.mxu0 0.0
        %4545 = vmatprep.subr.mxu0 0.0
        %4546 = vmatpush1.msra.mxu0 0.0
        %4547 = vmatprep.subr.mxu0 0.0
        %4548 = vmatpush1.msra.mxu0 0.0
        %4549 = vmatprep.subr.mxu0 0.0
        %4550 = vmatpush1.msra.mxu0 0.0
        %4551 = vmatprep.subr.mxu0 0.0
        %4552 = vmatpush1.msra.mxu0 0.0
        %4553 = vmatprep.subr.mxu0 0.0
        %4554 = vmatpush1.msra.mxu0 0.0
        %4555 = vmatprep.subr.mxu0 0.0
        %4556 = vmatpush1.msra.mxu0 0.0
        %4557 = vmatprep.subr.mxu0 0.0
        %v4558 = vand.u32 %v4223, 4294901760
        %v4559 = vsub.f32 %v4223, %v4558
        %v4560 = vand.u32 %v4559, 4294901760
        %4561 = vmatpush1.msra.mxu0 %v4560
        %4562 = vmatprep.subr.mxu0 0.0
        %4563 = vmatpush2.msra.mxu0 0.0
        %4564 = vmatprep.subr.mxu0 0.0
        %4565 = vmatpush2.msra.mxu0 0.0
        %4566 = vmatprep.subr.mxu0 0.0
        %4567 = vmatpush2.msra.mxu0 0.0
        %4568 = vmatprep.subr.mxu0 0.0
        %4569 = vmatpush2.msra.mxu0 0.0
        %4570 = vmatprep.subr.mxu0 0.0
        %4571 = vmatpush2.msra.mxu0 0.0
        %4572 = vmatprep.subr.mxu0 0.0
        %4573 = vmatpush2.msra.mxu0 0.0
        %4574 = vmatprep.subr.mxu0 0.0
        %4575 = vmatpush2.msra.mxu0 0.0
        %4576 = vmatprep.subr.mxu0 0.0
        %4577 = vmatpush2.msra.mxu0 0.0
        %4578 = vmatprep.subr.mxu0 0.0
        %4579 = vmatpush2.msra.mxu0 0.0
        %4580 = vmatprep.subr.mxu0 0.0
        %4581 = vmatpush2.msra.mxu0 0.0
        %4582 = vmatprep.subr.mxu0 0.0
        %4583 = vmatpush2.msra.mxu0 0.0
        %4584 = vmatprep.subr.mxu0 0.0
        %4585 = vmatpush2.msra.mxu0 0.0
        %4586 = vmatprep.subr.mxu0 0.0
        %4587 = vmatpush2.msra.mxu0 0.0
        %4588 = vmatprep.subr.mxu0 0.0
        %4589 = vmatpush2.msra.mxu0 0.0
        %4590 = vmatprep.subr.mxu0 0.0
        %4591 = vmatpush2.msra.mxu0 0.0
        %4592 = vmatprep.subr.mxu0 0.0
        %4593 = vmatpush2.msra.mxu0 0.0
        %4594 = vmatprep.mubr.f32.mxu0 0.0
        %v4595 = vand.u32 %v4225, 4294901760
        %4596 = vmatmul.mubr.f32.gmra.mxu0 %v4595
        %v4597 = vpop.f32.mrf.mxu0
        %v4598 = vadd.f32 %v4524, %v4597
        %v4599 = vpop.f32.mrf.mxu0
        %4600 = vdwg.mxu0
        %4601 = vmatprep.subr.mxu0 0.0
        %4602 = vmatpush1.msra.mxu0 0.0
        %4603 = vmatprep.subr.mxu0 0.0
        %4604 = vmatpush1.msra.mxu0 0.0
        %4605 = vmatprep.subr.mxu0 0.0
        %4606 = vmatpush1.msra.mxu0 0.0
        %4607 = vmatprep.subr.mxu0 0.0
        %4608 = vmatpush1.msra.mxu0 0.0
        %4609 = vmatprep.subr.mxu0 0.0
        %4610 = vmatpush1.msra.mxu0 0.0
        %4611 = vmatprep.subr.mxu0 0.0
        %4612 = vmatpush1.msra.mxu0 0.0
        %4613 = vmatprep.subr.mxu0 0.0
        %4614 = vmatpush1.msra.mxu0 0.0
        %4615 = vmatprep.subr.mxu0 0.0
        %4616 = vmatpush1.msra.mxu0 0.0
        %4617 = vmatprep.subr.mxu0 0.0
        %4618 = vmatpush1.msra.mxu0 0.0
        %4619 = vmatprep.subr.mxu0 0.0
        %4620 = vmatpush1.msra.mxu0 0.0
        %4621 = vmatprep.subr.mxu0 0.0
        %4622 = vmatpush1.msra.mxu0 0.0
        %4623 = vmatprep.subr.mxu0 0.0
        %4624 = vmatpush1.msra.mxu0 0.0
        %4625 = vmatprep.subr.mxu0 0.0
        %4626 = vmatpush1.msra.mxu0 0.0
        %4627 = vmatprep.subr.mxu0 0.0
        %4628 = vmatpush1.msra.mxu0 0.0
        %4629 = vmatprep.subr.mxu0 0.0
        %4630 = vmatpush1.msra.mxu0 0.0
        %4631 = vmatprep.subr.mxu0 0.0
        %v4632 = vand.u32 %v4223, 4294901760
        %4633 = vmatpush1.msra.mxu0 %v4632
        %4634 = vmatprep.subr.mxu0 0.0
        %4635 = vmatpush2.msra.mxu0 0.0
        %4636 = vmatprep.subr.mxu0 0.0
        %4637 = vmatpush2.msra.mxu0 0.0
        %4638 = vmatprep.subr.mxu0 0.0
        %4639 = vmatpush2.msra.mxu0 0.0
        %4640 = vmatprep.subr.mxu0 0.0
        %4641 = vmatpush2.msra.mxu0 0.0
        %4642 = vmatprep.subr.mxu0 0.0
        %4643 = vmatpush2.msra.mxu0 0.0
        %4644 = vmatprep.subr.mxu0 0.0
        %4645 = vmatpush2.msra.mxu0 0.0
        %4646 = vmatprep.subr.mxu0 0.0
        %4647 = vmatpush2.msra.mxu0 0.0
        %4648 = vmatprep.subr.mxu0 0.0
        %4649 = vmatpush2.msra.mxu0 0.0
        %4650 = vmatprep.subr.mxu0 0.0
        %4651 = vmatpush2.msra.mxu0 0.0
        %4652 = vmatprep.subr.mxu0 0.0
        %4653 = vmatpush2.msra.mxu0 0.0
        %4654 = vmatprep.subr.mxu0 0.0
        %4655 = vmatpush2.msra.mxu0 0.0
        %4656 = vmatprep.subr.mxu0 0.0
        %4657 = vmatpush2.msra.mxu0 0.0
        %4658 = vmatprep.subr.mxu0 0.0
        %4659 = vmatpush2.msra.mxu0 0.0
        %4660 = vmatprep.subr.mxu0 0.0
        %4661 = vmatpush2.msra.mxu0 0.0
        %4662 = vmatprep.subr.mxu0 0.0
        %4663 = vmatpush2.msra.mxu0 0.0
        %4664 = vmatprep.subr.mxu0 0.0
        %4665 = vmatpush2.msra.mxu0 0.0
        %4666 = vmatprep.mubr.f32.mxu0 0.0
        %v4667 = vand.u32 %v4225, 4294901760
        %4668 = vmatmul.mubr.f32.gmra.mxu0 %v4667
        %v4669 = vpop.f32.mrf.mxu0
        %v4670 = vadd.f32 %v4598, %v4669
        %v4671 = vpop.f32.mrf.mxu0
        %4672 = vdwg.mxu0
        %v4674 = vsel %vm1896, %v2809, 0
        %4676 = vmatprep.subr.mxu0 0.0
        %4677 = vmatpush1.msra.mxu0 0.0
        %4678 = vmatprep.subr.mxu0 0.0
        %4679 = vmatpush1.msra.mxu0 0.0
        %4680 = vmatprep.subr.mxu0 0.0
        %4681 = vmatpush1.msra.mxu0 0.0
        %4682 = vmatprep.subr.mxu0 0.0
        %4683 = vmatpush1.msra.mxu0 0.0
        %4684 = vmatprep.subr.mxu0 0.0
        %4685 = vmatpush1.msra.mxu0 0.0
        %4686 = vmatprep.subr.mxu0 0.0
        %4687 = vmatpush1.msra.mxu0 0.0
        %4688 = vmatprep.subr.mxu0 0.0
        %4689 = vmatpush1.msra.mxu0 0.0
        %4690 = vmatprep.subr.mxu0 0.0
        %4691 = vmatpush1.msra.mxu0 0.0
        %4692 = vmatprep.subr.mxu0 0.0
        %4693 = vmatpush1.msra.mxu0 0.0
        %4694 = vmatprep.subr.mxu0 0.0
        %4695 = vmatpush1.msra.mxu0 0.0
        %4696 = vmatprep.subr.mxu0 0.0
        %4697 = vmatpush1.msra.mxu0 0.0
        %4698 = vmatprep.subr.mxu0 0.0
        %4699 = vmatpush1.msra.mxu0 0.0
        %4700 = vmatprep.subr.mxu0 0.0
        %4701 = vmatpush1.msra.mxu0 0.0
        %4702 = vmatprep.subr.mxu0 0.0
        %4703 = vmatpush1.msra.mxu0 0.0
        %4704 = vmatprep.subr.mxu0 0.0
        %4705 = vmatpush1.msra.mxu0 0.0
        %4706 = vmatprep.subr.mxu0 0.0
        %v4707 = vand.u32 %v2810, 4294901760
        %4708 = vmatpush1.msra.mxu0 %v4707
        %4709 = vmatprep.subr.mxu0 0.0
        %4710 = vmatpush2.msra.mxu0 0.0
        %4711 = vmatprep.subr.mxu0 0.0
        %4712 = vmatpush2.msra.mxu0 0.0
        %4713 = vmatprep.subr.mxu0 0.0
        %4714 = vmatpush2.msra.mxu0 0.0
        %4715 = vmatprep.subr.mxu0 0.0
        %4716 = vmatpush2.msra.mxu0 0.0
        %4717 = vmatprep.subr.mxu0 0.0
        %4718 = vmatpush2.msra.mxu0 0.0
        %4719 = vmatprep.subr.mxu0 0.0
        %4720 = vmatpush2.msra.mxu0 0.0
        %4721 = vmatprep.subr.mxu0 0.0
        %4722 = vmatpush2.msra.mxu0 0.0
        %4723 = vmatprep.subr.mxu0 0.0
        %4724 = vmatpush2.msra.mxu0 0.0
        %4725 = vmatprep.subr.mxu0 0.0
        %4726 = vmatpush2.msra.mxu0 0.0
        %4727 = vmatprep.subr.mxu0 0.0
        %4728 = vmatpush2.msra.mxu0 0.0
        %4729 = vmatprep.subr.mxu0 0.0
        %4730 = vmatpush2.msra.mxu0 0.0
        %4731 = vmatprep.subr.mxu0 0.0
        %4732 = vmatpush2.msra.mxu0 0.0
        %4733 = vmatprep.subr.mxu0 0.0
        %4734 = vmatpush2.msra.mxu0 0.0
        %4735 = vmatprep.subr.mxu0 0.0
        %4736 = vmatpush2.msra.mxu0 0.0
        %4737 = vmatprep.subr.mxu0 0.0
        %4738 = vmatpush2.msra.mxu0 0.0
        %4739 = vmatprep.subr.mxu0 0.0
        %4740 = vmatpush2.msra.mxu0 0.0
        %4741 = vmatprep.mubr.f32.mxu0 0.0
        %v4742 = vand.u32 %v4674, 4294901760
        %v4743 = vsub.f32 %v4674, %v4742
        %v4744 = vand.u32 %v4743, 4294901760
        %v4745 = vsub.f32 %v4743, %v4744
        %v4746 = vand.u32 %v4745, 4294901760
        %4747 = vmatmul.mubr.f32.gmra.mxu0 %v4746
        %v4748 = vpop.f32.mrf.mxu0
        %v4749 = vadd.f32 %v4670, %v4748
        %v4750 = vpop.f32.mrf.mxu0
        %4751 = vdwg.mxu0
        %4752 = vmatprep.subr.mxu0 0.0
        %4753 = vmatpush1.msra.mxu0 0.0
        %4754 = vmatprep.subr.mxu0 0.0
        %4755 = vmatpush1.msra.mxu0 0.0
        %4756 = vmatprep.subr.mxu0 0.0
        %4757 = vmatpush1.msra.mxu0 0.0
        %4758 = vmatprep.subr.mxu0 0.0
        %4759 = vmatpush1.msra.mxu0 0.0
        %4760 = vmatprep.subr.mxu0 0.0
        %4761 = vmatpush1.msra.mxu0 0.0
        %4762 = vmatprep.subr.mxu0 0.0
        %4763 = vmatpush1.msra.mxu0 0.0
        %4764 = vmatprep.subr.mxu0 0.0
        %4765 = vmatpush1.msra.mxu0 0.0
        %4766 = vmatprep.subr.mxu0 0.0
        %4767 = vmatpush1.msra.mxu0 0.0
        %4768 = vmatprep.subr.mxu0 0.0
        %4769 = vmatpush1.msra.mxu0 0.0
        %4770 = vmatprep.subr.mxu0 0.0
        %4771 = vmatpush1.msra.mxu0 0.0
        %4772 = vmatprep.subr.mxu0 0.0
        %4773 = vmatpush1.msra.mxu0 0.0
        %4774 = vmatprep.subr.mxu0 0.0
        %4775 = vmatpush1.msra.mxu0 0.0
        %4776 = vmatprep.subr.mxu0 0.0
        %4777 = vmatpush1.msra.mxu0 0.0
        %4778 = vmatprep.subr.mxu0 0.0
        %4779 = vmatpush1.msra.mxu0 0.0
        %4780 = vmatprep.subr.mxu0 0.0
        %4781 = vmatpush1.msra.mxu0 0.0
        %4782 = vmatprep.subr.mxu0 0.0
        %v4783 = vand.u32 %v2810, 4294901760
        %v4784 = vsub.f32 %v2810, %v4783
        %v4785 = vand.u32 %v4784, 4294901760
        %v4786 = vsub.f32 %v4784, %v4785
        %v4787 = vand.u32 %v4786, 4294901760
        %4788 = vmatpush1.msra.mxu0 %v4787
        %4789 = vmatprep.subr.mxu0 0.0
        %4790 = vmatpush2.msra.mxu0 0.0
        %4791 = vmatprep.subr.mxu0 0.0
        %4792 = vmatpush2.msra.mxu0 0.0
        %4793 = vmatprep.subr.mxu0 0.0
        %4794 = vmatpush2.msra.mxu0 0.0
        %4795 = vmatprep.subr.mxu0 0.0
        %4796 = vmatpush2.msra.mxu0 0.0
        %4797 = vmatprep.subr.mxu0 0.0
        %4798 = vmatpush2.msra.mxu0 0.0
        %4799 = vmatprep.subr.mxu0 0.0
        %4800 = vmatpush2.msra.mxu0 0.0
        %4801 = vmatprep.subr.mxu0 0.0
        %4802 = vmatpush2.msra.mxu0 0.0
        %4803 = vmatprep.subr.mxu0 0.0
        %4804 = vmatpush2.msra.mxu0 0.0
        %4805 = vmatprep.subr.mxu0 0.0
        %4806 = vmatpush2.msra.mxu0 0.0
        %4807 = vmatprep.subr.mxu0 0.0
        %4808 = vmatpush2.msra.mxu0 0.0
        %4809 = vmatprep.subr.mxu0 0.0
        %4810 = vmatpush2.msra.mxu0 0.0
        %4811 = vmatprep.subr.mxu0 0.0
        %4812 = vmatpush2.msra.mxu0 0.0
        %4813 = vmatprep.subr.mxu0 0.0
        %4814 = vmatpush2.msra.mxu0 0.0
        %4815 = vmatprep.subr.mxu0 0.0
        %4816 = vmatpush2.msra.mxu0 0.0
        %4817 = vmatprep.subr.mxu0 0.0
        %4818 = vmatpush2.msra.mxu0 0.0
        %4819 = vmatprep.subr.mxu0 0.0
        %4820 = vmatpush2.msra.mxu0 0.0
        %4821 = vmatprep.mubr.f32.mxu0 0.0
        %v4822 = vand.u32 %v4674, 4294901760
        %4823 = vmatmul.mubr.f32.gmra.mxu0 %v4822
        %v4824 = vpop.f32.mrf.mxu0
        %v4825 = vadd.f32 %v4749, %v4824
        %v4826 = vpop.f32.mrf.mxu0
        %4827 = vdwg.mxu0
        %4828 = vmatprep.subr.mxu0 0.0
        %4829 = vmatpush1.msra.mxu0 0.0
        %4830 = vmatprep.subr.mxu0 0.0
        %4831 = vmatpush1.msra.mxu0 0.0
        %4832 = vmatprep.subr.mxu0 0.0
        %4833 = vmatpush1.msra.mxu0 0.0
        %4834 = vmatprep.subr.mxu0 0.0
        %4835 = vmatpush1.msra.mxu0 0.0
        %4836 = vmatprep.subr.mxu0 0.0
        %4837 = vmatpush1.msra.mxu0 0.0
        %4838 = vmatprep.subr.mxu0 0.0
        %4839 = vmatpush1.msra.mxu0 0.0
        %4840 = vmatprep.subr.mxu0 0.0
        %4841 = vmatpush1.msra.mxu0 0.0
        %4842 = vmatprep.subr.mxu0 0.0
        %4843 = vmatpush1.msra.mxu0 0.0
        %4844 = vmatprep.subr.mxu0 0.0
        %4845 = vmatpush1.msra.mxu0 0.0
        %4846 = vmatprep.subr.mxu0 0.0
        %4847 = vmatpush1.msra.mxu0 0.0
        %4848 = vmatprep.subr.mxu0 0.0
        %4849 = vmatpush1.msra.mxu0 0.0
        %4850 = vmatprep.subr.mxu0 0.0
        %4851 = vmatpush1.msra.mxu0 0.0
        %4852 = vmatprep.subr.mxu0 0.0
        %4853 = vmatpush1.msra.mxu0 0.0
        %4854 = vmatprep.subr.mxu0 0.0
        %4855 = vmatpush1.msra.mxu0 0.0
        %4856 = vmatprep.subr.mxu0 0.0
        %4857 = vmatpush1.msra.mxu0 0.0
        %4858 = vmatprep.subr.mxu0 0.0
        %v4859 = vand.u32 %v2810, 4294901760
        %v4860 = vsub.f32 %v2810, %v4859
        %4861 = vmatpush1.msra.mxu0 %v4860
        %4862 = vmatprep.subr.mxu0 0.0
        %4863 = vmatpush2.msra.mxu0 0.0
        %4864 = vmatprep.subr.mxu0 0.0
        %4865 = vmatpush2.msra.mxu0 0.0
        %4866 = vmatprep.subr.mxu0 0.0
        %4867 = vmatpush2.msra.mxu0 0.0
        %4868 = vmatprep.subr.mxu0 0.0
        %4869 = vmatpush2.msra.mxu0 0.0
        %4870 = vmatprep.subr.mxu0 0.0
        %4871 = vmatpush2.msra.mxu0 0.0
        %4872 = vmatprep.subr.mxu0 0.0
        %4873 = vmatpush2.msra.mxu0 0.0
        %4874 = vmatprep.subr.mxu0 0.0
        %4875 = vmatpush2.msra.mxu0 0.0
        %4876 = vmatprep.subr.mxu0 0.0
        %4877 = vmatpush2.msra.mxu0 0.0
        %4878 = vmatprep.subr.mxu0 0.0
        %4879 = vmatpush2.msra.mxu0 0.0
        %4880 = vmatprep.subr.mxu0 0.0
        %4881 = vmatpush2.msra.mxu0 0.0
        %4882 = vmatprep.subr.mxu0 0.0
        %4883 = vmatpush2.msra.mxu0 0.0
        %4884 = vmatprep.subr.mxu0 0.0
        %4885 = vmatpush2.msra.mxu0 0.0
        %4886 = vmatprep.subr.mxu0 0.0
        %4887 = vmatpush2.msra.mxu0 0.0
        %4888 = vmatprep.subr.mxu0 0.0
        %4889 = vmatpush2.msra.mxu0 0.0
        %4890 = vmatprep.subr.mxu0 0.0
        %4891 = vmatpush2.msra.mxu0 0.0
        %4892 = vmatprep.subr.mxu0 0.0
        %4893 = vmatpush2.msra.mxu0 0.0
        %4894 = vmatprep.mubr.f32.mxu0 0.0
        %v4895 = vand.u32 %v4674, 4294901760
        %v4896 = vsub.f32 %v4674, %v4895
        %4897 = vmatmul.mubr.f32.gmra.mxu0 %v4896
        %v4898 = vpop.f32.mrf.mxu0
        %v4899 = vadd.f32 %v4825, %v4898
        %v4900 = vpop.f32.mrf.mxu0
        %4901 = vdwg.mxu0
        %4902 = vmatprep.subr.mxu0 0.0
        %4903 = vmatpush1.msra.mxu0 0.0
        %4904 = vmatprep.subr.mxu0 0.0
        %4905 = vmatpush1.msra.mxu0 0.0
        %4906 = vmatprep.subr.mxu0 0.0
        %4907 = vmatpush1.msra.mxu0 0.0
        %4908 = vmatprep.subr.mxu0 0.0
        %4909 = vmatpush1.msra.mxu0 0.0
        %4910 = vmatprep.subr.mxu0 0.0
        %4911 = vmatpush1.msra.mxu0 0.0
        %4912 = vmatprep.subr.mxu0 0.0
        %4913 = vmatpush1.msra.mxu0 0.0
        %4914 = vmatprep.subr.mxu0 0.0
        %4915 = vmatpush1.msra.mxu0 0.0
        %4916 = vmatprep.subr.mxu0 0.0
        %4917 = vmatpush1.msra.mxu0 0.0
        %4918 = vmatprep.subr.mxu0 0.0
        %4919 = vmatpush1.msra.mxu0 0.0
        %4920 = vmatprep.subr.mxu0 0.0
        %4921 = vmatpush1.msra.mxu0 0.0
        %4922 = vmatprep.subr.mxu0 0.0
        %4923 = vmatpush1.msra.mxu0 0.0
        %4924 = vmatprep.subr.mxu0 0.0
        %4925 = vmatpush1.msra.mxu0 0.0
        %4926 = vmatprep.subr.mxu0 0.0
        %4927 = vmatpush1.msra.mxu0 0.0
        %4928 = vmatprep.subr.mxu0 0.0
        %4929 = vmatpush1.msra.mxu0 0.0
        %4930 = vmatprep.subr.mxu0 0.0
        %4931 = vmatpush1.msra.mxu0 0.0
        %4932 = vmatprep.subr.mxu0 0.0
        %v4933 = vand.u32 %v2810, 4294901760
        %4934 = vmatpush1.msra.mxu0 %v4933
        %4935 = vmatprep.subr.mxu0 0.0
        %4936 = vmatpush2.msra.mxu0 0.0
        %4937 = vmatprep.subr.mxu0 0.0
        %4938 = vmatpush2.msra.mxu0 0.0
        %4939 = vmatprep.subr.mxu0 0.0
        %4940 = vmatpush2.msra.mxu0 0.0
        %4941 = vmatprep.subr.mxu0 0.0
        %4942 = vmatpush2.msra.mxu0 0.0
        %4943 = vmatprep.subr.mxu0 0.0
        %4944 = vmatpush2.msra.mxu0 0.0
        %4945 = vmatprep.subr.mxu0 0.0
        %4946 = vmatpush2.msra.mxu0 0.0
        %4947 = vmatprep.subr.mxu0 0.0
        %4948 = vmatpush2.msra.mxu0 0.0
        %4949 = vmatprep.subr.mxu0 0.0
        %4950 = vmatpush2.msra.mxu0 0.0
        %4951 = vmatprep.subr.mxu0 0.0
        %4952 = vmatpush2.msra.mxu0 0.0
        %4953 = vmatprep.subr.mxu0 0.0
        %4954 = vmatpush2.msra.mxu0 0.0
        %4955 = vmatprep.subr.mxu0 0.0
        %4956 = vmatpush2.msra.mxu0 0.0
        %4957 = vmatprep.subr.mxu0 0.0
        %4958 = vmatpush2.msra.mxu0 0.0
        %4959 = vmatprep.subr.mxu0 0.0
        %4960 = vmatpush2.msra.mxu0 0.0
        %4961 = vmatprep.subr.mxu0 0.0
        %4962 = vmatpush2.msra.mxu0 0.0
        %4963 = vmatprep.subr.mxu0 0.0
        %4964 = vmatpush2.msra.mxu0 0.0
        %4965 = vmatprep.subr.mxu0 0.0
        %4966 = vmatpush2.msra.mxu0 0.0
        %4967 = vmatprep.mubr.f32.mxu0 0.0
        %v4968 = vand.u32 %v4674, 4294901760
        %v4969 = vsub.f32 %v4674, %v4968
        %v4970 = vand.u32 %v4969, 4294901760
        %4971 = vmatmul.mubr.f32.gmra.mxu0 %v4970
        %v4972 = vpop.f32.mrf.mxu0
        %v4973 = vadd.f32 %v4899, %v4972
        %v4974 = vpop.f32.mrf.mxu0
        %4975 = vdwg.mxu0
        %4976 = vmatprep.subr.mxu0 0.0
        %4977 = vmatpush1.msra.mxu0 0.0
        %4978 = vmatprep.subr.mxu0 0.0
        %4979 = vmatpush1.msra.mxu0 0.0
        %4980 = vmatprep.subr.mxu0 0.0
        %4981 = vmatpush1.msra.mxu0 0.0
        %4982 = vmatprep.subr.mxu0 0.0
        %4983 = vmatpush1.msra.mxu0 0.0
        %4984 = vmatprep.subr.mxu0 0.0
        %4985 = vmatpush1.msra.mxu0 0.0
        %4986 = vmatprep.subr.mxu0 0.0
        %4987 = vmatpush1.msra.mxu0 0.0
        %4988 = vmatprep.subr.mxu0 0.0
        %4989 = vmatpush1.msra.mxu0 0.0
        %4990 = vmatprep.subr.mxu0 0.0
        %4991 = vmatpush1.msra.mxu0 0.0
        %4992 = vmatprep.subr.mxu0 0.0
        %4993 = vmatpush1.msra.mxu0 0.0
        %4994 = vmatprep.subr.mxu0 0.0
        %4995 = vmatpush1.msra.mxu0 0.0
        %4996 = vmatprep.subr.mxu0 0.0
        %4997 = vmatpush1.msra.mxu0 0.0
        %4998 = vmatprep.subr.mxu0 0.0
        %4999 = vmatpush1.msra.mxu0 0.0
        %5000 = vmatprep.subr.mxu0 0.0
        %5001 = vmatpush1.msra.mxu0 0.0
        %5002 = vmatprep.subr.mxu0 0.0
        %5003 = vmatpush1.msra.mxu0 0.0
        %5004 = vmatprep.subr.mxu0 0.0
        %5005 = vmatpush1.msra.mxu0 0.0
        %5006 = vmatprep.subr.mxu0 0.0
        %v5007 = vand.u32 %v2810, 4294901760
        %v5008 = vsub.f32 %v2810, %v5007
        %v5009 = vand.u32 %v5008, 4294901760
        %5010 = vmatpush1.msra.mxu0 %v5009
        %5011 = vmatprep.subr.mxu0 0.0
        %5012 = vmatpush2.msra.mxu0 0.0
        %5013 = vmatprep.subr.mxu0 0.0
        %5014 = vmatpush2.msra.mxu0 0.0
        %5015 = vmatprep.subr.mxu0 0.0
        %5016 = vmatpush2.msra.mxu0 0.0
        %5017 = vmatprep.subr.mxu0 0.0
        %5018 = vmatpush2.msra.mxu0 0.0
        %5019 = vmatprep.subr.mxu0 0.0
        %5020 = vmatpush2.msra.mxu0 0.0
        %5021 = vmatprep.subr.mxu0 0.0
        %5022 = vmatpush2.msra.mxu0 0.0
        %5023 = vmatprep.subr.mxu0 0.0
        %5024 = vmatpush2.msra.mxu0 0.0
        %5025 = vmatprep.subr.mxu0 0.0
        %5026 = vmatpush2.msra.mxu0 0.0
        %5027 = vmatprep.subr.mxu0 0.0
        %5028 = vmatpush2.msra.mxu0 0.0
        %5029 = vmatprep.subr.mxu0 0.0
        %5030 = vmatpush2.msra.mxu0 0.0
        %5031 = vmatprep.subr.mxu0 0.0
        %5032 = vmatpush2.msra.mxu0 0.0
        %5033 = vmatprep.subr.mxu0 0.0
        %5034 = vmatpush2.msra.mxu0 0.0
        %5035 = vmatprep.subr.mxu0 0.0
        %5036 = vmatpush2.msra.mxu0 0.0
        %5037 = vmatprep.subr.mxu0 0.0
        %5038 = vmatpush2.msra.mxu0 0.0
        %5039 = vmatprep.subr.mxu0 0.0
        %5040 = vmatpush2.msra.mxu0 0.0
        %5041 = vmatprep.subr.mxu0 0.0
        %5042 = vmatpush2.msra.mxu0 0.0
        %5043 = vmatprep.mubr.f32.mxu0 0.0
        %v5044 = vand.u32 %v4674, 4294901760
        %5045 = vmatmul.mubr.f32.gmra.mxu0 %v5044
        %v5046 = vpop.f32.mrf.mxu0
        %v5047 = vadd.f32 %v4973, %v5046
        %v5048 = vpop.f32.mrf.mxu0
        %5049 = vdwg.mxu0
        %5050 = vmatprep.subr.mxu0 0.0
        %5051 = vmatpush1.msra.mxu0 0.0
        %5052 = vmatprep.subr.mxu0 0.0
        %5053 = vmatpush1.msra.mxu0 0.0
        %5054 = vmatprep.subr.mxu0 0.0
        %5055 = vmatpush1.msra.mxu0 0.0
        %5056 = vmatprep.subr.mxu0 0.0
        %5057 = vmatpush1.msra.mxu0 0.0
        %5058 = vmatprep.subr.mxu0 0.0
        %5059 = vmatpush1.msra.mxu0 0.0
        %5060 = vmatprep.subr.mxu0 0.0
        %5061 = vmatpush1.msra.mxu0 0.0
        %5062 = vmatprep.subr.mxu0 0.0
        %5063 = vmatpush1.msra.mxu0 0.0
        %5064 = vmatprep.subr.mxu0 0.0
        %5065 = vmatpush1.msra.mxu0 0.0
        %5066 = vmatprep.subr.mxu0 0.0
        %5067 = vmatpush1.msra.mxu0 0.0
        %5068 = vmatprep.subr.mxu0 0.0
        %5069 = vmatpush1.msra.mxu0 0.0
        %5070 = vmatprep.subr.mxu0 0.0
        %5071 = vmatpush1.msra.mxu0 0.0
        %5072 = vmatprep.subr.mxu0 0.0
        %5073 = vmatpush1.msra.mxu0 0.0
        %5074 = vmatprep.subr.mxu0 0.0
        %5075 = vmatpush1.msra.mxu0 0.0
        %5076 = vmatprep.subr.mxu0 0.0
        %5077 = vmatpush1.msra.mxu0 0.0
        %5078 = vmatprep.subr.mxu0 0.0
        %5079 = vmatpush1.msra.mxu0 0.0
        %5080 = vmatprep.subr.mxu0 0.0
        %v5081 = vand.u32 %v2810, 4294901760
        %5082 = vmatpush1.msra.mxu0 %v5081
        %5083 = vmatprep.subr.mxu0 0.0
        %5084 = vmatpush2.msra.mxu0 0.0
        %5085 = vmatprep.subr.mxu0 0.0
        %5086 = vmatpush2.msra.mxu0 0.0
        %5087 = vmatprep.subr.mxu0 0.0
        %5088 = vmatpush2.msra.mxu0 0.0
        %5089 = vmatprep.subr.mxu0 0.0
        %5090 = vmatpush2.msra.mxu0 0.0
        %5091 = vmatprep.subr.mxu0 0.0
        %5092 = vmatpush2.msra.mxu0 0.0
        %5093 = vmatprep.subr.mxu0 0.0
        %5094 = vmatpush2.msra.mxu0 0.0
        %5095 = vmatprep.subr.mxu0 0.0
        %5096 = vmatpush2.msra.mxu0 0.0
        %5097 = vmatprep.subr.mxu0 0.0
        %5098 = vmatpush2.msra.mxu0 0.0
        %5099 = vmatprep.subr.mxu0 0.0
        %5100 = vmatpush2.msra.mxu0 0.0
        %5101 = vmatprep.subr.mxu0 0.0
        %5102 = vmatpush2.msra.mxu0 0.0
        %5103 = vmatprep.subr.mxu0 0.0
        %5104 = vmatpush2.msra.mxu0 0.0
        %5105 = vmatprep.subr.mxu0 0.0
        %5106 = vmatpush2.msra.mxu0 0.0
        %5107 = vmatprep.subr.mxu0 0.0
        %5108 = vmatpush2.msra.mxu0 0.0
        %5109 = vmatprep.subr.mxu0 0.0
        %5110 = vmatpush2.msra.mxu0 0.0
        %5111 = vmatprep.subr.mxu0 0.0
        %5112 = vmatpush2.msra.mxu0 0.0
        %5113 = vmatprep.subr.mxu0 0.0
        %5114 = vmatpush2.msra.mxu0 0.0
        %5115 = vmatprep.mubr.f32.mxu0 0.0
        %v5116 = vand.u32 %v4674, 4294901760
        %5117 = vmatmul.mubr.f32.gmra.mxu0 %v5116
        %v5118 = vpop.f32.mrf.mxu0
        %v5119 = vadd.f32 %v5047, %v5118
        %v5120 = vpop.f32.mrf.mxu0
        %5121 = vdwg.mxu0
        %s5122 = scalar_lea.vmem %s4, 32
        %v5123 = vld [vmem:[%s5122] sm:$0xff]
        %v5124 = vld [vmem:[%s5122 + $0x8] sm:$0xff]
        %v5125 = vld [vmem:[%s5122 + $0x10] sm:$0xff]
        %v5126 = vld [vmem:[%s5122 + $0x18] sm:$0xff]
        %5127 = vmatprep.subr.mxu0 0.0
        %5128 = vmatpush1.msra.mxu0 0.0
        %5129 = vmatprep.subr.mxu0 0.0
        %5130 = vmatpush1.msra.mxu0 0.0
        %5131 = vmatprep.subr.mxu0 0.0
        %5132 = vmatpush1.msra.mxu0 0.0
        %5133 = vmatprep.subr.mxu0 0.0
        %5134 = vmatpush1.msra.mxu0 0.0
        %5135 = vmatprep.subr.mxu0 0.0
        %5136 = vmatpush1.msra.mxu0 0.0
        %5137 = vmatprep.subr.mxu0 0.0
        %5138 = vmatpush1.msra.mxu0 0.0
        %5139 = vmatprep.subr.mxu0 0.0
        %5140 = vmatpush1.msra.mxu0 0.0
        %5141 = vmatprep.subr.mxu0 0.0
        %5142 = vmatpush1.msra.mxu0 0.0
        %5143 = vmatprep.subr.mxu0 0.0
        %5144 = vmatpush1.msra.mxu0 0.0
        %5145 = vmatprep.subr.mxu0 0.0
        %5146 = vmatpush1.msra.mxu0 0.0
        %5147 = vmatprep.subr.mxu0 0.0
        %5148 = vmatpush1.msra.mxu0 0.0
        %5149 = vmatprep.subr.mxu0 0.0
        %5150 = vmatpush1.msra.mxu0 0.0
        %5151 = vmatprep.subr.mxu0 0.0
        %v5152 = vand.u32 %v5126, 4294901760
        %5153 = vmatpush1.msra.mxu0 %v5152
        %5154 = vmatprep.subr.mxu0 0.0
        %v5155 = vand.u32 %v5125, 4294901760
        %5156 = vmatpush1.msra.mxu0 %v5155
        %5157 = vmatprep.subr.mxu0 0.0
        %v5158 = vand.u32 %v5124, 4294901760
        %5159 = vmatpush1.msra.mxu0 %v5158
        %5160 = vmatprep.subr.mxu0 0.0
        %v5161 = vand.u32 %v5123, 4294901760
        %5162 = vmatpush1.msra.mxu0 %v5161
        %5163 = vmatprep.subr.mxu0 0.0
        %5164 = vmatpush2.msra.mxu0 0.0
        %5165 = vmatprep.subr.mxu0 0.0
        %5166 = vmatpush2.msra.mxu0 0.0
        %5167 = vmatprep.subr.mxu0 0.0
        %5168 = vmatpush2.msra.mxu0 0.0
        %5169 = vmatprep.subr.mxu0 0.0
        %5170 = vmatpush2.msra.mxu0 0.0
        %5171 = vmatprep.subr.mxu0 0.0
        %5172 = vmatpush2.msra.mxu0 0.0
        %5173 = vmatprep.subr.mxu0 0.0
        %5174 = vmatpush2.msra.mxu0 0.0
        %5175 = vmatprep.subr.mxu0 0.0
        %5176 = vmatpush2.msra.mxu0 0.0
        %5177 = vmatprep.subr.mxu0 0.0
        %5178 = vmatpush2.msra.mxu0 0.0
        %5179 = vmatprep.subr.mxu0 0.0
        %5180 = vmatpush2.msra.mxu0 0.0
        %5181 = vmatprep.subr.mxu0 0.0
        %5182 = vmatpush2.msra.mxu0 0.0
        %5183 = vmatprep.subr.mxu0 0.0
        %5184 = vmatpush2.msra.mxu0 0.0
        %5185 = vmatprep.subr.mxu0 0.0
        %5186 = vmatpush2.msra.mxu0 0.0
        %5187 = vmatprep.subr.mxu0 0.0
        %5188 = vmatpush2.msra.mxu0 0.0
        %5189 = vmatprep.subr.mxu0 0.0
        %5190 = vmatpush2.msra.mxu0 0.0
        %5191 = vmatprep.subr.mxu0 0.0
        %5192 = vmatpush2.msra.mxu0 0.0
        %5193 = vmatprep.subr.mxu0 0.0
        %5194 = vmatpush2.msra.mxu0 0.0
        %5195 = vmatprep.mubr.f32.mxu0 0.0
        %v5196 = vand.u32 %v408, 4294901760
        %v5197 = vsub.f32 %v408, %v5196
        %v5198 = vand.u32 %v5197, 4294901760
        %v5199 = vsub.f32 %v5197, %v5198
        %v5200 = vand.u32 %v5199, 4294901760
        %5201 = vmatmul.mubr.f32.gmra.mxu0 %v5200
        %v5202 = vpop.f32.mrf.mxu0
        %v5203 = vadd.f32 0.0, %v5202
        %v5204 = vpop.f32.mrf.mxu0
        %5205 = vdwg.mxu0
        %5206 = vmatprep.subr.mxu0 0.0
        %5207 = vmatpush1.msra.mxu0 0.0
        %5208 = vmatprep.subr.mxu0 0.0
        %5209 = vmatpush1.msra.mxu0 0.0
        %5210 = vmatprep.subr.mxu0 0.0
        %5211 = vmatpush1.msra.mxu0 0.0
        %5212 = vmatprep.subr.mxu0 0.0
        %5213 = vmatpush1.msra.mxu0 0.0
        %5214 = vmatprep.subr.mxu0 0.0
        %5215 = vmatpush1.msra.mxu0 0.0
        %5216 = vmatprep.subr.mxu0 0.0
        %5217 = vmatpush1.msra.mxu0 0.0
        %5218 = vmatprep.subr.mxu0 0.0
        %5219 = vmatpush1.msra.mxu0 0.0
        %5220 = vmatprep.subr.mxu0 0.0
        %5221 = vmatpush1.msra.mxu0 0.0
        %5222 = vmatprep.subr.mxu0 0.0
        %5223 = vmatpush1.msra.mxu0 0.0
        %5224 = vmatprep.subr.mxu0 0.0
        %5225 = vmatpush1.msra.mxu0 0.0
        %5226 = vmatprep.subr.mxu0 0.0
        %5227 = vmatpush1.msra.mxu0 0.0
        %5228 = vmatprep.subr.mxu0 0.0
        %5229 = vmatpush1.msra.mxu0 0.0
        %5230 = vmatprep.subr.mxu0 0.0
        %v5231 = vand.u32 %v5126, 4294901760
        %v5232 = vsub.f32 %v5126, %v5231
        %v5233 = vand.u32 %v5232, 4294901760
        %v5234 = vsub.f32 %v5232, %v5233
        %v5235 = vand.u32 %v5234, 4294901760
        %5236 = vmatpush1.msra.mxu0 %v5235
        %5237 = vmatprep.subr.mxu0 0.0
        %v5238 = vand.u32 %v5125, 4294901760
        %v5239 = vsub.f32 %v5125, %v5238
        %v5240 = vand.u32 %v5239, 4294901760
        %v5241 = vsub.f32 %v5239, %v5240
        %v5242 = vand.u32 %v5241, 4294901760
        %5243 = vmatpush1.msra.mxu0 %v5242
        %5244 = vmatprep.subr.mxu0 0.0
        %v5245 = vand.u32 %v5124, 4294901760
        %v5246 = vsub.f32 %v5124, %v5245
        %v5247 = vand.u32 %v5246, 4294901760
        %v5248 = vsub.f32 %v5246, %v5247
        %v5249 = vand.u32 %v5248, 4294901760
        %5250 = vmatpush1.msra.mxu0 %v5249
        %5251 = vmatprep.subr.mxu0 0.0
        %v5252 = vand.u32 %v5123, 4294901760
        %v5253 = vsub.f32 %v5123, %v5252
        %v5254 = vand.u32 %v5253, 4294901760
        %v5255 = vsub.f32 %v5253, %v5254
        %v5256 = vand.u32 %v5255, 4294901760
        %5257 = vmatpush1.msra.mxu0 %v5256
        %5258 = vmatprep.subr.mxu0 0.0
        %5259 = vmatpush2.msra.mxu0 0.0
        %5260 = vmatprep.subr.mxu0 0.0
        %5261 = vmatpush2.msra.mxu0 0.0
        %5262 = vmatprep.subr.mxu0 0.0
        %5263 = vmatpush2.msra.mxu0 0.0
        %5264 = vmatprep.subr.mxu0 0.0
        %5265 = vmatpush2.msra.mxu0 0.0
        %5266 = vmatprep.subr.mxu0 0.0
        %5267 = vmatpush2.msra.mxu0 0.0
        %5268 = vmatprep.subr.mxu0 0.0
        %5269 = vmatpush2.msra.mxu0 0.0
        %5270 = vmatprep.subr.mxu0 0.0
        %5271 = vmatpush2.msra.mxu0 0.0
        %5272 = vmatprep.subr.mxu0 0.0
        %5273 = vmatpush2.msra.mxu0 0.0
        %5274 = vmatprep.subr.mxu0 0.0
        %5275 = vmatpush2.msra.mxu0 0.0
        %5276 = vmatprep.subr.mxu0 0.0
        %5277 = vmatpush2.msra.mxu0 0.0
        %5278 = vmatprep.subr.mxu0 0.0
        %5279 = vmatpush2.msra.mxu0 0.0
        %5280 = vmatprep.subr.mxu0 0.0
        %5281 = vmatpush2.msra.mxu0 0.0
        %5282 = vmatprep.subr.mxu0 0.0
        %5283 = vmatpush2.msra.mxu0 0.0
        %5284 = vmatprep.subr.mxu0 0.0
        %5285 = vmatpush2.msra.mxu0 0.0
        %5286 = vmatprep.subr.mxu0 0.0
        %5287 = vmatpush2.msra.mxu0 0.0
        %5288 = vmatprep.subr.mxu0 0.0
        %5289 = vmatpush2.msra.mxu0 0.0
        %5290 = vmatprep.mubr.f32.mxu0 0.0
        %v5291 = vand.u32 %v408, 4294901760
        %5292 = vmatmul.mubr.f32.gmra.mxu0 %v5291
        %v5293 = vpop.f32.mrf.mxu0
        %v5294 = vadd.f32 %v5203, %v5293
        %v5295 = vpop.f32.mrf.mxu0
        %5296 = vdwg.mxu0
        %5297 = vmatprep.subr.mxu0 0.0
        %5298 = vmatpush1.msra.mxu0 0.0
        %5299 = vmatprep.subr.mxu0 0.0
        %5300 = vmatpush1.msra.mxu0 0.0
        %5301 = vmatprep.subr.mxu0 0.0
        %5302 = vmatpush1.msra.mxu0 0.0
        %5303 = vmatprep.subr.mxu0 0.0
        %5304 = vmatpush1.msra.mxu0 0.0
        %5305 = vmatprep.subr.mxu0 0.0
        %5306 = vmatpush1.msra.mxu0 0.0
        %5307 = vmatprep.subr.mxu0 0.0
        %5308 = vmatpush1.msra.mxu0 0.0
        %5309 = vmatprep.subr.mxu0 0.0
        %5310 = vmatpush1.msra.mxu0 0.0
        %5311 = vmatprep.subr.mxu0 0.0
        %5312 = vmatpush1.msra.mxu0 0.0
        %5313 = vmatprep.subr.mxu0 0.0
        %5314 = vmatpush1.msra.mxu0 0.0
        %5315 = vmatprep.subr.mxu0 0.0
        %5316 = vmatpush1.msra.mxu0 0.0
        %5317 = vmatprep.subr.mxu0 0.0
        %5318 = vmatpush1.msra.mxu0 0.0
        %5319 = vmatprep.subr.mxu0 0.0
        %5320 = vmatpush1.msra.mxu0 0.0
        %5321 = vmatprep.subr.mxu0 0.0
        %v5322 = vand.u32 %v5126, 4294901760
        %v5323 = vsub.f32 %v5126, %v5322
        %5324 = vmatpush1.msra.mxu0 %v5323
        %5325 = vmatprep.subr.mxu0 0.0
        %v5326 = vand.u32 %v5125, 4294901760
        %v5327 = vsub.f32 %v5125, %v5326
        %5328 = vmatpush1.msra.mxu0 %v5327
        %5329 = vmatprep.subr.mxu0 0.0
        %v5330 = vand.u32 %v5124, 4294901760
        %v5331 = vsub.f32 %v5124, %v5330
        %5332 = vmatpush1.msra.mxu0 %v5331
        %5333 = vmatprep.subr.mxu0 0.0
        %v5334 = vand.u32 %v5123, 4294901760
        %v5335 = vsub.f32 %v5123, %v5334
        %5336 = vmatpush1.msra.mxu0 %v5335
        %5337 = vmatprep.subr.mxu0 0.0
        %5338 = vmatpush2.msra.mxu0 0.0
        %5339 = vmatprep.subr.mxu0 0.0
        %5340 = vmatpush2.msra.mxu0 0.0
        %5341 = vmatprep.subr.mxu0 0.0
        %5342 = vmatpush2.msra.mxu0 0.0
        %5343 = vmatprep.subr.mxu0 0.0
        %5344 = vmatpush2.msra.mxu0 0.0
        %5345 = vmatprep.subr.mxu0 0.0
        %5346 = vmatpush2.msra.mxu0 0.0
        %5347 = vmatprep.subr.mxu0 0.0
        %5348 = vmatpush2.msra.mxu0 0.0
        %5349 = vmatprep.subr.mxu0 0.0
        %5350 = vmatpush2.msra.mxu0 0.0
        %5351 = vmatprep.subr.mxu0 0.0
        %5352 = vmatpush2.msra.mxu0 0.0
        %5353 = vmatprep.subr.mxu0 0.0
        %5354 = vmatpush2.msra.mxu0 0.0
        %5355 = vmatprep.subr.mxu0 0.0
        %5356 = vmatpush2.msra.mxu0 0.0
        %5357 = vmatprep.subr.mxu0 0.0
        %5358 = vmatpush2.msra.mxu0 0.0
        %5359 = vmatprep.subr.mxu0 0.0
        %5360 = vmatpush2.msra.mxu0 0.0
        %5361 = vmatprep.subr.mxu0 0.0
        %5362 = vmatpush2.msra.mxu0 0.0
        %5363 = vmatprep.subr.mxu0 0.0
        %5364 = vmatpush2.msra.mxu0 0.0
        %5365 = vmatprep.subr.mxu0 0.0
        %5366 = vmatpush2.msra.mxu0 0.0
        %5367 = vmatprep.subr.mxu0 0.0
        %5368 = vmatpush2.msra.mxu0 0.0
        %5369 = vmatprep.mubr.f32.mxu0 0.0
        %v5370 = vand.u32 %v408, 4294901760
        %v5371 = vsub.f32 %v408, %v5370
        %5372 = vmatmul.mubr.f32.gmra.mxu0 %v5371
        %v5373 = vpop.f32.mrf.mxu0
        %v5374 = vadd.f32 %v5294, %v5373
        %v5375 = vpop.f32.mrf.mxu0
        %5376 = vdwg.mxu0
        %5377 = vmatprep.subr.mxu0 0.0
        %5378 = vmatpush1.msra.mxu0 0.0
        %5379 = vmatprep.subr.mxu0 0.0
        %5380 = vmatpush1.msra.mxu0 0.0
        %5381 = vmatprep.subr.mxu0 0.0
        %5382 = vmatpush1.msra.mxu0 0.0
        %5383 = vmatprep.subr.mxu0 0.0
        %5384 = vmatpush1.msra.mxu0 0.0
        %5385 = vmatprep.subr.mxu0 0.0
        %5386 = vmatpush1.msra.mxu0 0.0
        %5387 = vmatprep.subr.mxu0 0.0
        %5388 = vmatpush1.msra.mxu0 0.0
        %5389 = vmatprep.subr.mxu0 0.0
        %5390 = vmatpush1.msra.mxu0 0.0
        %5391 = vmatprep.subr.mxu0 0.0
        %5392 = vmatpush1.msra.mxu0 0.0
        %5393 = vmatprep.subr.mxu0 0.0
        %5394 = vmatpush1.msra.mxu0 0.0
        %5395 = vmatprep.subr.mxu0 0.0
        %5396 = vmatpush1.msra.mxu0 0.0
        %5397 = vmatprep.subr.mxu0 0.0
        %5398 = vmatpush1.msra.mxu0 0.0
        %5399 = vmatprep.subr.mxu0 0.0
        %5400 = vmatpush1.msra.mxu0 0.0
        %5401 = vmatprep.subr.mxu0 0.0
        %v5402 = vand.u32 %v5126, 4294901760
        %5403 = vmatpush1.msra.mxu0 %v5402
        %5404 = vmatprep.subr.mxu0 0.0
        %v5405 = vand.u32 %v5125, 4294901760
        %5406 = vmatpush1.msra.mxu0 %v5405
        %5407 = vmatprep.subr.mxu0 0.0
        %v5408 = vand.u32 %v5124, 4294901760
        %5409 = vmatpush1.msra.mxu0 %v5408
        %5410 = vmatprep.subr.mxu0 0.0
        %v5411 = vand.u32 %v5123, 4294901760
        %5412 = vmatpush1.msra.mxu0 %v5411
        %5413 = vmatprep.subr.mxu0 0.0
        %5414 = vmatpush2.msra.mxu0 0.0
        %5415 = vmatprep.subr.mxu0 0.0
        %5416 = vmatpush2.msra.mxu0 0.0
        %5417 = vmatprep.subr.mxu0 0.0
        %5418 = vmatpush2.msra.mxu0 0.0
        %5419 = vmatprep.subr.mxu0 0.0
        %5420 = vmatpush2.msra.mxu0 0.0
        %5421 = vmatprep.subr.mxu0 0.0
        %5422 = vmatpush2.msra.mxu0 0.0
        %5423 = vmatprep.subr.mxu0 0.0
        %5424 = vmatpush2.msra.mxu0 0.0
        %5425 = vmatprep.subr.mxu0 0.0
        %5426 = vmatpush2.msra.mxu0 0.0
        %5427 = vmatprep.subr.mxu0 0.0
        %5428 = vmatpush2.msra.mxu0 0.0
        %5429 = vmatprep.subr.mxu0 0.0
        %5430 = vmatpush2.msra.mxu0 0.0
        %5431 = vmatprep.subr.mxu0 0.0
        %5432 = vmatpush2.msra.mxu0 0.0
        %5433 = vmatprep.subr.mxu0 0.0
        %5434 = vmatpush2.msra.mxu0 0.0
        %5435 = vmatprep.subr.mxu0 0.0
        %5436 = vmatpush2.msra.mxu0 0.0
        %5437 = vmatprep.subr.mxu0 0.0
        %5438 = vmatpush2.msra.mxu0 0.0
        %5439 = vmatprep.subr.mxu0 0.0
        %5440 = vmatpush2.msra.mxu0 0.0
        %5441 = vmatprep.subr.mxu0 0.0
        %5442 = vmatpush2.msra.mxu0 0.0
        %5443 = vmatprep.subr.mxu0 0.0
        %5444 = vmatpush2.msra.mxu0 0.0
        %5445 = vmatprep.mubr.f32.mxu0 0.0
        %v5446 = vand.u32 %v408, 4294901760
        %v5447 = vsub.f32 %v408, %v5446
        %v5448 = vand.u32 %v5447, 4294901760
        %5449 = vmatmul.mubr.f32.gmra.mxu0 %v5448
        %v5450 = vpop.f32.mrf.mxu0
        %v5451 = vadd.f32 %v5374, %v5450
        %v5452 = vpop.f32.mrf.mxu0
        %5453 = vdwg.mxu0
        %5454 = vmatprep.subr.mxu0 0.0
        %5455 = vmatpush1.msra.mxu0 0.0
        %5456 = vmatprep.subr.mxu0 0.0
        %5457 = vmatpush1.msra.mxu0 0.0
        %5458 = vmatprep.subr.mxu0 0.0
        %5459 = vmatpush1.msra.mxu0 0.0
        %5460 = vmatprep.subr.mxu0 0.0
        %5461 = vmatpush1.msra.mxu0 0.0
        %5462 = vmatprep.subr.mxu0 0.0
        %5463 = vmatpush1.msra.mxu0 0.0
        %5464 = vmatprep.subr.mxu0 0.0
        %5465 = vmatpush1.msra.mxu0 0.0
        %5466 = vmatprep.subr.mxu0 0.0
        %5467 = vmatpush1.msra.mxu0 0.0
        %5468 = vmatprep.subr.mxu0 0.0
        %5469 = vmatpush1.msra.mxu0 0.0
        %5470 = vmatprep.subr.mxu0 0.0
        %5471 = vmatpush1.msra.mxu0 0.0
        %5472 = vmatprep.subr.mxu0 0.0
        %5473 = vmatpush1.msra.mxu0 0.0
        %5474 = vmatprep.subr.mxu0 0.0
        %5475 = vmatpush1.msra.mxu0 0.0
        %5476 = vmatprep.subr.mxu0 0.0
        %5477 = vmatpush1.msra.mxu0 0.0
        %5478 = vmatprep.subr.mxu0 0.0
        %v5479 = vand.u32 %v5126, 4294901760
        %v5480 = vsub.f32 %v5126, %v5479
        %v5481 = vand.u32 %v5480, 4294901760
        %5482 = vmatpush1.msra.mxu0 %v5481
        %5483 = vmatprep.subr.mxu0 0.0
        %v5484 = vand.u32 %v5125, 4294901760
        %v5485 = vsub.f32 %v5125, %v5484
        %v5486 = vand.u32 %v5485, 4294901760
        %5487 = vmatpush1.msra.mxu0 %v5486
        %5488 = vmatprep.subr.mxu0 0.0
        %v5489 = vand.u32 %v5124, 4294901760
        %v5490 = vsub.f32 %v5124, %v5489
        %v5491 = vand.u32 %v5490, 4294901760
        %5492 = vmatpush1.msra.mxu0 %v5491
        %5493 = vmatprep.subr.mxu0 0.0
        %v5494 = vand.u32 %v5123, 4294901760
        %v5495 = vsub.f32 %v5123, %v5494
        %v5496 = vand.u32 %v5495, 4294901760
        %5497 = vmatpush1.msra.mxu0 %v5496
        %5498 = vmatprep.subr.mxu0 0.0
        %5499 = vmatpush2.msra.mxu0 0.0
        %5500 = vmatprep.subr.mxu0 0.0
        %5501 = vmatpush2.msra.mxu0 0.0
        %5502 = vmatprep.subr.mxu0 0.0
        %5503 = vmatpush2.msra.mxu0 0.0
        %5504 = vmatprep.subr.mxu0 0.0
        %5505 = vmatpush2.msra.mxu0 0.0
        %5506 = vmatprep.subr.mxu0 0.0
        %5507 = vmatpush2.msra.mxu0 0.0
        %5508 = vmatprep.subr.mxu0 0.0
        %5509 = vmatpush2.msra.mxu0 0.0
        %5510 = vmatprep.subr.mxu0 0.0
        %5511 = vmatpush2.msra.mxu0 0.0
        %5512 = vmatprep.subr.mxu0 0.0
        %5513 = vmatpush2.msra.mxu0 0.0
        %5514 = vmatprep.subr.mxu0 0.0
        %5515 = vmatpush2.msra.mxu0 0.0
        %5516 = vmatprep.subr.mxu0 0.0
        %5517 = vmatpush2.msra.mxu0 0.0
        %5518 = vmatprep.subr.mxu0 0.0
        %5519 = vmatpush2.msra.mxu0 0.0
        %5520 = vmatprep.subr.mxu0 0.0
        %5521 = vmatpush2.msra.mxu0 0.0
        %5522 = vmatprep.subr.mxu0 0.0
        %5523 = vmatpush2.msra.mxu0 0.0
        %5524 = vmatprep.subr.mxu0 0.0
        %5525 = vmatpush2.msra.mxu0 0.0
        %5526 = vmatprep.subr.mxu0 0.0
        %5527 = vmatpush2.msra.mxu0 0.0
        %5528 = vmatprep.subr.mxu0 0.0
        %5529 = vmatpush2.msra.mxu0 0.0
        %5530 = vmatprep.mubr.f32.mxu0 0.0
        %v5531 = vand.u32 %v408, 4294901760
        %5532 = vmatmul.mubr.f32.gmra.mxu0 %v5531
        %v5533 = vpop.f32.mrf.mxu0
        %v5534 = vadd.f32 %v5451, %v5533
        %v5535 = vpop.f32.mrf.mxu0
        %5536 = vdwg.mxu0
        %5537 = vmatprep.subr.mxu0 0.0
        %5538 = vmatpush1.msra.mxu0 0.0
        %5539 = vmatprep.subr.mxu0 0.0
        %5540 = vmatpush1.msra.mxu0 0.0
        %5541 = vmatprep.subr.mxu0 0.0
        %5542 = vmatpush1.msra.mxu0 0.0
        %5543 = vmatprep.subr.mxu0 0.0
        %5544 = vmatpush1.msra.mxu0 0.0
        %5545 = vmatprep.subr.mxu0 0.0
        %5546 = vmatpush1.msra.mxu0 0.0
        %5547 = vmatprep.subr.mxu0 0.0
        %5548 = vmatpush1.msra.mxu0 0.0
        %5549 = vmatprep.subr.mxu0 0.0
        %5550 = vmatpush1.msra.mxu0 0.0
        %5551 = vmatprep.subr.mxu0 0.0
        %5552 = vmatpush1.msra.mxu0 0.0
        %5553 = vmatprep.subr.mxu0 0.0
        %5554 = vmatpush1.msra.mxu0 0.0
        %5555 = vmatprep.subr.mxu0 0.0
        %5556 = vmatpush1.msra.mxu0 0.0
        %5557 = vmatprep.subr.mxu0 0.0
        %5558 = vmatpush1.msra.mxu0 0.0
        %5559 = vmatprep.subr.mxu0 0.0
        %5560 = vmatpush1.msra.mxu0 0.0
        %5561 = vmatprep.subr.mxu0 0.0
        %v5562 = vand.u32 %v5126, 4294901760
        %5563 = vmatpush1.msra.mxu0 %v5562
        %5564 = vmatprep.subr.mxu0 0.0
        %v5565 = vand.u32 %v5125, 4294901760
        %5566 = vmatpush1.msra.mxu0 %v5565
        %5567 = vmatprep.subr.mxu0 0.0
        %v5568 = vand.u32 %v5124, 4294901760
        %5569 = vmatpush1.msra.mxu0 %v5568
        %5570 = vmatprep.subr.mxu0 0.0
        %v5571 = vand.u32 %v5123, 4294901760
        %5572 = vmatpush1.msra.mxu0 %v5571
        %5573 = vmatprep.subr.mxu0 0.0
        %5574 = vmatpush2.msra.mxu0 0.0
        %5575 = vmatprep.subr.mxu0 0.0
        %5576 = vmatpush2.msra.mxu0 0.0
        %5577 = vmatprep.subr.mxu0 0.0
        %5578 = vmatpush2.msra.mxu0 0.0
        %5579 = vmatprep.subr.mxu0 0.0
        %5580 = vmatpush2.msra.mxu0 0.0
        %5581 = vmatprep.subr.mxu0 0.0
        %5582 = vmatpush2.msra.mxu0 0.0
        %5583 = vmatprep.subr.mxu0 0.0
        %5584 = vmatpush2.msra.mxu0 0.0
        %5585 = vmatprep.subr.mxu0 0.0
        %5586 = vmatpush2.msra.mxu0 0.0
        %5587 = vmatprep.subr.mxu0 0.0
        %5588 = vmatpush2.msra.mxu0 0.0
        %5589 = vmatprep.subr.mxu0 0.0
        %5590 = vmatpush2.msra.mxu0 0.0
        %5591 = vmatprep.subr.mxu0 0.0
        %5592 = vmatpush2.msra.mxu0 0.0
        %5593 = vmatprep.subr.mxu0 0.0
        %5594 = vmatpush2.msra.mxu0 0.0
        %5595 = vmatprep.subr.mxu0 0.0
        %5596 = vmatpush2.msra.mxu0 0.0
        %5597 = vmatprep.subr.mxu0 0.0
        %5598 = vmatpush2.msra.mxu0 0.0
        %5599 = vmatprep.subr.mxu0 0.0
        %5600 = vmatpush2.msra.mxu0 0.0
        %5601 = vmatprep.subr.mxu0 0.0
        %5602 = vmatpush2.msra.mxu0 0.0
        %5603 = vmatprep.subr.mxu0 0.0
        %5604 = vmatpush2.msra.mxu0 0.0
        %5605 = vmatprep.mubr.f32.mxu0 0.0
        %v5606 = vand.u32 %v408, 4294901760
        %5607 = vmatmul.mubr.f32.gmra.mxu0 %v5606
        %v5608 = vpop.f32.mrf.mxu0
        %v5609 = vadd.f32 %v5534, %v5608
        %v5610 = vpop.f32.mrf.mxu0
        %5611 = vdwg.mxu0
        %5613 = vrot.lane.b32.xlu0 %v5609, 124
        %v5614 = vpop.permute.xlu0 %5613
        %5616 = vrot.lane.b32.xlu0 %v5609, 4
        %v5617 = vpop.permute.xlu0 %5616
        %v5619 = vsel %vm902, %v5614, %v5617
        %v5620 = vmul.f32 %v5609, %v383
        %v5621 = vmul.f32 %v5619, %v384
        %v5622 = vadd.f32 %v5620, %v5621
        %s5623 = scalar_lea.vmem %s5, 32
        %v5624 = vld [vmem:[%s5623] sm:$0xff]
        %v5625 = vld [vmem:[%s5623 + $0x8] sm:$0xff]
        %v5626 = vld [vmem:[%s5623 + $0x10] sm:$0xff]
        %v5627 = vld [vmem:[%s5623 + $0x18] sm:$0xff]
        %5628 = vmatprep.subr.mxu0 0.0
        %5629 = vmatpush1.msra.mxu0 0.0
        %5630 = vmatprep.subr.mxu0 0.0
        %5631 = vmatpush1.msra.mxu0 0.0
        %5632 = vmatprep.subr.mxu0 0.0
        %5633 = vmatpush1.msra.mxu0 0.0
        %5634 = vmatprep.subr.mxu0 0.0
        %5635 = vmatpush1.msra.mxu0 0.0
        %5636 = vmatprep.subr.mxu0 0.0
        %5637 = vmatpush1.msra.mxu0 0.0
        %5638 = vmatprep.subr.mxu0 0.0
        %5639 = vmatpush1.msra.mxu0 0.0
        %5640 = vmatprep.subr.mxu0 0.0
        %5641 = vmatpush1.msra.mxu0 0.0
        %5642 = vmatprep.subr.mxu0 0.0
        %5643 = vmatpush1.msra.mxu0 0.0
        %5644 = vmatprep.subr.mxu0 0.0
        %5645 = vmatpush1.msra.mxu0 0.0
        %5646 = vmatprep.subr.mxu0 0.0
        %5647 = vmatpush1.msra.mxu0 0.0
        %5648 = vmatprep.subr.mxu0 0.0
        %5649 = vmatpush1.msra.mxu0 0.0
        %5650 = vmatprep.subr.mxu0 0.0
        %5651 = vmatpush1.msra.mxu0 0.0
        %5652 = vmatprep.subr.mxu0 0.0
        %v5653 = vand.u32 %v5627, 4294901760
        %5654 = vmatpush1.msra.mxu0 %v5653
        %5655 = vmatprep.subr.mxu0 0.0
        %v5656 = vand.u32 %v5626, 4294901760
        %5657 = vmatpush1.msra.mxu0 %v5656
        %5658 = vmatprep.subr.mxu0 0.0
        %v5659 = vand.u32 %v5625, 4294901760
        %5660 = vmatpush1.msra.mxu0 %v5659
        %5661 = vmatprep.subr.mxu0 0.0
        %v5662 = vand.u32 %v5624, 4294901760
        %5663 = vmatpush1.msra.mxu0 %v5662
        %5664 = vmatprep.subr.mxu0 0.0
        %5665 = vmatpush2.msra.mxu0 0.0
        %5666 = vmatprep.subr.mxu0 0.0
        %5667 = vmatpush2.msra.mxu0 0.0
        %5668 = vmatprep.subr.mxu0 0.0
        %5669 = vmatpush2.msra.mxu0 0.0
        %5670 = vmatprep.subr.mxu0 0.0
        %5671 = vmatpush2.msra.mxu0 0.0
        %5672 = vmatprep.subr.mxu0 0.0
        %5673 = vmatpush2.msra.mxu0 0.0
        %5674 = vmatprep.subr.mxu0 0.0
        %5675 = vmatpush2.msra.mxu0 0.0
        %5676 = vmatprep.subr.mxu0 0.0
        %5677 = vmatpush2.msra.mxu0 0.0
        %5678 = vmatprep.subr.mxu0 0.0
        %5679 = vmatpush2.msra.mxu0 0.0
        %5680 = vmatprep.subr.mxu0 0.0
        %5681 = vmatpush2.msra.mxu0 0.0
        %5682 = vmatprep.subr.mxu0 0.0
        %5683 = vmatpush2.msra.mxu0 0.0
        %5684 = vmatprep.subr.mxu0 0.0
        %5685 = vmatpush2.msra.mxu0 0.0
        %5686 = vmatprep.subr.mxu0 0.0
        %5687 = vmatpush2.msra.mxu0 0.0
        %5688 = vmatprep.subr.mxu0 0.0
        %5689 = vmatpush2.msra.mxu0 0.0
        %5690 = vmatprep.subr.mxu0 0.0
        %5691 = vmatpush2.msra.mxu0 0.0
        %5692 = vmatprep.subr.mxu0 0.0
        %5693 = vmatpush2.msra.mxu0 0.0
        %5694 = vmatprep.subr.mxu0 0.0
        %5695 = vmatpush2.msra.mxu0 0.0
        %5696 = vmatprep.mubr.f32.mxu0 0.0
        %v5697 = vand.u32 %v408, 4294901760
        %v5698 = vsub.f32 %v408, %v5697
        %v5699 = vand.u32 %v5698, 4294901760
        %v5700 = vsub.f32 %v5698, %v5699
        %v5701 = vand.u32 %v5700, 4294901760
        %5702 = vmatmul.mubr.f32.gmra.mxu0 %v5701
        %v5703 = vpop.f32.mrf.mxu0
        %v5704 = vadd.f32 0.0, %v5703
        %v5705 = vpop.f32.mrf.mxu0
        %5706 = vdwg.mxu0
        %5707 = vmatprep.subr.mxu0 0.0
        %5708 = vmatpush1.msra.mxu0 0.0
        %5709 = vmatprep.subr.mxu0 0.0
        %5710 = vmatpush1.msra.mxu0 0.0
        %5711 = vmatprep.subr.mxu0 0.0
        %5712 = vmatpush1.msra.mxu0 0.0
        %5713 = vmatprep.subr.mxu0 0.0
        %5714 = vmatpush1.msra.mxu0 0.0
        %5715 = vmatprep.subr.mxu0 0.0
        %5716 = vmatpush1.msra.mxu0 0.0
        %5717 = vmatprep.subr.mxu0 0.0
        %5718 = vmatpush1.msra.mxu0 0.0
        %5719 = vmatprep.subr.mxu0 0.0
        %5720 = vmatpush1.msra.mxu0 0.0
        %5721 = vmatprep.subr.mxu0 0.0
        %5722 = vmatpush1.msra.mxu0 0.0
        %5723 = vmatprep.subr.mxu0 0.0
        %5724 = vmatpush1.msra.mxu0 0.0
        %5725 = vmatprep.subr.mxu0 0.0
        %5726 = vmatpush1.msra.mxu0 0.0
        %5727 = vmatprep.subr.mxu0 0.0
        %5728 = vmatpush1.msra.mxu0 0.0
        %5729 = vmatprep.subr.mxu0 0.0
        %5730 = vmatpush1.msra.mxu0 0.0
        %5731 = vmatprep.subr.mxu0 0.0
        %v5732 = vand.u32 %v5627, 4294901760
        %v5733 = vsub.f32 %v5627, %v5732
        %v5734 = vand.u32 %v5733, 4294901760
        %v5735 = vsub.f32 %v5733, %v5734
        %v5736 = vand.u32 %v5735, 4294901760
        %5737 = vmatpush1.msra.mxu0 %v5736
        %5738 = vmatprep.subr.mxu0 0.0
        %v5739 = vand.u32 %v5626, 4294901760
        %v5740 = vsub.f32 %v5626, %v5739
        %v5741 = vand.u32 %v5740, 4294901760
        %v5742 = vsub.f32 %v5740, %v5741
        %v5743 = vand.u32 %v5742, 4294901760
        %5744 = vmatpush1.msra.mxu0 %v5743
        %5745 = vmatprep.subr.mxu0 0.0
        %v5746 = vand.u32 %v5625, 4294901760
        %v5747 = vsub.f32 %v5625, %v5746
        %v5748 = vand.u32 %v5747, 4294901760
        %v5749 = vsub.f32 %v5747, %v5748
        %v5750 = vand.u32 %v5749, 4294901760
        %5751 = vmatpush1.msra.mxu0 %v5750
        %5752 = vmatprep.subr.mxu0 0.0
        %v5753 = vand.u32 %v5624, 4294901760
        %v5754 = vsub.f32 %v5624, %v5753
        %v5755 = vand.u32 %v5754, 4294901760
        %v5756 = vsub.f32 %v5754, %v5755
        %v5757 = vand.u32 %v5756, 4294901760
        %5758 = vmatpush1.msra.mxu0 %v5757
        %5759 = vmatprep.subr.mxu0 0.0
        %5760 = vmatpush2.msra.mxu0 0.0
        %5761 = vmatprep.subr.mxu0 0.0
        %5762 = vmatpush2.msra.mxu0 0.0
        %5763 = vmatprep.subr.mxu0 0.0
        %5764 = vmatpush2.msra.mxu0 0.0
        %5765 = vmatprep.subr.mxu0 0.0
        %5766 = vmatpush2.msra.mxu0 0.0
        %5767 = vmatprep.subr.mxu0 0.0
        %5768 = vmatpush2.msra.mxu0 0.0
        %5769 = vmatprep.subr.mxu0 0.0
        %5770 = vmatpush2.msra.mxu0 0.0
        %5771 = vmatprep.subr.mxu0 0.0
        %5772 = vmatpush2.msra.mxu0 0.0
        %5773 = vmatprep.subr.mxu0 0.0
        %5774 = vmatpush2.msra.mxu0 0.0
        %5775 = vmatprep.subr.mxu0 0.0
        %5776 = vmatpush2.msra.mxu0 0.0
        %5777 = vmatprep.subr.mxu0 0.0
        %5778 = vmatpush2.msra.mxu0 0.0
        %5779 = vmatprep.subr.mxu0 0.0
        %5780 = vmatpush2.msra.mxu0 0.0
        %5781 = vmatprep.subr.mxu0 0.0
        %5782 = vmatpush2.msra.mxu0 0.0
        %5783 = vmatprep.subr.mxu0 0.0
        %5784 = vmatpush2.msra.mxu0 0.0
        %5785 = vmatprep.subr.mxu0 0.0
        %5786 = vmatpush2.msra.mxu0 0.0
        %5787 = vmatprep.subr.mxu0 0.0
        %5788 = vmatpush2.msra.mxu0 0.0
        %5789 = vmatprep.subr.mxu0 0.0
        %5790 = vmatpush2.msra.mxu0 0.0
        %5791 = vmatprep.mubr.f32.mxu0 0.0
        %v5792 = vand.u32 %v408, 4294901760
        %5793 = vmatmul.mubr.f32.gmra.mxu0 %v5792
        %v5794 = vpop.f32.mrf.mxu0
        %v5795 = vadd.f32 %v5704, %v5794
        %v5796 = vpop.f32.mrf.mxu0
        %5797 = vdwg.mxu0
        %5798 = vmatprep.subr.mxu0 0.0
        %5799 = vmatpush1.msra.mxu0 0.0
        %5800 = vmatprep.subr.mxu0 0.0
        %5801 = vmatpush1.msra.mxu0 0.0
        %5802 = vmatprep.subr.mxu0 0.0
        %5803 = vmatpush1.msra.mxu0 0.0
        %5804 = vmatprep.subr.mxu0 0.0
        %5805 = vmatpush1.msra.mxu0 0.0
        %5806 = vmatprep.subr.mxu0 0.0
        %5807 = vmatpush1.msra.mxu0 0.0
        %5808 = vmatprep.subr.mxu0 0.0
        %5809 = vmatpush1.msra.mxu0 0.0
        %5810 = vmatprep.subr.mxu0 0.0
        %5811 = vmatpush1.msra.mxu0 0.0
        %5812 = vmatprep.subr.mxu0 0.0
        %5813 = vmatpush1.msra.mxu0 0.0
        %5814 = vmatprep.subr.mxu0 0.0
        %5815 = vmatpush1.msra.mxu0 0.0
        %5816 = vmatprep.subr.mxu0 0.0
        %5817 = vmatpush1.msra.mxu0 0.0
        %5818 = vmatprep.subr.mxu0 0.0
        %5819 = vmatpush1.msra.mxu0 0.0
        %5820 = vmatprep.subr.mxu0 0.0
        %5821 = vmatpush1.msra.mxu0 0.0
        %5822 = vmatprep.subr.mxu0 0.0
        %v5823 = vand.u32 %v5627, 4294901760
        %v5824 = vsub.f32 %v5627, %v5823
        %5825 = vmatpush1.msra.mxu0 %v5824
        %5826 = vmatprep.subr.mxu0 0.0
        %v5827 = vand.u32 %v5626, 4294901760
        %v5828 = vsub.f32 %v5626, %v5827
        %5829 = vmatpush1.msra.mxu0 %v5828
        %5830 = vmatprep.subr.mxu0 0.0
        %v5831 = vand.u32 %v5625, 4294901760
        %v5832 = vsub.f32 %v5625, %v5831
        %5833 = vmatpush1.msra.mxu0 %v5832
        %5834 = vmatprep.subr.mxu0 0.0
        %v5835 = vand.u32 %v5624, 4294901760
        %v5836 = vsub.f32 %v5624, %v5835
        %5837 = vmatpush1.msra.mxu0 %v5836
        %5838 = vmatprep.subr.mxu0 0.0
        %5839 = vmatpush2.msra.mxu0 0.0
        %5840 = vmatprep.subr.mxu0 0.0
        %5841 = vmatpush2.msra.mxu0 0.0
        %5842 = vmatprep.subr.mxu0 0.0
        %5843 = vmatpush2.msra.mxu0 0.0
        %5844 = vmatprep.subr.mxu0 0.0
        %5845 = vmatpush2.msra.mxu0 0.0
        %5846 = vmatprep.subr.mxu0 0.0
        %5847 = vmatpush2.msra.mxu0 0.0
        %5848 = vmatprep.subr.mxu0 0.0
        %5849 = vmatpush2.msra.mxu0 0.0
        %5850 = vmatprep.subr.mxu0 0.0
        %5851 = vmatpush2.msra.mxu0 0.0
        %5852 = vmatprep.subr.mxu0 0.0
        %5853 = vmatpush2.msra.mxu0 0.0
        %5854 = vmatprep.subr.mxu0 0.0
        %5855 = vmatpush2.msra.mxu0 0.0
        %5856 = vmatprep.subr.mxu0 0.0
        %5857 = vmatpush2.msra.mxu0 0.0
        %5858 = vmatprep.subr.mxu0 0.0
        %5859 = vmatpush2.msra.mxu0 0.0
        %5860 = vmatprep.subr.mxu0 0.0
        %5861 = vmatpush2.msra.mxu0 0.0
        %5862 = vmatprep.subr.mxu0 0.0
        %5863 = vmatpush2.msra.mxu0 0.0
        %5864 = vmatprep.subr.mxu0 0.0
        %5865 = vmatpush2.msra.mxu0 0.0
        %5866 = vmatprep.subr.mxu0 0.0
        %5867 = vmatpush2.msra.mxu0 0.0
        %5868 = vmatprep.subr.mxu0 0.0
        %5869 = vmatpush2.msra.mxu0 0.0
        %5870 = vmatprep.mubr.f32.mxu0 0.0
        %v5871 = vand.u32 %v408, 4294901760
        %v5872 = vsub.f32 %v408, %v5871
        %5873 = vmatmul.mubr.f32.gmra.mxu0 %v5872
        %v5874 = vpop.f32.mrf.mxu0
        %v5875 = vadd.f32 %v5795, %v5874
        %v5876 = vpop.f32.mrf.mxu0
        %5877 = vdwg.mxu0
        %5878 = vmatprep.subr.mxu0 0.0
        %5879 = vmatpush1.msra.mxu0 0.0
        %5880 = vmatprep.subr.mxu0 0.0
        %5881 = vmatpush1.msra.mxu0 0.0
        %5882 = vmatprep.subr.mxu0 0.0
        %5883 = vmatpush1.msra.mxu0 0.0
        %5884 = vmatprep.subr.mxu0 0.0
        %5885 = vmatpush1.msra.mxu0 0.0
        %5886 = vmatprep.subr.mxu0 0.0
        %5887 = vmatpush1.msra.mxu0 0.0
        %5888 = vmatprep.subr.mxu0 0.0
        %5889 = vmatpush1.msra.mxu0 0.0
        %5890 = vmatprep.subr.mxu0 0.0
        %5891 = vmatpush1.msra.mxu0 0.0
        %5892 = vmatprep.subr.mxu0 0.0
        %5893 = vmatpush1.msra.mxu0 0.0
        %5894 = vmatprep.subr.mxu0 0.0
        %5895 = vmatpush1.msra.mxu0 0.0
        %5896 = vmatprep.subr.mxu0 0.0
        %5897 = vmatpush1.msra.mxu0 0.0
        %5898 = vmatprep.subr.mxu0 0.0
        %5899 = vmatpush1.msra.mxu0 0.0
        %5900 = vmatprep.subr.mxu0 0.0
        %5901 = vmatpush1.msra.mxu0 0.0
        %5902 = vmatprep.subr.mxu0 0.0
        %v5903 = vand.u32 %v5627, 4294901760
        %5904 = vmatpush1.msra.mxu0 %v5903
        %5905 = vmatprep.subr.mxu0 0.0
        %v5906 = vand.u32 %v5626, 4294901760
        %5907 = vmatpush1.msra.mxu0 %v5906
        %5908 = vmatprep.subr.mxu0 0.0
        %v5909 = vand.u32 %v5625, 4294901760
        %5910 = vmatpush1.msra.mxu0 %v5909
        %5911 = vmatprep.subr.mxu0 0.0
        %v5912 = vand.u32 %v5624, 4294901760
        %5913 = vmatpush1.msra.mxu0 %v5912
        %5914 = vmatprep.subr.mxu0 0.0
        %5915 = vmatpush2.msra.mxu0 0.0
        %5916 = vmatprep.subr.mxu0 0.0
        %5917 = vmatpush2.msra.mxu0 0.0
        %5918 = vmatprep.subr.mxu0 0.0
        %5919 = vmatpush2.msra.mxu0 0.0
        %5920 = vmatprep.subr.mxu0 0.0
        %5921 = vmatpush2.msra.mxu0 0.0
        %5922 = vmatprep.subr.mxu0 0.0
        %5923 = vmatpush2.msra.mxu0 0.0
        %5924 = vmatprep.subr.mxu0 0.0
        %5925 = vmatpush2.msra.mxu0 0.0
        %5926 = vmatprep.subr.mxu0 0.0
        %5927 = vmatpush2.msra.mxu0 0.0
        %5928 = vmatprep.subr.mxu0 0.0
        %5929 = vmatpush2.msra.mxu0 0.0
        %5930 = vmatprep.subr.mxu0 0.0
        %5931 = vmatpush2.msra.mxu0 0.0
        %5932 = vmatprep.subr.mxu0 0.0
        %5933 = vmatpush2.msra.mxu0 0.0
        %5934 = vmatprep.subr.mxu0 0.0
        %5935 = vmatpush2.msra.mxu0 0.0
        %5936 = vmatprep.subr.mxu0 0.0
        %5937 = vmatpush2.msra.mxu0 0.0
        %5938 = vmatprep.subr.mxu0 0.0
        %5939 = vmatpush2.msra.mxu0 0.0
        %5940 = vmatprep.subr.mxu0 0.0
        %5941 = vmatpush2.msra.mxu0 0.0
        %5942 = vmatprep.subr.mxu0 0.0
        %5943 = vmatpush2.msra.mxu0 0.0
        %5944 = vmatprep.subr.mxu0 0.0
        %5945 = vmatpush2.msra.mxu0 0.0
        %5946 = vmatprep.mubr.f32.mxu0 0.0
        %v5947 = vand.u32 %v408, 4294901760
        %v5948 = vsub.f32 %v408, %v5947
        %v5949 = vand.u32 %v5948, 4294901760
        %5950 = vmatmul.mubr.f32.gmra.mxu0 %v5949
        %v5951 = vpop.f32.mrf.mxu0
        %v5952 = vadd.f32 %v5875, %v5951
        %v5953 = vpop.f32.mrf.mxu0
        %5954 = vdwg.mxu0
        %5955 = vmatprep.subr.mxu0 0.0
        %5956 = vmatpush1.msra.mxu0 0.0
        %5957 = vmatprep.subr.mxu0 0.0
        %5958 = vmatpush1.msra.mxu0 0.0
        %5959 = vmatprep.subr.mxu0 0.0
        %5960 = vmatpush1.msra.mxu0 0.0
        %5961 = vmatprep.subr.mxu0 0.0
        %5962 = vmatpush1.msra.mxu0 0.0
        %5963 = vmatprep.subr.mxu0 0.0
        %5964 = vmatpush1.msra.mxu0 0.0
        %5965 = vmatprep.subr.mxu0 0.0
        %5966 = vmatpush1.msra.mxu0 0.0
        %5967 = vmatprep.subr.mxu0 0.0
        %5968 = vmatpush1.msra.mxu0 0.0
        %5969 = vmatprep.subr.mxu0 0.0
        %5970 = vmatpush1.msra.mxu0 0.0
        %5971 = vmatprep.subr.mxu0 0.0
        %5972 = vmatpush1.msra.mxu0 0.0
        %5973 = vmatprep.subr.mxu0 0.0
        %5974 = vmatpush1.msra.mxu0 0.0
        %5975 = vmatprep.subr.mxu0 0.0
        %5976 = vmatpush1.msra.mxu0 0.0
        %5977 = vmatprep.subr.mxu0 0.0
        %5978 = vmatpush1.msra.mxu0 0.0
        %5979 = vmatprep.subr.mxu0 0.0
        %v5980 = vand.u32 %v5627, 4294901760
        %v5981 = vsub.f32 %v5627, %v5980
        %v5982 = vand.u32 %v5981, 4294901760
        %5983 = vmatpush1.msra.mxu0 %v5982
        %5984 = vmatprep.subr.mxu0 0.0
        %v5985 = vand.u32 %v5626, 4294901760
        %v5986 = vsub.f32 %v5626, %v5985
        %v5987 = vand.u32 %v5986, 4294901760
        %5988 = vmatpush1.msra.mxu0 %v5987
        %5989 = vmatprep.subr.mxu0 0.0
        %v5990 = vand.u32 %v5625, 4294901760
        %v5991 = vsub.f32 %v5625, %v5990
        %v5992 = vand.u32 %v5991, 4294901760
        %5993 = vmatpush1.msra.mxu0 %v5992
        %5994 = vmatprep.subr.mxu0 0.0
        %v5995 = vand.u32 %v5624, 4294901760
        %v5996 = vsub.f32 %v5624, %v5995
        %v5997 = vand.u32 %v5996, 4294901760
        %5998 = vmatpush1.msra.mxu0 %v5997
        %5999 = vmatprep.subr.mxu0 0.0
        %6000 = vmatpush2.msra.mxu0 0.0
        %6001 = vmatprep.subr.mxu0 0.0
        %6002 = vmatpush2.msra.mxu0 0.0
        %6003 = vmatprep.subr.mxu0 0.0
        %6004 = vmatpush2.msra.mxu0 0.0
        %6005 = vmatprep.subr.mxu0 0.0
        %6006 = vmatpush2.msra.mxu0 0.0
        %6007 = vmatprep.subr.mxu0 0.0
        %6008 = vmatpush2.msra.mxu0 0.0
        %6009 = vmatprep.subr.mxu0 0.0
        %6010 = vmatpush2.msra.mxu0 0.0
        %6011 = vmatprep.subr.mxu0 0.0
        %6012 = vmatpush2.msra.mxu0 0.0
        %6013 = vmatprep.subr.mxu0 0.0
        %6014 = vmatpush2.msra.mxu0 0.0
        %6015 = vmatprep.subr.mxu0 0.0
        %6016 = vmatpush2.msra.mxu0 0.0
        %6017 = vmatprep.subr.mxu0 0.0
        %6018 = vmatpush2.msra.mxu0 0.0
        %6019 = vmatprep.subr.mxu0 0.0
        %6020 = vmatpush2.msra.mxu0 0.0
        %6021 = vmatprep.subr.mxu0 0.0
        %6022 = vmatpush2.msra.mxu0 0.0
        %6023 = vmatprep.subr.mxu0 0.0
        %6024 = vmatpush2.msra.mxu0 0.0
        %6025 = vmatprep.subr.mxu0 0.0
        %6026 = vmatpush2.msra.mxu0 0.0
        %6027 = vmatprep.subr.mxu0 0.0
        %6028 = vmatpush2.msra.mxu0 0.0
        %6029 = vmatprep.subr.mxu0 0.0
        %6030 = vmatpush2.msra.mxu0 0.0
        %6031 = vmatprep.mubr.f32.mxu0 0.0
        %v6032 = vand.u32 %v408, 4294901760
        %6033 = vmatmul.mubr.f32.gmra.mxu0 %v6032
        %v6034 = vpop.f32.mrf.mxu0
        %v6035 = vadd.f32 %v5952, %v6034
        %v6036 = vpop.f32.mrf.mxu0
        %6037 = vdwg.mxu0
        %6038 = vmatprep.subr.mxu0 0.0
        %6039 = vmatpush1.msra.mxu0 0.0
        %6040 = vmatprep.subr.mxu0 0.0
        %6041 = vmatpush1.msra.mxu0 0.0
        %6042 = vmatprep.subr.mxu0 0.0
        %6043 = vmatpush1.msra.mxu0 0.0
        %6044 = vmatprep.subr.mxu0 0.0
        %6045 = vmatpush1.msra.mxu0 0.0
        %6046 = vmatprep.subr.mxu0 0.0
        %6047 = vmatpush1.msra.mxu0 0.0
        %6048 = vmatprep.subr.mxu0 0.0
        %6049 = vmatpush1.msra.mxu0 0.0
        %6050 = vmatprep.subr.mxu0 0.0
        %6051 = vmatpush1.msra.mxu0 0.0
        %6052 = vmatprep.subr.mxu0 0.0
        %6053 = vmatpush1.msra.mxu0 0.0
        %6054 = vmatprep.subr.mxu0 0.0
        %6055 = vmatpush1.msra.mxu0 0.0
        %6056 = vmatprep.subr.mxu0 0.0
        %6057 = vmatpush1.msra.mxu0 0.0
        %6058 = vmatprep.subr.mxu0 0.0
        %6059 = vmatpush1.msra.mxu0 0.0
        %6060 = vmatprep.subr.mxu0 0.0
        %6061 = vmatpush1.msra.mxu0 0.0
        %6062 = vmatprep.subr.mxu0 0.0
        %v6063 = vand.u32 %v5627, 4294901760
        %6064 = vmatpush1.msra.mxu0 %v6063
        %6065 = vmatprep.subr.mxu0 0.0
        %v6066 = vand.u32 %v5626, 4294901760
        %6067 = vmatpush1.msra.mxu0 %v6066
        %6068 = vmatprep.subr.mxu0 0.0
        %v6069 = vand.u32 %v5625, 4294901760
        %6070 = vmatpush1.msra.mxu0 %v6069
        %6071 = vmatprep.subr.mxu0 0.0
        %v6072 = vand.u32 %v5624, 4294901760
        %6073 = vmatpush1.msra.mxu0 %v6072
        %6074 = vmatprep.subr.mxu0 0.0
        %6075 = vmatpush2.msra.mxu0 0.0
        %6076 = vmatprep.subr.mxu0 0.0
        %6077 = vmatpush2.msra.mxu0 0.0
        %6078 = vmatprep.subr.mxu0 0.0
        %6079 = vmatpush2.msra.mxu0 0.0
        %6080 = vmatprep.subr.mxu0 0.0
        %6081 = vmatpush2.msra.mxu0 0.0
        %6082 = vmatprep.subr.mxu0 0.0
        %6083 = vmatpush2.msra.mxu0 0.0
        %6084 = vmatprep.subr.mxu0 0.0
        %6085 = vmatpush2.msra.mxu0 0.0
        %6086 = vmatprep.subr.mxu0 0.0
        %6087 = vmatpush2.msra.mxu0 0.0
        %6088 = vmatprep.subr.mxu0 0.0
        %6089 = vmatpush2.msra.mxu0 0.0
        %6090 = vmatprep.subr.mxu0 0.0
        %6091 = vmatpush2.msra.mxu0 0.0
        %6092 = vmatprep.subr.mxu0 0.0
        %6093 = vmatpush2.msra.mxu0 0.0
        %6094 = vmatprep.subr.mxu0 0.0
        %6095 = vmatpush2.msra.mxu0 0.0
        %6096 = vmatprep.subr.mxu0 0.0
        %6097 = vmatpush2.msra.mxu0 0.0
        %6098 = vmatprep.subr.mxu0 0.0
        %6099 = vmatpush2.msra.mxu0 0.0
        %6100 = vmatprep.subr.mxu0 0.0
        %6101 = vmatpush2.msra.mxu0 0.0
        %6102 = vmatprep.subr.mxu0 0.0
        %6103 = vmatpush2.msra.mxu0 0.0
        %6104 = vmatprep.subr.mxu0 0.0
        %6105 = vmatpush2.msra.mxu0 0.0
        %6106 = vmatprep.mubr.f32.mxu0 0.0
        %v6107 = vand.u32 %v408, 4294901760
        %6108 = vmatmul.mubr.f32.gmra.mxu0 %v6107
        %v6109 = vpop.f32.mrf.mxu0
        %v6110 = vadd.f32 %v6035, %v6109
        %v6111 = vpop.f32.mrf.mxu0
        %6112 = vdwg.mxu0
        %s6113 = scalar_lea.vmem %s3, 64
        %v6114 = vld [vmem:[%s6113] sm:$0xff]
        %v6115 = vld [vmem:[%s6113 + $0x8] sm:$0xff]
        %v6116 = vld [vmem:[%s6113 + $0x10] sm:$0xff]
        %v6117 = vld [vmem:[%s6113 + $0x18] sm:$0xff]
        %6118 = vmatprep.subr.mxu0 0.0
        %6119 = vmatpush1.msra.mxu0 0.0
        %6120 = vmatprep.subr.mxu0 0.0
        %6121 = vmatpush1.msra.mxu0 0.0
        %6122 = vmatprep.subr.mxu0 0.0
        %6123 = vmatpush1.msra.mxu0 0.0
        %6124 = vmatprep.subr.mxu0 0.0
        %6125 = vmatpush1.msra.mxu0 0.0
        %6126 = vmatprep.subr.mxu0 0.0
        %6127 = vmatpush1.msra.mxu0 0.0
        %6128 = vmatprep.subr.mxu0 0.0
        %6129 = vmatpush1.msra.mxu0 0.0
        %6130 = vmatprep.subr.mxu0 0.0
        %6131 = vmatpush1.msra.mxu0 0.0
        %6132 = vmatprep.subr.mxu0 0.0
        %6133 = vmatpush1.msra.mxu0 0.0
        %6134 = vmatprep.subr.mxu0 0.0
        %6135 = vmatpush1.msra.mxu0 0.0
        %6136 = vmatprep.subr.mxu0 0.0
        %6137 = vmatpush1.msra.mxu0 0.0
        %6138 = vmatprep.subr.mxu0 0.0
        %6139 = vmatpush1.msra.mxu0 0.0
        %6140 = vmatprep.subr.mxu0 0.0
        %6141 = vmatpush1.msra.mxu0 0.0
        %6142 = vmatprep.subr.mxu0 0.0
        %v6143 = vand.u32 %v6117, 4294901760
        %6144 = vmatpush1.msra.mxu0 %v6143
        %6145 = vmatprep.subr.mxu0 0.0
        %v6146 = vand.u32 %v6116, 4294901760
        %6147 = vmatpush1.msra.mxu0 %v6146
        %6148 = vmatprep.subr.mxu0 0.0
        %v6149 = vand.u32 %v6115, 4294901760
        %6150 = vmatpush1.msra.mxu0 %v6149
        %6151 = vmatprep.subr.mxu0 0.0
        %v6152 = vand.u32 %v6114, 4294901760
        %6153 = vmatpush1.msra.mxu0 %v6152
        %6154 = vmatprep.subr.mxu0 0.0
        %6155 = vmatpush2.msra.mxu0 0.0
        %6156 = vmatprep.subr.mxu0 0.0
        %6157 = vmatpush2.msra.mxu0 0.0
        %6158 = vmatprep.subr.mxu0 0.0
        %6159 = vmatpush2.msra.mxu0 0.0
        %6160 = vmatprep.subr.mxu0 0.0
        %6161 = vmatpush2.msra.mxu0 0.0
        %6162 = vmatprep.subr.mxu0 0.0
        %6163 = vmatpush2.msra.mxu0 0.0
        %6164 = vmatprep.subr.mxu0 0.0
        %6165 = vmatpush2.msra.mxu0 0.0
        %6166 = vmatprep.subr.mxu0 0.0
        %6167 = vmatpush2.msra.mxu0 0.0
        %6168 = vmatprep.subr.mxu0 0.0
        %6169 = vmatpush2.msra.mxu0 0.0
        %6170 = vmatprep.subr.mxu0 0.0
        %6171 = vmatpush2.msra.mxu0 0.0
        %6172 = vmatprep.subr.mxu0 0.0
        %6173 = vmatpush2.msra.mxu0 0.0
        %6174 = vmatprep.subr.mxu0 0.0
        %6175 = vmatpush2.msra.mxu0 0.0
        %6176 = vmatprep.subr.mxu0 0.0
        %6177 = vmatpush2.msra.mxu0 0.0
        %6178 = vmatprep.subr.mxu0 0.0
        %6179 = vmatpush2.msra.mxu0 0.0
        %6180 = vmatprep.subr.mxu0 0.0
        %6181 = vmatpush2.msra.mxu0 0.0
        %6182 = vmatprep.subr.mxu0 0.0
        %6183 = vmatpush2.msra.mxu0 0.0
        %6184 = vmatprep.subr.mxu0 0.0
        %6185 = vmatpush2.msra.mxu0 0.0
        %6186 = vmatprep.mubr.f32.mxu0 0.0
        %v6187 = vand.u32 %v408, 4294901760
        %v6188 = vsub.f32 %v408, %v6187
        %v6189 = vand.u32 %v6188, 4294901760
        %v6190 = vsub.f32 %v6188, %v6189
        %v6191 = vand.u32 %v6190, 4294901760
        %6192 = vmatmul.mubr.f32.gmra.mxu0 %v6191
        %v6193 = vpop.f32.mrf.mxu0
        %v6194 = vadd.f32 0.0, %v6193
        %v6195 = vpop.f32.mrf.mxu0
        %6196 = vdwg.mxu0
        %6197 = vmatprep.subr.mxu0 0.0
        %6198 = vmatpush1.msra.mxu0 0.0
        %6199 = vmatprep.subr.mxu0 0.0
        %6200 = vmatpush1.msra.mxu0 0.0
        %6201 = vmatprep.subr.mxu0 0.0
        %6202 = vmatpush1.msra.mxu0 0.0
        %6203 = vmatprep.subr.mxu0 0.0
        %6204 = vmatpush1.msra.mxu0 0.0
        %6205 = vmatprep.subr.mxu0 0.0
        %6206 = vmatpush1.msra.mxu0 0.0
        %6207 = vmatprep.subr.mxu0 0.0
        %6208 = vmatpush1.msra.mxu0 0.0
        %6209 = vmatprep.subr.mxu0 0.0
        %6210 = vmatpush1.msra.mxu0 0.0
        %6211 = vmatprep.subr.mxu0 0.0
        %6212 = vmatpush1.msra.mxu0 0.0
        %6213 = vmatprep.subr.mxu0 0.0
        %6214 = vmatpush1.msra.mxu0 0.0
        %6215 = vmatprep.subr.mxu0 0.0
        %6216 = vmatpush1.msra.mxu0 0.0
        %6217 = vmatprep.subr.mxu0 0.0
        %6218 = vmatpush1.msra.mxu0 0.0
        %6219 = vmatprep.subr.mxu0 0.0
        %6220 = vmatpush1.msra.mxu0 0.0
        %6221 = vmatprep.subr.mxu0 0.0
        %v6222 = vand.u32 %v6117, 4294901760
        %v6223 = vsub.f32 %v6117, %v6222
        %v6224 = vand.u32 %v6223, 4294901760
        %v6225 = vsub.f32 %v6223, %v6224
        %v6226 = vand.u32 %v6225, 4294901760
        %6227 = vmatpush1.msra.mxu0 %v6226
        %6228 = vmatprep.subr.mxu0 0.0
        %v6229 = vand.u32 %v6116, 4294901760
        %v6230 = vsub.f32 %v6116, %v6229
        %v6231 = vand.u32 %v6230, 4294901760
        %v6232 = vsub.f32 %v6230, %v6231
        %v6233 = vand.u32 %v6232, 4294901760
        %6234 = vmatpush1.msra.mxu0 %v6233
        %6235 = vmatprep.subr.mxu0 0.0
        %v6236 = vand.u32 %v6115, 4294901760
        %v6237 = vsub.f32 %v6115, %v6236
        %v6238 = vand.u32 %v6237, 4294901760
        %v6239 = vsub.f32 %v6237, %v6238
        %v6240 = vand.u32 %v6239, 4294901760
        %6241 = vmatpush1.msra.mxu0 %v6240
        %6242 = vmatprep.subr.mxu0 0.0
        %v6243 = vand.u32 %v6114, 4294901760
        %v6244 = vsub.f32 %v6114, %v6243
        %v6245 = vand.u32 %v6244, 4294901760
        %v6246 = vsub.f32 %v6244, %v6245
        %v6247 = vand.u32 %v6246, 4294901760
        %6248 = vmatpush1.msra.mxu0 %v6247
        %6249 = vmatprep.subr.mxu0 0.0
        %6250 = vmatpush2.msra.mxu0 0.0
        %6251 = vmatprep.subr.mxu0 0.0
        %6252 = vmatpush2.msra.mxu0 0.0
        %6253 = vmatprep.subr.mxu0 0.0
        %6254 = vmatpush2.msra.mxu0 0.0
        %6255 = vmatprep.subr.mxu0 0.0
        %6256 = vmatpush2.msra.mxu0 0.0
        %6257 = vmatprep.subr.mxu0 0.0
        %6258 = vmatpush2.msra.mxu0 0.0
        %6259 = vmatprep.subr.mxu0 0.0
        %6260 = vmatpush2.msra.mxu0 0.0
        %6261 = vmatprep.subr.mxu0 0.0
        %6262 = vmatpush2.msra.mxu0 0.0
        %6263 = vmatprep.subr.mxu0 0.0
        %6264 = vmatpush2.msra.mxu0 0.0
        %6265 = vmatprep.subr.mxu0 0.0
        %6266 = vmatpush2.msra.mxu0 0.0
        %6267 = vmatprep.subr.mxu0 0.0
        %6268 = vmatpush2.msra.mxu0 0.0
        %6269 = vmatprep.subr.mxu0 0.0
        %6270 = vmatpush2.msra.mxu0 0.0
        %6271 = vmatprep.subr.mxu0 0.0
        %6272 = vmatpush2.msra.mxu0 0.0
        %6273 = vmatprep.subr.mxu0 0.0
        %6274 = vmatpush2.msra.mxu0 0.0
        %6275 = vmatprep.subr.mxu0 0.0
        %6276 = vmatpush2.msra.mxu0 0.0
        %6277 = vmatprep.subr.mxu0 0.0
        %6278 = vmatpush2.msra.mxu0 0.0
        %6279 = vmatprep.subr.mxu0 0.0
        %6280 = vmatpush2.msra.mxu0 0.0
        %6281 = vmatprep.mubr.f32.mxu0 0.0
        %v6282 = vand.u32 %v408, 4294901760
        %6283 = vmatmul.mubr.f32.gmra.mxu0 %v6282
        %v6284 = vpop.f32.mrf.mxu0
        %v6285 = vadd.f32 %v6194, %v6284
        %v6286 = vpop.f32.mrf.mxu0
        %6287 = vdwg.mxu0
        %6288 = vmatprep.subr.mxu0 0.0
        %6289 = vmatpush1.msra.mxu0 0.0
        %6290 = vmatprep.subr.mxu0 0.0
        %6291 = vmatpush1.msra.mxu0 0.0
        %6292 = vmatprep.subr.mxu0 0.0
        %6293 = vmatpush1.msra.mxu0 0.0
        %6294 = vmatprep.subr.mxu0 0.0
        %6295 = vmatpush1.msra.mxu0 0.0
        %6296 = vmatprep.subr.mxu0 0.0
        %6297 = vmatpush1.msra.mxu0 0.0
        %6298 = vmatprep.subr.mxu0 0.0
        %6299 = vmatpush1.msra.mxu0 0.0
        %6300 = vmatprep.subr.mxu0 0.0
        %6301 = vmatpush1.msra.mxu0 0.0
        %6302 = vmatprep.subr.mxu0 0.0
        %6303 = vmatpush1.msra.mxu0 0.0
        %6304 = vmatprep.subr.mxu0 0.0
        %6305 = vmatpush1.msra.mxu0 0.0
        %6306 = vmatprep.subr.mxu0 0.0
        %6307 = vmatpush1.msra.mxu0 0.0
        %6308 = vmatprep.subr.mxu0 0.0
        %6309 = vmatpush1.msra.mxu0 0.0
        %6310 = vmatprep.subr.mxu0 0.0
        %6311 = vmatpush1.msra.mxu0 0.0
        %6312 = vmatprep.subr.mxu0 0.0
        %v6313 = vand.u32 %v6117, 4294901760
        %v6314 = vsub.f32 %v6117, %v6313
        %6315 = vmatpush1.msra.mxu0 %v6314
        %6316 = vmatprep.subr.mxu0 0.0
        %v6317 = vand.u32 %v6116, 4294901760
        %v6318 = vsub.f32 %v6116, %v6317
        %6319 = vmatpush1.msra.mxu0 %v6318
        %6320 = vmatprep.subr.mxu0 0.0
        %v6321 = vand.u32 %v6115, 4294901760
        %v6322 = vsub.f32 %v6115, %v6321
        %6323 = vmatpush1.msra.mxu0 %v6322
        %6324 = vmatprep.subr.mxu0 0.0
        %v6325 = vand.u32 %v6114, 4294901760
        %v6326 = vsub.f32 %v6114, %v6325
        %6327 = vmatpush1.msra.mxu0 %v6326
        %6328 = vmatprep.subr.mxu0 0.0
        %6329 = vmatpush2.msra.mxu0 0.0
        %6330 = vmatprep.subr.mxu0 0.0
        %6331 = vmatpush2.msra.mxu0 0.0
        %6332 = vmatprep.subr.mxu0 0.0
        %6333 = vmatpush2.msra.mxu0 0.0
        %6334 = vmatprep.subr.mxu0 0.0
        %6335 = vmatpush2.msra.mxu0 0.0
        %6336 = vmatprep.subr.mxu0 0.0
        %6337 = vmatpush2.msra.mxu0 0.0
        %6338 = vmatprep.subr.mxu0 0.0
        %6339 = vmatpush2.msra.mxu0 0.0
        %6340 = vmatprep.subr.mxu0 0.0
        %6341 = vmatpush2.msra.mxu0 0.0
        %6342 = vmatprep.subr.mxu0 0.0
        %6343 = vmatpush2.msra.mxu0 0.0
        %6344 = vmatprep.subr.mxu0 0.0
        %6345 = vmatpush2.msra.mxu0 0.0
        %6346 = vmatprep.subr.mxu0 0.0
        %6347 = vmatpush2.msra.mxu0 0.0
        %6348 = vmatprep.subr.mxu0 0.0
        %6349 = vmatpush2.msra.mxu0 0.0
        %6350 = vmatprep.subr.mxu0 0.0
        %6351 = vmatpush2.msra.mxu0 0.0
        %6352 = vmatprep.subr.mxu0 0.0
        %6353 = vmatpush2.msra.mxu0 0.0
        %6354 = vmatprep.subr.mxu0 0.0
        %6355 = vmatpush2.msra.mxu0 0.0
        %6356 = vmatprep.subr.mxu0 0.0
        %6357 = vmatpush2.msra.mxu0 0.0
        %6358 = vmatprep.subr.mxu0 0.0
        %6359 = vmatpush2.msra.mxu0 0.0
        %6360 = vmatprep.mubr.f32.mxu0 0.0
        %v6361 = vand.u32 %v408, 4294901760
        %v6362 = vsub.f32 %v408, %v6361
        %6363 = vmatmul.mubr.f32.gmra.mxu0 %v6362
        %v6364 = vpop.f32.mrf.mxu0
        %v6365 = vadd.f32 %v6285, %v6364
        %v6366 = vpop.f32.mrf.mxu0
        %6367 = vdwg.mxu0
        %6368 = vmatprep.subr.mxu0 0.0
        %6369 = vmatpush1.msra.mxu0 0.0
        %6370 = vmatprep.subr.mxu0 0.0
        %6371 = vmatpush1.msra.mxu0 0.0
        %6372 = vmatprep.subr.mxu0 0.0
        %6373 = vmatpush1.msra.mxu0 0.0
        %6374 = vmatprep.subr.mxu0 0.0
        %6375 = vmatpush1.msra.mxu0 0.0
        %6376 = vmatprep.subr.mxu0 0.0
        %6377 = vmatpush1.msra.mxu0 0.0
        %6378 = vmatprep.subr.mxu0 0.0
        %6379 = vmatpush1.msra.mxu0 0.0
        %6380 = vmatprep.subr.mxu0 0.0
        %6381 = vmatpush1.msra.mxu0 0.0
        %6382 = vmatprep.subr.mxu0 0.0
        %6383 = vmatpush1.msra.mxu0 0.0
        %6384 = vmatprep.subr.mxu0 0.0
        %6385 = vmatpush1.msra.mxu0 0.0
        %6386 = vmatprep.subr.mxu0 0.0
        %6387 = vmatpush1.msra.mxu0 0.0
        %6388 = vmatprep.subr.mxu0 0.0
        %6389 = vmatpush1.msra.mxu0 0.0
        %6390 = vmatprep.subr.mxu0 0.0
        %6391 = vmatpush1.msra.mxu0 0.0
        %6392 = vmatprep.subr.mxu0 0.0
        %v6393 = vand.u32 %v6117, 4294901760
        %6394 = vmatpush1.msra.mxu0 %v6393
        %6395 = vmatprep.subr.mxu0 0.0
        %v6396 = vand.u32 %v6116, 4294901760
        %6397 = vmatpush1.msra.mxu0 %v6396
        %6398 = vmatprep.subr.mxu0 0.0
        %v6399 = vand.u32 %v6115, 4294901760
        %6400 = vmatpush1.msra.mxu0 %v6399
        %6401 = vmatprep.subr.mxu0 0.0
        %v6402 = vand.u32 %v6114, 4294901760
        %6403 = vmatpush1.msra.mxu0 %v6402
        %6404 = vmatprep.subr.mxu0 0.0
        %6405 = vmatpush2.msra.mxu0 0.0
        %6406 = vmatprep.subr.mxu0 0.0
        %6407 = vmatpush2.msra.mxu0 0.0
        %6408 = vmatprep.subr.mxu0 0.0
        %6409 = vmatpush2.msra.mxu0 0.0
        %6410 = vmatprep.subr.mxu0 0.0
        %6411 = vmatpush2.msra.mxu0 0.0
        %6412 = vmatprep.subr.mxu0 0.0
        %6413 = vmatpush2.msra.mxu0 0.0
        %6414 = vmatprep.subr.mxu0 0.0
        %6415 = vmatpush2.msra.mxu0 0.0
        %6416 = vmatprep.subr.mxu0 0.0
        %6417 = vmatpush2.msra.mxu0 0.0
        %6418 = vmatprep.subr.mxu0 0.0
        %6419 = vmatpush2.msra.mxu0 0.0
        %6420 = vmatprep.subr.mxu0 0.0
        %6421 = vmatpush2.msra.mxu0 0.0
        %6422 = vmatprep.subr.mxu0 0.0
        %6423 = vmatpush2.msra.mxu0 0.0
        %6424 = vmatprep.subr.mxu0 0.0
        %6425 = vmatpush2.msra.mxu0 0.0
        %6426 = vmatprep.subr.mxu0 0.0
        %6427 = vmatpush2.msra.mxu0 0.0
        %6428 = vmatprep.subr.mxu0 0.0
        %6429 = vmatpush2.msra.mxu0 0.0
        %6430 = vmatprep.subr.mxu0 0.0
        %6431 = vmatpush2.msra.mxu0 0.0
        %6432 = vmatprep.subr.mxu0 0.0
        %6433 = vmatpush2.msra.mxu0 0.0
        %6434 = vmatprep.subr.mxu0 0.0
        %6435 = vmatpush2.msra.mxu0 0.0
        %6436 = vmatprep.mubr.f32.mxu0 0.0
        %v6437 = vand.u32 %v408, 4294901760
        %v6438 = vsub.f32 %v408, %v6437
        %v6439 = vand.u32 %v6438, 4294901760
        %6440 = vmatmul.mubr.f32.gmra.mxu0 %v6439
        %v6441 = vpop.f32.mrf.mxu0
        %v6442 = vadd.f32 %v6365, %v6441
        %v6443 = vpop.f32.mrf.mxu0
        %6444 = vdwg.mxu0
        %6445 = vmatprep.subr.mxu0 0.0
        %6446 = vmatpush1.msra.mxu0 0.0
        %6447 = vmatprep.subr.mxu0 0.0
        %6448 = vmatpush1.msra.mxu0 0.0
        %6449 = vmatprep.subr.mxu0 0.0
        %6450 = vmatpush1.msra.mxu0 0.0
        %6451 = vmatprep.subr.mxu0 0.0
        %6452 = vmatpush1.msra.mxu0 0.0
        %6453 = vmatprep.subr.mxu0 0.0
        %6454 = vmatpush1.msra.mxu0 0.0
        %6455 = vmatprep.subr.mxu0 0.0
        %6456 = vmatpush1.msra.mxu0 0.0
        %6457 = vmatprep.subr.mxu0 0.0
        %6458 = vmatpush1.msra.mxu0 0.0
        %6459 = vmatprep.subr.mxu0 0.0
        %6460 = vmatpush1.msra.mxu0 0.0
        %6461 = vmatprep.subr.mxu0 0.0
        %6462 = vmatpush1.msra.mxu0 0.0
        %6463 = vmatprep.subr.mxu0 0.0
        %6464 = vmatpush1.msra.mxu0 0.0
        %6465 = vmatprep.subr.mxu0 0.0
        %6466 = vmatpush1.msra.mxu0 0.0
        %6467 = vmatprep.subr.mxu0 0.0
        %6468 = vmatpush1.msra.mxu0 0.0
        %6469 = vmatprep.subr.mxu0 0.0
        %v6470 = vand.u32 %v6117, 4294901760
        %v6471 = vsub.f32 %v6117, %v6470
        %v6472 = vand.u32 %v6471, 4294901760
        %6473 = vmatpush1.msra.mxu0 %v6472
        %6474 = vmatprep.subr.mxu0 0.0
        %v6475 = vand.u32 %v6116, 4294901760
        %v6476 = vsub.f32 %v6116, %v6475
        %v6477 = vand.u32 %v6476, 4294901760
        %6478 = vmatpush1.msra.mxu0 %v6477
        %6479 = vmatprep.subr.mxu0 0.0
        %v6480 = vand.u32 %v6115, 4294901760
        %v6481 = vsub.f32 %v6115, %v6480
        %v6482 = vand.u32 %v6481, 4294901760
        %6483 = vmatpush1.msra.mxu0 %v6482
        %6484 = vmatprep.subr.mxu0 0.0
        %v6485 = vand.u32 %v6114, 4294901760
        %v6486 = vsub.f32 %v6114, %v6485
        %v6487 = vand.u32 %v6486, 4294901760
        %6488 = vmatpush1.msra.mxu0 %v6487
        %6489 = vmatprep.subr.mxu0 0.0
        %6490 = vmatpush2.msra.mxu0 0.0
        %6491 = vmatprep.subr.mxu0 0.0
        %6492 = vmatpush2.msra.mxu0 0.0
        %6493 = vmatprep.subr.mxu0 0.0
        %6494 = vmatpush2.msra.mxu0 0.0
        %6495 = vmatprep.subr.mxu0 0.0
        %6496 = vmatpush2.msra.mxu0 0.0
        %6497 = vmatprep.subr.mxu0 0.0
        %6498 = vmatpush2.msra.mxu0 0.0
        %6499 = vmatprep.subr.mxu0 0.0
        %6500 = vmatpush2.msra.mxu0 0.0
        %6501 = vmatprep.subr.mxu0 0.0
        %6502 = vmatpush2.msra.mxu0 0.0
        %6503 = vmatprep.subr.mxu0 0.0
        %6504 = vmatpush2.msra.mxu0 0.0
        %6505 = vmatprep.subr.mxu0 0.0
        %6506 = vmatpush2.msra.mxu0 0.0
        %6507 = vmatprep.subr.mxu0 0.0
        %6508 = vmatpush2.msra.mxu0 0.0
        %6509 = vmatprep.subr.mxu0 0.0
        %6510 = vmatpush2.msra.mxu0 0.0
        %6511 = vmatprep.subr.mxu0 0.0
        %6512 = vmatpush2.msra.mxu0 0.0
        %6513 = vmatprep.subr.mxu0 0.0
        %6514 = vmatpush2.msra.mxu0 0.0
        %6515 = vmatprep.subr.mxu0 0.0
        %6516 = vmatpush2.msra.mxu0 0.0
        %6517 = vmatprep.subr.mxu0 0.0
        %6518 = vmatpush2.msra.mxu0 0.0
        %6519 = vmatprep.subr.mxu0 0.0
        %6520 = vmatpush2.msra.mxu0 0.0
        %6521 = vmatprep.mubr.f32.mxu0 0.0
        %v6522 = vand.u32 %v408, 4294901760
        %6523 = vmatmul.mubr.f32.gmra.mxu0 %v6522
        %v6524 = vpop.f32.mrf.mxu0
        %v6525 = vadd.f32 %v6442, %v6524
        %v6526 = vpop.f32.mrf.mxu0
        %6527 = vdwg.mxu0
        %6528 = vmatprep.subr.mxu0 0.0
        %6529 = vmatpush1.msra.mxu0 0.0
        %6530 = vmatprep.subr.mxu0 0.0
        %6531 = vmatpush1.msra.mxu0 0.0
        %6532 = vmatprep.subr.mxu0 0.0
        %6533 = vmatpush1.msra.mxu0 0.0
        %6534 = vmatprep.subr.mxu0 0.0
        %6535 = vmatpush1.msra.mxu0 0.0
        %6536 = vmatprep.subr.mxu0 0.0
        %6537 = vmatpush1.msra.mxu0 0.0
        %6538 = vmatprep.subr.mxu0 0.0
        %6539 = vmatpush1.msra.mxu0 0.0
        %6540 = vmatprep.subr.mxu0 0.0
        %6541 = vmatpush1.msra.mxu0 0.0
        %6542 = vmatprep.subr.mxu0 0.0
        %6543 = vmatpush1.msra.mxu0 0.0
        %6544 = vmatprep.subr.mxu0 0.0
        %6545 = vmatpush1.msra.mxu0 0.0
        %6546 = vmatprep.subr.mxu0 0.0
        %6547 = vmatpush1.msra.mxu0 0.0
        %6548 = vmatprep.subr.mxu0 0.0
        %6549 = vmatpush1.msra.mxu0 0.0
        %6550 = vmatprep.subr.mxu0 0.0
        %6551 = vmatpush1.msra.mxu0 0.0
        %6552 = vmatprep.subr.mxu0 0.0
        %v6553 = vand.u32 %v6117, 4294901760
        %6554 = vmatpush1.msra.mxu0 %v6553
        %6555 = vmatprep.subr.mxu0 0.0
        %v6556 = vand.u32 %v6116, 4294901760
        %6557 = vmatpush1.msra.mxu0 %v6556
        %6558 = vmatprep.subr.mxu0 0.0
        %v6559 = vand.u32 %v6115, 4294901760
        %6560 = vmatpush1.msra.mxu0 %v6559
        %6561 = vmatprep.subr.mxu0 0.0
        %v6562 = vand.u32 %v6114, 4294901760
        %6563 = vmatpush1.msra.mxu0 %v6562
        %6564 = vmatprep.subr.mxu0 0.0
        %6565 = vmatpush2.msra.mxu0 0.0
        %6566 = vmatprep.subr.mxu0 0.0
        %6567 = vmatpush2.msra.mxu0 0.0
        %6568 = vmatprep.subr.mxu0 0.0
        %6569 = vmatpush2.msra.mxu0 0.0
        %6570 = vmatprep.subr.mxu0 0.0
        %6571 = vmatpush2.msra.mxu0 0.0
        %6572 = vmatprep.subr.mxu0 0.0
        %6573 = vmatpush2.msra.mxu0 0.0
        %6574 = vmatprep.subr.mxu0 0.0
        %6575 = vmatpush2.msra.mxu0 0.0
        %6576 = vmatprep.subr.mxu0 0.0
        %6577 = vmatpush2.msra.mxu0 0.0
        %6578 = vmatprep.subr.mxu0 0.0
        %6579 = vmatpush2.msra.mxu0 0.0
        %6580 = vmatprep.subr.mxu0 0.0
        %6581 = vmatpush2.msra.mxu0 0.0
        %6582 = vmatprep.subr.mxu0 0.0
        %6583 = vmatpush2.msra.mxu0 0.0
        %6584 = vmatprep.subr.mxu0 0.0
        %6585 = vmatpush2.msra.mxu0 0.0
        %6586 = vmatprep.subr.mxu0 0.0
        %6587 = vmatpush2.msra.mxu0 0.0
        %6588 = vmatprep.subr.mxu0 0.0
        %6589 = vmatpush2.msra.mxu0 0.0
        %6590 = vmatprep.subr.mxu0 0.0
        %6591 = vmatpush2.msra.mxu0 0.0
        %6592 = vmatprep.subr.mxu0 0.0
        %6593 = vmatpush2.msra.mxu0 0.0
        %6594 = vmatprep.subr.mxu0 0.0
        %6595 = vmatpush2.msra.mxu0 0.0
        %6596 = vmatprep.mubr.f32.mxu0 0.0
        %v6597 = vand.u32 %v408, 4294901760
        %6598 = vmatmul.mubr.f32.gmra.mxu0 %v6597
        %v6599 = vpop.f32.mrf.mxu0
        %v6600 = vadd.f32 %v6525, %v6599
        %v6601 = vpop.f32.mrf.mxu0
        %6602 = vdwg.mxu0
        %6604 = vrot.lane.b32.xlu0 %v6600, 124
        %v6605 = vpop.permute.xlu0 %6604
        %6607 = vrot.lane.b32.xlu0 %v6600, 4
        %v6608 = vpop.permute.xlu0 %6607
        %v6610 = vsel %vm902, %v6605, %v6608
        %v6611 = vmul.f32 %v6600, %v383
        %v6612 = vmul.f32 %v6610, %v384
        %v6613 = vadd.f32 %v6611, %v6612
        %v6615 = vsel %vm1896, %v6613, 0
        %v6618 = vsel %vm1896, %v5622, 0
        %6620 = vmatprep.subr.mxu0 0.0
        %6621 = vmatpush1.xpose.msra.mxu0 0.0
        %6622 = vmatprep.subr.mxu0 0.0
        %6623 = vmatpush1.xpose.msra.mxu0 0.0
        %6624 = vmatprep.subr.mxu0 0.0
        %6625 = vmatpush1.xpose.msra.mxu0 0.0
        %6626 = vmatprep.subr.mxu0 0.0
        %6627 = vmatpush1.xpose.msra.mxu0 0.0
        %6628 = vmatprep.subr.mxu0 0.0
        %6629 = vmatpush1.xpose.msra.mxu0 0.0
        %6630 = vmatprep.subr.mxu0 0.0
        %6631 = vmatpush1.xpose.msra.mxu0 0.0
        %6632 = vmatprep.subr.mxu0 0.0
        %6633 = vmatpush1.xpose.msra.mxu0 0.0
        %6634 = vmatprep.subr.mxu0 0.0
        %6635 = vmatpush1.xpose.msra.mxu0 0.0
        %6636 = vmatprep.subr.mxu0 0.0
        %6637 = vmatpush1.xpose.msra.mxu0 0.0
        %6638 = vmatprep.subr.mxu0 0.0
        %6639 = vmatpush1.xpose.msra.mxu0 0.0
        %6640 = vmatprep.subr.mxu0 0.0
        %6641 = vmatpush1.xpose.msra.mxu0 0.0
        %6642 = vmatprep.subr.mxu0 0.0
        %6643 = vmatpush1.xpose.msra.mxu0 0.0
        %6644 = vmatprep.subr.mxu0 0.0
        %6645 = vmatpush1.xpose.msra.mxu0 0.0
        %6646 = vmatprep.subr.mxu0 0.0
        %6647 = vmatpush1.xpose.msra.mxu0 0.0
        %6648 = vmatprep.subr.mxu0 0.0
        %6649 = vmatpush1.xpose.msra.mxu0 0.0
        %6650 = vmatprep.subr.mxu0 0.0
        %v6651 = vand.u32 %v6618, 4294901760
        %6652 = vmatpush1.xpose.msra.mxu0 %v6651
        %6653 = vmatprep.subr.mxu0 0.0
        %6654 = vmatpush2.xpose.msra.mxu0 0.0
        %6655 = vmatprep.subr.mxu0 0.0
        %6656 = vmatpush2.xpose.msra.mxu0 0.0
        %6657 = vmatprep.subr.mxu0 0.0
        %6658 = vmatpush2.xpose.msra.mxu0 0.0
        %6659 = vmatprep.subr.mxu0 0.0
        %6660 = vmatpush2.xpose.msra.mxu0 0.0
        %6661 = vmatprep.subr.mxu0 0.0
        %6662 = vmatpush2.xpose.msra.mxu0 0.0
        %6663 = vmatprep.subr.mxu0 0.0
        %6664 = vmatpush2.xpose.msra.mxu0 0.0
        %6665 = vmatprep.subr.mxu0 0.0
        %6666 = vmatpush2.xpose.msra.mxu0 0.0
        %6667 = vmatprep.subr.mxu0 0.0
        %6668 = vmatpush2.xpose.msra.mxu0 0.0
        %6669 = vmatprep.subr.mxu0 0.0
        %6670 = vmatpush2.xpose.msra.mxu0 0.0
        %6671 = vmatprep.subr.mxu0 0.0
        %6672 = vmatpush2.xpose.msra.mxu0 0.0
        %6673 = vmatprep.subr.mxu0 0.0
        %6674 = vmatpush2.xpose.msra.mxu0 0.0
        %6675 = vmatprep.subr.mxu0 0.0
        %6676 = vmatpush2.xpose.msra.mxu0 0.0
        %6677 = vmatprep.subr.mxu0 0.0
        %6678 = vmatpush2.xpose.msra.mxu0 0.0
        %6679 = vmatprep.subr.mxu0 0.0
        %6680 = vmatpush2.xpose.msra.mxu0 0.0
        %6681 = vmatprep.subr.mxu0 0.0
        %6682 = vmatpush2.xpose.msra.mxu0 0.0
        %6683 = vmatprep.subr.mxu0 0.0
        %6684 = vmatpush2.xpose.msra.mxu0 0.0
        %6685 = vmatprep.mubr.f32.mxu0 0.0
        %v6686 = vand.u32 %v6615, 4294901760
        %v6687 = vsub.f32 %v6615, %v6686
        %v6688 = vand.u32 %v6687, 4294901760
        %v6689 = vsub.f32 %v6687, %v6688
        %v6690 = vand.u32 %v6689, 4294901760
        %6691 = vmatmul.mubr.f32.gmra.mxu0 %v6690
        %v6692 = vpop.f32.mrf.mxu0
        %v6693 = vadd.f32 0.0, %v6692
        %v6694 = vpop.f32.mrf.mxu0
        %6695 = vdwg.mxu0
        %6696 = vmatprep.subr.mxu0 0.0
        %6697 = vmatpush1.xpose.msra.mxu0 0.0
        %6698 = vmatprep.subr.mxu0 0.0
        %6699 = vmatpush1.xpose.msra.mxu0 0.0
        %6700 = vmatprep.subr.mxu0 0.0
        %6701 = vmatpush1.xpose.msra.mxu0 0.0
        %6702 = vmatprep.subr.mxu0 0.0
        %6703 = vmatpush1.xpose.msra.mxu0 0.0
        %6704 = vmatprep.subr.mxu0 0.0
        %6705 = vmatpush1.xpose.msra.mxu0 0.0
        %6706 = vmatprep.subr.mxu0 0.0
        %6707 = vmatpush1.xpose.msra.mxu0 0.0
        %6708 = vmatprep.subr.mxu0 0.0
        %6709 = vmatpush1.xpose.msra.mxu0 0.0
        %6710 = vmatprep.subr.mxu0 0.0
        %6711 = vmatpush1.xpose.msra.mxu0 0.0
        %6712 = vmatprep.subr.mxu0 0.0
        %6713 = vmatpush1.xpose.msra.mxu0 0.0
        %6714 = vmatprep.subr.mxu0 0.0
        %6715 = vmatpush1.xpose.msra.mxu0 0.0
        %6716 = vmatprep.subr.mxu0 0.0
        %6717 = vmatpush1.xpose.msra.mxu0 0.0
        %6718 = vmatprep.subr.mxu0 0.0
        %6719 = vmatpush1.xpose.msra.mxu0 0.0
        %6720 = vmatprep.subr.mxu0 0.0
        %6721 = vmatpush1.xpose.msra.mxu0 0.0
        %6722 = vmatprep.subr.mxu0 0.0
        %6723 = vmatpush1.xpose.msra.mxu0 0.0
        %6724 = vmatprep.subr.mxu0 0.0
        %6725 = vmatpush1.xpose.msra.mxu0 0.0
        %6726 = vmatprep.subr.mxu0 0.0
        %v6727 = vand.u32 %v6618, 4294901760
        %v6728 = vsub.f32 %v6618, %v6727
        %v6729 = vand.u32 %v6728, 4294901760
        %v6730 = vsub.f32 %v6728, %v6729
        %v6731 = vand.u32 %v6730, 4294901760
        %6732 = vmatpush1.xpose.msra.mxu0 %v6731
        %6733 = vmatprep.subr.mxu0 0.0
        %6734 = vmatpush2.xpose.msra.mxu0 0.0
        %6735 = vmatprep.subr.mxu0 0.0
        %6736 = vmatpush2.xpose.msra.mxu0 0.0
        %6737 = vmatprep.subr.mxu0 0.0
        %6738 = vmatpush2.xpose.msra.mxu0 0.0
        %6739 = vmatprep.subr.mxu0 0.0
        %6740 = vmatpush2.xpose.msra.mxu0 0.0
        %6741 = vmatprep.subr.mxu0 0.0
        %6742 = vmatpush2.xpose.msra.mxu0 0.0
        %6743 = vmatprep.subr.mxu0 0.0
        %6744 = vmatpush2.xpose.msra.mxu0 0.0
        %6745 = vmatprep.subr.mxu0 0.0
        %6746 = vmatpush2.xpose.msra.mxu0 0.0
        %6747 = vmatprep.subr.mxu0 0.0
        %6748 = vmatpush2.xpose.msra.mxu0 0.0
        %6749 = vmatprep.subr.mxu0 0.0
        %6750 = vmatpush2.xpose.msra.mxu0 0.0
        %6751 = vmatprep.subr.mxu0 0.0
        %6752 = vmatpush2.xpose.msra.mxu0 0.0
        %6753 = vmatprep.subr.mxu0 0.0
        %6754 = vmatpush2.xpose.msra.mxu0 0.0
        %6755 = vmatprep.subr.mxu0 0.0
        %6756 = vmatpush2.xpose.msra.mxu0 0.0
        %6757 = vmatprep.subr.mxu0 0.0
        %6758 = vmatpush2.xpose.msra.mxu0 0.0
        %6759 = vmatprep.subr.mxu0 0.0
        %6760 = vmatpush2.xpose.msra.mxu0 0.0
        %6761 = vmatprep.subr.mxu0 0.0
        %6762 = vmatpush2.xpose.msra.mxu0 0.0
        %6763 = vmatprep.subr.mxu0 0.0
        %6764 = vmatpush2.xpose.msra.mxu0 0.0
        %6765 = vmatprep.mubr.f32.mxu0 0.0
        %v6766 = vand.u32 %v6615, 4294901760
        %6767 = vmatmul.mubr.f32.gmra.mxu0 %v6766
        %v6768 = vpop.f32.mrf.mxu0
        %v6769 = vadd.f32 %v6693, %v6768
        %v6770 = vpop.f32.mrf.mxu0
        %6771 = vdwg.mxu0
        %6772 = vmatprep.subr.mxu0 0.0
        %6773 = vmatpush1.xpose.msra.mxu0 0.0
        %6774 = vmatprep.subr.mxu0 0.0
        %6775 = vmatpush1.xpose.msra.mxu0 0.0
        %6776 = vmatprep.subr.mxu0 0.0
        %6777 = vmatpush1.xpose.msra.mxu0 0.0
        %6778 = vmatprep.subr.mxu0 0.0
        %6779 = vmatpush1.xpose.msra.mxu0 0.0
        %6780 = vmatprep.subr.mxu0 0.0
        %6781 = vmatpush1.xpose.msra.mxu0 0.0
        %6782 = vmatprep.subr.mxu0 0.0
        %6783 = vmatpush1.xpose.msra.mxu0 0.0
        %6784 = vmatprep.subr.mxu0 0.0
        %6785 = vmatpush1.xpose.msra.mxu0 0.0
        %6786 = vmatprep.subr.mxu0 0.0
        %6787 = vmatpush1.xpose.msra.mxu0 0.0
        %6788 = vmatprep.subr.mxu0 0.0
        %6789 = vmatpush1.xpose.msra.mxu0 0.0
        %6790 = vmatprep.subr.mxu0 0.0
        %6791 = vmatpush1.xpose.msra.mxu0 0.0
        %6792 = vmatprep.subr.mxu0 0.0
        %6793 = vmatpush1.xpose.msra.mxu0 0.0
        %6794 = vmatprep.subr.mxu0 0.0
        %6795 = vmatpush1.xpose.msra.mxu0 0.0
        %6796 = vmatprep.subr.mxu0 0.0
        %6797 = vmatpush1.xpose.msra.mxu0 0.0
        %6798 = vmatprep.subr.mxu0 0.0
        %6799 = vmatpush1.xpose.msra.mxu0 0.0
        %6800 = vmatprep.subr.mxu0 0.0
        %6801 = vmatpush1.xpose.msra.mxu0 0.0
        %6802 = vmatprep.subr.mxu0 0.0
        %v6803 = vand.u32 %v6618, 4294901760
        %v6804 = vsub.f32 %v6618, %v6803
        %6805 = vmatpush1.xpose.msra.mxu0 %v6804
        %6806 = vmatprep.subr.mxu0 0.0
        %6807 = vmatpush2.xpose.msra.mxu0 0.0
        %6808 = vmatprep.subr.mxu0 0.0
        %6809 = vmatpush2.xpose.msra.mxu0 0.0
        %6810 = vmatprep.subr.mxu0 0.0
        %6811 = vmatpush2.xpose.msra.mxu0 0.0
        %6812 = vmatprep.subr.mxu0 0.0
        %6813 = vmatpush2.xpose.msra.mxu0 0.0
        %6814 = vmatprep.subr.mxu0 0.0
        %6815 = vmatpush2.xpose.msra.mxu0 0.0
        %6816 = vmatprep.subr.mxu0 0.0
        %6817 = vmatpush2.xpose.msra.mxu0 0.0
        %6818 = vmatprep.subr.mxu0 0.0
        %6819 = vmatpush2.xpose.msra.mxu0 0.0
        %6820 = vmatprep.subr.mxu0 0.0
        %6821 = vmatpush2.xpose.msra.mxu0 0.0
        %6822 = vmatprep.subr.mxu0 0.0
        %6823 = vmatpush2.xpose.msra.mxu0 0.0
        %6824 = vmatprep.subr.mxu0 0.0
        %6825 = vmatpush2.xpose.msra.mxu0 0.0
        %6826 = vmatprep.subr.mxu0 0.0
        %6827 = vmatpush2.xpose.msra.mxu0 0.0
        %6828 = vmatprep.subr.mxu0 0.0
        %6829 = vmatpush2.xpose.msra.mxu0 0.0
        %6830 = vmatprep.subr.mxu0 0.0
        %6831 = vmatpush2.xpose.msra.mxu0 0.0
        %6832 = vmatprep.subr.mxu0 0.0
        %6833 = vmatpush2.xpose.msra.mxu0 0.0
        %6834 = vmatprep.subr.mxu0 0.0
        %6835 = vmatpush2.xpose.msra.mxu0 0.0
        %6836 = vmatprep.subr.mxu0 0.0
        %6837 = vmatpush2.xpose.msra.mxu0 0.0
        %6838 = vmatprep.mubr.f32.mxu0 0.0
        %v6839 = vand.u32 %v6615, 4294901760
        %v6840 = vsub.f32 %v6615, %v6839
        %6841 = vmatmul.mubr.f32.gmra.mxu0 %v6840
        %v6842 = vpop.f32.mrf.mxu0
        %v6843 = vadd.f32 %v6769, %v6842
        %v6844 = vpop.f32.mrf.mxu0
        %6845 = vdwg.mxu0
        %6846 = vmatprep.subr.mxu0 0.0
        %6847 = vmatpush1.xpose.msra.mxu0 0.0
        %6848 = vmatprep.subr.mxu0 0.0
        %6849 = vmatpush1.xpose.msra.mxu0 0.0
        %6850 = vmatprep.subr.mxu0 0.0
        %6851 = vmatpush1.xpose.msra.mxu0 0.0
        %6852 = vmatprep.subr.mxu0 0.0
        %6853 = vmatpush1.xpose.msra.mxu0 0.0
        %6854 = vmatprep.subr.mxu0 0.0
        %6855 = vmatpush1.xpose.msra.mxu0 0.0
        %6856 = vmatprep.subr.mxu0 0.0
        %6857 = vmatpush1.xpose.msra.mxu0 0.0
        %6858 = vmatprep.subr.mxu0 0.0
        %6859 = vmatpush1.xpose.msra.mxu0 0.0
        %6860 = vmatprep.subr.mxu0 0.0
        %6861 = vmatpush1.xpose.msra.mxu0 0.0
        %6862 = vmatprep.subr.mxu0 0.0
        %6863 = vmatpush1.xpose.msra.mxu0 0.0
        %6864 = vmatprep.subr.mxu0 0.0
        %6865 = vmatpush1.xpose.msra.mxu0 0.0
        %6866 = vmatprep.subr.mxu0 0.0
        %6867 = vmatpush1.xpose.msra.mxu0 0.0
        %6868 = vmatprep.subr.mxu0 0.0
        %6869 = vmatpush1.xpose.msra.mxu0 0.0
        %6870 = vmatprep.subr.mxu0 0.0
        %6871 = vmatpush1.xpose.msra.mxu0 0.0
        %6872 = vmatprep.subr.mxu0 0.0
        %6873 = vmatpush1.xpose.msra.mxu0 0.0
        %6874 = vmatprep.subr.mxu0 0.0
        %6875 = vmatpush1.xpose.msra.mxu0 0.0
        %6876 = vmatprep.subr.mxu0 0.0
        %v6877 = vand.u32 %v6618, 4294901760
        %6878 = vmatpush1.xpose.msra.mxu0 %v6877
        %6879 = vmatprep.subr.mxu0 0.0
        %6880 = vmatpush2.xpose.msra.mxu0 0.0
        %6881 = vmatprep.subr.mxu0 0.0
        %6882 = vmatpush2.xpose.msra.mxu0 0.0
        %6883 = vmatprep.subr.mxu0 0.0
        %6884 = vmatpush2.xpose.msra.mxu0 0.0
        %6885 = vmatprep.subr.mxu0 0.0
        %6886 = vmatpush2.xpose.msra.mxu0 0.0
        %6887 = vmatprep.subr.mxu0 0.0
        %6888 = vmatpush2.xpose.msra.mxu0 0.0
        %6889 = vmatprep.subr.mxu0 0.0
        %6890 = vmatpush2.xpose.msra.mxu0 0.0
        %6891 = vmatprep.subr.mxu0 0.0
        %6892 = vmatpush2.xpose.msra.mxu0 0.0
        %6893 = vmatprep.subr.mxu0 0.0
        %6894 = vmatpush2.xpose.msra.mxu0 0.0
        %6895 = vmatprep.subr.mxu0 0.0
        %6896 = vmatpush2.xpose.msra.mxu0 0.0
        %6897 = vmatprep.subr.mxu0 0.0
        %6898 = vmatpush2.xpose.msra.mxu0 0.0
        %6899 = vmatprep.subr.mxu0 0.0
        %6900 = vmatpush2.xpose.msra.mxu0 0.0
        %6901 = vmatprep.subr.mxu0 0.0
        %6902 = vmatpush2.xpose.msra.mxu0 0.0
        %6903 = vmatprep.subr.mxu0 0.0
        %6904 = vmatpush2.xpose.msra.mxu0 0.0
        %6905 = vmatprep.subr.mxu0 0.0
        %6906 = vmatpush2.xpose.msra.mxu0 0.0
        %6907 = vmatprep.subr.mxu0 0.0
        %6908 = vmatpush2.xpose.msra.mxu0 0.0
        %6909 = vmatprep.subr.mxu0 0.0
        %6910 = vmatpush2.xpose.msra.mxu0 0.0
        %6911 = vmatprep.mubr.f32.mxu0 0.0
        %v6912 = vand.u32 %v6615, 4294901760
        %v6913 = vsub.f32 %v6615, %v6912
        %v6914 = vand.u32 %v6913, 4294901760
        %6915 = vmatmul.mubr.f32.gmra.mxu0 %v6914
        %v6916 = vpop.f32.mrf.mxu0
        %v6917 = vadd.f32 %v6843, %v6916
        %v6918 = vpop.f32.mrf.mxu0
        %6919 = vdwg.mxu0
        %6920 = vmatprep.subr.mxu0 0.0
        %6921 = vmatpush1.xpose.msra.mxu0 0.0
        %6922 = vmatprep.subr.mxu0 0.0
        %6923 = vmatpush1.xpose.msra.mxu0 0.0
        %6924 = vmatprep.subr.mxu0 0.0
        %6925 = vmatpush1.xpose.msra.mxu0 0.0
        %6926 = vmatprep.subr.mxu0 0.0
        %6927 = vmatpush1.xpose.msra.mxu0 0.0
        %6928 = vmatprep.subr.mxu0 0.0
        %6929 = vmatpush1.xpose.msra.mxu0 0.0
        %6930 = vmatprep.subr.mxu0 0.0
        %6931 = vmatpush1.xpose.msra.mxu0 0.0
        %6932 = vmatprep.subr.mxu0 0.0
        %6933 = vmatpush1.xpose.msra.mxu0 0.0
        %6934 = vmatprep.subr.mxu0 0.0
        %6935 = vmatpush1.xpose.msra.mxu0 0.0
        %6936 = vmatprep.subr.mxu0 0.0
        %6937 = vmatpush1.xpose.msra.mxu0 0.0
        %6938 = vmatprep.subr.mxu0 0.0
        %6939 = vmatpush1.xpose.msra.mxu0 0.0
        %6940 = vmatprep.subr.mxu0 0.0
        %6941 = vmatpush1.xpose.msra.mxu0 0.0
        %6942 = vmatprep.subr.mxu0 0.0
        %6943 = vmatpush1.xpose.msra.mxu0 0.0
        %6944 = vmatprep.subr.mxu0 0.0
        %6945 = vmatpush1.xpose.msra.mxu0 0.0
        %6946 = vmatprep.subr.mxu0 0.0
        %6947 = vmatpush1.xpose.msra.mxu0 0.0
        %6948 = vmatprep.subr.mxu0 0.0
        %6949 = vmatpush1.xpose.msra.mxu0 0.0
        %6950 = vmatprep.subr.mxu0 0.0
        %v6951 = vand.u32 %v6618, 4294901760
        %v6952 = vsub.f32 %v6618, %v6951
        %v6953 = vand.u32 %v6952, 4294901760
        %6954 = vmatpush1.xpose.msra.mxu0 %v6953
        %6955 = vmatprep.subr.mxu0 0.0
        %6956 = vmatpush2.xpose.msra.mxu0 0.0
        %6957 = vmatprep.subr.mxu0 0.0
        %6958 = vmatpush2.xpose.msra.mxu0 0.0
        %6959 = vmatprep.subr.mxu0 0.0
        %6960 = vmatpush2.xpose.msra.mxu0 0.0
        %6961 = vmatprep.subr.mxu0 0.0
        %6962 = vmatpush2.xpose.msra.mxu0 0.0
        %6963 = vmatprep.subr.mxu0 0.0
        %6964 = vmatpush2.xpose.msra.mxu0 0.0
        %6965 = vmatprep.subr.mxu0 0.0
        %6966 = vmatpush2.xpose.msra.mxu0 0.0
        %6967 = vmatprep.subr.mxu0 0.0
        %6968 = vmatpush2.xpose.msra.mxu0 0.0
        %6969 = vmatprep.subr.mxu0 0.0
        %6970 = vmatpush2.xpose.msra.mxu0 0.0
        %6971 = vmatprep.subr.mxu0 0.0
        %6972 = vmatpush2.xpose.msra.mxu0 0.0
        %6973 = vmatprep.subr.mxu0 0.0
        %6974 = vmatpush2.xpose.msra.mxu0 0.0
        %6975 = vmatprep.subr.mxu0 0.0
        %6976 = vmatpush2.xpose.msra.mxu0 0.0
        %6977 = vmatprep.subr.mxu0 0.0
        %6978 = vmatpush2.xpose.msra.mxu0 0.0
        %6979 = vmatprep.subr.mxu0 0.0
        %6980 = vmatpush2.xpose.msra.mxu0 0.0
        %6981 = vmatprep.subr.mxu0 0.0
        %6982 = vmatpush2.xpose.msra.mxu0 0.0
        %6983 = vmatprep.subr.mxu0 0.0
        %6984 = vmatpush2.xpose.msra.mxu0 0.0
        %6985 = vmatprep.subr.mxu0 0.0
        %6986 = vmatpush2.xpose.msra.mxu0 0.0
        %6987 = vmatprep.mubr.f32.mxu0 0.0
        %v6988 = vand.u32 %v6615, 4294901760
        %6989 = vmatmul.mubr.f32.gmra.mxu0 %v6988
        %v6990 = vpop.f32.mrf.mxu0
        %v6991 = vadd.f32 %v6917, %v6990
        %v6992 = vpop.f32.mrf.mxu0
        %6993 = vdwg.mxu0
        %6994 = vmatprep.subr.mxu0 0.0
        %6995 = vmatpush1.xpose.msra.mxu0 0.0
        %6996 = vmatprep.subr.mxu0 0.0
        %6997 = vmatpush1.xpose.msra.mxu0 0.0
        %6998 = vmatprep.subr.mxu0 0.0
        %6999 = vmatpush1.xpose.msra.mxu0 0.0
        %7000 = vmatprep.subr.mxu0 0.0
        %7001 = vmatpush1.xpose.msra.mxu0 0.0
        %7002 = vmatprep.subr.mxu0 0.0
        %7003 = vmatpush1.xpose.msra.mxu0 0.0
        %7004 = vmatprep.subr.mxu0 0.0
        %7005 = vmatpush1.xpose.msra.mxu0 0.0
        %7006 = vmatprep.subr.mxu0 0.0
        %7007 = vmatpush1.xpose.msra.mxu0 0.0
        %7008 = vmatprep.subr.mxu0 0.0
        %7009 = vmatpush1.xpose.msra.mxu0 0.0
        %7010 = vmatprep.subr.mxu0 0.0
        %7011 = vmatpush1.xpose.msra.mxu0 0.0
        %7012 = vmatprep.subr.mxu0 0.0
        %7013 = vmatpush1.xpose.msra.mxu0 0.0
        %7014 = vmatprep.subr.mxu0 0.0
        %7015 = vmatpush1.xpose.msra.mxu0 0.0
        %7016 = vmatprep.subr.mxu0 0.0
        %7017 = vmatpush1.xpose.msra.mxu0 0.0
        %7018 = vmatprep.subr.mxu0 0.0
        %7019 = vmatpush1.xpose.msra.mxu0 0.0
        %7020 = vmatprep.subr.mxu0 0.0
        %7021 = vmatpush1.xpose.msra.mxu0 0.0
        %7022 = vmatprep.subr.mxu0 0.0
        %7023 = vmatpush1.xpose.msra.mxu0 0.0
        %7024 = vmatprep.subr.mxu0 0.0
        %v7025 = vand.u32 %v6618, 4294901760
        %7026 = vmatpush1.xpose.msra.mxu0 %v7025
        %7027 = vmatprep.subr.mxu0 0.0
        %7028 = vmatpush2.xpose.msra.mxu0 0.0
        %7029 = vmatprep.subr.mxu0 0.0
        %7030 = vmatpush2.xpose.msra.mxu0 0.0
        %7031 = vmatprep.subr.mxu0 0.0
        %7032 = vmatpush2.xpose.msra.mxu0 0.0
        %7033 = vmatprep.subr.mxu0 0.0
        %7034 = vmatpush2.xpose.msra.mxu0 0.0
        %7035 = vmatprep.subr.mxu0 0.0
        %7036 = vmatpush2.xpose.msra.mxu0 0.0
        %7037 = vmatprep.subr.mxu0 0.0
        %7038 = vmatpush2.xpose.msra.mxu0 0.0
        %7039 = vmatprep.subr.mxu0 0.0
        %7040 = vmatpush2.xpose.msra.mxu0 0.0
        %7041 = vmatprep.subr.mxu0 0.0
        %7042 = vmatpush2.xpose.msra.mxu0 0.0
        %7043 = vmatprep.subr.mxu0 0.0
        %7044 = vmatpush2.xpose.msra.mxu0 0.0
        %7045 = vmatprep.subr.mxu0 0.0
        %7046 = vmatpush2.xpose.msra.mxu0 0.0
        %7047 = vmatprep.subr.mxu0 0.0
        %7048 = vmatpush2.xpose.msra.mxu0 0.0
        %7049 = vmatprep.subr.mxu0 0.0
        %7050 = vmatpush2.xpose.msra.mxu0 0.0
        %7051 = vmatprep.subr.mxu0 0.0
        %7052 = vmatpush2.xpose.msra.mxu0 0.0
        %7053 = vmatprep.subr.mxu0 0.0
        %7054 = vmatpush2.xpose.msra.mxu0 0.0
        %7055 = vmatprep.subr.mxu0 0.0
        %7056 = vmatpush2.xpose.msra.mxu0 0.0
        %7057 = vmatprep.subr.mxu0 0.0
        %7058 = vmatpush2.xpose.msra.mxu0 0.0
        %7059 = vmatprep.mubr.f32.mxu0 0.0
        %v7060 = vand.u32 %v6615, 4294901760
        %7061 = vmatmul.mubr.f32.gmra.mxu0 %v7060
        %v7062 = vpop.f32.mrf.mxu0
        %v7063 = vadd.f32 %v6991, %v7062
        %v7064 = vpop.f32.mrf.mxu0
        %7065 = vdwg.mxu0
        %v7066 = vmul.f32 %v7063, 0.35355338
        %v7067 = vsel %vm1896, %v7066, -inf
        %7068 = vmax.xlane.f32.xlu0 %v7067
        %v7069 = vpop.xlane.xlu0 %7068
        %v7070 = vsub.f32 %v7066, %v7069
        %v7071 = vmul.f32 %v7070, 1.442695
        %v7072 = vpow.pop %v7071
        %v7073 = vsel %vm1896, %v7072, 0.0
        %7074 = vadd.xlane.f32.xlu0 %v7073
        %v7075 = vpop.xlane.xlu0 %7074
        %v7077 = vsel %vm1896, %v7072, 0
        %7079 = vmatprep.subr.mxu0 0.0
        %7080 = vmatpush1.msra.mxu0 0.0
        %7081 = vmatprep.subr.mxu0 0.0
        %7082 = vmatpush1.msra.mxu0 0.0
        %7083 = vmatprep.subr.mxu0 0.0
        %7084 = vmatpush1.msra.mxu0 0.0
        %7085 = vmatprep.subr.mxu0 0.0
        %7086 = vmatpush1.msra.mxu0 0.0
        %7087 = vmatprep.subr.mxu0 0.0
        %7088 = vmatpush1.msra.mxu0 0.0
        %7089 = vmatprep.subr.mxu0 0.0
        %7090 = vmatpush1.msra.mxu0 0.0
        %7091 = vmatprep.subr.mxu0 0.0
        %7092 = vmatpush1.msra.mxu0 0.0
        %7093 = vmatprep.subr.mxu0 0.0
        %7094 = vmatpush1.msra.mxu0 0.0
        %7095 = vmatprep.subr.mxu0 0.0
        %7096 = vmatpush1.msra.mxu0 0.0
        %7097 = vmatprep.subr.mxu0 0.0
        %7098 = vmatpush1.msra.mxu0 0.0
        %7099 = vmatprep.subr.mxu0 0.0
        %7100 = vmatpush1.msra.mxu0 0.0
        %7101 = vmatprep.subr.mxu0 0.0
        %7102 = vmatpush1.msra.mxu0 0.0
        %7103 = vmatprep.subr.mxu0 0.0
        %7104 = vmatpush1.msra.mxu0 0.0
        %7105 = vmatprep.subr.mxu0 0.0
        %7106 = vmatpush1.msra.mxu0 0.0
        %7107 = vmatprep.subr.mxu0 0.0
        %7108 = vmatpush1.msra.mxu0 0.0
        %7109 = vmatprep.subr.mxu0 0.0
        %v7110 = vand.u32 %v6110, 4294901760
        %7111 = vmatpush1.msra.mxu0 %v7110
        %7112 = vmatprep.subr.mxu0 0.0
        %7113 = vmatpush2.msra.mxu0 0.0
        %7114 = vmatprep.subr.mxu0 0.0
        %7115 = vmatpush2.msra.mxu0 0.0
        %7116 = vmatprep.subr.mxu0 0.0
        %7117 = vmatpush2.msra.mxu0 0.0
        %7118 = vmatprep.subr.mxu0 0.0
        %7119 = vmatpush2.msra.mxu0 0.0
        %7120 = vmatprep.subr.mxu0 0.0
        %7121 = vmatpush2.msra.mxu0 0.0
        %7122 = vmatprep.subr.mxu0 0.0
        %7123 = vmatpush2.msra.mxu0 0.0
        %7124 = vmatprep.subr.mxu0 0.0
        %7125 = vmatpush2.msra.mxu0 0.0
        %7126 = vmatprep.subr.mxu0 0.0
        %7127 = vmatpush2.msra.mxu0 0.0
        %7128 = vmatprep.subr.mxu0 0.0
        %7129 = vmatpush2.msra.mxu0 0.0
        %7130 = vmatprep.subr.mxu0 0.0
        %7131 = vmatpush2.msra.mxu0 0.0
        %7132 = vmatprep.subr.mxu0 0.0
        %7133 = vmatpush2.msra.mxu0 0.0
        %7134 = vmatprep.subr.mxu0 0.0
        %7135 = vmatpush2.msra.mxu0 0.0
        %7136 = vmatprep.subr.mxu0 0.0
        %7137 = vmatpush2.msra.mxu0 0.0
        %7138 = vmatprep.subr.mxu0 0.0
        %7139 = vmatpush2.msra.mxu0 0.0
        %7140 = vmatprep.subr.mxu0 0.0
        %7141 = vmatpush2.msra.mxu0 0.0
        %7142 = vmatprep.subr.mxu0 0.0
        %7143 = vmatpush2.msra.mxu0 0.0
        %7144 = vmatprep.mubr.f32.mxu0 0.0
        %v7145 = vand.u32 %v7077, 4294901760
        %v7146 = vsub.f32 %v7077, %v7145
        %v7147 = vand.u32 %v7146, 4294901760
        %v7148 = vsub.f32 %v7146, %v7147
        %v7149 = vand.u32 %v7148, 4294901760
        %7150 = vmatmul.mubr.f32.gmra.mxu0 %v7149
        %v7151 = vpop.f32.mrf.mxu0
        %v7152 = vadd.f32 0.0, %v7151
        %v7153 = vpop.f32.mrf.mxu0
        %7154 = vdwg.mxu0
        %7155 = vmatprep.subr.mxu0 0.0
        %7156 = vmatpush1.msra.mxu0 0.0
        %7157 = vmatprep.subr.mxu0 0.0
        %7158 = vmatpush1.msra.mxu0 0.0
        %7159 = vmatprep.subr.mxu0 0.0
        %7160 = vmatpush1.msra.mxu0 0.0
        %7161 = vmatprep.subr.mxu0 0.0
        %7162 = vmatpush1.msra.mxu0 0.0
        %7163 = vmatprep.subr.mxu0 0.0
        %7164 = vmatpush1.msra.mxu0 0.0
        %7165 = vmatprep.subr.mxu0 0.0
        %7166 = vmatpush1.msra.mxu0 0.0
        %7167 = vmatprep.subr.mxu0 0.0
        %7168 = vmatpush1.msra.mxu0 0.0
        %7169 = vmatprep.subr.mxu0 0.0
        %7170 = vmatpush1.msra.mxu0 0.0
        %7171 = vmatprep.subr.mxu0 0.0
        %7172 = vmatpush1.msra.mxu0 0.0
        %7173 = vmatprep.subr.mxu0 0.0
        %7174 = vmatpush1.msra.mxu0 0.0
        %7175 = vmatprep.subr.mxu0 0.0
        %7176 = vmatpush1.msra.mxu0 0.0
        %7177 = vmatprep.subr.mxu0 0.0
        %7178 = vmatpush1.msra.mxu0 0.0
        %7179 = vmatprep.subr.mxu0 0.0
        %7180 = vmatpush1.msra.mxu0 0.0
        %7181 = vmatprep.subr.mxu0 0.0
        %7182 = vmatpush1.msra.mxu0 0.0
        %7183 = vmatprep.subr.mxu0 0.0
        %7184 = vmatpush1.msra.mxu0 0.0
        %7185 = vmatprep.subr.mxu0 0.0
        %v7186 = vand.u32 %v6110, 4294901760
        %v7187 = vsub.f32 %v6110, %v7186
        %v7188 = vand.u32 %v7187, 4294901760
        %v7189 = vsub.f32 %v7187, %v7188
        %v7190 = vand.u32 %v7189, 4294901760
        %7191 = vmatpush1.msra.mxu0 %v7190
        %7192 = vmatprep.subr.mxu0 0.0
        %7193 = vmatpush2.msra.mxu0 0.0
        %7194 = vmatprep.subr.mxu0 0.0
        %7195 = vmatpush2.msra.mxu0 0.0
        %7196 = vmatprep.subr.mxu0 0.0
        %7197 = vmatpush2.msra.mxu0 0.0
        %7198 = vmatprep.subr.mxu0 0.0
        %7199 = vmatpush2.msra.mxu0 0.0
        %7200 = vmatprep.subr.mxu0 0.0
        %7201 = vmatpush2.msra.mxu0 0.0
        %7202 = vmatprep.subr.mxu0 0.0
        %7203 = vmatpush2.msra.mxu0 0.0
        %7204 = vmatprep.subr.mxu0 0.0
        %7205 = vmatpush2.msra.mxu0 0.0
        %7206 = vmatprep.subr.mxu0 0.0
        %7207 = vmatpush2.msra.mxu0 0.0
        %7208 = vmatprep.subr.mxu0 0.0
        %7209 = vmatpush2.msra.mxu0 0.0
        %7210 = vmatprep.subr.mxu0 0.0
        %7211 = vmatpush2.msra.mxu0 0.0
        %7212 = vmatprep.subr.mxu0 0.0
        %7213 = vmatpush2.msra.mxu0 0.0
        %7214 = vmatprep.subr.mxu0 0.0
        %7215 = vmatpush2.msra.mxu0 0.0
        %7216 = vmatprep.subr.mxu0 0.0
        %7217 = vmatpush2.msra.mxu0 0.0
        %7218 = vmatprep.subr.mxu0 0.0
        %7219 = vmatpush2.msra.mxu0 0.0
        %7220 = vmatprep.subr.mxu0 0.0
        %7221 = vmatpush2.msra.mxu0 0.0
        %7222 = vmatprep.subr.mxu0 0.0
        %7223 = vmatpush2.msra.mxu0 0.0
        %7224 = vmatprep.mubr.f32.mxu0 0.0
        %v7225 = vand.u32 %v7077, 4294901760
        %7226 = vmatmul.mubr.f32.gmra.mxu0 %v7225
        %v7227 = vpop.f32.mrf.mxu0
        %v7228 = vadd.f32 %v7152, %v7227
        %v7229 = vpop.f32.mrf.mxu0
        %7230 = vdwg.mxu0
        %7231 = vmatprep.subr.mxu0 0.0
        %7232 = vmatpush1.msra.mxu0 0.0
        %7233 = vmatprep.subr.mxu0 0.0
        %7234 = vmatpush1.msra.mxu0 0.0
        %7235 = vmatprep.subr.mxu0 0.0
        %7236 = vmatpush1.msra.mxu0 0.0
        %7237 = vmatprep.subr.mxu0 0.0
        %7238 = vmatpush1.msra.mxu0 0.0
        %7239 = vmatprep.subr.mxu0 0.0
        %7240 = vmatpush1.msra.mxu0 0.0
        %7241 = vmatprep.subr.mxu0 0.0
        %7242 = vmatpush1.msra.mxu0 0.0
        %7243 = vmatprep.subr.mxu0 0.0
        %7244 = vmatpush1.msra.mxu0 0.0
        %7245 = vmatprep.subr.mxu0 0.0
        %7246 = vmatpush1.msra.mxu0 0.0
        %7247 = vmatprep.subr.mxu0 0.0
        %7248 = vmatpush1.msra.mxu0 0.0
        %7249 = vmatprep.subr.mxu0 0.0
        %7250 = vmatpush1.msra.mxu0 0.0
        %7251 = vmatprep.subr.mxu0 0.0
        %7252 = vmatpush1.msra.mxu0 0.0
        %7253 = vmatprep.subr.mxu0 0.0
        %7254 = vmatpush1.msra.mxu0 0.0
        %7255 = vmatprep.subr.mxu0 0.0
        %7256 = vmatpush1.msra.mxu0 0.0
        %7257 = vmatprep.subr.mxu0 0.0
        %7258 = vmatpush1.msra.mxu0 0.0
        %7259 = vmatprep.subr.mxu0 0.0
        %7260 = vmatpush1.msra.mxu0 0.0
        %7261 = vmatprep.subr.mxu0 0.0
        %v7262 = vand.u32 %v6110, 4294901760
        %v7263 = vsub.f32 %v6110, %v7262
        %7264 = vmatpush1.msra.mxu0 %v7263
        %7265 = vmatprep.subr.mxu0 0.0
        %7266 = vmatpush2.msra.mxu0 0.0
        %7267 = vmatprep.subr.mxu0 0.0
        %7268 = vmatpush2.msra.mxu0 0.0
        %7269 = vmatprep.subr.mxu0 0.0
        %7270 = vmatpush2.msra.mxu0 0.0
        %7271 = vmatprep.subr.mxu0 0.0
        %7272 = vmatpush2.msra.mxu0 0.0
        %7273 = vmatprep.subr.mxu0 0.0
        %7274 = vmatpush2.msra.mxu0 0.0
        %7275 = vmatprep.subr.mxu0 0.0
        %7276 = vmatpush2.msra.mxu0 0.0
        %7277 = vmatprep.subr.mxu0 0.0
        %7278 = vmatpush2.msra.mxu0 0.0
        %7279 = vmatprep.subr.mxu0 0.0
        %7280 = vmatpush2.msra.mxu0 0.0
        %7281 = vmatprep.subr.mxu0 0.0
        %7282 = vmatpush2.msra.mxu0 0.0
        %7283 = vmatprep.subr.mxu0 0.0
        %7284 = vmatpush2.msra.mxu0 0.0
        %7285 = vmatprep.subr.mxu0 0.0
        %7286 = vmatpush2.msra.mxu0 0.0
        %7287 = vmatprep.subr.mxu0 0.0
        %7288 = vmatpush2.msra.mxu0 0.0
        %7289 = vmatprep.subr.mxu0 0.0
        %7290 = vmatpush2.msra.mxu0 0.0
        %7291 = vmatprep.subr.mxu0 0.0
        %7292 = vmatpush2.msra.mxu0 0.0
        %7293 = vmatprep.subr.mxu0 0.0
        %7294 = vmatpush2.msra.mxu0 0.0
        %7295 = vmatprep.subr.mxu0 0.0
        %7296 = vmatpush2.msra.mxu0 0.0
        %7297 = vmatprep.mubr.f32.mxu0 0.0
        %v7298 = vand.u32 %v7077, 4294901760
        %v7299 = vsub.f32 %v7077, %v7298
        %7300 = vmatmul.mubr.f32.gmra.mxu0 %v7299
        %v7301 = vpop.f32.mrf.mxu0
        %v7302 = vadd.f32 %v7228, %v7301
        %v7303 = vpop.f32.mrf.mxu0
        %7304 = vdwg.mxu0
        %7305 = vmatprep.subr.mxu0 0.0
        %7306 = vmatpush1.msra.mxu0 0.0
        %7307 = vmatprep.subr.mxu0 0.0
        %7308 = vmatpush1.msra.mxu0 0.0
        %7309 = vmatprep.subr.mxu0 0.0
        %7310 = vmatpush1.msra.mxu0 0.0
        %7311 = vmatprep.subr.mxu0 0.0
        %7312 = vmatpush1.msra.mxu0 0.0
        %7313 = vmatprep.subr.mxu0 0.0
        %7314 = vmatpush1.msra.mxu0 0.0
        %7315 = vmatprep.subr.mxu0 0.0
        %7316 = vmatpush1.msra.mxu0 0.0
        %7317 = vmatprep.subr.mxu0 0.0
        %7318 = vmatpush1.msra.mxu0 0.0
        %7319 = vmatprep.subr.mxu0 0.0
        %7320 = vmatpush1.msra.mxu0 0.0
        %7321 = vmatprep.subr.mxu0 0.0
        %7322 = vmatpush1.msra.mxu0 0.0
        %7323 = vmatprep.subr.mxu0 0.0
        %7324 = vmatpush1.msra.mxu0 0.0
        %7325 = vmatprep.subr.mxu0 0.0
        %7326 = vmatpush1.msra.mxu0 0.0
        %7327 = vmatprep.subr.mxu0 0.0
        %7328 = vmatpush1.msra.mxu0 0.0
        %7329 = vmatprep.subr.mxu0 0.0
        %7330 = vmatpush1.msra.mxu0 0.0
        %7331 = vmatprep.subr.mxu0 0.0
        %7332 = vmatpush1.msra.mxu0 0.0
        %7333 = vmatprep.subr.mxu0 0.0
        %7334 = vmatpush1.msra.mxu0 0.0
        %7335 = vmatprep.subr.mxu0 0.0
        %v7336 = vand.u32 %v6110, 4294901760
        %7337 = vmatpush1.msra.mxu0 %v7336
        %7338 = vmatprep.subr.mxu0 0.0
        %7339 = vmatpush2.msra.mxu0 0.0
        %7340 = vmatprep.subr.mxu0 0.0
        %7341 = vmatpush2.msra.mxu0 0.0
        %7342 = vmatprep.subr.mxu0 0.0
        %7343 = vmatpush2.msra.mxu0 0.0
        %7344 = vmatprep.subr.mxu0 0.0
        %7345 = vmatpush2.msra.mxu0 0.0
        %7346 = vmatprep.subr.mxu0 0.0
        %7347 = vmatpush2.msra.mxu0 0.0
        %7348 = vmatprep.subr.mxu0 0.0
        %7349 = vmatpush2.msra.mxu0 0.0
        %7350 = vmatprep.subr.mxu0 0.0
        %7351 = vmatpush2.msra.mxu0 0.0
        %7352 = vmatprep.subr.mxu0 0.0
        %7353 = vmatpush2.msra.mxu0 0.0
        %7354 = vmatprep.subr.mxu0 0.0
        %7355 = vmatpush2.msra.mxu0 0.0
        %7356 = vmatprep.subr.mxu0 0.0
        %7357 = vmatpush2.msra.mxu0 0.0
        %7358 = vmatprep.subr.mxu0 0.0
        %7359 = vmatpush2.msra.mxu0 0.0
        %7360 = vmatprep.subr.mxu0 0.0
        %7361 = vmatpush2.msra.mxu0 0.0
        %7362 = vmatprep.subr.mxu0 0.0
        %7363 = vmatpush2.msra.mxu0 0.0
        %7364 = vmatprep.subr.mxu0 0.0
        %7365 = vmatpush2.msra.mxu0 0.0
        %7366 = vmatprep.subr.mxu0 0.0
        %7367 = vmatpush2.msra.mxu0 0.0
        %7368 = vmatprep.subr.mxu0 0.0
        %7369 = vmatpush2.msra.mxu0 0.0
        %7370 = vmatprep.mubr.f32.mxu0 0.0
        %v7371 = vand.u32 %v7077, 4294901760
        %v7372 = vsub.f32 %v7077, %v7371
        %v7373 = vand.u32 %v7372, 4294901760
        %7374 = vmatmul.mubr.f32.gmra.mxu0 %v7373
        %v7375 = vpop.f32.mrf.mxu0
        %v7376 = vadd.f32 %v7302, %v7375
        %v7377 = vpop.f32.mrf.mxu0
        %7378 = vdwg.mxu0
        %7379 = vmatprep.subr.mxu0 0.0
        %7380 = vmatpush1.msra.mxu0 0.0
        %7381 = vmatprep.subr.mxu0 0.0
        %7382 = vmatpush1.msra.mxu0 0.0
        %7383 = vmatprep.subr.mxu0 0.0
        %7384 = vmatpush1.msra.mxu0 0.0
        %7385 = vmatprep.subr.mxu0 0.0
        %7386 = vmatpush1.msra.mxu0 0.0
        %7387 = vmatprep.subr.mxu0 0.0
        %7388 = vmatpush1.msra.mxu0 0.0
        %7389 = vmatprep.subr.mxu0 0.0
        %7390 = vmatpush1.msra.mxu0 0.0
        %7391 = vmatprep.subr.mxu0 0.0
        %7392 = vmatpush1.msra.mxu0 0.0
        %7393 = vmatprep.subr.mxu0 0.0
        %7394 = vmatpush1.msra.mxu0 0.0
        %7395 = vmatprep.subr.mxu0 0.0
        %7396 = vmatpush1.msra.mxu0 0.0
        %7397 = vmatprep.subr.mxu0 0.0
        %7398 = vmatpush1.msra.mxu0 0.0
        %7399 = vmatprep.subr.mxu0 0.0
        %7400 = vmatpush1.msra.mxu0 0.0
        %7401 = vmatprep.subr.mxu0 0.0
        %7402 = vmatpush1.msra.mxu0 0.0
        %7403 = vmatprep.subr.mxu0 0.0
        %7404 = vmatpush1.msra.mxu0 0.0
        %7405 = vmatprep.subr.mxu0 0.0
        %7406 = vmatpush1.msra.mxu0 0.0
        %7407 = vmatprep.subr.mxu0 0.0
        %7408 = vmatpush1.msra.mxu0 0.0
        %7409 = vmatprep.subr.mxu0 0.0
        %v7410 = vand.u32 %v6110, 4294901760
        %v7411 = vsub.f32 %v6110, %v7410
        %v7412 = vand.u32 %v7411, 4294901760
        %7413 = vmatpush1.msra.mxu0 %v7412
        %7414 = vmatprep.subr.mxu0 0.0
        %7415 = vmatpush2.msra.mxu0 0.0
        %7416 = vmatprep.subr.mxu0 0.0
        %7417 = vmatpush2.msra.mxu0 0.0
        %7418 = vmatprep.subr.mxu0 0.0
        %7419 = vmatpush2.msra.mxu0 0.0
        %7420 = vmatprep.subr.mxu0 0.0
        %7421 = vmatpush2.msra.mxu0 0.0
        %7422 = vmatprep.subr.mxu0 0.0
        %7423 = vmatpush2.msra.mxu0 0.0
        %7424 = vmatprep.subr.mxu0 0.0
        %7425 = vmatpush2.msra.mxu0 0.0
        %7426 = vmatprep.subr.mxu0 0.0
        %7427 = vmatpush2.msra.mxu0 0.0
        %7428 = vmatprep.subr.mxu0 0.0
        %7429 = vmatpush2.msra.mxu0 0.0
        %7430 = vmatprep.subr.mxu0 0.0
        %7431 = vmatpush2.msra.mxu0 0.0
        %7432 = vmatprep.subr.mxu0 0.0
        %7433 = vmatpush2.msra.mxu0 0.0
        %7434 = vmatprep.subr.mxu0 0.0
        %7435 = vmatpush2.msra.mxu0 0.0
        %7436 = vmatprep.subr.mxu0 0.0
        %7437 = vmatpush2.msra.mxu0 0.0
        %7438 = vmatprep.subr.mxu0 0.0
        %7439 = vmatpush2.msra.mxu0 0.0
        %7440 = vmatprep.subr.mxu0 0.0
        %7441 = vmatpush2.msra.mxu0 0.0
        %7442 = vmatprep.subr.mxu0 0.0
        %7443 = vmatpush2.msra.mxu0 0.0
        %7444 = vmatprep.subr.mxu0 0.0
        %7445 = vmatpush2.msra.mxu0 0.0
        %7446 = vmatprep.mubr.f32.mxu0 0.0
        %v7447 = vand.u32 %v7077, 4294901760
        %7448 = vmatmul.mubr.f32.gmra.mxu0 %v7447
        %v7449 = vpop.f32.mrf.mxu0
        %v7450 = vadd.f32 %v7376, %v7449
        %v7451 = vpop.f32.mrf.mxu0
        %7452 = vdwg.mxu0
        %7453 = vmatprep.subr.mxu0 0.0
        %7454 = vmatpush1.msra.mxu0 0.0
        %7455 = vmatprep.subr.mxu0 0.0
        %7456 = vmatpush1.msra.mxu0 0.0
        %7457 = vmatprep.subr.mxu0 0.0
        %7458 = vmatpush1.msra.mxu0 0.0
        %7459 = vmatprep.subr.mxu0 0.0
        %7460 = vmatpush1.msra.mxu0 0.0
        %7461 = vmatprep.subr.mxu0 0.0
        %7462 = vmatpush1.msra.mxu0 0.0
        %7463 = vmatprep.subr.mxu0 0.0
        %7464 = vmatpush1.msra.mxu0 0.0
        %7465 = vmatprep.subr.mxu0 0.0
        %7466 = vmatpush1.msra.mxu0 0.0
        %7467 = vmatprep.subr.mxu0 0.0
        %7468 = vmatpush1.msra.mxu0 0.0
        %7469 = vmatprep.subr.mxu0 0.0
        %7470 = vmatpush1.msra.mxu0 0.0
        %7471 = vmatprep.subr.mxu0 0.0
        %7472 = vmatpush1.msra.mxu0 0.0
        %7473 = vmatprep.subr.mxu0 0.0
        %7474 = vmatpush1.msra.mxu0 0.0
        %7475 = vmatprep.subr.mxu0 0.0
        %7476 = vmatpush1.msra.mxu0 0.0
        %7477 = vmatprep.subr.mxu0 0.0
        %7478 = vmatpush1.msra.mxu0 0.0
        %7479 = vmatprep.subr.mxu0 0.0
        %7480 = vmatpush1.msra.mxu0 0.0
        %7481 = vmatprep.subr.mxu0 0.0
        %7482 = vmatpush1.msra.mxu0 0.0
        %7483 = vmatprep.subr.mxu0 0.0
        %v7484 = vand.u32 %v6110, 4294901760
        %7485 = vmatpush1.msra.mxu0 %v7484
        %7486 = vmatprep.subr.mxu0 0.0
        %7487 = vmatpush2.msra.mxu0 0.0
        %7488 = vmatprep.subr.mxu0 0.0
        %7489 = vmatpush2.msra.mxu0 0.0
        %7490 = vmatprep.subr.mxu0 0.0
        %7491 = vmatpush2.msra.mxu0 0.0
        %7492 = vmatprep.subr.mxu0 0.0
        %7493 = vmatpush2.msra.mxu0 0.0
        %7494 = vmatprep.subr.mxu0 0.0
        %7495 = vmatpush2.msra.mxu0 0.0
        %7496 = vmatprep.subr.mxu0 0.0
        %7497 = vmatpush2.msra.mxu0 0.0
        %7498 = vmatprep.subr.mxu0 0.0
        %7499 = vmatpush2.msra.mxu0 0.0
        %7500 = vmatprep.subr.mxu0 0.0
        %7501 = vmatpush2.msra.mxu0 0.0
        %7502 = vmatprep.subr.mxu0 0.0
        %7503 = vmatpush2.msra.mxu0 0.0
        %7504 = vmatprep.subr.mxu0 0.0
        %7505 = vmatpush2.msra.mxu0 0.0
        %7506 = vmatprep.subr.mxu0 0.0
        %7507 = vmatpush2.msra.mxu0 0.0
        %7508 = vmatprep.subr.mxu0 0.0
        %7509 = vmatpush2.msra.mxu0 0.0
        %7510 = vmatprep.subr.mxu0 0.0
        %7511 = vmatpush2.msra.mxu0 0.0
        %7512 = vmatprep.subr.mxu0 0.0
        %7513 = vmatpush2.msra.mxu0 0.0
        %7514 = vmatprep.subr.mxu0 0.0
        %7515 = vmatpush2.msra.mxu0 0.0
        %7516 = vmatprep.subr.mxu0 0.0
        %7517 = vmatpush2.msra.mxu0 0.0
        %7518 = vmatprep.mubr.f32.mxu0 0.0
        %v7519 = vand.u32 %v7077, 4294901760
        %7520 = vmatmul.mubr.f32.gmra.mxu0 %v7519
        %v7521 = vpop.f32.mrf.mxu0
        %v7522 = vadd.f32 %v7450, %v7521
        %v7523 = vpop.f32.mrf.mxu0
        %7524 = vdwg.mxu0
        %v7525 = vrcp.pop %v7075
        %v7526 = vmul.f32 %v7522, %v7525
        %s7527 = scalar_lea.vmem %s6, 16
        %v7528 = vld [vmem:[%s7527] sm:$0xff]
        %v7530 = vsel %vm1896, %v7526, 0
        %7532 = vmatprep.subr.mxu0 0.0
        %7533 = vmatpush1.msra.mxu0 0.0
        %7534 = vmatprep.subr.mxu0 0.0
        %7535 = vmatpush1.msra.mxu0 0.0
        %7536 = vmatprep.subr.mxu0 0.0
        %7537 = vmatpush1.msra.mxu0 0.0
        %7538 = vmatprep.subr.mxu0 0.0
        %7539 = vmatpush1.msra.mxu0 0.0
        %7540 = vmatprep.subr.mxu0 0.0
        %7541 = vmatpush1.msra.mxu0 0.0
        %7542 = vmatprep.subr.mxu0 0.0
        %7543 = vmatpush1.msra.mxu0 0.0
        %7544 = vmatprep.subr.mxu0 0.0
        %7545 = vmatpush1.msra.mxu0 0.0
        %7546 = vmatprep.subr.mxu0 0.0
        %7547 = vmatpush1.msra.mxu0 0.0
        %7548 = vmatprep.subr.mxu0 0.0
        %7549 = vmatpush1.msra.mxu0 0.0
        %7550 = vmatprep.subr.mxu0 0.0
        %7551 = vmatpush1.msra.mxu0 0.0
        %7552 = vmatprep.subr.mxu0 0.0
        %7553 = vmatpush1.msra.mxu0 0.0
        %7554 = vmatprep.subr.mxu0 0.0
        %7555 = vmatpush1.msra.mxu0 0.0
        %7556 = vmatprep.subr.mxu0 0.0
        %7557 = vmatpush1.msra.mxu0 0.0
        %7558 = vmatprep.subr.mxu0 0.0
        %7559 = vmatpush1.msra.mxu0 0.0
        %7560 = vmatprep.subr.mxu0 0.0
        %7561 = vmatpush1.msra.mxu0 0.0
        %7562 = vmatprep.subr.mxu0 0.0
        %v7563 = vand.u32 %v7528, 4294901760
        %7564 = vmatpush1.msra.mxu0 %v7563
        %7565 = vmatprep.subr.mxu0 0.0
        %7566 = vmatpush2.msra.mxu0 0.0
        %7567 = vmatprep.subr.mxu0 0.0
        %7568 = vmatpush2.msra.mxu0 0.0
        %7569 = vmatprep.subr.mxu0 0.0
        %7570 = vmatpush2.msra.mxu0 0.0
        %7571 = vmatprep.subr.mxu0 0.0
        %7572 = vmatpush2.msra.mxu0 0.0
        %7573 = vmatprep.subr.mxu0 0.0
        %7574 = vmatpush2.msra.mxu0 0.0
        %7575 = vmatprep.subr.mxu0 0.0
        %7576 = vmatpush2.msra.mxu0 0.0
        %7577 = vmatprep.subr.mxu0 0.0
        %7578 = vmatpush2.msra.mxu0 0.0
        %7579 = vmatprep.subr.mxu0 0.0
        %7580 = vmatpush2.msra.mxu0 0.0
        %7581 = vmatprep.subr.mxu0 0.0
        %7582 = vmatpush2.msra.mxu0 0.0
        %7583 = vmatprep.subr.mxu0 0.0
        %7584 = vmatpush2.msra.mxu0 0.0
        %7585 = vmatprep.subr.mxu0 0.0
        %7586 = vmatpush2.msra.mxu0 0.0
        %7587 = vmatprep.subr.mxu0 0.0
        %7588 = vmatpush2.msra.mxu0 0.0
        %7589 = vmatprep.subr.mxu0 0.0
        %7590 = vmatpush2.msra.mxu0 0.0
        %7591 = vmatprep.subr.mxu0 0.0
        %7592 = vmatpush2.msra.mxu0 0.0
        %7593 = vmatprep.subr.mxu0 0.0
        %7594 = vmatpush2.msra.mxu0 0.0
        %7595 = vmatprep.subr.mxu0 0.0
        %7596 = vmatpush2.msra.mxu0 0.0
        %7597 = vmatprep.mubr.f32.mxu0 0.0
        %v7598 = vand.u32 %v7530, 4294901760
        %v7599 = vsub.f32 %v7530, %v7598
        %v7600 = vand.u32 %v7599, 4294901760
        %v7601 = vsub.f32 %v7599, %v7600
        %v7602 = vand.u32 %v7601, 4294901760
        %7603 = vmatmul.mubr.f32.gmra.mxu0 %v7602
        %v7604 = vpop.f32.mrf.mxu0
        %v7605 = vadd.f32 0.0, %v7604
        %v7606 = vpop.f32.mrf.mxu0
        %7607 = vdwg.mxu0
        %7608 = vmatprep.subr.mxu0 0.0
        %7609 = vmatpush1.msra.mxu0 0.0
        %7610 = vmatprep.subr.mxu0 0.0
        %7611 = vmatpush1.msra.mxu0 0.0
        %7612 = vmatprep.subr.mxu0 0.0
        %7613 = vmatpush1.msra.mxu0 0.0
        %7614 = vmatprep.subr.mxu0 0.0
        %7615 = vmatpush1.msra.mxu0 0.0
        %7616 = vmatprep.subr.mxu0 0.0
        %7617 = vmatpush1.msra.mxu0 0.0
        %7618 = vmatprep.subr.mxu0 0.0
        %7619 = vmatpush1.msra.mxu0 0.0
        %7620 = vmatprep.subr.mxu0 0.0
        %7621 = vmatpush1.msra.mxu0 0.0
        %7622 = vmatprep.subr.mxu0 0.0
        %7623 = vmatpush1.msra.mxu0 0.0
        %7624 = vmatprep.subr.mxu0 0.0
        %7625 = vmatpush1.msra.mxu0 0.0
        %7626 = vmatprep.subr.mxu0 0.0
        %7627 = vmatpush1.msra.mxu0 0.0
        %7628 = vmatprep.subr.mxu0 0.0
        %7629 = vmatpush1.msra.mxu0 0.0
        %7630 = vmatprep.subr.mxu0 0.0
        %7631 = vmatpush1.msra.mxu0 0.0
        %7632 = vmatprep.subr.mxu0 0.0
        %7633 = vmatpush1.msra.mxu0 0.0
        %7634 = vmatprep.subr.mxu0 0.0
        %7635 = vmatpush1.msra.mxu0 0.0
        %7636 = vmatprep.subr.mxu0 0.0
        %7637 = vmatpush1.msra.mxu0 0.0
        %7638 = vmatprep.subr.mxu0 0.0
        %v7639 = vand.u32 %v7528, 4294901760
        %v7640 = vsub.f32 %v7528, %v7639
        %v7641 = vand.u32 %v7640, 4294901760
        %v7642 = vsub.f32 %v7640, %v7641
        %v7643 = vand.u32 %v7642, 4294901760
        %7644 = vmatpush1.msra.mxu0 %v7643
        %7645 = vmatprep.subr.mxu0 0.0
        %7646 = vmatpush2.msra.mxu0 0.0
        %7647 = vmatprep.subr.mxu0 0.0
        %7648 = vmatpush2.msra.mxu0 0.0
        %7649 = vmatprep.subr.mxu0 0.0
        %7650 = vmatpush2.msra.mxu0 0.0
        %7651 = vmatprep.subr.mxu0 0.0
        %7652 = vmatpush2.msra.mxu0 0.0
        %7653 = vmatprep.subr.mxu0 0.0
        %7654 = vmatpush2.msra.mxu0 0.0
        %7655 = vmatprep.subr.mxu0 0.0
        %7656 = vmatpush2.msra.mxu0 0.0
        %7657 = vmatprep.subr.mxu0 0.0
        %7658 = vmatpush2.msra.mxu0 0.0
        %7659 = vmatprep.subr.mxu0 0.0
        %7660 = vmatpush2.msra.mxu0 0.0
        %7661 = vmatprep.subr.mxu0 0.0
        %7662 = vmatpush2.msra.mxu0 0.0
        %7663 = vmatprep.subr.mxu0 0.0
        %7664 = vmatpush2.msra.mxu0 0.0
        %7665 = vmatprep.subr.mxu0 0.0
        %7666 = vmatpush2.msra.mxu0 0.0
        %7667 = vmatprep.subr.mxu0 0.0
        %7668 = vmatpush2.msra.mxu0 0.0
        %7669 = vmatprep.subr.mxu0 0.0
        %7670 = vmatpush2.msra.mxu0 0.0
        %7671 = vmatprep.subr.mxu0 0.0
        %7672 = vmatpush2.msra.mxu0 0.0
        %7673 = vmatprep.subr.mxu0 0.0
        %7674 = vmatpush2.msra.mxu0 0.0
        %7675 = vmatprep.subr.mxu0 0.0
        %7676 = vmatpush2.msra.mxu0 0.0
        %7677 = vmatprep.mubr.f32.mxu0 0.0
        %v7678 = vand.u32 %v7530, 4294901760
        %7679 = vmatmul.mubr.f32.gmra.mxu0 %v7678
        %v7680 = vpop.f32.mrf.mxu0
        %v7681 = vadd.f32 %v7605, %v7680
        %v7682 = vpop.f32.mrf.mxu0
        %7683 = vdwg.mxu0
        %7684 = vmatprep.subr.mxu0 0.0
        %7685 = vmatpush1.msra.mxu0 0.0
        %7686 = vmatprep.subr.mxu0 0.0
        %7687 = vmatpush1.msra.mxu0 0.0
        %7688 = vmatprep.subr.mxu0 0.0
        %7689 = vmatpush1.msra.mxu0 0.0
        %7690 = vmatprep.subr.mxu0 0.0
        %7691 = vmatpush1.msra.mxu0 0.0
        %7692 = vmatprep.subr.mxu0 0.0
        %7693 = vmatpush1.msra.mxu0 0.0
        %7694 = vmatprep.subr.mxu0 0.0
        %7695 = vmatpush1.msra.mxu0 0.0
        %7696 = vmatprep.subr.mxu0 0.0
        %7697 = vmatpush1.msra.mxu0 0.0
        %7698 = vmatprep.subr.mxu0 0.0
        %7699 = vmatpush1.msra.mxu0 0.0
        %7700 = vmatprep.subr.mxu0 0.0
        %7701 = vmatpush1.msra.mxu0 0.0
        %7702 = vmatprep.subr.mxu0 0.0
        %7703 = vmatpush1.msra.mxu0 0.0
        %7704 = vmatprep.subr.mxu0 0.0
        %7705 = vmatpush1.msra.mxu0 0.0
        %7706 = vmatprep.subr.mxu0 0.0
        %7707 = vmatpush1.msra.mxu0 0.0
        %7708 = vmatprep.subr.mxu0 0.0
        %7709 = vmatpush1.msra.mxu0 0.0
        %7710 = vmatprep.subr.mxu0 0.0
        %7711 = vmatpush1.msra.mxu0 0.0
        %7712 = vmatprep.subr.mxu0 0.0
        %7713 = vmatpush1.msra.mxu0 0.0
        %7714 = vmatprep.subr.mxu0 0.0
        %v7715 = vand.u32 %v7528, 4294901760
        %v7716 = vsub.f32 %v7528, %v7715
        %7717 = vmatpush1.msra.mxu0 %v7716
        %7718 = vmatprep.subr.mxu0 0.0
        %7719 = vmatpush2.msra.mxu0 0.0
        %7720 = vmatprep.subr.mxu0 0.0
        %7721 = vmatpush2.msra.mxu0 0.0
        %7722 = vmatprep.subr.mxu0 0.0
        %7723 = vmatpush2.msra.mxu0 0.0
        %7724 = vmatprep.subr.mxu0 0.0
        %7725 = vmatpush2.msra.mxu0 0.0
        %7726 = vmatprep.subr.mxu0 0.0
        %7727 = vmatpush2.msra.mxu0 0.0
        %7728 = vmatprep.subr.mxu0 0.0
        %7729 = vmatpush2.msra.mxu0 0.0
        %7730 = vmatprep.subr.mxu0 0.0
        %7731 = vmatpush2.msra.mxu0 0.0
        %7732 = vmatprep.subr.mxu0 0.0
        %7733 = vmatpush2.msra.mxu0 0.0
        %7734 = vmatprep.subr.mxu0 0.0
        %7735 = vmatpush2.msra.mxu0 0.0
        %7736 = vmatprep.subr.mxu0 0.0
        %7737 = vmatpush2.msra.mxu0 0.0
        %7738 = vmatprep.subr.mxu0 0.0
        %7739 = vmatpush2.msra.mxu0 0.0
        %7740 = vmatprep.subr.mxu0 0.0
        %7741 = vmatpush2.msra.mxu0 0.0
        %7742 = vmatprep.subr.mxu0 0.0
        %7743 = vmatpush2.msra.mxu0 0.0
        %7744 = vmatprep.subr.mxu0 0.0
        %7745 = vmatpush2.msra.mxu0 0.0
        %7746 = vmatprep.subr.mxu0 0.0
        %7747 = vmatpush2.msra.mxu0 0.0
        %7748 = vmatprep.subr.mxu0 0.0
        %7749 = vmatpush2.msra.mxu0 0.0
        %7750 = vmatprep.mubr.f32.mxu0 0.0
        %v7751 = vand.u32 %v7530, 4294901760
        %v7752 = vsub.f32 %v7530, %v7751
        %7753 = vmatmul.mubr.f32.gmra.mxu0 %v7752
        %v7754 = vpop.f32.mrf.mxu0
        %v7755 = vadd.f32 %v7681, %v7754
        %v7756 = vpop.f32.mrf.mxu0
        %7757 = vdwg.mxu0
        %7758 = vmatprep.subr.mxu0 0.0
        %7759 = vmatpush1.msra.mxu0 0.0
        %7760 = vmatprep.subr.mxu0 0.0
        %7761 = vmatpush1.msra.mxu0 0.0
        %7762 = vmatprep.subr.mxu0 0.0
        %7763 = vmatpush1.msra.mxu0 0.0
        %7764 = vmatprep.subr.mxu0 0.0
        %7765 = vmatpush1.msra.mxu0 0.0
        %7766 = vmatprep.subr.mxu0 0.0
        %7767 = vmatpush1.msra.mxu0 0.0
        %7768 = vmatprep.subr.mxu0 0.0
        %7769 = vmatpush1.msra.mxu0 0.0
        %7770 = vmatprep.subr.mxu0 0.0
        %7771 = vmatpush1.msra.mxu0 0.0
        %7772 = vmatprep.subr.mxu0 0.0
        %7773 = vmatpush1.msra.mxu0 0.0
        %7774 = vmatprep.subr.mxu0 0.0
        %7775 = vmatpush1.msra.mxu0 0.0
        %7776 = vmatprep.subr.mxu0 0.0
        %7777 = vmatpush1.msra.mxu0 0.0
        %7778 = vmatprep.subr.mxu0 0.0
        %7779 = vmatpush1.msra.mxu0 0.0
        %7780 = vmatprep.subr.mxu0 0.0
        %7781 = vmatpush1.msra.mxu0 0.0
        %7782 = vmatprep.subr.mxu0 0.0
        %7783 = vmatpush1.msra.mxu0 0.0
        %7784 = vmatprep.subr.mxu0 0.0
        %7785 = vmatpush1.msra.mxu0 0.0
        %7786 = vmatprep.subr.mxu0 0.0
        %7787 = vmatpush1.msra.mxu0 0.0
        %7788 = vmatprep.subr.mxu0 0.0
        %v7789 = vand.u32 %v7528, 4294901760
        %7790 = vmatpush1.msra.mxu0 %v7789
        %7791 = vmatprep.subr.mxu0 0.0
        %7792 = vmatpush2.msra.mxu0 0.0
        %7793 = vmatprep.subr.mxu0 0.0
        %7794 = vmatpush2.msra.mxu0 0.0
        %7795 = vmatprep.subr.mxu0 0.0
        %7796 = vmatpush2.msra.mxu0 0.0
        %7797 = vmatprep.subr.mxu0 0.0
        %7798 = vmatpush2.msra.mxu0 0.0
        %7799 = vmatprep.subr.mxu0 0.0
        %7800 = vmatpush2.msra.mxu0 0.0
        %7801 = vmatprep.subr.mxu0 0.0
        %7802 = vmatpush2.msra.mxu0 0.0
        %7803 = vmatprep.subr.mxu0 0.0
        %7804 = vmatpush2.msra.mxu0 0.0
        %7805 = vmatprep.subr.mxu0 0.0
        %7806 = vmatpush2.msra.mxu0 0.0
        %7807 = vmatprep.subr.mxu0 0.0
        %7808 = vmatpush2.msra.mxu0 0.0
        %7809 = vmatprep.subr.mxu0 0.0
        %7810 = vmatpush2.msra.mxu0 0.0
        %7811 = vmatprep.subr.mxu0 0.0
        %7812 = vmatpush2.msra.mxu0 0.0
        %7813 = vmatprep.subr.mxu0 0.0
        %7814 = vmatpush2.msra.mxu0 0.0
        %7815 = vmatprep.subr.mxu0 0.0
        %7816 = vmatpush2.msra.mxu0 0.0
        %7817 = vmatprep.subr.mxu0 0.0
        %7818 = vmatpush2.msra.mxu0 0.0
        %7819 = vmatprep.subr.mxu0 0.0
        %7820 = vmatpush2.msra.mxu0 0.0
        %7821 = vmatprep.subr.mxu0 0.0
        %7822 = vmatpush2.msra.mxu0 0.0
        %7823 = vmatprep.mubr.f32.mxu0 0.0
        %v7824 = vand.u32 %v7530, 4294901760
        %v7825 = vsub.f32 %v7530, %v7824
        %v7826 = vand.u32 %v7825, 4294901760
        %7827 = vmatmul.mubr.f32.gmra.mxu0 %v7826
        %v7828 = vpop.f32.mrf.mxu0
        %v7829 = vadd.f32 %v7755, %v7828
        %v7830 = vpop.f32.mrf.mxu0
        %7831 = vdwg.mxu0
        %7832 = vmatprep.subr.mxu0 0.0
        %7833 = vmatpush1.msra.mxu0 0.0
        %7834 = vmatprep.subr.mxu0 0.0
        %7835 = vmatpush1.msra.mxu0 0.0
        %7836 = vmatprep.subr.mxu0 0.0
        %7837 = vmatpush1.msra.mxu0 0.0
        %7838 = vmatprep.subr.mxu0 0.0
        %7839 = vmatpush1.msra.mxu0 0.0
        %7840 = vmatprep.subr.mxu0 0.0
        %7841 = vmatpush1.msra.mxu0 0.0
        %7842 = vmatprep.subr.mxu0 0.0
        %7843 = vmatpush1.msra.mxu0 0.0
        %7844 = vmatprep.subr.mxu0 0.0
        %7845 = vmatpush1.msra.mxu0 0.0
        %7846 = vmatprep.subr.mxu0 0.0
        %7847 = vmatpush1.msra.mxu0 0.0
        %7848 = vmatprep.subr.mxu0 0.0
        %7849 = vmatpush1.msra.mxu0 0.0
        %7850 = vmatprep.subr.mxu0 0.0
        %7851 = vmatpush1.msra.mxu0 0.0
        %7852 = vmatprep.subr.mxu0 0.0
        %7853 = vmatpush1.msra.mxu0 0.0
        %7854 = vmatprep.subr.mxu0 0.0
        %7855 = vmatpush1.msra.mxu0 0.0
        %7856 = vmatprep.subr.mxu0 0.0
        %7857 = vmatpush1.msra.mxu0 0.0
        %7858 = vmatprep.subr.mxu0 0.0
        %7859 = vmatpush1.msra.mxu0 0.0
        %7860 = vmatprep.subr.mxu0 0.0
        %7861 = vmatpush1.msra.mxu0 0.0
        %7862 = vmatprep.subr.mxu0 0.0
        %v7863 = vand.u32 %v7528, 4294901760
        %v7864 = vsub.f32 %v7528, %v7863
        %v7865 = vand.u32 %v7864, 4294901760
        %7866 = vmatpush1.msra.mxu0 %v7865
        %7867 = vmatprep.subr.mxu0 0.0
        %7868 = vmatpush2.msra.mxu0 0.0
        %7869 = vmatprep.subr.mxu0 0.0
        %7870 = vmatpush2.msra.mxu0 0.0
        %7871 = vmatprep.subr.mxu0 0.0
        %7872 = vmatpush2.msra.mxu0 0.0
        %7873 = vmatprep.subr.mxu0 0.0
        %7874 = vmatpush2.msra.mxu0 0.0
        %7875 = vmatprep.subr.mxu0 0.0
        %7876 = vmatpush2.msra.mxu0 0.0
        %7877 = vmatprep.subr.mxu0 0.0
        %7878 = vmatpush2.msra.mxu0 0.0
        %7879 = vmatprep.subr.mxu0 0.0
        %7880 = vmatpush2.msra.mxu0 0.0
        %7881 = vmatprep.subr.mxu0 0.0
        %7882 = vmatpush2.msra.mxu0 0.0
        %7883 = vmatprep.subr.mxu0 0.0
        %7884 = vmatpush2.msra.mxu0 0.0
        %7885 = vmatprep.subr.mxu0 0.0
        %7886 = vmatpush2.msra.mxu0 0.0
        %7887 = vmatprep.subr.mxu0 0.0
        %7888 = vmatpush2.msra.mxu0 0.0
        %7889 = vmatprep.subr.mxu0 0.0
        %7890 = vmatpush2.msra.mxu0 0.0
        %7891 = vmatprep.subr.mxu0 0.0
        %7892 = vmatpush2.msra.mxu0 0.0
        %7893 = vmatprep.subr.mxu0 0.0
        %7894 = vmatpush2.msra.mxu0 0.0
        %7895 = vmatprep.subr.mxu0 0.0
        %7896 = vmatpush2.msra.mxu0 0.0
        %7897 = vmatprep.subr.mxu0 0.0
        %7898 = vmatpush2.msra.mxu0 0.0
        %7899 = vmatprep.mubr.f32.mxu0 0.0
        %v7900 = vand.u32 %v7530, 4294901760
        %7901 = vmatmul.mubr.f32.gmra.mxu0 %v7900
        %v7902 = vpop.f32.mrf.mxu0
        %v7903 = vadd.f32 %v7829, %v7902
        %v7904 = vpop.f32.mrf.mxu0
        %7905 = vdwg.mxu0
        %7906 = vmatprep.subr.mxu0 0.0
        %7907 = vmatpush1.msra.mxu0 0.0
        %7908 = vmatprep.subr.mxu0 0.0
        %7909 = vmatpush1.msra.mxu0 0.0
        %7910 = vmatprep.subr.mxu0 0.0
        %7911 = vmatpush1.msra.mxu0 0.0
        %7912 = vmatprep.subr.mxu0 0.0
        %7913 = vmatpush1.msra.mxu0 0.0
        %7914 = vmatprep.subr.mxu0 0.0
        %7915 = vmatpush1.msra.mxu0 0.0
        %7916 = vmatprep.subr.mxu0 0.0
        %7917 = vmatpush1.msra.mxu0 0.0
        %7918 = vmatprep.subr.mxu0 0.0
        %7919 = vmatpush1.msra.mxu0 0.0
        %7920 = vmatprep.subr.mxu0 0.0
        %7921 = vmatpush1.msra.mxu0 0.0
        %7922 = vmatprep.subr.mxu0 0.0
        %7923 = vmatpush1.msra.mxu0 0.0
        %7924 = vmatprep.subr.mxu0 0.0
        %7925 = vmatpush1.msra.mxu0 0.0
        %7926 = vmatprep.subr.mxu0 0.0
        %7927 = vmatpush1.msra.mxu0 0.0
        %7928 = vmatprep.subr.mxu0 0.0
        %7929 = vmatpush1.msra.mxu0 0.0
        %7930 = vmatprep.subr.mxu0 0.0
        %7931 = vmatpush1.msra.mxu0 0.0
        %7932 = vmatprep.subr.mxu0 0.0
        %7933 = vmatpush1.msra.mxu0 0.0
        %7934 = vmatprep.subr.mxu0 0.0
        %7935 = vmatpush1.msra.mxu0 0.0
        %7936 = vmatprep.subr.mxu0 0.0
        %v7937 = vand.u32 %v7528, 4294901760
        %7938 = vmatpush1.msra.mxu0 %v7937
        %7939 = vmatprep.subr.mxu0 0.0
        %7940 = vmatpush2.msra.mxu0 0.0
        %7941 = vmatprep.subr.mxu0 0.0
        %7942 = vmatpush2.msra.mxu0 0.0
        %7943 = vmatprep.subr.mxu0 0.0
        %7944 = vmatpush2.msra.mxu0 0.0
        %7945 = vmatprep.subr.mxu0 0.0
        %7946 = vmatpush2.msra.mxu0 0.0
        %7947 = vmatprep.subr.mxu0 0.0
        %7948 = vmatpush2.msra.mxu0 0.0
        %7949 = vmatprep.subr.mxu0 0.0
        %7950 = vmatpush2.msra.mxu0 0.0
        %7951 = vmatprep.subr.mxu0 0.0
        %7952 = vmatpush2.msra.mxu0 0.0
        %7953 = vmatprep.subr.mxu0 0.0
        %7954 = vmatpush2.msra.mxu0 0.0
        %7955 = vmatprep.subr.mxu0 0.0
        %7956 = vmatpush2.msra.mxu0 0.0
        %7957 = vmatprep.subr.mxu0 0.0
        %7958 = vmatpush2.msra.mxu0 0.0
        %7959 = vmatprep.subr.mxu0 0.0
        %7960 = vmatpush2.msra.mxu0 0.0
        %7961 = vmatprep.subr.mxu0 0.0
        %7962 = vmatpush2.msra.mxu0 0.0
        %7963 = vmatprep.subr.mxu0 0.0
        %7964 = vmatpush2.msra.mxu0 0.0
        %7965 = vmatprep.subr.mxu0 0.0
        %7966 = vmatpush2.msra.mxu0 0.0
        %7967 = vmatprep.subr.mxu0 0.0
        %7968 = vmatpush2.msra.mxu0 0.0
        %7969 = vmatprep.subr.mxu0 0.0
        %7970 = vmatpush2.msra.mxu0 0.0
        %7971 = vmatprep.mubr.f32.mxu0 0.0
        %v7972 = vand.u32 %v7530, 4294901760
        %7973 = vmatmul.mubr.f32.gmra.mxu0 %v7972
        %v7974 = vpop.f32.mrf.mxu0
        %v7975 = vadd.f32 %v7903, %v7974
        %v7976 = vpop.f32.mrf.mxu0
        %7977 = vdwg.mxu0
        %v7978 = vadd.f32 %v5119, %v7975
        %s7979 = scalar_lea.vmem %s3, 96
        %v7980 = vld [vmem:[%s7979] sm:$0xff]
        %v7981 = vld [vmem:[%s7979 + $0x8] sm:$0xff]
        %v7982 = vld [vmem:[%s7979 + $0x10] sm:$0xff]
        %v7983 = vld [vmem:[%s7979 + $0x18] sm:$0xff]
        %7984 = vmatprep.subr.mxu0 0.0
        %7985 = vmatpush1.msra.mxu0 0.0
        %7986 = vmatprep.subr.mxu0 0.0
        %7987 = vmatpush1.msra.mxu0 0.0
        %7988 = vmatprep.subr.mxu0 0.0
        %7989 = vmatpush1.msra.mxu0 0.0
        %7990 = vmatprep.subr.mxu0 0.0
        %7991 = vmatpush1.msra.mxu0 0.0
        %7992 = vmatprep.subr.mxu0 0.0
        %7993 = vmatpush1.msra.mxu0 0.0
        %7994 = vmatprep.subr.mxu0 0.0
        %7995 = vmatpush1.msra.mxu0 0.0
        %7996 = vmatprep.subr.mxu0 0.0
        %7997 = vmatpush1.msra.mxu0 0.0
        %7998 = vmatprep.subr.mxu0 0.0
        %7999 = vmatpush1.msra.mxu0 0.0
        %8000 = vmatprep.subr.mxu0 0.0
        %8001 = vmatpush1.msra.mxu0 0.0
        %8002 = vmatprep.subr.mxu0 0.0
        %8003 = vmatpush1.msra.mxu0 0.0
        %8004 = vmatprep.subr.mxu0 0.0
        %8005 = vmatpush1.msra.mxu0 0.0
        %8006 = vmatprep.subr.mxu0 0.0
        %8007 = vmatpush1.msra.mxu0 0.0
        %8008 = vmatprep.subr.mxu0 0.0
        %v8009 = vand.u32 %v7983, 4294901760
        %8010 = vmatpush1.msra.mxu0 %v8009
        %8011 = vmatprep.subr.mxu0 0.0
        %v8012 = vand.u32 %v7982, 4294901760
        %8013 = vmatpush1.msra.mxu0 %v8012
        %8014 = vmatprep.subr.mxu0 0.0
        %v8015 = vand.u32 %v7981, 4294901760
        %8016 = vmatpush1.msra.mxu0 %v8015
        %8017 = vmatprep.subr.mxu0 0.0
        %v8018 = vand.u32 %v7980, 4294901760
        %8019 = vmatpush1.msra.mxu0 %v8018
        %8020 = vmatprep.subr.mxu0 0.0
        %8021 = vmatpush2.msra.mxu0 0.0
        %8022 = vmatprep.subr.mxu0 0.0
        %8023 = vmatpush2.msra.mxu0 0.0
        %8024 = vmatprep.subr.mxu0 0.0
        %8025 = vmatpush2.msra.mxu0 0.0
        %8026 = vmatprep.subr.mxu0 0.0
        %8027 = vmatpush2.msra.mxu0 0.0
        %8028 = vmatprep.subr.mxu0 0.0
        %8029 = vmatpush2.msra.mxu0 0.0
        %8030 = vmatprep.subr.mxu0 0.0
        %8031 = vmatpush2.msra.mxu0 0.0
        %8032 = vmatprep.subr.mxu0 0.0
        %8033 = vmatpush2.msra.mxu0 0.0
        %8034 = vmatprep.subr.mxu0 0.0
        %8035 = vmatpush2.msra.mxu0 0.0
        %8036 = vmatprep.subr.mxu0 0.0
        %8037 = vmatpush2.msra.mxu0 0.0
        %8038 = vmatprep.subr.mxu0 0.0
        %8039 = vmatpush2.msra.mxu0 0.0
        %8040 = vmatprep.subr.mxu0 0.0
        %8041 = vmatpush2.msra.mxu0 0.0
        %8042 = vmatprep.subr.mxu0 0.0
        %8043 = vmatpush2.msra.mxu0 0.0
        %8044 = vmatprep.subr.mxu0 0.0
        %8045 = vmatpush2.msra.mxu0 0.0
        %8046 = vmatprep.subr.mxu0 0.0
        %8047 = vmatpush2.msra.mxu0 0.0
        %8048 = vmatprep.subr.mxu0 0.0
        %8049 = vmatpush2.msra.mxu0 0.0
        %8050 = vmatprep.subr.mxu0 0.0
        %8051 = vmatpush2.msra.mxu0 0.0
        %8052 = vmatprep.mubr.f32.mxu0 0.0
        %v8053 = vand.u32 %v408, 4294901760
        %v8054 = vsub.f32 %v408, %v8053
        %v8055 = vand.u32 %v8054, 4294901760
        %v8056 = vsub.f32 %v8054, %v8055
        %v8057 = vand.u32 %v8056, 4294901760
        %8058 = vmatmul.mubr.f32.gmra.mxu0 %v8057
        %v8059 = vpop.f32.mrf.mxu0
        %v8060 = vadd.f32 0.0, %v8059
        %v8061 = vpop.f32.mrf.mxu0
        %8062 = vdwg.mxu0
        %8063 = vmatprep.subr.mxu0 0.0
        %8064 = vmatpush1.msra.mxu0 0.0
        %8065 = vmatprep.subr.mxu0 0.0
        %8066 = vmatpush1.msra.mxu0 0.0
        %8067 = vmatprep.subr.mxu0 0.0
        %8068 = vmatpush1.msra.mxu0 0.0
        %8069 = vmatprep.subr.mxu0 0.0
        %8070 = vmatpush1.msra.mxu0 0.0
        %8071 = vmatprep.subr.mxu0 0.0
        %8072 = vmatpush1.msra.mxu0 0.0
        %8073 = vmatprep.subr.mxu0 0.0
        %8074 = vmatpush1.msra.mxu0 0.0
        %8075 = vmatprep.subr.mxu0 0.0
        %8076 = vmatpush1.msra.mxu0 0.0
        %8077 = vmatprep.subr.mxu0 0.0
        %8078 = vmatpush1.msra.mxu0 0.0
        %8079 = vmatprep.subr.mxu0 0.0
        %8080 = vmatpush1.msra.mxu0 0.0
        %8081 = vmatprep.subr.mxu0 0.0
        %8082 = vmatpush1.msra.mxu0 0.0
        %8083 = vmatprep.subr.mxu0 0.0
        %8084 = vmatpush1.msra.mxu0 0.0
        %8085 = vmatprep.subr.mxu0 0.0
        %8086 = vmatpush1.msra.mxu0 0.0
        %8087 = vmatprep.subr.mxu0 0.0
        %v8088 = vand.u32 %v7983, 4294901760
        %v8089 = vsub.f32 %v7983, %v8088
        %v8090 = vand.u32 %v8089, 4294901760
        %v8091 = vsub.f32 %v8089, %v8090
        %v8092 = vand.u32 %v8091, 4294901760
        %8093 = vmatpush1.msra.mxu0 %v8092
        %8094 = vmatprep.subr.mxu0 0.0
        %v8095 = vand.u32 %v7982, 4294901760
        %v8096 = vsub.f32 %v7982, %v8095
        %v8097 = vand.u32 %v8096, 4294901760
        %v8098 = vsub.f32 %v8096, %v8097
        %v8099 = vand.u32 %v8098, 4294901760
        %8100 = vmatpush1.msra.mxu0 %v8099
        %8101 = vmatprep.subr.mxu0 0.0
        %v8102 = vand.u32 %v7981, 4294901760
        %v8103 = vsub.f32 %v7981, %v8102
        %v8104 = vand.u32 %v8103, 4294901760
        %v8105 = vsub.f32 %v8103, %v8104
        %v8106 = vand.u32 %v8105, 4294901760
        %8107 = vmatpush1.msra.mxu0 %v8106
        %8108 = vmatprep.subr.mxu0 0.0
        %v8109 = vand.u32 %v7980, 4294901760
        %v8110 = vsub.f32 %v7980, %v8109
        %v8111 = vand.u32 %v8110, 4294901760
        %v8112 = vsub.f32 %v8110, %v8111
        %v8113 = vand.u32 %v8112, 4294901760
        %8114 = vmatpush1.msra.mxu0 %v8113
        %8115 = vmatprep.subr.mxu0 0.0
        %8116 = vmatpush2.msra.mxu0 0.0
        %8117 = vmatprep.subr.mxu0 0.0
        %8118 = vmatpush2.msra.mxu0 0.0
        %8119 = vmatprep.subr.mxu0 0.0
        %8120 = vmatpush2.msra.mxu0 0.0
        %8121 = vmatprep.subr.mxu0 0.0
        %8122 = vmatpush2.msra.mxu0 0.0
        %8123 = vmatprep.subr.mxu0 0.0
        %8124 = vmatpush2.msra.mxu0 0.0
        %8125 = vmatprep.subr.mxu0 0.0
        %8126 = vmatpush2.msra.mxu0 0.0
        %8127 = vmatprep.subr.mxu0 0.0
        %8128 = vmatpush2.msra.mxu0 0.0
        %8129 = vmatprep.subr.mxu0 0.0
        %8130 = vmatpush2.msra.mxu0 0.0
        %8131 = vmatprep.subr.mxu0 0.0
        %8132 = vmatpush2.msra.mxu0 0.0
        %8133 = vmatprep.subr.mxu0 0.0
        %8134 = vmatpush2.msra.mxu0 0.0
        %8135 = vmatprep.subr.mxu0 0.0
        %8136 = vmatpush2.msra.mxu0 0.0
        %8137 = vmatprep.subr.mxu0 0.0
        %8138 = vmatpush2.msra.mxu0 0.0
        %8139 = vmatprep.subr.mxu0 0.0
        %8140 = vmatpush2.msra.mxu0 0.0
        %8141 = vmatprep.subr.mxu0 0.0
        %8142 = vmatpush2.msra.mxu0 0.0
        %8143 = vmatprep.subr.mxu0 0.0
        %8144 = vmatpush2.msra.mxu0 0.0
        %8145 = vmatprep.subr.mxu0 0.0
        %8146 = vmatpush2.msra.mxu0 0.0
        %8147 = vmatprep.mubr.f32.mxu0 0.0
        %v8148 = vand.u32 %v408, 4294901760
        %8149 = vmatmul.mubr.f32.gmra.mxu0 %v8148
        %v8150 = vpop.f32.mrf.mxu0
        %v8151 = vadd.f32 %v8060, %v8150
        %v8152 = vpop.f32.mrf.mxu0
        %8153 = vdwg.mxu0
        %8154 = vmatprep.subr.mxu0 0.0
        %8155 = vmatpush1.msra.mxu0 0.0
        %8156 = vmatprep.subr.mxu0 0.0
        %8157 = vmatpush1.msra.mxu0 0.0
        %8158 = vmatprep.subr.mxu0 0.0
        %8159 = vmatpush1.msra.mxu0 0.0
        %8160 = vmatprep.subr.mxu0 0.0
        %8161 = vmatpush1.msra.mxu0 0.0
        %8162 = vmatprep.subr.mxu0 0.0
        %8163 = vmatpush1.msra.mxu0 0.0
        %8164 = vmatprep.subr.mxu0 0.0
        %8165 = vmatpush1.msra.mxu0 0.0
        %8166 = vmatprep.subr.mxu0 0.0
        %8167 = vmatpush1.msra.mxu0 0.0
        %8168 = vmatprep.subr.mxu0 0.0
        %8169 = vmatpush1.msra.mxu0 0.0
        %8170 = vmatprep.subr.mxu0 0.0
        %8171 = vmatpush1.msra.mxu0 0.0
        %8172 = vmatprep.subr.mxu0 0.0
        %8173 = vmatpush1.msra.mxu0 0.0
        %8174 = vmatprep.subr.mxu0 0.0
        %8175 = vmatpush1.msra.mxu0 0.0
        %8176 = vmatprep.subr.mxu0 0.0
        %8177 = vmatpush1.msra.mxu0 0.0
        %8178 = vmatprep.subr.mxu0 0.0
        %v8179 = vand.u32 %v7983, 4294901760
        %v8180 = vsub.f32 %v7983, %v8179
        %8181 = vmatpush1.msra.mxu0 %v8180
        %8182 = vmatprep.subr.mxu0 0.0
        %v8183 = vand.u32 %v7982, 4294901760
        %v8184 = vsub.f32 %v7982, %v8183
        %8185 = vmatpush1.msra.mxu0 %v8184
        %8186 = vmatprep.subr.mxu0 0.0
        %v8187 = vand.u32 %v7981, 4294901760
        %v8188 = vsub.f32 %v7981, %v8187
        %8189 = vmatpush1.msra.mxu0 %v8188
        %8190 = vmatprep.subr.mxu0 0.0
        %v8191 = vand.u32 %v7980, 4294901760
        %v8192 = vsub.f32 %v7980, %v8191
        %8193 = vmatpush1.msra.mxu0 %v8192
        %8194 = vmatprep.subr.mxu0 0.0
        %8195 = vmatpush2.msra.mxu0 0.0
        %8196 = vmatprep.subr.mxu0 0.0
        %8197 = vmatpush2.msra.mxu0 0.0
        %8198 = vmatprep.subr.mxu0 0.0
        %8199 = vmatpush2.msra.mxu0 0.0
        %8200 = vmatprep.subr.mxu0 0.0
        %8201 = vmatpush2.msra.mxu0 0.0
        %8202 = vmatprep.subr.mxu0 0.0
        %8203 = vmatpush2.msra.mxu0 0.0
        %8204 = vmatprep.subr.mxu0 0.0
        %8205 = vmatpush2.msra.mxu0 0.0
        %8206 = vmatprep.subr.mxu0 0.0
        %8207 = vmatpush2.msra.mxu0 0.0
        %8208 = vmatprep.subr.mxu0 0.0
        %8209 = vmatpush2.msra.mxu0 0.0
        %8210 = vmatprep.subr.mxu0 0.0
        %8211 = vmatpush2.msra.mxu0 0.0
        %8212 = vmatprep.subr.mxu0 0.0
        %8213 = vmatpush2.msra.mxu0 0.0
        %8214 = vmatprep.subr.mxu0 0.0
        %8215 = vmatpush2.msra.mxu0 0.0
        %8216 = vmatprep.subr.mxu0 0.0
        %8217 = vmatpush2.msra.mxu0 0.0
        %8218 = vmatprep.subr.mxu0 0.0
        %8219 = vmatpush2.msra.mxu0 0.0
        %8220 = vmatprep.subr.mxu0 0.0
        %8221 = vmatpush2.msra.mxu0 0.0
        %8222 = vmatprep.subr.mxu0 0.0
        %8223 = vmatpush2.msra.mxu0 0.0
        %8224 = vmatprep.subr.mxu0 0.0
        %8225 = vmatpush2.msra.mxu0 0.0
        %8226 = vmatprep.mubr.f32.mxu0 0.0
        %v8227 = vand.u32 %v408, 4294901760
        %v8228 = vsub.f32 %v408, %v8227
        %8229 = vmatmul.mubr.f32.gmra.mxu0 %v8228
        %v8230 = vpop.f32.mrf.mxu0
        %v8231 = vadd.f32 %v8151, %v8230
        %v8232 = vpop.f32.mrf.mxu0
        %8233 = vdwg.mxu0
        %8234 = vmatprep.subr.mxu0 0.0
        %8235 = vmatpush1.msra.mxu0 0.0
        %8236 = vmatprep.subr.mxu0 0.0
        %8237 = vmatpush1.msra.mxu0 0.0
        %8238 = vmatprep.subr.mxu0 0.0
        %8239 = vmatpush1.msra.mxu0 0.0
        %8240 = vmatprep.subr.mxu0 0.0
        %8241 = vmatpush1.msra.mxu0 0.0
        %8242 = vmatprep.subr.mxu0 0.0
        %8243 = vmatpush1.msra.mxu0 0.0
        %8244 = vmatprep.subr.mxu0 0.0
        %8245 = vmatpush1.msra.mxu0 0.0
        %8246 = vmatprep.subr.mxu0 0.0
        %8247 = vmatpush1.msra.mxu0 0.0
        %8248 = vmatprep.subr.mxu0 0.0
        %8249 = vmatpush1.msra.mxu0 0.0
        %8250 = vmatprep.subr.mxu0 0.0
        %8251 = vmatpush1.msra.mxu0 0.0
        %8252 = vmatprep.subr.mxu0 0.0
        %8253 = vmatpush1.msra.mxu0 0.0
        %8254 = vmatprep.subr.mxu0 0.0
        %8255 = vmatpush1.msra.mxu0 0.0
        %8256 = vmatprep.subr.mxu0 0.0
        %8257 = vmatpush1.msra.mxu0 0.0
        %8258 = vmatprep.subr.mxu0 0.0
        %v8259 = vand.u32 %v7983, 4294901760
        %8260 = vmatpush1.msra.mxu0 %v8259
        %8261 = vmatprep.subr.mxu0 0.0
        %v8262 = vand.u32 %v7982, 4294901760
        %8263 = vmatpush1.msra.mxu0 %v8262
        %8264 = vmatprep.subr.mxu0 0.0
        %v8265 = vand.u32 %v7981, 4294901760
        %8266 = vmatpush1.msra.mxu0 %v8265
        %8267 = vmatprep.subr.mxu0 0.0
        %v8268 = vand.u32 %v7980, 4294901760
        %8269 = vmatpush1.msra.mxu0 %v8268
        %8270 = vmatprep.subr.mxu0 0.0
        %8271 = vmatpush2.msra.mxu0 0.0
        %8272 = vmatprep.subr.mxu0 0.0
        %8273 = vmatpush2.msra.mxu0 0.0
        %8274 = vmatprep.subr.mxu0 0.0
        %8275 = vmatpush2.msra.mxu0 0.0
        %8276 = vmatprep.subr.mxu0 0.0
        %8277 = vmatpush2.msra.mxu0 0.0
        %8278 = vmatprep.subr.mxu0 0.0
        %8279 = vmatpush2.msra.mxu0 0.0
        %8280 = vmatprep.subr.mxu0 0.0
        %8281 = vmatpush2.msra.mxu0 0.0
        %8282 = vmatprep.subr.mxu0 0.0
        %8283 = vmatpush2.msra.mxu0 0.0
        %8284 = vmatprep.subr.mxu0 0.0
        %8285 = vmatpush2.msra.mxu0 0.0
        %8286 = vmatprep.subr.mxu0 0.0
        %8287 = vmatpush2.msra.mxu0 0.0
        %8288 = vmatprep.subr.mxu0 0.0
        %8289 = vmatpush2.msra.mxu0 0.0
        %8290 = vmatprep.subr.mxu0 0.0
        %8291 = vmatpush2.msra.mxu0 0.0
        %8292 = vmatprep.subr.mxu0 0.0
        %8293 = vmatpush2.msra.mxu0 0.0
        %8294 = vmatprep.subr.mxu0 0.0
        %8295 = vmatpush2.msra.mxu0 0.0
        %8296 = vmatprep.subr.mxu0 0.0
        %8297 = vmatpush2.msra.mxu0 0.0
        %8298 = vmatprep.subr.mxu0 0.0
        %8299 = vmatpush2.msra.mxu0 0.0
        %8300 = vmatprep.subr.mxu0 0.0
        %8301 = vmatpush2.msra.mxu0 0.0
        %8302 = vmatprep.mubr.f32.mxu0 0.0
        %v8303 = vand.u32 %v408, 4294901760
        %v8304 = vsub.f32 %v408, %v8303
        %v8305 = vand.u32 %v8304, 4294901760
        %8306 = vmatmul.mubr.f32.gmra.mxu0 %v8305
        %v8307 = vpop.f32.mrf.mxu0
        %v8308 = vadd.f32 %v8231, %v8307
        %v8309 = vpop.f32.mrf.mxu0
        %8310 = vdwg.mxu0
        %8311 = vmatprep.subr.mxu0 0.0
        %8312 = vmatpush1.msra.mxu0 0.0
        %8313 = vmatprep.subr.mxu0 0.0
        %8314 = vmatpush1.msra.mxu0 0.0
        %8315 = vmatprep.subr.mxu0 0.0
        %8316 = vmatpush1.msra.mxu0 0.0
        %8317 = vmatprep.subr.mxu0 0.0
        %8318 = vmatpush1.msra.mxu0 0.0
        %8319 = vmatprep.subr.mxu0 0.0
        %8320 = vmatpush1.msra.mxu0 0.0
        %8321 = vmatprep.subr.mxu0 0.0
        %8322 = vmatpush1.msra.mxu0 0.0
        %8323 = vmatprep.subr.mxu0 0.0
        %8324 = vmatpush1.msra.mxu0 0.0
        %8325 = vmatprep.subr.mxu0 0.0
        %8326 = vmatpush1.msra.mxu0 0.0
        %8327 = vmatprep.subr.mxu0 0.0
        %8328 = vmatpush1.msra.mxu0 0.0
        %8329 = vmatprep.subr.mxu0 0.0
        %8330 = vmatpush1.msra.mxu0 0.0
        %8331 = vmatprep.subr.mxu0 0.0
        %8332 = vmatpush1.msra.mxu0 0.0
        %8333 = vmatprep.subr.mxu0 0.0
        %8334 = vmatpush1.msra.mxu0 0.0
        %8335 = vmatprep.subr.mxu0 0.0
        %v8336 = vand.u32 %v7983, 4294901760
        %v8337 = vsub.f32 %v7983, %v8336
        %v8338 = vand.u32 %v8337, 4294901760
        %8339 = vmatpush1.msra.mxu0 %v8338
        %8340 = vmatprep.subr.mxu0 0.0
        %v8341 = vand.u32 %v7982, 4294901760
        %v8342 = vsub.f32 %v7982, %v8341
        %v8343 = vand.u32 %v8342, 4294901760
        %8344 = vmatpush1.msra.mxu0 %v8343
        %8345 = vmatprep.subr.mxu0 0.0
        %v8346 = vand.u32 %v7981, 4294901760
        %v8347 = vsub.f32 %v7981, %v8346
        %v8348 = vand.u32 %v8347, 4294901760
        %8349 = vmatpush1.msra.mxu0 %v8348
        %8350 = vmatprep.subr.mxu0 0.0
        %v8351 = vand.u32 %v7980, 4294901760
        %v8352 = vsub.f32 %v7980, %v8351
        %v8353 = vand.u32 %v8352, 4294901760
        %8354 = vmatpush1.msra.mxu0 %v8353
        %8355 = vmatprep.subr.mxu0 0.0
        %8356 = vmatpush2.msra.mxu0 0.0
        %8357 = vmatprep.subr.mxu0 0.0
        %8358 = vmatpush2.msra.mxu0 0.0
        %8359 = vmatprep.subr.mxu0 0.0
        %8360 = vmatpush2.msra.mxu0 0.0
        %8361 = vmatprep.subr.mxu0 0.0
        %8362 = vmatpush2.msra.mxu0 0.0
        %8363 = vmatprep.subr.mxu0 0.0
        %8364 = vmatpush2.msra.mxu0 0.0
        %8365 = vmatprep.subr.mxu0 0.0
        %8366 = vmatpush2.msra.mxu0 0.0
        %8367 = vmatprep.subr.mxu0 0.0
        %8368 = vmatpush2.msra.mxu0 0.0
        %8369 = vmatprep.subr.mxu0 0.0
        %8370 = vmatpush2.msra.mxu0 0.0
        %8371 = vmatprep.subr.mxu0 0.0
        %8372 = vmatpush2.msra.mxu0 0.0
        %8373 = vmatprep.subr.mxu0 0.0
        %8374 = vmatpush2.msra.mxu0 0.0
        %8375 = vmatprep.subr.mxu0 0.0
        %8376 = vmatpush2.msra.mxu0 0.0
        %8377 = vmatprep.subr.mxu0 0.0
        %8378 = vmatpush2.msra.mxu0 0.0
        %8379 = vmatprep.subr.mxu0 0.0
        %8380 = vmatpush2.msra.mxu0 0.0
        %8381 = vmatprep.subr.mxu0 0.0
        %8382 = vmatpush2.msra.mxu0 0.0
        %8383 = vmatprep.subr.mxu0 0.0
        %8384 = vmatpush2.msra.mxu0 0.0
        %8385 = vmatprep.subr.mxu0 0.0
        %8386 = vmatpush2.msra.mxu0 0.0
        %8387 = vmatprep.mubr.f32.mxu0 0.0
        %v8388 = vand.u32 %v408, 4294901760
        %8389 = vmatmul.mubr.f32.gmra.mxu0 %v8388
        %v8390 = vpop.f32.mrf.mxu0
        %v8391 = vadd.f32 %v8308, %v8390
        %v8392 = vpop.f32.mrf.mxu0
        %8393 = vdwg.mxu0
        %8394 = vmatprep.subr.mxu0 0.0
        %8395 = vmatpush1.msra.mxu0 0.0
        %8396 = vmatprep.subr.mxu0 0.0
        %8397 = vmatpush1.msra.mxu0 0.0
        %8398 = vmatprep.subr.mxu0 0.0
        %8399 = vmatpush1.msra.mxu0 0.0
        %8400 = vmatprep.subr.mxu0 0.0
        %8401 = vmatpush1.msra.mxu0 0.0
        %8402 = vmatprep.subr.mxu0 0.0
        %8403 = vmatpush1.msra.mxu0 0.0
        %8404 = vmatprep.subr.mxu0 0.0
        %8405 = vmatpush1.msra.mxu0 0.0
        %8406 = vmatprep.subr.mxu0 0.0
        %8407 = vmatpush1.msra.mxu0 0.0
        %8408 = vmatprep.subr.mxu0 0.0
        %8409 = vmatpush1.msra.mxu0 0.0
        %8410 = vmatprep.subr.mxu0 0.0
        %8411 = vmatpush1.msra.mxu0 0.0
        %8412 = vmatprep.subr.mxu0 0.0
        %8413 = vmatpush1.msra.mxu0 0.0
        %8414 = vmatprep.subr.mxu0 0.0
        %8415 = vmatpush1.msra.mxu0 0.0
        %8416 = vmatprep.subr.mxu0 0.0
        %8417 = vmatpush1.msra.mxu0 0.0
        %8418 = vmatprep.subr.mxu0 0.0
        %v8419 = vand.u32 %v7983, 4294901760
        %8420 = vmatpush1.msra.mxu0 %v8419
        %8421 = vmatprep.subr.mxu0 0.0
        %v8422 = vand.u32 %v7982, 4294901760
        %8423 = vmatpush1.msra.mxu0 %v8422
        %8424 = vmatprep.subr.mxu0 0.0
        %v8425 = vand.u32 %v7981, 4294901760
        %8426 = vmatpush1.msra.mxu0 %v8425
        %8427 = vmatprep.subr.mxu0 0.0
        %v8428 = vand.u32 %v7980, 4294901760
        %8429 = vmatpush1.msra.mxu0 %v8428
        %8430 = vmatprep.subr.mxu0 0.0
        %8431 = vmatpush2.msra.mxu0 0.0
        %8432 = vmatprep.subr.mxu0 0.0
        %8433 = vmatpush2.msra.mxu0 0.0
        %8434 = vmatprep.subr.mxu0 0.0
        %8435 = vmatpush2.msra.mxu0 0.0
        %8436 = vmatprep.subr.mxu0 0.0
        %8437 = vmatpush2.msra.mxu0 0.0
        %8438 = vmatprep.subr.mxu0 0.0
        %8439 = vmatpush2.msra.mxu0 0.0
        %8440 = vmatprep.subr.mxu0 0.0
        %8441 = vmatpush2.msra.mxu0 0.0
        %8442 = vmatprep.subr.mxu0 0.0
        %8443 = vmatpush2.msra.mxu0 0.0
        %8444 = vmatprep.subr.mxu0 0.0
        %8445 = vmatpush2.msra.mxu0 0.0
        %8446 = vmatprep.subr.mxu0 0.0
        %8447 = vmatpush2.msra.mxu0 0.0
        %8448 = vmatprep.subr.mxu0 0.0
        %8449 = vmatpush2.msra.mxu0 0.0
        %8450 = vmatprep.subr.mxu0 0.0
        %8451 = vmatpush2.msra.mxu0 0.0
        %8452 = vmatprep.subr.mxu0 0.0
        %8453 = vmatpush2.msra.mxu0 0.0
        %8454 = vmatprep.subr.mxu0 0.0
        %8455 = vmatpush2.msra.mxu0 0.0
        %8456 = vmatprep.subr.mxu0 0.0
        %8457 = vmatpush2.msra.mxu0 0.0
        %8458 = vmatprep.subr.mxu0 0.0
        %8459 = vmatpush2.msra.mxu0 0.0
        %8460 = vmatprep.subr.mxu0 0.0
        %8461 = vmatpush2.msra.mxu0 0.0
        %8462 = vmatprep.mubr.f32.mxu0 0.0
        %v8463 = vand.u32 %v408, 4294901760
        %8464 = vmatmul.mubr.f32.gmra.mxu0 %v8463
        %v8465 = vpop.f32.mrf.mxu0
        %v8466 = vadd.f32 %v8391, %v8465
        %v8467 = vpop.f32.mrf.mxu0
        %8468 = vdwg.mxu0
        %8470 = vrot.lane.b32.xlu0 %v8466, 124
        %v8471 = vpop.permute.xlu0 %8470
        %8473 = vrot.lane.b32.xlu0 %v8466, 4
        %v8474 = vpop.permute.xlu0 %8473
        %v8476 = vsel %vm902, %v8471, %v8474
        %v8477 = vmul.f32 %v8466, %v383
        %v8478 = vmul.f32 %v8476, %v384
        %v8479 = vadd.f32 %v8477, %v8478
        %v8481 = vsel %vm1896, %v8479, 0
        %8483 = vmatprep.subr.mxu0 0.0
        %8484 = vmatpush1.xpose.msra.mxu0 0.0
        %8485 = vmatprep.subr.mxu0 0.0
        %8486 = vmatpush1.xpose.msra.mxu0 0.0
        %8487 = vmatprep.subr.mxu0 0.0
        %8488 = vmatpush1.xpose.msra.mxu0 0.0
        %8489 = vmatprep.subr.mxu0 0.0
        %8490 = vmatpush1.xpose.msra.mxu0 0.0
        %8491 = vmatprep.subr.mxu0 0.0
        %8492 = vmatpush1.xpose.msra.mxu0 0.0
        %8493 = vmatprep.subr.mxu0 0.0
        %8494 = vmatpush1.xpose.msra.mxu0 0.0
        %8495 = vmatprep.subr.mxu0 0.0
        %8496 = vmatpush1.xpose.msra.mxu0 0.0
        %8497 = vmatprep.subr.mxu0 0.0
        %8498 = vmatpush1.xpose.msra.mxu0 0.0
        %8499 = vmatprep.subr.mxu0 0.0
        %8500 = vmatpush1.xpose.msra.mxu0 0.0
        %8501 = vmatprep.subr.mxu0 0.0
        %8502 = vmatpush1.xpose.msra.mxu0 0.0
        %8503 = vmatprep.subr.mxu0 0.0
        %8504 = vmatpush1.xpose.msra.mxu0 0.0
        %8505 = vmatprep.subr.mxu0 0.0
        %8506 = vmatpush1.xpose.msra.mxu0 0.0
        %8507 = vmatprep.subr.mxu0 0.0
        %8508 = vmatpush1.xpose.msra.mxu0 0.0
        %8509 = vmatprep.subr.mxu0 0.0
        %8510 = vmatpush1.xpose.msra.mxu0 0.0
        %8511 = vmatprep.subr.mxu0 0.0
        %8512 = vmatpush1.xpose.msra.mxu0 0.0
        %8513 = vmatprep.subr.mxu0 0.0
        %v8514 = vand.u32 %v6618, 4294901760
        %8515 = vmatpush1.xpose.msra.mxu0 %v8514
        %8516 = vmatprep.subr.mxu0 0.0
        %8517 = vmatpush2.xpose.msra.mxu0 0.0
        %8518 = vmatprep.subr.mxu0 0.0
        %8519 = vmatpush2.xpose.msra.mxu0 0.0
        %8520 = vmatprep.subr.mxu0 0.0
        %8521 = vmatpush2.xpose.msra.mxu0 0.0
        %8522 = vmatprep.subr.mxu0 0.0
        %8523 = vmatpush2.xpose.msra.mxu0 0.0
        %8524 = vmatprep.subr.mxu0 0.0
        %8525 = vmatpush2.xpose.msra.mxu0 0.0
        %8526 = vmatprep.subr.mxu0 0.0
        %8527 = vmatpush2.xpose.msra.mxu0 0.0
        %8528 = vmatprep.subr.mxu0 0.0
        %8529 = vmatpush2.xpose.msra.mxu0 0.0
        %8530 = vmatprep.subr.mxu0 0.0
        %8531 = vmatpush2.xpose.msra.mxu0 0.0
        %8532 = vmatprep.subr.mxu0 0.0
        %8533 = vmatpush2.xpose.msra.mxu0 0.0
        %8534 = vmatprep.subr.mxu0 0.0
        %8535 = vmatpush2.xpose.msra.mxu0 0.0
        %8536 = vmatprep.subr.mxu0 0.0
        %8537 = vmatpush2.xpose.msra.mxu0 0.0
        %8538 = vmatprep.subr.mxu0 0.0
        %8539 = vmatpush2.xpose.msra.mxu0 0.0
        %8540 = vmatprep.subr.mxu0 0.0
        %8541 = vmatpush2.xpose.msra.mxu0 0.0
        %8542 = vmatprep.subr.mxu0 0.0
        %8543 = vmatpush2.xpose.msra.mxu0 0.0
        %8544 = vmatprep.subr.mxu0 0.0
        %8545 = vmatpush2.xpose.msra.mxu0 0.0
        %8546 = vmatprep.subr.mxu0 0.0
        %8547 = vmatpush2.xpose.msra.mxu0 0.0
        %8548 = vmatprep.mubr.f32.mxu0 0.0
        %v8549 = vand.u32 %v8481, 4294901760
        %v8550 = vsub.f32 %v8481, %v8549
        %v8551 = vand.u32 %v8550, 4294901760
        %v8552 = vsub.f32 %v8550, %v8551
        %v8553 = vand.u32 %v8552, 4294901760
        %8554 = vmatmul.mubr.f32.gmra.mxu0 %v8553
        %v8555 = vpop.f32.mrf.mxu0
        %v8556 = vadd.f32 0.0, %v8555
        %v8557 = vpop.f32.mrf.mxu0
        %8558 = vdwg.mxu0
        %8559 = vmatprep.subr.mxu0 0.0
        %8560 = vmatpush1.xpose.msra.mxu0 0.0
        %8561 = vmatprep.subr.mxu0 0.0
        %8562 = vmatpush1.xpose.msra.mxu0 0.0
        %8563 = vmatprep.subr.mxu0 0.0
        %8564 = vmatpush1.xpose.msra.mxu0 0.0
        %8565 = vmatprep.subr.mxu0 0.0
        %8566 = vmatpush1.xpose.msra.mxu0 0.0
        %8567 = vmatprep.subr.mxu0 0.0
        %8568 = vmatpush1.xpose.msra.mxu0 0.0
        %8569 = vmatprep.subr.mxu0 0.0
        %8570 = vmatpush1.xpose.msra.mxu0 0.0
        %8571 = vmatprep.subr.mxu0 0.0
        %8572 = vmatpush1.xpose.msra.mxu0 0.0
        %8573 = vmatprep.subr.mxu0 0.0
        %8574 = vmatpush1.xpose.msra.mxu0 0.0
        %8575 = vmatprep.subr.mxu0 0.0
        %8576 = vmatpush1.xpose.msra.mxu0 0.0
        %8577 = vmatprep.subr.mxu0 0.0
        %8578 = vmatpush1.xpose.msra.mxu0 0.0
        %8579 = vmatprep.subr.mxu0 0.0
        %8580 = vmatpush1.xpose.msra.mxu0 0.0
        %8581 = vmatprep.subr.mxu0 0.0
        %8582 = vmatpush1.xpose.msra.mxu0 0.0
        %8583 = vmatprep.subr.mxu0 0.0
        %8584 = vmatpush1.xpose.msra.mxu0 0.0
        %8585 = vmatprep.subr.mxu0 0.0
        %8586 = vmatpush1.xpose.msra.mxu0 0.0
        %8587 = vmatprep.subr.mxu0 0.0
        %8588 = vmatpush1.xpose.msra.mxu0 0.0
        %8589 = vmatprep.subr.mxu0 0.0
        %v8590 = vand.u32 %v6618, 4294901760
        %v8591 = vsub.f32 %v6618, %v8590
        %v8592 = vand.u32 %v8591, 4294901760
        %v8593 = vsub.f32 %v8591, %v8592
        %v8594 = vand.u32 %v8593, 4294901760
        %8595 = vmatpush1.xpose.msra.mxu0 %v8594
        %8596 = vmatprep.subr.mxu0 0.0
        %8597 = vmatpush2.xpose.msra.mxu0 0.0
        %8598 = vmatprep.subr.mxu0 0.0
        %8599 = vmatpush2.xpose.msra.mxu0 0.0
        %8600 = vmatprep.subr.mxu0 0.0
        %8601 = vmatpush2.xpose.msra.mxu0 0.0
        %8602 = vmatprep.subr.mxu0 0.0
        %8603 = vmatpush2.xpose.msra.mxu0 0.0
        %8604 = vmatprep.subr.mxu0 0.0
        %8605 = vmatpush2.xpose.msra.mxu0 0.0
        %8606 = vmatprep.subr.mxu0 0.0
        %8607 = vmatpush2.xpose.msra.mxu0 0.0
        %8608 = vmatprep.subr.mxu0 0.0
        %8609 = vmatpush2.xpose.msra.mxu0 0.0
        %8610 = vmatprep.subr.mxu0 0.0
        %8611 = vmatpush2.xpose.msra.mxu0 0.0
        %8612 = vmatprep.subr.mxu0 0.0
        %8613 = vmatpush2.xpose.msra.mxu0 0.0
        %8614 = vmatprep.subr.mxu0 0.0
        %8615 = vmatpush2.xpose.msra.mxu0 0.0
        %8616 = vmatprep.subr.mxu0 0.0
        %8617 = vmatpush2.xpose.msra.mxu0 0.0
        %8618 = vmatprep.subr.mxu0 0.0
        %8619 = vmatpush2.xpose.msra.mxu0 0.0
        %8620 = vmatprep.subr.mxu0 0.0
        %8621 = vmatpush2.xpose.msra.mxu0 0.0
        %8622 = vmatprep.subr.mxu0 0.0
        %8623 = vmatpush2.xpose.msra.mxu0 0.0
        %8624 = vmatprep.subr.mxu0 0.0
        %8625 = vmatpush2.xpose.msra.mxu0 0.0
        %8626 = vmatprep.subr.mxu0 0.0
        %8627 = vmatpush2.xpose.msra.mxu0 0.0
        %8628 = vmatprep.mubr.f32.mxu0 0.0
        %v8629 = vand.u32 %v8481, 4294901760
        %8630 = vmatmul.mubr.f32.gmra.mxu0 %v8629
        %v8631 = vpop.f32.mrf.mxu0
        %v8632 = vadd.f32 %v8556, %v8631
        %v8633 = vpop.f32.mrf.mxu0
        %8634 = vdwg.mxu0
        %8635 = vmatprep.subr.mxu0 0.0
        %8636 = vmatpush1.xpose.msra.mxu0 0.0
        %8637 = vmatprep.subr.mxu0 0.0
        %8638 = vmatpush1.xpose.msra.mxu0 0.0
        %8639 = vmatprep.subr.mxu0 0.0
        %8640 = vmatpush1.xpose.msra.mxu0 0.0
        %8641 = vmatprep.subr.mxu0 0.0
        %8642 = vmatpush1.xpose.msra.mxu0 0.0
        %8643 = vmatprep.subr.mxu0 0.0
        %8644 = vmatpush1.xpose.msra.mxu0 0.0
        %8645 = vmatprep.subr.mxu0 0.0
        %8646 = vmatpush1.xpose.msra.mxu0 0.0
        %8647 = vmatprep.subr.mxu0 0.0
        %8648 = vmatpush1.xpose.msra.mxu0 0.0
        %8649 = vmatprep.subr.mxu0 0.0
        %8650 = vmatpush1.xpose.msra.mxu0 0.0
        %8651 = vmatprep.subr.mxu0 0.0
        %8652 = vmatpush1.xpose.msra.mxu0 0.0
        %8653 = vmatprep.subr.mxu0 0.0
        %8654 = vmatpush1.xpose.msra.mxu0 0.0
        %8655 = vmatprep.subr.mxu0 0.0
        %8656 = vmatpush1.xpose.msra.mxu0 0.0
        %8657 = vmatprep.subr.mxu0 0.0
        %8658 = vmatpush1.xpose.msra.mxu0 0.0
        %8659 = vmatprep.subr.mxu0 0.0
        %8660 = vmatpush1.xpose.msra.mxu0 0.0
        %8661 = vmatprep.subr.mxu0 0.0
        %8662 = vmatpush1.xpose.msra.mxu0 0.0
        %8663 = vmatprep.subr.mxu0 0.0
        %8664 = vmatpush1.xpose.msra.mxu0 0.0
        %8665 = vmatprep.subr.mxu0 0.0
        %v8666 = vand.u32 %v6618, 4294901760
        %v8667 = vsub.f32 %v6618, %v8666
        %8668 = vmatpush1.xpose.msra.mxu0 %v8667
        %8669 = vmatprep.subr.mxu0 0.0
        %8670 = vmatpush2.xpose.msra.mxu0 0.0
        %8671 = vmatprep.subr.mxu0 0.0
        %8672 = vmatpush2.xpose.msra.mxu0 0.0
        %8673 = vmatprep.subr.mxu0 0.0
        %8674 = vmatpush2.xpose.msra.mxu0 0.0
        %8675 = vmatprep.subr.mxu0 0.0
        %8676 = vmatpush2.xpose.msra.mxu0 0.0
        %8677 = vmatprep.subr.mxu0 0.0
        %8678 = vmatpush2.xpose.msra.mxu0 0.0
        %8679 = vmatprep.subr.mxu0 0.0
        %8680 = vmatpush2.xpose.msra.mxu0 0.0
        %8681 = vmatprep.subr.mxu0 0.0
        %8682 = vmatpush2.xpose.msra.mxu0 0.0
        %8683 = vmatprep.subr.mxu0 0.0
        %8684 = vmatpush2.xpose.msra.mxu0 0.0
        %8685 = vmatprep.subr.mxu0 0.0
        %8686 = vmatpush2.xpose.msra.mxu0 0.0
        %8687 = vmatprep.subr.mxu0 0.0
        %8688 = vmatpush2.xpose.msra.mxu0 0.0
        %8689 = vmatprep.subr.mxu0 0.0
        %8690 = vmatpush2.xpose.msra.mxu0 0.0
        %8691 = vmatprep.subr.mxu0 0.0
        %8692 = vmatpush2.xpose.msra.mxu0 0.0
        %8693 = vmatprep.subr.mxu0 0.0
        %8694 = vmatpush2.xpose.msra.mxu0 0.0
        %8695 = vmatprep.subr.mxu0 0.0
        %8696 = vmatpush2.xpose.msra.mxu0 0.0
        %8697 = vmatprep.subr.mxu0 0.0
        %8698 = vmatpush2.xpose.msra.mxu0 0.0
        %8699 = vmatprep.subr.mxu0 0.0
        %8700 = vmatpush2.xpose.msra.mxu0 0.0
        %8701 = vmatprep.mubr.f32.mxu0 0.0
        %v8702 = vand.u32 %v8481, 4294901760
        %v8703 = vsub.f32 %v8481, %v8702
        %8704 = vmatmul.mubr.f32.gmra.mxu0 %v8703
        %v8705 = vpop.f32.mrf.mxu0
        %v8706 = vadd.f32 %v8632, %v8705
        %v8707 = vpop.f32.mrf.mxu0
        %8708 = vdwg.mxu0
        %8709 = vmatprep.subr.mxu0 0.0
        %8710 = vmatpush1.xpose.msra.mxu0 0.0
        %8711 = vmatprep.subr.mxu0 0.0
        %8712 = vmatpush1.xpose.msra.mxu0 0.0
        %8713 = vmatprep.subr.mxu0 0.0
        %8714 = vmatpush1.xpose.msra.mxu0 0.0
        %8715 = vmatprep.subr.mxu0 0.0
        %8716 = vmatpush1.xpose.msra.mxu0 0.0
        %8717 = vmatprep.subr.mxu0 0.0
        %8718 = vmatpush1.xpose.msra.mxu0 0.0
        %8719 = vmatprep.subr.mxu0 0.0
        %8720 = vmatpush1.xpose.msra.mxu0 0.0
        %8721 = vmatprep.subr.mxu0 0.0
        %8722 = vmatpush1.xpose.msra.mxu0 0.0
        %8723 = vmatprep.subr.mxu0 0.0
        %8724 = vmatpush1.xpose.msra.mxu0 0.0
        %8725 = vmatprep.subr.mxu0 0.0
        %8726 = vmatpush1.xpose.msra.mxu0 0.0
        %8727 = vmatprep.subr.mxu0 0.0
        %8728 = vmatpush1.xpose.msra.mxu0 0.0
        %8729 = vmatprep.subr.mxu0 0.0
        %8730 = vmatpush1.xpose.msra.mxu0 0.0
        %8731 = vmatprep.subr.mxu0 0.0
        %8732 = vmatpush1.xpose.msra.mxu0 0.0
        %8733 = vmatprep.subr.mxu0 0.0
        %8734 = vmatpush1.xpose.msra.mxu0 0.0
        %8735 = vmatprep.subr.mxu0 0.0
        %8736 = vmatpush1.xpose.msra.mxu0 0.0
        %8737 = vmatprep.subr.mxu0 0.0
        %8738 = vmatpush1.xpose.msra.mxu0 0.0
        %8739 = vmatprep.subr.mxu0 0.0
        %v8740 = vand.u32 %v6618, 4294901760
        %8741 = vmatpush1.xpose.msra.mxu0 %v8740
        %8742 = vmatprep.subr.mxu0 0.0
        %8743 = vmatpush2.xpose.msra.mxu0 0.0
        %8744 = vmatprep.subr.mxu0 0.0
        %8745 = vmatpush2.xpose.msra.mxu0 0.0
        %8746 = vmatprep.subr.mxu0 0.0
        %8747 = vmatpush2.xpose.msra.mxu0 0.0
        %8748 = vmatprep.subr.mxu0 0.0
        %8749 = vmatpush2.xpose.msra.mxu0 0.0
        %8750 = vmatprep.subr.mxu0 0.0
        %8751 = vmatpush2.xpose.msra.mxu0 0.0
        %8752 = vmatprep.subr.mxu0 0.0
        %8753 = vmatpush2.xpose.msra.mxu0 0.0
        %8754 = vmatprep.subr.mxu0 0.0
        %8755 = vmatpush2.xpose.msra.mxu0 0.0
        %8756 = vmatprep.subr.mxu0 0.0
        %8757 = vmatpush2.xpose.msra.mxu0 0.0
        %8758 = vmatprep.subr.mxu0 0.0
        %8759 = vmatpush2.xpose.msra.mxu0 0.0
        %8760 = vmatprep.subr.mxu0 0.0
        %8761 = vmatpush2.xpose.msra.mxu0 0.0
        %8762 = vmatprep.subr.mxu0 0.0
        %8763 = vmatpush2.xpose.msra.mxu0 0.0
        %8764 = vmatprep.subr.mxu0 0.0
        %8765 = vmatpush2.xpose.msra.mxu0 0.0
        %8766 = vmatprep.subr.mxu0 0.0
        %8767 = vmatpush2.xpose.msra.mxu0 0.0
        %8768 = vmatprep.subr.mxu0 0.0
        %8769 = vmatpush2.xpose.msra.mxu0 0.0
        %8770 = vmatprep.subr.mxu0 0.0
        %8771 = vmatpush2.xpose.msra.mxu0 0.0
        %8772 = vmatprep.subr.mxu0 0.0
        %8773 = vmatpush2.xpose.msra.mxu0 0.0
        %8774 = vmatprep.mubr.f32.mxu0 0.0
        %v8775 = vand.u32 %v8481, 4294901760
        %v8776 = vsub.f32 %v8481, %v8775
        %v8777 = vand.u32 %v8776, 4294901760
        %8778 = vmatmul.mubr.f32.gmra.mxu0 %v8777
        %v8779 = vpop.f32.mrf.mxu0
        %v8780 = vadd.f32 %v8706, %v8779
        %v8781 = vpop.f32.mrf.mxu0
        %8782 = vdwg.mxu0
        %8783 = vmatprep.subr.mxu0 0.0
        %8784 = vmatpush1.xpose.msra.mxu0 0.0
        %8785 = vmatprep.subr.mxu0 0.0
        %8786 = vmatpush1.xpose.msra.mxu0 0.0
        %8787 = vmatprep.subr.mxu0 0.0
        %8788 = vmatpush1.xpose.msra.mxu0 0.0
        %8789 = vmatprep.subr.mxu0 0.0
        %8790 = vmatpush1.xpose.msra.mxu0 0.0
        %8791 = vmatprep.subr.mxu0 0.0
        %8792 = vmatpush1.xpose.msra.mxu0 0.0
        %8793 = vmatprep.subr.mxu0 0.0
        %8794 = vmatpush1.xpose.msra.mxu0 0.0
        %8795 = vmatprep.subr.mxu0 0.0
        %8796 = vmatpush1.xpose.msra.mxu0 0.0
        %8797 = vmatprep.subr.mxu0 0.0
        %8798 = vmatpush1.xpose.msra.mxu0 0.0
        %8799 = vmatprep.subr.mxu0 0.0
        %8800 = vmatpush1.xpose.msra.mxu0 0.0
        %8801 = vmatprep.subr.mxu0 0.0
        %8802 = vmatpush1.xpose.msra.mxu0 0.0
        %8803 = vmatprep.subr.mxu0 0.0
        %8804 = vmatpush1.xpose.msra.mxu0 0.0
        %8805 = vmatprep.subr.mxu0 0.0
        %8806 = vmatpush1.xpose.msra.mxu0 0.0
        %8807 = vmatprep.subr.mxu0 0.0
        %8808 = vmatpush1.xpose.msra.mxu0 0.0
        %8809 = vmatprep.subr.mxu0 0.0
        %8810 = vmatpush1.xpose.msra.mxu0 0.0
        %8811 = vmatprep.subr.mxu0 0.0
        %8812 = vmatpush1.xpose.msra.mxu0 0.0
        %8813 = vmatprep.subr.mxu0 0.0
        %v8814 = vand.u32 %v6618, 4294901760
        %v8815 = vsub.f32 %v6618, %v8814
        %v8816 = vand.u32 %v8815, 4294901760
        %8817 = vmatpush1.xpose.msra.mxu0 %v8816
        %8818 = vmatprep.subr.mxu0 0.0
        %8819 = vmatpush2.xpose.msra.mxu0 0.0
        %8820 = vmatprep.subr.mxu0 0.0
        %8821 = vmatpush2.xpose.msra.mxu0 0.0
        %8822 = vmatprep.subr.mxu0 0.0
        %8823 = vmatpush2.xpose.msra.mxu0 0.0
        %8824 = vmatprep.subr.mxu0 0.0
        %8825 = vmatpush2.xpose.msra.mxu0 0.0
        %8826 = vmatprep.subr.mxu0 0.0
        %8827 = vmatpush2.xpose.msra.mxu0 0.0
        %8828 = vmatprep.subr.mxu0 0.0
        %8829 = vmatpush2.xpose.msra.mxu0 0.0
        %8830 = vmatprep.subr.mxu0 0.0
        %8831 = vmatpush2.xpose.msra.mxu0 0.0
        %8832 = vmatprep.subr.mxu0 0.0
        %8833 = vmatpush2.xpose.msra.mxu0 0.0
        %8834 = vmatprep.subr.mxu0 0.0
        %8835 = vmatpush2.xpose.msra.mxu0 0.0
        %8836 = vmatprep.subr.mxu0 0.0
        %8837 = vmatpush2.xpose.msra.mxu0 0.0
        %8838 = vmatprep.subr.mxu0 0.0
        %8839 = vmatpush2.xpose.msra.mxu0 0.0
        %8840 = vmatprep.subr.mxu0 0.0
        %8841 = vmatpush2.xpose.msra.mxu0 0.0
        %8842 = vmatprep.subr.mxu0 0.0
        %8843 = vmatpush2.xpose.msra.mxu0 0.0
        %8844 = vmatprep.subr.mxu0 0.0
        %8845 = vmatpush2.xpose.msra.mxu0 0.0
        %8846 = vmatprep.subr.mxu0 0.0
        %8847 = vmatpush2.xpose.msra.mxu0 0.0
        %8848 = vmatprep.subr.mxu0 0.0
        %8849 = vmatpush2.xpose.msra.mxu0 0.0
        %8850 = vmatprep.mubr.f32.mxu0 0.0
        %v8851 = vand.u32 %v8481, 4294901760
        %8852 = vmatmul.mubr.f32.gmra.mxu0 %v8851
        %v8853 = vpop.f32.mrf.mxu0
        %v8854 = vadd.f32 %v8780, %v8853
        %v8855 = vpop.f32.mrf.mxu0
        %8856 = vdwg.mxu0
        %8857 = vmatprep.subr.mxu0 0.0
        %8858 = vmatpush1.xpose.msra.mxu0 0.0
        %8859 = vmatprep.subr.mxu0 0.0
        %8860 = vmatpush1.xpose.msra.mxu0 0.0
        %8861 = vmatprep.subr.mxu0 0.0
        %8862 = vmatpush1.xpose.msra.mxu0 0.0
        %8863 = vmatprep.subr.mxu0 0.0
        %8864 = vmatpush1.xpose.msra.mxu0 0.0
        %8865 = vmatprep.subr.mxu0 0.0
        %8866 = vmatpush1.xpose.msra.mxu0 0.0
        %8867 = vmatprep.subr.mxu0 0.0
        %8868 = vmatpush1.xpose.msra.mxu0 0.0
        %8869 = vmatprep.subr.mxu0 0.0
        %8870 = vmatpush1.xpose.msra.mxu0 0.0
        %8871 = vmatprep.subr.mxu0 0.0
        %8872 = vmatpush1.xpose.msra.mxu0 0.0
        %8873 = vmatprep.subr.mxu0 0.0
        %8874 = vmatpush1.xpose.msra.mxu0 0.0
        %8875 = vmatprep.subr.mxu0 0.0
        %8876 = vmatpush1.xpose.msra.mxu0 0.0
        %8877 = vmatprep.subr.mxu0 0.0
        %8878 = vmatpush1.xpose.msra.mxu0 0.0
        %8879 = vmatprep.subr.mxu0 0.0
        %8880 = vmatpush1.xpose.msra.mxu0 0.0
        %8881 = vmatprep.subr.mxu0 0.0
        %8882 = vmatpush1.xpose.msra.mxu0 0.0
        %8883 = vmatprep.subr.mxu0 0.0
        %8884 = vmatpush1.xpose.msra.mxu0 0.0
        %8885 = vmatprep.subr.mxu0 0.0
        %8886 = vmatpush1.xpose.msra.mxu0 0.0
        %8887 = vmatprep.subr.mxu0 0.0
        %v8888 = vand.u32 %v6618, 4294901760
        %8889 = vmatpush1.xpose.msra.mxu0 %v8888
        %8890 = vmatprep.subr.mxu0 0.0
        %8891 = vmatpush2.xpose.msra.mxu0 0.0
        %8892 = vmatprep.subr.mxu0 0.0
        %8893 = vmatpush2.xpose.msra.mxu0 0.0
        %8894 = vmatprep.subr.mxu0 0.0
        %8895 = vmatpush2.xpose.msra.mxu0 0.0
        %8896 = vmatprep.subr.mxu0 0.0
        %8897 = vmatpush2.xpose.msra.mxu0 0.0
        %8898 = vmatprep.subr.mxu0 0.0
        %8899 = vmatpush2.xpose.msra.mxu0 0.0
        %8900 = vmatprep.subr.mxu0 0.0
        %8901 = vmatpush2.xpose.msra.mxu0 0.0
        %8902 = vmatprep.subr.mxu0 0.0
        %8903 = vmatpush2.xpose.msra.mxu0 0.0
        %8904 = vmatprep.subr.mxu0 0.0
        %8905 = vmatpush2.xpose.msra.mxu0 0.0
        %8906 = vmatprep.subr.mxu0 0.0
        %8907 = vmatpush2.xpose.msra.mxu0 0.0
        %8908 = vmatprep.subr.mxu0 0.0
        %8909 = vmatpush2.xpose.msra.mxu0 0.0
        %8910 = vmatprep.subr.mxu0 0.0
        %8911 = vmatpush2.xpose.msra.mxu0 0.0
        %8912 = vmatprep.subr.mxu0 0.0
        %8913 = vmatpush2.xpose.msra.mxu0 0.0
        %8914 = vmatprep.subr.mxu0 0.0
        %8915 = vmatpush2.xpose.msra.mxu0 0.0
        %8916 = vmatprep.subr.mxu0 0.0
        %8917 = vmatpush2.xpose.msra.mxu0 0.0
        %8918 = vmatprep.subr.mxu0 0.0
        %8919 = vmatpush2.xpose.msra.mxu0 0.0
        %8920 = vmatprep.subr.mxu0 0.0
        %8921 = vmatpush2.xpose.msra.mxu0 0.0
        %8922 = vmatprep.mubr.f32.mxu0 0.0
        %v8923 = vand.u32 %v8481, 4294901760
        %8924 = vmatmul.mubr.f32.gmra.mxu0 %v8923
        %v8925 = vpop.f32.mrf.mxu0
        %v8926 = vadd.f32 %v8854, %v8925
        %v8927 = vpop.f32.mrf.mxu0
        %8928 = vdwg.mxu0
        %v8929 = vmul.f32 %v8926, 0.35355338
        %v8930 = vsel %vm1896, %v8929, -inf
        %8931 = vmax.xlane.f32.xlu0 %v8930
        %v8932 = vpop.xlane.xlu0 %8931
        %v8933 = vsub.f32 %v8929, %v8932
        %v8934 = vmul.f32 %v8933, 1.442695
        %v8935 = vpow.pop %v8934
        %v8936 = vsel %vm1896, %v8935, 0.0
        %8937 = vadd.xlane.f32.xlu0 %v8936
        %v8938 = vpop.xlane.xlu0 %8937
        %v8940 = vsel %vm1896, %v8935, 0
        %8942 = vmatprep.subr.mxu0 0.0
        %8943 = vmatpush1.msra.mxu0 0.0
        %8944 = vmatprep.subr.mxu0 0.0
        %8945 = vmatpush1.msra.mxu0 0.0
        %8946 = vmatprep.subr.mxu0 0.0
        %8947 = vmatpush1.msra.mxu0 0.0
        %8948 = vmatprep.subr.mxu0 0.0
        %8949 = vmatpush1.msra.mxu0 0.0
        %8950 = vmatprep.subr.mxu0 0.0
        %8951 = vmatpush1.msra.mxu0 0.0
        %8952 = vmatprep.subr.mxu0 0.0
        %8953 = vmatpush1.msra.mxu0 0.0
        %8954 = vmatprep.subr.mxu0 0.0
        %8955 = vmatpush1.msra.mxu0 0.0
        %8956 = vmatprep.subr.mxu0 0.0
        %8957 = vmatpush1.msra.mxu0 0.0
        %8958 = vmatprep.subr.mxu0 0.0
        %8959 = vmatpush1.msra.mxu0 0.0
        %8960 = vmatprep.subr.mxu0 0.0
        %8961 = vmatpush1.msra.mxu0 0.0
        %8962 = vmatprep.subr.mxu0 0.0
        %8963 = vmatpush1.msra.mxu0 0.0
        %8964 = vmatprep.subr.mxu0 0.0
        %8965 = vmatpush1.msra.mxu0 0.0
        %8966 = vmatprep.subr.mxu0 0.0
        %8967 = vmatpush1.msra.mxu0 0.0
        %8968 = vmatprep.subr.mxu0 0.0
        %8969 = vmatpush1.msra.mxu0 0.0
        %8970 = vmatprep.subr.mxu0 0.0
        %8971 = vmatpush1.msra.mxu0 0.0
        %8972 = vmatprep.subr.mxu0 0.0
        %v8973 = vand.u32 %v6110, 4294901760
        %8974 = vmatpush1.msra.mxu0 %v8973
        %8975 = vmatprep.subr.mxu0 0.0
        %8976 = vmatpush2.msra.mxu0 0.0
        %8977 = vmatprep.subr.mxu0 0.0
        %8978 = vmatpush2.msra.mxu0 0.0
        %8979 = vmatprep.subr.mxu0 0.0
        %8980 = vmatpush2.msra.mxu0 0.0
        %8981 = vmatprep.subr.mxu0 0.0
        %8982 = vmatpush2.msra.mxu0 0.0
        %8983 = vmatprep.subr.mxu0 0.0
        %8984 = vmatpush2.msra.mxu0 0.0
        %8985 = vmatprep.subr.mxu0 0.0
        %8986 = vmatpush2.msra.mxu0 0.0
        %8987 = vmatprep.subr.mxu0 0.0
        %8988 = vmatpush2.msra.mxu0 0.0
        %8989 = vmatprep.subr.mxu0 0.0
        %8990 = vmatpush2.msra.mxu0 0.0
        %8991 = vmatprep.subr.mxu0 0.0
        %8992 = vmatpush2.msra.mxu0 0.0
        %8993 = vmatprep.subr.mxu0 0.0
        %8994 = vmatpush2.msra.mxu0 0.0
        %8995 = vmatprep.subr.mxu0 0.0
        %8996 = vmatpush2.msra.mxu0 0.0
        %8997 = vmatprep.subr.mxu0 0.0
        %8998 = vmatpush2.msra.mxu0 0.0
        %8999 = vmatprep.subr.mxu0 0.0
        %9000 = vmatpush2.msra.mxu0 0.0
        %9001 = vmatprep.subr.mxu0 0.0
        %9002 = vmatpush2.msra.mxu0 0.0
        %9003 = vmatprep.subr.mxu0 0.0
        %9004 = vmatpush2.msra.mxu0 0.0
        %9005 = vmatprep.subr.mxu0 0.0
        %9006 = vmatpush2.msra.mxu0 0.0
        %9007 = vmatprep.mubr.f32.mxu0 0.0
        %v9008 = vand.u32 %v8940, 4294901760
        %v9009 = vsub.f32 %v8940, %v9008
        %v9010 = vand.u32 %v9009, 4294901760
        %v9011 = vsub.f32 %v9009, %v9010
        %v9012 = vand.u32 %v9011, 4294901760
        %9013 = vmatmul.mubr.f32.gmra.mxu0 %v9012
        %v9014 = vpop.f32.mrf.mxu0
        %v9015 = vadd.f32 0.0, %v9014
        %v9016 = vpop.f32.mrf.mxu0
        %9017 = vdwg.mxu0
        %9018 = vmatprep.subr.mxu0 0.0
        %9019 = vmatpush1.msra.mxu0 0.0
        %9020 = vmatprep.subr.mxu0 0.0
        %9021 = vmatpush1.msra.mxu0 0.0
        %9022 = vmatprep.subr.mxu0 0.0
        %9023 = vmatpush1.msra.mxu0 0.0
        %9024 = vmatprep.subr.mxu0 0.0
        %9025 = vmatpush1.msra.mxu0 0.0
        %9026 = vmatprep.subr.mxu0 0.0
        %9027 = vmatpush1.msra.mxu0 0.0
        %9028 = vmatprep.subr.mxu0 0.0
        %9029 = vmatpush1.msra.mxu0 0.0
        %9030 = vmatprep.subr.mxu0 0.0
        %9031 = vmatpush1.msra.mxu0 0.0
        %9032 = vmatprep.subr.mxu0 0.0
        %9033 = vmatpush1.msra.mxu0 0.0
        %9034 = vmatprep.subr.mxu0 0.0
        %9035 = vmatpush1.msra.mxu0 0.0
        %9036 = vmatprep.subr.mxu0 0.0
        %9037 = vmatpush1.msra.mxu0 0.0
        %9038 = vmatprep.subr.mxu0 0.0
        %9039 = vmatpush1.msra.mxu0 0.0
        %9040 = vmatprep.subr.mxu0 0.0
        %9041 = vmatpush1.msra.mxu0 0.0
        %9042 = vmatprep.subr.mxu0 0.0
        %9043 = vmatpush1.msra.mxu0 0.0
        %9044 = vmatprep.subr.mxu0 0.0
        %9045 = vmatpush1.msra.mxu0 0.0
        %9046 = vmatprep.subr.mxu0 0.0
        %9047 = vmatpush1.msra.mxu0 0.0
        %9048 = vmatprep.subr.mxu0 0.0
        %v9049 = vand.u32 %v6110, 4294901760
        %v9050 = vsub.f32 %v6110, %v9049
        %v9051 = vand.u32 %v9050, 4294901760
        %v9052 = vsub.f32 %v9050, %v9051
        %v9053 = vand.u32 %v9052, 4294901760
        %9054 = vmatpush1.msra.mxu0 %v9053
        %9055 = vmatprep.subr.mxu0 0.0
        %9056 = vmatpush2.msra.mxu0 0.0
        %9057 = vmatprep.subr.mxu0 0.0
        %9058 = vmatpush2.msra.mxu0 0.0
        %9059 = vmatprep.subr.mxu0 0.0
        %9060 = vmatpush2.msra.mxu0 0.0
        %9061 = vmatprep.subr.mxu0 0.0
        %9062 = vmatpush2.msra.mxu0 0.0
        %9063 = vmatprep.subr.mxu0 0.0
        %9064 = vmatpush2.msra.mxu0 0.0
        %9065 = vmatprep.subr.mxu0 0.0
        %9066 = vmatpush2.msra.mxu0 0.0
        %9067 = vmatprep.subr.mxu0 0.0
        %9068 = vmatpush2.msra.mxu0 0.0
        %9069 = vmatprep.subr.mxu0 0.0
        %9070 = vmatpush2.msra.mxu0 0.0
        %9071 = vmatprep.subr.mxu0 0.0
        %9072 = vmatpush2.msra.mxu0 0.0
        %9073 = vmatprep.subr.mxu0 0.0
        %9074 = vmatpush2.msra.mxu0 0.0
        %9075 = vmatprep.subr.mxu0 0.0
        %9076 = vmatpush2.msra.mxu0 0.0
        %9077 = vmatprep.subr.mxu0 0.0
        %9078 = vmatpush2.msra.mxu0 0.0
        %9079 = vmatprep.subr.mxu0 0.0
        %9080 = vmatpush2.msra.mxu0 0.0
        %9081 = vmatprep.subr.mxu0 0.0
        %9082 = vmatpush2.msra.mxu0 0.0
        %9083 = vmatprep.subr.mxu0 0.0
        %9084 = vmatpush2.msra.mxu0 0.0
        %9085 = vmatprep.subr.mxu0 0.0
        %9086 = vmatpush2.msra.mxu0 0.0
        %9087 = vmatprep.mubr.f32.mxu0 0.0
        %v9088 = vand.u32 %v8940, 4294901760
        %9089 = vmatmul.mubr.f32.gmra.mxu0 %v9088
        %v9090 = vpop.f32.mrf.mxu0
        %v9091 = vadd.f32 %v9015, %v9090
        %v9092 = vpop.f32.mrf.mxu0
        %9093 = vdwg.mxu0
        %9094 = vmatprep.subr.mxu0 0.0
        %9095 = vmatpush1.msra.mxu0 0.0
        %9096 = vmatprep.subr.mxu0 0.0
        %9097 = vmatpush1.msra.mxu0 0.0
        %9098 = vmatprep.subr.mxu0 0.0
        %9099 = vmatpush1.msra.mxu0 0.0
        %9100 = vmatprep.subr.mxu0 0.0
        %9101 = vmatpush1.msra.mxu0 0.0
        %9102 = vmatprep.subr.mxu0 0.0
        %9103 = vmatpush1.msra.mxu0 0.0
        %9104 = vmatprep.subr.mxu0 0.0
        %9105 = vmatpush1.msra.mxu0 0.0
        %9106 = vmatprep.subr.mxu0 0.0
        %9107 = vmatpush1.msra.mxu0 0.0
        %9108 = vmatprep.subr.mxu0 0.0
        %9109 = vmatpush1.msra.mxu0 0.0
        %9110 = vmatprep.subr.mxu0 0.0
        %9111 = vmatpush1.msra.mxu0 0.0
        %9112 = vmatprep.subr.mxu0 0.0
        %9113 = vmatpush1.msra.mxu0 0.0
        %9114 = vmatprep.subr.mxu0 0.0
        %9115 = vmatpush1.msra.mxu0 0.0
        %9116 = vmatprep.subr.mxu0 0.0
        %9117 = vmatpush1.msra.mxu0 0.0
        %9118 = vmatprep.subr.mxu0 0.0
        %9119 = vmatpush1.msra.mxu0 0.0
        %9120 = vmatprep.subr.mxu0 0.0
        %9121 = vmatpush1.msra.mxu0 0.0
        %9122 = vmatprep.subr.mxu0 0.0
        %9123 = vmatpush1.msra.mxu0 0.0
        %9124 = vmatprep.subr.mxu0 0.0
        %v9125 = vand.u32 %v6110, 4294901760
        %v9126 = vsub.f32 %v6110, %v9125
        %9127 = vmatpush1.msra.mxu0 %v9126
        %9128 = vmatprep.subr.mxu0 0.0
        %9129 = vmatpush2.msra.mxu0 0.0
        %9130 = vmatprep.subr.mxu0 0.0
        %9131 = vmatpush2.msra.mxu0 0.0
        %9132 = vmatprep.subr.mxu0 0.0
        %9133 = vmatpush2.msra.mxu0 0.0
        %9134 = vmatprep.subr.mxu0 0.0
        %9135 = vmatpush2.msra.mxu0 0.0
        %9136 = vmatprep.subr.mxu0 0.0
        %9137 = vmatpush2.msra.mxu0 0.0
        %9138 = vmatprep.subr.mxu0 0.0
        %9139 = vmatpush2.msra.mxu0 0.0
        %9140 = vmatprep.subr.mxu0 0.0
        %9141 = vmatpush2.msra.mxu0 0.0
        %9142 = vmatprep.subr.mxu0 0.0
        %9143 = vmatpush2.msra.mxu0 0.0
        %9144 = vmatprep.subr.mxu0 0.0
        %9145 = vmatpush2.msra.mxu0 0.0
        %9146 = vmatprep.subr.mxu0 0.0
        %9147 = vmatpush2.msra.mxu0 0.0
        %9148 = vmatprep.subr.mxu0 0.0
        %9149 = vmatpush2.msra.mxu0 0.0
        %9150 = vmatprep.subr.mxu0 0.0
        %9151 = vmatpush2.msra.mxu0 0.0
        %9152 = vmatprep.subr.mxu0 0.0
        %9153 = vmatpush2.msra.mxu0 0.0
        %9154 = vmatprep.subr.mxu0 0.0
        %9155 = vmatpush2.msra.mxu0 0.0
        %9156 = vmatprep.subr.mxu0 0.0
        %9157 = vmatpush2.msra.mxu0 0.0
        %9158 = vmatprep.subr.mxu0 0.0
        %9159 = vmatpush2.msra.mxu0 0.0
        %9160 = vmatprep.mubr.f32.mxu0 0.0
        %v9161 = vand.u32 %v8940, 4294901760
        %v9162 = vsub.f32 %v8940, %v9161
        %9163 = vmatmul.mubr.f32.gmra.mxu0 %v9162
        %v9164 = vpop.f32.mrf.mxu0
        %v9165 = vadd.f32 %v9091, %v9164
        %v9166 = vpop.f32.mrf.mxu0
        %9167 = vdwg.mxu0
        %9168 = vmatprep.subr.mxu0 0.0
        %9169 = vmatpush1.msra.mxu0 0.0
        %9170 = vmatprep.subr.mxu0 0.0
        %9171 = vmatpush1.msra.mxu0 0.0
        %9172 = vmatprep.subr.mxu0 0.0
        %9173 = vmatpush1.msra.mxu0 0.0
        %9174 = vmatprep.subr.mxu0 0.0
        %9175 = vmatpush1.msra.mxu0 0.0
        %9176 = vmatprep.subr.mxu0 0.0
        %9177 = vmatpush1.msra.mxu0 0.0
        %9178 = vmatprep.subr.mxu0 0.0
        %9179 = vmatpush1.msra.mxu0 0.0
        %9180 = vmatprep.subr.mxu0 0.0
        %9181 = vmatpush1.msra.mxu0 0.0
        %9182 = vmatprep.subr.mxu0 0.0
        %9183 = vmatpush1.msra.mxu0 0.0
        %9184 = vmatprep.subr.mxu0 0.0
        %9185 = vmatpush1.msra.mxu0 0.0
        %9186 = vmatprep.subr.mxu0 0.0
        %9187 = vmatpush1.msra.mxu0 0.0
        %9188 = vmatprep.subr.mxu0 0.0
        %9189 = vmatpush1.msra.mxu0 0.0
        %9190 = vmatprep.subr.mxu0 0.0
        %9191 = vmatpush1.msra.mxu0 0.0
        %9192 = vmatprep.subr.mxu0 0.0
        %9193 = vmatpush1.msra.mxu0 0.0
        %9194 = vmatprep.subr.mxu0 0.0
        %9195 = vmatpush1.msra.mxu0 0.0
        %9196 = vmatprep.subr.mxu0 0.0
        %9197 = vmatpush1.msra.mxu0 0.0
        %9198 = vmatprep.subr.mxu0 0.0
        %v9199 = vand.u32 %v6110, 4294901760
        %9200 = vmatpush1.msra.mxu0 %v9199
        %9201 = vmatprep.subr.mxu0 0.0
        %9202 = vmatpush2.msra.mxu0 0.0
        %9203 = vmatprep.subr.mxu0 0.0
        %9204 = vmatpush2.msra.mxu0 0.0
        %9205 = vmatprep.subr.mxu0 0.0
        %9206 = vmatpush2.msra.mxu0 0.0
        %9207 = vmatprep.subr.mxu0 0.0
        %9208 = vmatpush2.msra.mxu0 0.0
        %9209 = vmatprep.subr.mxu0 0.0
        %9210 = vmatpush2.msra.mxu0 0.0
        %9211 = vmatprep.subr.mxu0 0.0
        %9212 = vmatpush2.msra.mxu0 0.0
        %9213 = vmatprep.subr.mxu0 0.0
        %9214 = vmatpush2.msra.mxu0 0.0
        %9215 = vmatprep.subr.mxu0 0.0
        %9216 = vmatpush2.msra.mxu0 0.0
        %9217 = vmatprep.subr.mxu0 0.0
        %9218 = vmatpush2.msra.mxu0 0.0
        %9219 = vmatprep.subr.mxu0 0.0
        %9220 = vmatpush2.msra.mxu0 0.0
        %9221 = vmatprep.subr.mxu0 0.0
        %9222 = vmatpush2.msra.mxu0 0.0
        %9223 = vmatprep.subr.mxu0 0.0
        %9224 = vmatpush2.msra.mxu0 0.0
        %9225 = vmatprep.subr.mxu0 0.0
        %9226 = vmatpush2.msra.mxu0 0.0
        %9227 = vmatprep.subr.mxu0 0.0
        %9228 = vmatpush2.msra.mxu0 0.0
        %9229 = vmatprep.subr.mxu0 0.0
        %9230 = vmatpush2.msra.mxu0 0.0
        %9231 = vmatprep.subr.mxu0 0.0
        %9232 = vmatpush2.msra.mxu0 0.0
        %9233 = vmatprep.mubr.f32.mxu0 0.0
        %v9234 = vand.u32 %v8940, 4294901760
        %v9235 = vsub.f32 %v8940, %v9234
        %v9236 = vand.u32 %v9235, 4294901760
        %9237 = vmatmul.mubr.f32.gmra.mxu0 %v9236
        %v9238 = vpop.f32.mrf.mxu0
        %v9239 = vadd.f32 %v9165, %v9238
        %v9240 = vpop.f32.mrf.mxu0
        %9241 = vdwg.mxu0
        %9242 = vmatprep.subr.mxu0 0.0
        %9243 = vmatpush1.msra.mxu0 0.0
        %9244 = vmatprep.subr.mxu0 0.0
        %9245 = vmatpush1.msra.mxu0 0.0
        %9246 = vmatprep.subr.mxu0 0.0
        %9247 = vmatpush1.msra.mxu0 0.0
        %9248 = vmatprep.subr.mxu0 0.0
        %9249 = vmatpush1.msra.mxu0 0.0
        %9250 = vmatprep.subr.mxu0 0.0
        %9251 = vmatpush1.msra.mxu0 0.0
        %9252 = vmatprep.subr.mxu0 0.0
        %9253 = vmatpush1.msra.mxu0 0.0
        %9254 = vmatprep.subr.mxu0 0.0
        %9255 = vmatpush1.msra.mxu0 0.0
        %9256 = vmatprep.subr.mxu0 0.0
        %9257 = vmatpush1.msra.mxu0 0.0
        %9258 = vmatprep.subr.mxu0 0.0
        %9259 = vmatpush1.msra.mxu0 0.0
        %9260 = vmatprep.subr.mxu0 0.0
        %9261 = vmatpush1.msra.mxu0 0.0
        %9262 = vmatprep.subr.mxu0 0.0
        %9263 = vmatpush1.msra.mxu0 0.0
        %9264 = vmatprep.subr.mxu0 0.0
        %9265 = vmatpush1.msra.mxu0 0.0
        %9266 = vmatprep.subr.mxu0 0.0
        %9267 = vmatpush1.msra.mxu0 0.0
        %9268 = vmatprep.subr.mxu0 0.0
        %9269 = vmatpush1.msra.mxu0 0.0
        %9270 = vmatprep.subr.mxu0 0.0
        %9271 = vmatpush1.msra.mxu0 0.0
        %9272 = vmatprep.subr.mxu0 0.0
        %v9273 = vand.u32 %v6110, 4294901760
        %v9274 = vsub.f32 %v6110, %v9273
        %v9275 = vand.u32 %v9274, 4294901760
        %9276 = vmatpush1.msra.mxu0 %v9275
        %9277 = vmatprep.subr.mxu0 0.0
        %9278 = vmatpush2.msra.mxu0 0.0
        %9279 = vmatprep.subr.mxu0 0.0
        %9280 = vmatpush2.msra.mxu0 0.0
        %9281 = vmatprep.subr.mxu0 0.0
        %9282 = vmatpush2.msra.mxu0 0.0
        %9283 = vmatprep.subr.mxu0 0.0
        %9284 = vmatpush2.msra.mxu0 0.0
        %9285 = vmatprep.subr.mxu0 0.0
        %9286 = vmatpush2.msra.mxu0 0.0
        %9287 = vmatprep.subr.mxu0 0.0
        %9288 = vmatpush2.msra.mxu0 0.0
        %9289 = vmatprep.subr.mxu0 0.0
        %9290 = vmatpush2.msra.mxu0 0.0
        %9291 = vmatprep.subr.mxu0 0.0
        %9292 = vmatpush2.msra.mxu0 0.0
        %9293 = vmatprep.subr.mxu0 0.0
        %9294 = vmatpush2.msra.mxu0 0.0
        %9295 = vmatprep.subr.mxu0 0.0
        %9296 = vmatpush2.msra.mxu0 0.0
        %9297 = vmatprep.subr.mxu0 0.0
        %9298 = vmatpush2.msra.mxu0 0.0
        %9299 = vmatprep.subr.mxu0 0.0
        %9300 = vmatpush2.msra.mxu0 0.0
        %9301 = vmatprep.subr.mxu0 0.0
        %9302 = vmatpush2.msra.mxu0 0.0
        %9303 = vmatprep.subr.mxu0 0.0
        %9304 = vmatpush2.msra.mxu0 0.0
        %9305 = vmatprep.subr.mxu0 0.0
        %9306 = vmatpush2.msra.mxu0 0.0
        %9307 = vmatprep.subr.mxu0 0.0
        %9308 = vmatpush2.msra.mxu0 0.0
        %9309 = vmatprep.mubr.f32.mxu0 0.0
        %v9310 = vand.u32 %v8940, 4294901760
        %9311 = vmatmul.mubr.f32.gmra.mxu0 %v9310
        %v9312 = vpop.f32.mrf.mxu0
        %v9313 = vadd.f32 %v9239, %v9312
        %v9314 = vpop.f32.mrf.mxu0
        %9315 = vdwg.mxu0
        %9316 = vmatprep.subr.mxu0 0.0
        %9317 = vmatpush1.msra.mxu0 0.0
        %9318 = vmatprep.subr.mxu0 0.0
        %9319 = vmatpush1.msra.mxu0 0.0
        %9320 = vmatprep.subr.mxu0 0.0
        %9321 = vmatpush1.msra.mxu0 0.0
        %9322 = vmatprep.subr.mxu0 0.0
        %9323 = vmatpush1.msra.mxu0 0.0
        %9324 = vmatprep.subr.mxu0 0.0
        %9325 = vmatpush1.msra.mxu0 0.0
        %9326 = vmatprep.subr.mxu0 0.0
        %9327 = vmatpush1.msra.mxu0 0.0
        %9328 = vmatprep.subr.mxu0 0.0
        %9329 = vmatpush1.msra.mxu0 0.0
        %9330 = vmatprep.subr.mxu0 0.0
        %9331 = vmatpush1.msra.mxu0 0.0
        %9332 = vmatprep.subr.mxu0 0.0
        %9333 = vmatpush1.msra.mxu0 0.0
        %9334 = vmatprep.subr.mxu0 0.0
        %9335 = vmatpush1.msra.mxu0 0.0
        %9336 = vmatprep.subr.mxu0 0.0
        %9337 = vmatpush1.msra.mxu0 0.0
        %9338 = vmatprep.subr.mxu0 0.0
        %9339 = vmatpush1.msra.mxu0 0.0
        %9340 = vmatprep.subr.mxu0 0.0
        %9341 = vmatpush1.msra.mxu0 0.0
        %9342 = vmatprep.subr.mxu0 0.0
        %9343 = vmatpush1.msra.mxu0 0.0
        %9344 = vmatprep.subr.mxu0 0.0
        %9345 = vmatpush1.msra.mxu0 0.0
        %9346 = vmatprep.subr.mxu0 0.0
        %v9347 = vand.u32 %v6110, 4294901760
        %9348 = vmatpush1.msra.mxu0 %v9347
        %9349 = vmatprep.subr.mxu0 0.0
        %9350 = vmatpush2.msra.mxu0 0.0
        %9351 = vmatprep.subr.mxu0 0.0
        %9352 = vmatpush2.msra.mxu0 0.0
        %9353 = vmatprep.subr.mxu0 0.0
        %9354 = vmatpush2.msra.mxu0 0.0
        %9355 = vmatprep.subr.mxu0 0.0
        %9356 = vmatpush2.msra.mxu0 0.0
        %9357 = vmatprep.subr.mxu0 0.0
        %9358 = vmatpush2.msra.mxu0 0.0
        %9359 = vmatprep.subr.mxu0 0.0
        %9360 = vmatpush2.msra.mxu0 0.0
        %9361 = vmatprep.subr.mxu0 0.0
        %9362 = vmatpush2.msra.mxu0 0.0
        %9363 = vmatprep.subr.mxu0 0.0
        %9364 = vmatpush2.msra.mxu0 0.0
        %9365 = vmatprep.subr.mxu0 0.0
        %9366 = vmatpush2.msra.mxu0 0.0
        %9367 = vmatprep.subr.mxu0 0.0
        %9368 = vmatpush2.msra.mxu0 0.0
        %9369 = vmatprep.subr.mxu0 0.0
        %9370 = vmatpush2.msra.mxu0 0.0
        %9371 = vmatprep.subr.mxu0 0.0
        %9372 = vmatpush2.msra.mxu0 0.0
        %9373 = vmatprep.subr.mxu0 0.0
        %9374 = vmatpush2.msra.mxu0 0.0
        %9375 = vmatprep.subr.mxu0 0.0
        %9376 = vmatpush2.msra.mxu0 0.0
        %9377 = vmatprep.subr.mxu0 0.0
        %9378 = vmatpush2.msra.mxu0 0.0
        %9379 = vmatprep.subr.mxu0 0.0
        %9380 = vmatpush2.msra.mxu0 0.0
        %9381 = vmatprep.mubr.f32.mxu0 0.0
        %v9382 = vand.u32 %v8940, 4294901760
        %9383 = vmatmul.mubr.f32.gmra.mxu0 %v9382
        %v9384 = vpop.f32.mrf.mxu0
        %v9385 = vadd.f32 %v9313, %v9384
        %v9386 = vpop.f32.mrf.mxu0
        %9387 = vdwg.mxu0
        %v9388 = vrcp.pop %v8938
        %v9389 = vmul.f32 %v9385, %v9388
        %s9390 = scalar_lea.vmem %s6, 24
        %v9391 = vld [vmem:[%s9390] sm:$0xff]
        %v9393 = vsel %vm1896, %v9389, 0
        %9395 = vmatprep.subr.mxu0 0.0
        %9396 = vmatpush1.msra.mxu0 0.0
        %9397 = vmatprep.subr.mxu0 0.0
        %9398 = vmatpush1.msra.mxu0 0.0
        %9399 = vmatprep.subr.mxu0 0.0
        %9400 = vmatpush1.msra.mxu0 0.0
        %9401 = vmatprep.subr.mxu0 0.0
        %9402 = vmatpush1.msra.mxu0 0.0
        %9403 = vmatprep.subr.mxu0 0.0
        %9404 = vmatpush1.msra.mxu0 0.0
        %9405 = vmatprep.subr.mxu0 0.0
        %9406 = vmatpush1.msra.mxu0 0.0
        %9407 = vmatprep.subr.mxu0 0.0
        %9408 = vmatpush1.msra.mxu0 0.0
        %9409 = vmatprep.subr.mxu0 0.0
        %9410 = vmatpush1.msra.mxu0 0.0
        %9411 = vmatprep.subr.mxu0 0.0
        %9412 = vmatpush1.msra.mxu0 0.0
        %9413 = vmatprep.subr.mxu0 0.0
        %9414 = vmatpush1.msra.mxu0 0.0
        %9415 = vmatprep.subr.mxu0 0.0
        %9416 = vmatpush1.msra.mxu0 0.0
        %9417 = vmatprep.subr.mxu0 0.0
        %9418 = vmatpush1.msra.mxu0 0.0
        %9419 = vmatprep.subr.mxu0 0.0
        %9420 = vmatpush1.msra.mxu0 0.0
        %9421 = vmatprep.subr.mxu0 0.0
        %9422 = vmatpush1.msra.mxu0 0.0
        %9423 = vmatprep.subr.mxu0 0.0
        %9424 = vmatpush1.msra.mxu0 0.0
        %9425 = vmatprep.subr.mxu0 0.0
        %v9426 = vand.u32 %v9391, 4294901760
        %9427 = vmatpush1.msra.mxu0 %v9426
        %9428 = vmatprep.subr.mxu0 0.0
        %9429 = vmatpush2.msra.mxu0 0.0
        %9430 = vmatprep.subr.mxu0 0.0
        %9431 = vmatpush2.msra.mxu0 0.0
        %9432 = vmatprep.subr.mxu0 0.0
        %9433 = vmatpush2.msra.mxu0 0.0
        %9434 = vmatprep.subr.mxu0 0.0
        %9435 = vmatpush2.msra.mxu0 0.0
        %9436 = vmatprep.subr.mxu0 0.0
        %9437 = vmatpush2.msra.mxu0 0.0
        %9438 = vmatprep.subr.mxu0 0.0
        %9439 = vmatpush2.msra.mxu0 0.0
        %9440 = vmatprep.subr.mxu0 0.0
        %9441 = vmatpush2.msra.mxu0 0.0
        %9442 = vmatprep.subr.mxu0 0.0
        %9443 = vmatpush2.msra.mxu0 0.0
        %9444 = vmatprep.subr.mxu0 0.0
        %9445 = vmatpush2.msra.mxu0 0.0
        %9446 = vmatprep.subr.mxu0 0.0
        %9447 = vmatpush2.msra.mxu0 0.0
        %9448 = vmatprep.subr.mxu0 0.0
        %9449 = vmatpush2.msra.mxu0 0.0
        %9450 = vmatprep.subr.mxu0 0.0
        %9451 = vmatpush2.msra.mxu0 0.0
        %9452 = vmatprep.subr.mxu0 0.0
        %9453 = vmatpush2.msra.mxu0 0.0
        %9454 = vmatprep.subr.mxu0 0.0
        %9455 = vmatpush2.msra.mxu0 0.0
        %9456 = vmatprep.subr.mxu0 0.0
        %9457 = vmatpush2.msra.mxu0 0.0
        %9458 = vmatprep.subr.mxu0 0.0
        %9459 = vmatpush2.msra.mxu0 0.0
        %9460 = vmatprep.mubr.f32.mxu0 0.0
        %v9461 = vand.u32 %v9393, 4294901760
        %v9462 = vsub.f32 %v9393, %v9461
        %v9463 = vand.u32 %v9462, 4294901760
        %v9464 = vsub.f32 %v9462, %v9463
        %v9465 = vand.u32 %v9464, 4294901760
        %9466 = vmatmul.mubr.f32.gmra.mxu0 %v9465
        %v9467 = vpop.f32.mrf.mxu0
        %v9468 = vadd.f32 0.0, %v9467
        %v9469 = vpop.f32.mrf.mxu0
        %9470 = vdwg.mxu0
        %9471 = vmatprep.subr.mxu0 0.0
        %9472 = vmatpush1.msra.mxu0 0.0
        %9473 = vmatprep.subr.mxu0 0.0
        %9474 = vmatpush1.msra.mxu0 0.0
        %9475 = vmatprep.subr.mxu0 0.0
        %9476 = vmatpush1.msra.mxu0 0.0
        %9477 = vmatprep.subr.mxu0 0.0
        %9478 = vmatpush1.msra.mxu0 0.0
        %9479 = vmatprep.subr.mxu0 0.0
        %9480 = vmatpush1.msra.mxu0 0.0
        %9481 = vmatprep.subr.mxu0 0.0
        %9482 = vmatpush1.msra.mxu0 0.0
        %9483 = vmatprep.subr.mxu0 0.0
        %9484 = vmatpush1.msra.mxu0 0.0
        %9485 = vmatprep.subr.mxu0 0.0
        %9486 = vmatpush1.msra.mxu0 0.0
        %9487 = vmatprep.subr.mxu0 0.0
        %9488 = vmatpush1.msra.mxu0 0.0
        %9489 = vmatprep.subr.mxu0 0.0
        %9490 = vmatpush1.msra.mxu0 0.0
        %9491 = vmatprep.subr.mxu0 0.0
        %9492 = vmatpush1.msra.mxu0 0.0
        %9493 = vmatprep.subr.mxu0 0.0
        %9494 = vmatpush1.msra.mxu0 0.0
        %9495 = vmatprep.subr.mxu0 0.0
        %9496 = vmatpush1.msra.mxu0 0.0
        %9497 = vmatprep.subr.mxu0 0.0
        %9498 = vmatpush1.msra.mxu0 0.0
        %9499 = vmatprep.subr.mxu0 0.0
        %9500 = vmatpush1.msra.mxu0 0.0
        %9501 = vmatprep.subr.mxu0 0.0
        %v9502 = vand.u32 %v9391, 4294901760
        %v9503 = vsub.f32 %v9391, %v9502
        %v9504 = vand.u32 %v9503, 4294901760
        %v9505 = vsub.f32 %v9503, %v9504
        %v9506 = vand.u32 %v9505, 4294901760
        %9507 = vmatpush1.msra.mxu0 %v9506
        %9508 = vmatprep.subr.mxu0 0.0
        %9509 = vmatpush2.msra.mxu0 0.0
        %9510 = vmatprep.subr.mxu0 0.0
        %9511 = vmatpush2.msra.mxu0 0.0
        %9512 = vmatprep.subr.mxu0 0.0
        %9513 = vmatpush2.msra.mxu0 0.0
        %9514 = vmatprep.subr.mxu0 0.0
        %9515 = vmatpush2.msra.mxu0 0.0
        %9516 = vmatprep.subr.mxu0 0.0
        %9517 = vmatpush2.msra.mxu0 0.0
        %9518 = vmatprep.subr.mxu0 0.0
        %9519 = vmatpush2.msra.mxu0 0.0
        %9520 = vmatprep.subr.mxu0 0.0
        %9521 = vmatpush2.msra.mxu0 0.0
        %9522 = vmatprep.subr.mxu0 0.0
        %9523 = vmatpush2.msra.mxu0 0.0
        %9524 = vmatprep.subr.mxu0 0.0
        %9525 = vmatpush2.msra.mxu0 0.0
        %9526 = vmatprep.subr.mxu0 0.0
        %9527 = vmatpush2.msra.mxu0 0.0
        %9528 = vmatprep.subr.mxu0 0.0
        %9529 = vmatpush2.msra.mxu0 0.0
        %9530 = vmatprep.subr.mxu0 0.0
        %9531 = vmatpush2.msra.mxu0 0.0
        %9532 = vmatprep.subr.mxu0 0.0
        %9533 = vmatpush2.msra.mxu0 0.0
        %9534 = vmatprep.subr.mxu0 0.0
        %9535 = vmatpush2.msra.mxu0 0.0
        %9536 = vmatprep.subr.mxu0 0.0
        %9537 = vmatpush2.msra.mxu0 0.0
        %9538 = vmatprep.subr.mxu0 0.0
        %9539 = vmatpush2.msra.mxu0 0.0
        %9540 = vmatprep.mubr.f32.mxu0 0.0
        %v9541 = vand.u32 %v9393, 4294901760
        %9542 = vmatmul.mubr.f32.gmra.mxu0 %v9541
        %v9543 = vpop.f32.mrf.mxu0
        %v9544 = vadd.f32 %v9468, %v9543
        %v9545 = vpop.f32.mrf.mxu0
        %9546 = vdwg.mxu0
        %9547 = vmatprep.subr.mxu0 0.0
        %9548 = vmatpush1.msra.mxu0 0.0
        %9549 = vmatprep.subr.mxu0 0.0
        %9550 = vmatpush1.msra.mxu0 0.0
        %9551 = vmatprep.subr.mxu0 0.0
        %9552 = vmatpush1.msra.mxu0 0.0
        %9553 = vmatprep.subr.mxu0 0.0
        %9554 = vmatpush1.msra.mxu0 0.0
        %9555 = vmatprep.subr.mxu0 0.0
        %9556 = vmatpush1.msra.mxu0 0.0
        %9557 = vmatprep.subr.mxu0 0.0
        %9558 = vmatpush1.msra.mxu0 0.0
        %9559 = vmatprep.subr.mxu0 0.0
        %9560 = vmatpush1.msra.mxu0 0.0
        %9561 = vmatprep.subr.mxu0 0.0
        %9562 = vmatpush1.msra.mxu0 0.0
        %9563 = vmatprep.subr.mxu0 0.0
        %9564 = vmatpush1.msra.mxu0 0.0
        %9565 = vmatprep.subr.mxu0 0.0
        %9566 = vmatpush1.msra.mxu0 0.0
        %9567 = vmatprep.subr.mxu0 0.0
        %9568 = vmatpush1.msra.mxu0 0.0
        %9569 = vmatprep.subr.mxu0 0.0
        %9570 = vmatpush1.msra.mxu0 0.0
        %9571 = vmatprep.subr.mxu0 0.0
        %9572 = vmatpush1.msra.mxu0 0.0
        %9573 = vmatprep.subr.mxu0 0.0
        %9574 = vmatpush1.msra.mxu0 0.0
        %9575 = vmatprep.subr.mxu0 0.0
        %9576 = vmatpush1.msra.mxu0 0.0
        %9577 = vmatprep.subr.mxu0 0.0
        %v9578 = vand.u32 %v9391, 4294901760
        %v9579 = vsub.f32 %v9391, %v9578
        %9580 = vmatpush1.msra.mxu0 %v9579
        %9581 = vmatprep.subr.mxu0 0.0
        %9582 = vmatpush2.msra.mxu0 0.0
        %9583 = vmatprep.subr.mxu0 0.0
        %9584 = vmatpush2.msra.mxu0 0.0
        %9585 = vmatprep.subr.mxu0 0.0
        %9586 = vmatpush2.msra.mxu0 0.0
        %9587 = vmatprep.subr.mxu0 0.0
        %9588 = vmatpush2.msra.mxu0 0.0
        %9589 = vmatprep.subr.mxu0 0.0
        %9590 = vmatpush2.msra.mxu0 0.0
        %9591 = vmatprep.subr.mxu0 0.0
        %9592 = vmatpush2.msra.mxu0 0.0
        %9593 = vmatprep.subr.mxu0 0.0
        %9594 = vmatpush2.msra.mxu0 0.0
        %9595 = vmatprep.subr.mxu0 0.0
        %9596 = vmatpush2.msra.mxu0 0.0
        %9597 = vmatprep.subr.mxu0 0.0
        %9598 = vmatpush2.msra.mxu0 0.0
        %9599 = vmatprep.subr.mxu0 0.0
        %9600 = vmatpush2.msra.mxu0 0.0
        %9601 = vmatprep.subr.mxu0 0.0
        %9602 = vmatpush2.msra.mxu0 0.0
        %9603 = vmatprep.subr.mxu0 0.0
        %9604 = vmatpush2.msra.mxu0 0.0
        %9605 = vmatprep.subr.mxu0 0.0
        %9606 = vmatpush2.msra.mxu0 0.0
        %9607 = vmatprep.subr.mxu0 0.0
        %9608 = vmatpush2.msra.mxu0 0.0
        %9609 = vmatprep.subr.mxu0 0.0
        %9610 = vmatpush2.msra.mxu0 0.0
        %9611 = vmatprep.subr.mxu0 0.0
        %9612 = vmatpush2.msra.mxu0 0.0
        %9613 = vmatprep.mubr.f32.mxu0 0.0
        %v9614 = vand.u32 %v9393, 4294901760
        %v9615 = vsub.f32 %v9393, %v9614
        %9616 = vmatmul.mubr.f32.gmra.mxu0 %v9615
        %v9617 = vpop.f32.mrf.mxu0
        %v9618 = vadd.f32 %v9544, %v9617
        %v9619 = vpop.f32.mrf.mxu0
        %9620 = vdwg.mxu0
        %9621 = vmatprep.subr.mxu0 0.0
        %9622 = vmatpush1.msra.mxu0 0.0
        %9623 = vmatprep.subr.mxu0 0.0
        %9624 = vmatpush1.msra.mxu0 0.0
        %9625 = vmatprep.subr.mxu0 0.0
        %9626 = vmatpush1.msra.mxu0 0.0
        %9627 = vmatprep.subr.mxu0 0.0
        %9628 = vmatpush1.msra.mxu0 0.0
        %9629 = vmatprep.subr.mxu0 0.0
        %9630 = vmatpush1.msra.mxu0 0.0
        %9631 = vmatprep.subr.mxu0 0.0
        %9632 = vmatpush1.msra.mxu0 0.0
        %9633 = vmatprep.subr.mxu0 0.0
        %9634 = vmatpush1.msra.mxu0 0.0
        %9635 = vmatprep.subr.mxu0 0.0
        %9636 = vmatpush1.msra.mxu0 0.0
        %9637 = vmatprep.subr.mxu0 0.0
        %9638 = vmatpush1.msra.mxu0 0.0
        %9639 = vmatprep.subr.mxu0 0.0
        %9640 = vmatpush1.msra.mxu0 0.0
        %9641 = vmatprep.subr.mxu0 0.0
        %9642 = vmatpush1.msra.mxu0 0.0
        %9643 = vmatprep.subr.mxu0 0.0
        %9644 = vmatpush1.msra.mxu0 0.0
        %9645 = vmatprep.subr.mxu0 0.0
        %9646 = vmatpush1.msra.mxu0 0.0
        %9647 = vmatprep.subr.mxu0 0.0
        %9648 = vmatpush1.msra.mxu0 0.0
        %9649 = vmatprep.subr.mxu0 0.0
        %9650 = vmatpush1.msra.mxu0 0.0
        %9651 = vmatprep.subr.mxu0 0.0
        %v9652 = vand.u32 %v9391, 4294901760
        %9653 = vmatpush1.msra.mxu0 %v9652
        %9654 = vmatprep.subr.mxu0 0.0
        %9655 = vmatpush2.msra.mxu0 0.0
        %9656 = vmatprep.subr.mxu0 0.0
        %9657 = vmatpush2.msra.mxu0 0.0
        %9658 = vmatprep.subr.mxu0 0.0
        %9659 = vmatpush2.msra.mxu0 0.0
        %9660 = vmatprep.subr.mxu0 0.0
        %9661 = vmatpush2.msra.mxu0 0.0
        %9662 = vmatprep.subr.mxu0 0.0
        %9663 = vmatpush2.msra.mxu0 0.0
        %9664 = vmatprep.subr.mxu0 0.0
        %9665 = vmatpush2.msra.mxu0 0.0
        %9666 = vmatprep.subr.mxu0 0.0
        %9667 = vmatpush2.msra.mxu0 0.0
        %9668 = vmatprep.subr.mxu0 0.0
        %9669 = vmatpush2.msra.mxu0 0.0
        %9670 = vmatprep.subr.mxu0 0.0
        %9671 = vmatpush2.msra.mxu0 0.0
        %9672 = vmatprep.subr.mxu0 0.0
        %9673 = vmatpush2.msra.mxu0 0.0
        %9674 = vmatprep.subr.mxu0 0.0
        %9675 = vmatpush2.msra.mxu0 0.0
        %9676 = vmatprep.subr.mxu0 0.0
        %9677 = vmatpush2.msra.mxu0 0.0
        %9678 = vmatprep.subr.mxu0 0.0
        %9679 = vmatpush2.msra.mxu0 0.0
        %9680 = vmatprep.subr.mxu0 0.0
        %9681 = vmatpush2.msra.mxu0 0.0
        %9682 = vmatprep.subr.mxu0 0.0
        %9683 = vmatpush2.msra.mxu0 0.0
        %9684 = vmatprep.subr.mxu0 0.0
        %9685 = vmatpush2.msra.mxu0 0.0
        %9686 = vmatprep.mubr.f32.mxu0 0.0
        %v9687 = vand.u32 %v9393, 4294901760
        %v9688 = vsub.f32 %v9393, %v9687
        %v9689 = vand.u32 %v9688, 4294901760
        %9690 = vmatmul.mubr.f32.gmra.mxu0 %v9689
        %v9691 = vpop.f32.mrf.mxu0
        %v9692 = vadd.f32 %v9618, %v9691
        %v9693 = vpop.f32.mrf.mxu0
        %9694 = vdwg.mxu0
        %9695 = vmatprep.subr.mxu0 0.0
        %9696 = vmatpush1.msra.mxu0 0.0
        %9697 = vmatprep.subr.mxu0 0.0
        %9698 = vmatpush1.msra.mxu0 0.0
        %9699 = vmatprep.subr.mxu0 0.0
        %9700 = vmatpush1.msra.mxu0 0.0
        %9701 = vmatprep.subr.mxu0 0.0
        %9702 = vmatpush1.msra.mxu0 0.0
        %9703 = vmatprep.subr.mxu0 0.0
        %9704 = vmatpush1.msra.mxu0 0.0
        %9705 = vmatprep.subr.mxu0 0.0
        %9706 = vmatpush1.msra.mxu0 0.0
        %9707 = vmatprep.subr.mxu0 0.0
        %9708 = vmatpush1.msra.mxu0 0.0
        %9709 = vmatprep.subr.mxu0 0.0
        %9710 = vmatpush1.msra.mxu0 0.0
        %9711 = vmatprep.subr.mxu0 0.0
        %9712 = vmatpush1.msra.mxu0 0.0
        %9713 = vmatprep.subr.mxu0 0.0
        %9714 = vmatpush1.msra.mxu0 0.0
        %9715 = vmatprep.subr.mxu0 0.0
        %9716 = vmatpush1.msra.mxu0 0.0
        %9717 = vmatprep.subr.mxu0 0.0
        %9718 = vmatpush1.msra.mxu0 0.0
        %9719 = vmatprep.subr.mxu0 0.0
        %9720 = vmatpush1.msra.mxu0 0.0
        %9721 = vmatprep.subr.mxu0 0.0
        %9722 = vmatpush1.msra.mxu0 0.0
        %9723 = vmatprep.subr.mxu0 0.0
        %9724 = vmatpush1.msra.mxu0 0.0
        %9725 = vmatprep.subr.mxu0 0.0
        %v9726 = vand.u32 %v9391, 4294901760
        %v9727 = vsub.f32 %v9391, %v9726
        %v9728 = vand.u32 %v9727, 4294901760
        %9729 = vmatpush1.msra.mxu0 %v9728
        %9730 = vmatprep.subr.mxu0 0.0
        %9731 = vmatpush2.msra.mxu0 0.0
        %9732 = vmatprep.subr.mxu0 0.0
        %9733 = vmatpush2.msra.mxu0 0.0
        %9734 = vmatprep.subr.mxu0 0.0
        %9735 = vmatpush2.msra.mxu0 0.0
        %9736 = vmatprep.subr.mxu0 0.0
        %9737 = vmatpush2.msra.mxu0 0.0
        %9738 = vmatprep.subr.mxu0 0.0
        %9739 = vmatpush2.msra.mxu0 0.0
        %9740 = vmatprep.subr.mxu0 0.0
        %9741 = vmatpush2.msra.mxu0 0.0
        %9742 = vmatprep.subr.mxu0 0.0
        %9743 = vmatpush2.msra.mxu0 0.0
        %9744 = vmatprep.subr.mxu0 0.0
        %9745 = vmatpush2.msra.mxu0 0.0
        %9746 = vmatprep.subr.mxu0 0.0
        %9747 = vmatpush2.msra.mxu0 0.0
        %9748 = vmatprep.subr.mxu0 0.0
        %9749 = vmatpush2.msra.mxu0 0.0
        %9750 = vmatprep.subr.mxu0 0.0
        %9751 = vmatpush2.msra.mxu0 0.0
        %9752 = vmatprep.subr.mxu0 0.0
        %9753 = vmatpush2.msra.mxu0 0.0
        %9754 = vmatprep.subr.mxu0 0.0
        %9755 = vmatpush2.msra.mxu0 0.0
        %9756 = vmatprep.subr.mxu0 0.0
        %9757 = vmatpush2.msra.mxu0 0.0
        %9758 = vmatprep.subr.mxu0 0.0
        %9759 = vmatpush2.msra.mxu0 0.0
        %9760 = vmatprep.subr.mxu0 0.0
        %9761 = vmatpush2.msra.mxu0 0.0
        %9762 = vmatprep.mubr.f32.mxu0 0.0
        %v9763 = vand.u32 %v9393, 4294901760
        %9764 = vmatmul.mubr.f32.gmra.mxu0 %v9763
        %v9765 = vpop.f32.mrf.mxu0
        %v9766 = vadd.f32 %v9692, %v9765
        %v9767 = vpop.f32.mrf.mxu0
        %9768 = vdwg.mxu0
        %9769 = vmatprep.subr.mxu0 0.0
        %9770 = vmatpush1.msra.mxu0 0.0
        %9771 = vmatprep.subr.mxu0 0.0
        %9772 = vmatpush1.msra.mxu0 0.0
        %9773 = vmatprep.subr.mxu0 0.0
        %9774 = vmatpush1.msra.mxu0 0.0
        %9775 = vmatprep.subr.mxu0 0.0
        %9776 = vmatpush1.msra.mxu0 0.0
        %9777 = vmatprep.subr.mxu0 0.0
        %9778 = vmatpush1.msra.mxu0 0.0
        %9779 = vmatprep.subr.mxu0 0.0
        %9780 = vmatpush1.msra.mxu0 0.0
        %9781 = vmatprep.subr.mxu0 0.0
        %9782 = vmatpush1.msra.mxu0 0.0
        %9783 = vmatprep.subr.mxu0 0.0
        %9784 = vmatpush1.msra.mxu0 0.0
        %9785 = vmatprep.subr.mxu0 0.0
        %9786 = vmatpush1.msra.mxu0 0.0
        %9787 = vmatprep.subr.mxu0 0.0
        %9788 = vmatpush1.msra.mxu0 0.0
        %9789 = vmatprep.subr.mxu0 0.0
        %9790 = vmatpush1.msra.mxu0 0.0
        %9791 = vmatprep.subr.mxu0 0.0
        %9792 = vmatpush1.msra.mxu0 0.0
        %9793 = vmatprep.subr.mxu0 0.0
        %9794 = vmatpush1.msra.mxu0 0.0
        %9795 = vmatprep.subr.mxu0 0.0
        %9796 = vmatpush1.msra.mxu0 0.0
        %9797 = vmatprep.subr.mxu0 0.0
        %9798 = vmatpush1.msra.mxu0 0.0
        %9799 = vmatprep.subr.mxu0 0.0
        %v9800 = vand.u32 %v9391, 4294901760
        %9801 = vmatpush1.msra.mxu0 %v9800
        %9802 = vmatprep.subr.mxu0 0.0
        %9803 = vmatpush2.msra.mxu0 0.0
        %9804 = vmatprep.subr.mxu0 0.0
        %9805 = vmatpush2.msra.mxu0 0.0
        %9806 = vmatprep.subr.mxu0 0.0
        %9807 = vmatpush2.msra.mxu0 0.0
        %9808 = vmatprep.subr.mxu0 0.0
        %9809 = vmatpush2.msra.mxu0 0.0
        %9810 = vmatprep.subr.mxu0 0.0
        %9811 = vmatpush2.msra.mxu0 0.0
        %9812 = vmatprep.subr.mxu0 0.0
        %9813 = vmatpush2.msra.mxu0 0.0
        %9814 = vmatprep.subr.mxu0 0.0
        %9815 = vmatpush2.msra.mxu0 0.0
        %9816 = vmatprep.subr.mxu0 0.0
        %9817 = vmatpush2.msra.mxu0 0.0
        %9818 = vmatprep.subr.mxu0 0.0
        %9819 = vmatpush2.msra.mxu0 0.0
        %9820 = vmatprep.subr.mxu0 0.0
        %9821 = vmatpush2.msra.mxu0 0.0
        %9822 = vmatprep.subr.mxu0 0.0
        %9823 = vmatpush2.msra.mxu0 0.0
        %9824 = vmatprep.subr.mxu0 0.0
        %9825 = vmatpush2.msra.mxu0 0.0
        %9826 = vmatprep.subr.mxu0 0.0
        %9827 = vmatpush2.msra.mxu0 0.0
        %9828 = vmatprep.subr.mxu0 0.0
        %9829 = vmatpush2.msra.mxu0 0.0
        %9830 = vmatprep.subr.mxu0 0.0
        %9831 = vmatpush2.msra.mxu0 0.0
        %9832 = vmatprep.subr.mxu0 0.0
        %9833 = vmatpush2.msra.mxu0 0.0
        %9834 = vmatprep.mubr.f32.mxu0 0.0
        %v9835 = vand.u32 %v9393, 4294901760
        %9836 = vmatmul.mubr.f32.gmra.mxu0 %v9835
        %v9837 = vpop.f32.mrf.mxu0
        %v9838 = vadd.f32 %v9766, %v9837
        %v9839 = vpop.f32.mrf.mxu0
        %9840 = vdwg.mxu0
        %v9841 = vadd.f32 %v7978, %v9838
        %v9842 = vadd.f32 %v382, %v9841
        %v9843 = vld [vmem:[%s2] sm:$0x1]
        %v9844 = vmul.f32 %v9842, %v9842
        %v9845 = vsel %vm387, %v9844, 0.0
        %9846 = vadd.xlane.f32.xlu0 %v9845
        %v9847 = vpop.xlane.xlu0 %9846
        %v9848 = vmul.f32 %v9847, %v391
        %v9849 = vadd.f32 %v9848, 1e-06
        %v9850 = vrsqrt.pop %v9849
        %v9851 = vmul.f32 %v9842, %v9850
        %v9853 = vlaneseq
        %v9854 = vshrl.u32 %v9853, 7
        %v9855 = vsub.s32 0, %v9854
        %v9856 = vrot.slane %v9843, %v9855
        %v9858 = vmul.f32 %v9851, %v9856
        %v9859 = vld [vmem:[%s7] sm:$0xff]
        %v9860 = vld [vmem:[%s7 + $0x8] sm:$0xff]
        %v9861 = vld [vmem:[%s7 + $0x10] sm:$0xff]
        %v9862 = vld [vmem:[%s7 + $0x18] sm:$0xff]
        %v9864 = vsel %vm387, %v9858, 0
        %9866 = vmatprep.subr.mxu0 0.0
        %9867 = vmatpush1.msra.mxu0 0.0
        %9868 = vmatprep.subr.mxu0 0.0
        %9869 = vmatpush1.msra.mxu0 0.0
        %9870 = vmatprep.subr.mxu0 0.0
        %9871 = vmatpush1.msra.mxu0 0.0
        %9872 = vmatprep.subr.mxu0 0.0
        %9873 = vmatpush1.msra.mxu0 0.0
        %9874 = vmatprep.subr.mxu0 0.0
        %9875 = vmatpush1.msra.mxu0 0.0
        %9876 = vmatprep.subr.mxu0 0.0
        %9877 = vmatpush1.msra.mxu0 0.0
        %9878 = vmatprep.subr.mxu0 0.0
        %9879 = vmatpush1.msra.mxu0 0.0
        %9880 = vmatprep.subr.mxu0 0.0
        %9881 = vmatpush1.msra.mxu0 0.0
        %9882 = vmatprep.subr.mxu0 0.0
        %9883 = vmatpush1.msra.mxu0 0.0
        %9884 = vmatprep.subr.mxu0 0.0
        %9885 = vmatpush1.msra.mxu0 0.0
        %9886 = vmatprep.subr.mxu0 0.0
        %9887 = vmatpush1.msra.mxu0 0.0
        %9888 = vmatprep.subr.mxu0 0.0
        %9889 = vmatpush1.msra.mxu0 0.0
        %9890 = vmatprep.subr.mxu0 0.0
        %v9891 = vand.u32 %v9862, 4294901760
        %9892 = vmatpush1.msra.mxu0 %v9891
        %9893 = vmatprep.subr.mxu0 0.0
        %v9894 = vand.u32 %v9861, 4294901760
        %9895 = vmatpush1.msra.mxu0 %v9894
        %9896 = vmatprep.subr.mxu0 0.0
        %v9897 = vand.u32 %v9860, 4294901760
        %9898 = vmatpush1.msra.mxu0 %v9897
        %9899 = vmatprep.subr.mxu0 0.0
        %v9900 = vand.u32 %v9859, 4294901760
        %9901 = vmatpush1.msra.mxu0 %v9900
        %9902 = vmatprep.subr.mxu0 0.0
        %9903 = vmatpush2.msra.mxu0 0.0
        %9904 = vmatprep.subr.mxu0 0.0
        %9905 = vmatpush2.msra.mxu0 0.0
        %9906 = vmatprep.subr.mxu0 0.0
        %9907 = vmatpush2.msra.mxu0 0.0
        %9908 = vmatprep.subr.mxu0 0.0
        %9909 = vmatpush2.msra.mxu0 0.0
        %9910 = vmatprep.subr.mxu0 0.0
        %9911 = vmatpush2.msra.mxu0 0.0
        %9912 = vmatprep.subr.mxu0 0.0
        %9913 = vmatpush2.msra.mxu0 0.0
        %9914 = vmatprep.subr.mxu0 0.0
        %9915 = vmatpush2.msra.mxu0 0.0
        %9916 = vmatprep.subr.mxu0 0.0
        %9917 = vmatpush2.msra.mxu0 0.0
        %9918 = vmatprep.subr.mxu0 0.0
        %9919 = vmatpush2.msra.mxu0 0.0
        %9920 = vmatprep.subr.mxu0 0.0
        %9921 = vmatpush2.msra.mxu0 0.0
        %9922 = vmatprep.subr.mxu0 0.0
        %9923 = vmatpush2.msra.mxu0 0.0
        %9924 = vmatprep.subr.mxu0 0.0
        %9925 = vmatpush2.msra.mxu0 0.0
        %9926 = vmatprep.subr.mxu0 0.0
        %9927 = vmatpush2.msra.mxu0 0.0
        %9928 = vmatprep.subr.mxu0 0.0
        %9929 = vmatpush2.msra.mxu0 0.0
        %9930 = vmatprep.subr.mxu0 0.0
        %9931 = vmatpush2.msra.mxu0 0.0
        %9932 = vmatprep.subr.mxu0 0.0
        %9933 = vmatpush2.msra.mxu0 0.0
        %9934 = vmatprep.mubr.f32.mxu0 0.0
        %v9935 = vand.u32 %v9864, 4294901760
        %v9936 = vsub.f32 %v9864, %v9935
        %v9937 = vand.u32 %v9936, 4294901760
        %v9938 = vsub.f32 %v9936, %v9937
        %v9939 = vand.u32 %v9938, 4294901760
        %9940 = vmatmul.mubr.f32.gmra.mxu0 %v9939
        %v9941 = vpop.f32.mrf.mxu0
        %v9942 = vadd.f32 0.0, %v9941
        %v9943 = vpop.f32.mrf.mxu0
        %9944 = vdwg.mxu0
        %9945 = vmatprep.subr.mxu0 0.0
        %9946 = vmatpush1.msra.mxu0 0.0
        %9947 = vmatprep.subr.mxu0 0.0
        %9948 = vmatpush1.msra.mxu0 0.0
        %9949 = vmatprep.subr.mxu0 0.0
        %9950 = vmatpush1.msra.mxu0 0.0
        %9951 = vmatprep.subr.mxu0 0.0
        %9952 = vmatpush1.msra.mxu0 0.0
        %9953 = vmatprep.subr.mxu0 0.0
        %9954 = vmatpush1.msra.mxu0 0.0
        %9955 = vmatprep.subr.mxu0 0.0
        %9956 = vmatpush1.msra.mxu0 0.0
        %9957 = vmatprep.subr.mxu0 0.0
        %9958 = vmatpush1.msra.mxu0 0.0
        %9959 = vmatprep.subr.mxu0 0.0
        %9960 = vmatpush1.msra.mxu0 0.0
        %9961 = vmatprep.subr.mxu0 0.0
        %9962 = vmatpush1.msra.mxu0 0.0
        %9963 = vmatprep.subr.mxu0 0.0
        %9964 = vmatpush1.msra.mxu0 0.0
        %9965 = vmatprep.subr.mxu0 0.0
        %9966 = vmatpush1.msra.mxu0 0.0
        %9967 = vmatprep.subr.mxu0 0.0
        %9968 = vmatpush1.msra.mxu0 0.0
        %9969 = vmatprep.subr.mxu0 0.0
        %v9970 = vand.u32 %v9862, 4294901760
        %v9971 = vsub.f32 %v9862, %v9970
        %v9972 = vand.u32 %v9971, 4294901760
        %v9973 = vsub.f32 %v9971, %v9972
        %v9974 = vand.u32 %v9973, 4294901760
        %9975 = vmatpush1.msra.mxu0 %v9974
        %9976 = vmatprep.subr.mxu0 0.0
        %v9977 = vand.u32 %v9861, 4294901760
        %v9978 = vsub.f32 %v9861, %v9977
        %v9979 = vand.u32 %v9978, 4294901760
        %v9980 = vsub.f32 %v9978, %v9979
        %v9981 = vand.u32 %v9980, 4294901760
        %9982 = vmatpush1.msra.mxu0 %v9981
        %9983 = vmatprep.subr.mxu0 0.0
        %v9984 = vand.u32 %v9860, 4294901760
        %v9985 = vsub.f32 %v9860, %v9984
        %v9986 = vand.u32 %v9985, 4294901760
        %v9987 = vsub.f32 %v9985, %v9986
        %v9988 = vand.u32 %v9987, 4294901760
        %9989 = vmatpush1.msra.mxu0 %v9988
        %9990 = vmatprep.subr.mxu0 0.0
        %v9991 = vand.u32 %v9859, 4294901760
        %v9992 = vsub.f32 %v9859, %v9991
        %v9993 = vand.u32 %v9992, 4294901760
        %v9994 = vsub.f32 %v9992, %v9993
        %v9995 = vand.u32 %v9994, 4294901760
        %9996 = vmatpush1.msra.mxu0 %v9995
        %9997 = vmatprep.subr.mxu0 0.0
        %9998 = vmatpush2.msra.mxu0 0.0
        %9999 = vmatprep.subr.mxu0 0.0
        %10000 = vmatpush2.msra.mxu0 0.0
        %10001 = vmatprep.subr.mxu0 0.0
        %10002 = vmatpush2.msra.mxu0 0.0
        %10003 = vmatprep.subr.mxu0 0.0
        %10004 = vmatpush2.msra.mxu0 0.0
        %10005 = vmatprep.subr.mxu0 0.0
        %10006 = vmatpush2.msra.mxu0 0.0
        %10007 = vmatprep.subr.mxu0 0.0
        %10008 = vmatpush2.msra.mxu0 0.0
        %10009 = vmatprep.subr.mxu0 0.0
        %10010 = vmatpush2.msra.mxu0 0.0
        %10011 = vmatprep.subr.mxu0 0.0
        %10012 = vmatpush2.msra.mxu0 0.0
        %10013 = vmatprep.subr.mxu0 0.0
        %10014 = vmatpush2.msra.mxu0 0.0
        %10015 = vmatprep.subr.mxu0 0.0
        %10016 = vmatpush2.msra.mxu0 0.0
        %10017 = vmatprep.subr.mxu0 0.0
        %10018 = vmatpush2.msra.mxu0 0.0
        %10019 = vmatprep.subr.mxu0 0.0
        %10020 = vmatpush2.msra.mxu0 0.0
        %10021 = vmatprep.subr.mxu0 0.0
        %10022 = vmatpush2.msra.mxu0 0.0
        %10023 = vmatprep.subr.mxu0 0.0
        %10024 = vmatpush2.msra.mxu0 0.0
        %10025 = vmatprep.subr.mxu0 0.0
        %10026 = vmatpush2.msra.mxu0 0.0
        %10027 = vmatprep.subr.mxu0 0.0
        %10028 = vmatpush2.msra.mxu0 0.0
        %10029 = vmatprep.mubr.f32.mxu0 0.0
        %v10030 = vand.u32 %v9864, 4294901760
        %10031 = vmatmul.mubr.f32.gmra.mxu0 %v10030
        %v10032 = vpop.f32.mrf.mxu0
        %v10033 = vadd.f32 %v9942, %v10032
        %v10034 = vpop.f32.mrf.mxu0
        %10035 = vdwg.mxu0
        %10036 = vmatprep.subr.mxu0 0.0
        %10037 = vmatpush1.msra.mxu0 0.0
        %10038 = vmatprep.subr.mxu0 0.0
        %10039 = vmatpush1.msra.mxu0 0.0
        %10040 = vmatprep.subr.mxu0 0.0
        %10041 = vmatpush1.msra.mxu0 0.0
        %10042 = vmatprep.subr.mxu0 0.0
        %10043 = vmatpush1.msra.mxu0 0.0
        %10044 = vmatprep.subr.mxu0 0.0
        %10045 = vmatpush1.msra.mxu0 0.0
        %10046 = vmatprep.subr.mxu0 0.0
        %10047 = vmatpush1.msra.mxu0 0.0
        %10048 = vmatprep.subr.mxu0 0.0
        %10049 = vmatpush1.msra.mxu0 0.0
        %10050 = vmatprep.subr.mxu0 0.0
        %10051 = vmatpush1.msra.mxu0 0.0
        %10052 = vmatprep.subr.mxu0 0.0
        %10053 = vmatpush1.msra.mxu0 0.0
        %10054 = vmatprep.subr.mxu0 0.0
        %10055 = vmatpush1.msra.mxu0 0.0
        %10056 = vmatprep.subr.mxu0 0.0
        %10057 = vmatpush1.msra.mxu0 0.0
        %10058 = vmatprep.subr.mxu0 0.0
        %10059 = vmatpush1.msra.mxu0 0.0
        %10060 = vmatprep.subr.mxu0 0.0
        %v10061 = vand.u32 %v9862, 4294901760
        %v10062 = vsub.f32 %v9862, %v10061
        %10063 = vmatpush1.msra.mxu0 %v10062
        %10064 = vmatprep.subr.mxu0 0.0
        %v10065 = vand.u32 %v9861, 4294901760
        %v10066 = vsub.f32 %v9861, %v10065
        %10067 = vmatpush1.msra.mxu0 %v10066
        %10068 = vmatprep.subr.mxu0 0.0
        %v10069 = vand.u32 %v9860, 4294901760
        %v10070 = vsub.f32 %v9860, %v10069
        %10071 = vmatpush1.msra.mxu0 %v10070
        %10072 = vmatprep.subr.mxu0 0.0
        %v10073 = vand.u32 %v9859, 4294901760
        %v10074 = vsub.f32 %v9859, %v10073
        %10075 = vmatpush1.msra.mxu0 %v10074
        %10076 = vmatprep.subr.mxu0 0.0
        %10077 = vmatpush2.msra.mxu0 0.0
        %10078 = vmatprep.subr.mxu0 0.0
        %10079 = vmatpush2.msra.mxu0 0.0
        %10080 = vmatprep.subr.mxu0 0.0
        %10081 = vmatpush2.msra.mxu0 0.0
        %10082 = vmatprep.subr.mxu0 0.0
        %10083 = vmatpush2.msra.mxu0 0.0
        %10084 = vmatprep.subr.mxu0 0.0
        %10085 = vmatpush2.msra.mxu0 0.0
        %10086 = vmatprep.subr.mxu0 0.0
        %10087 = vmatpush2.msra.mxu0 0.0
        %10088 = vmatprep.subr.mxu0 0.0
        %10089 = vmatpush2.msra.mxu0 0.0
        %10090 = vmatprep.subr.mxu0 0.0
        %10091 = vmatpush2.msra.mxu0 0.0
        %10092 = vmatprep.subr.mxu0 0.0
        %10093 = vmatpush2.msra.mxu0 0.0
        %10094 = vmatprep.subr.mxu0 0.0
        %10095 = vmatpush2.msra.mxu0 0.0
        %10096 = vmatprep.subr.mxu0 0.0
        %10097 = vmatpush2.msra.mxu0 0.0
        %10098 = vmatprep.subr.mxu0 0.0
        %10099 = vmatpush2.msra.mxu0 0.0
        %10100 = vmatprep.subr.mxu0 0.0
        %10101 = vmatpush2.msra.mxu0 0.0
        %10102 = vmatprep.subr.mxu0 0.0
        %10103 = vmatpush2.msra.mxu0 0.0
        %10104 = vmatprep.subr.mxu0 0.0
        %10105 = vmatpush2.msra.mxu0 0.0
        %10106 = vmatprep.subr.mxu0 0.0
        %10107 = vmatpush2.msra.mxu0 0.0
        %10108 = vmatprep.mubr.f32.mxu0 0.0
        %v10109 = vand.u32 %v9864, 4294901760
        %v10110 = vsub.f32 %v9864, %v10109
        %10111 = vmatmul.mubr.f32.gmra.mxu0 %v10110
        %v10112 = vpop.f32.mrf.mxu0
        %v10113 = vadd.f32 %v10033, %v10112
        %v10114 = vpop.f32.mrf.mxu0
        %10115 = vdwg.mxu0
        %10116 = vmatprep.subr.mxu0 0.0
        %10117 = vmatpush1.msra.mxu0 0.0
        %10118 = vmatprep.subr.mxu0 0.0
        %10119 = vmatpush1.msra.mxu0 0.0
        %10120 = vmatprep.subr.mxu0 0.0
        %10121 = vmatpush1.msra.mxu0 0.0
        %10122 = vmatprep.subr.mxu0 0.0
        %10123 = vmatpush1.msra.mxu0 0.0
        %10124 = vmatprep.subr.mxu0 0.0
        %10125 = vmatpush1.msra.mxu0 0.0
        %10126 = vmatprep.subr.mxu0 0.0
        %10127 = vmatpush1.msra.mxu0 0.0
        %10128 = vmatprep.subr.mxu0 0.0
        %10129 = vmatpush1.msra.mxu0 0.0
        %10130 = vmatprep.subr.mxu0 0.0
        %10131 = vmatpush1.msra.mxu0 0.0
        %10132 = vmatprep.subr.mxu0 0.0
        %10133 = vmatpush1.msra.mxu0 0.0
        %10134 = vmatprep.subr.mxu0 0.0
        %10135 = vmatpush1.msra.mxu0 0.0
        %10136 = vmatprep.subr.mxu0 0.0
        %10137 = vmatpush1.msra.mxu0 0.0
        %10138 = vmatprep.subr.mxu0 0.0
        %10139 = vmatpush1.msra.mxu0 0.0
        %10140 = vmatprep.subr.mxu0 0.0
        %v10141 = vand.u32 %v9862, 4294901760
        %10142 = vmatpush1.msra.mxu0 %v10141
        %10143 = vmatprep.subr.mxu0 0.0
        %v10144 = vand.u32 %v9861, 4294901760
        %10145 = vmatpush1.msra.mxu0 %v10144
        %10146 = vmatprep.subr.mxu0 0.0
        %v10147 = vand.u32 %v9860, 4294901760
        %10148 = vmatpush1.msra.mxu0 %v10147
        %10149 = vmatprep.subr.mxu0 0.0
        %v10150 = vand.u32 %v9859, 4294901760
        %10151 = vmatpush1.msra.mxu0 %v10150
        %10152 = vmatprep.subr.mxu0 0.0
        %10153 = vmatpush2.msra.mxu0 0.0
        %10154 = vmatprep.subr.mxu0 0.0
        %10155 = vmatpush2.msra.mxu0 0.0
        %10156 = vmatprep.subr.mxu0 0.0
        %10157 = vmatpush2.msra.mxu0 0.0
        %10158 = vmatprep.subr.mxu0 0.0
        %10159 = vmatpush2.msra.mxu0 0.0
        %10160 = vmatprep.subr.mxu0 0.0
        %10161 = vmatpush2.msra.mxu0 0.0
        %10162 = vmatprep.subr.mxu0 0.0
        %10163 = vmatpush2.msra.mxu0 0.0
        %10164 = vmatprep.subr.mxu0 0.0
        %10165 = vmatpush2.msra.mxu0 0.0
        %10166 = vmatprep.subr.mxu0 0.0
        %10167 = vmatpush2.msra.mxu0 0.0
        %10168 = vmatprep.subr.mxu0 0.0
        %10169 = vmatpush2.msra.mxu0 0.0
        %10170 = vmatprep.subr.mxu0 0.0
        %10171 = vmatpush2.msra.mxu0 0.0
        %10172 = vmatprep.subr.mxu0 0.0
        %10173 = vmatpush2.msra.mxu0 0.0
        %10174 = vmatprep.subr.mxu0 0.0
        %10175 = vmatpush2.msra.mxu0 0.0
        %10176 = vmatprep.subr.mxu0 0.0
        %10177 = vmatpush2.msra.mxu0 0.0
        %10178 = vmatprep.subr.mxu0 0.0
        %10179 = vmatpush2.msra.mxu0 0.0
        %10180 = vmatprep.subr.mxu0 0.0
        %10181 = vmatpush2.msra.mxu0 0.0
        %10182 = vmatprep.subr.mxu0 0.0
        %10183 = vmatpush2.msra.mxu0 0.0
        %10184 = vmatprep.mubr.f32.mxu0 0.0
        %v10185 = vand.u32 %v9864, 4294901760
        %v10186 = vsub.f32 %v9864, %v10185
        %v10187 = vand.u32 %v10186, 4294901760
        %10188 = vmatmul.mubr.f32.gmra.mxu0 %v10187
        %v10189 = vpop.f32.mrf.mxu0
        %v10190 = vadd.f32 %v10113, %v10189
        %v10191 = vpop.f32.mrf.mxu0
        %10192 = vdwg.mxu0
        %10193 = vmatprep.subr.mxu0 0.0
        %10194 = vmatpush1.msra.mxu0 0.0
        %10195 = vmatprep.subr.mxu0 0.0
        %10196 = vmatpush1.msra.mxu0 0.0
        %10197 = vmatprep.subr.mxu0 0.0
        %10198 = vmatpush1.msra.mxu0 0.0
        %10199 = vmatprep.subr.mxu0 0.0
        %10200 = vmatpush1.msra.mxu0 0.0
        %10201 = vmatprep.subr.mxu0 0.0
        %10202 = vmatpush1.msra.mxu0 0.0
        %10203 = vmatprep.subr.mxu0 0.0
        %10204 = vmatpush1.msra.mxu0 0.0
        %10205 = vmatprep.subr.mxu0 0.0
        %10206 = vmatpush1.msra.mxu0 0.0
        %10207 = vmatprep.subr.mxu0 0.0
        %10208 = vmatpush1.msra.mxu0 0.0
        %10209 = vmatprep.subr.mxu0 0.0
        %10210 = vmatpush1.msra.mxu0 0.0
        %10211 = vmatprep.subr.mxu0 0.0
        %10212 = vmatpush1.msra.mxu0 0.0
        %10213 = vmatprep.subr.mxu0 0.0
        %10214 = vmatpush1.msra.mxu0 0.0
        %10215 = vmatprep.subr.mxu0 0.0
        %10216 = vmatpush1.msra.mxu0 0.0
        %10217 = vmatprep.subr.mxu0 0.0
        %v10218 = vand.u32 %v9862, 4294901760
        %v10219 = vsub.f32 %v9862, %v10218
        %v10220 = vand.u32 %v10219, 4294901760
        %10221 = vmatpush1.msra.mxu0 %v10220
        %10222 = vmatprep.subr.mxu0 0.0
        %v10223 = vand.u32 %v9861, 4294901760
        %v10224 = vsub.f32 %v9861, %v10223
        %v10225 = vand.u32 %v10224, 4294901760
        %10226 = vmatpush1.msra.mxu0 %v10225
        %10227 = vmatprep.subr.mxu0 0.0
        %v10228 = vand.u32 %v9860, 4294901760
        %v10229 = vsub.f32 %v9860, %v10228
        %v10230 = vand.u32 %v10229, 4294901760
        %10231 = vmatpush1.msra.mxu0 %v10230
        %10232 = vmatprep.subr.mxu0 0.0
        %v10233 = vand.u32 %v9859, 4294901760
        %v10234 = vsub.f32 %v9859, %v10233
        %v10235 = vand.u32 %v10234, 4294901760
        %10236 = vmatpush1.msra.mxu0 %v10235
        %10237 = vmatprep.subr.mxu0 0.0
        %10238 = vmatpush2.msra.mxu0 0.0
        %10239 = vmatprep.subr.mxu0 0.0
        %10240 = vmatpush2.msra.mxu0 0.0
        %10241 = vmatprep.subr.mxu0 0.0
        %10242 = vmatpush2.msra.mxu0 0.0
        %10243 = vmatprep.subr.mxu0 0.0
        %10244 = vmatpush2.msra.mxu0 0.0
        %10245 = vmatprep.subr.mxu0 0.0
        %10246 = vmatpush2.msra.mxu0 0.0
        %10247 = vmatprep.subr.mxu0 0.0
        %10248 = vmatpush2.msra.mxu0 0.0
        %10249 = vmatprep.subr.mxu0 0.0
        %10250 = vmatpush2.msra.mxu0 0.0
        %10251 = vmatprep.subr.mxu0 0.0
        %10252 = vmatpush2.msra.mxu0 0.0
        %10253 = vmatprep.subr.mxu0 0.0
        %10254 = vmatpush2.msra.mxu0 0.0
        %10255 = vmatprep.subr.mxu0 0.0
        %10256 = vmatpush2.msra.mxu0 0.0
        %10257 = vmatprep.subr.mxu0 0.0
        %10258 = vmatpush2.msra.mxu0 0.0
        %10259 = vmatprep.subr.mxu0 0.0
        %10260 = vmatpush2.msra.mxu0 0.0
        %10261 = vmatprep.subr.mxu0 0.0
        %10262 = vmatpush2.msra.mxu0 0.0
        %10263 = vmatprep.subr.mxu0 0.0
        %10264 = vmatpush2.msra.mxu0 0.0
        %10265 = vmatprep.subr.mxu0 0.0
        %10266 = vmatpush2.msra.mxu0 0.0
        %10267 = vmatprep.subr.mxu0 0.0
        %10268 = vmatpush2.msra.mxu0 0.0
        %10269 = vmatprep.mubr.f32.mxu0 0.0
        %v10270 = vand.u32 %v9864, 4294901760
        %10271 = vmatmul.mubr.f32.gmra.mxu0 %v10270
        %v10272 = vpop.f32.mrf.mxu0
        %v10273 = vadd.f32 %v10190, %v10272
        %v10274 = vpop.f32.mrf.mxu0
        %10275 = vdwg.mxu0
        %10276 = vmatprep.subr.mxu0 0.0
        %10277 = vmatpush1.msra.mxu0 0.0
        %10278 = vmatprep.subr.mxu0 0.0
        %10279 = vmatpush1.msra.mxu0 0.0
        %10280 = vmatprep.subr.mxu0 0.0
        %10281 = vmatpush1.msra.mxu0 0.0
        %10282 = vmatprep.subr.mxu0 0.0
        %10283 = vmatpush1.msra.mxu0 0.0
        %10284 = vmatprep.subr.mxu0 0.0
        %10285 = vmatpush1.msra.mxu0 0.0
        %10286 = vmatprep.subr.mxu0 0.0
        %10287 = vmatpush1.msra.mxu0 0.0
        %10288 = vmatprep.subr.mxu0 0.0
        %10289 = vmatpush1.msra.mxu0 0.0
        %10290 = vmatprep.subr.mxu0 0.0
        %10291 = vmatpush1.msra.mxu0 0.0
        %10292 = vmatprep.subr.mxu0 0.0
        %10293 = vmatpush1.msra.mxu0 0.0
        %10294 = vmatprep.subr.mxu0 0.0
        %10295 = vmatpush1.msra.mxu0 0.0
        %10296 = vmatprep.subr.mxu0 0.0
        %10297 = vmatpush1.msra.mxu0 0.0
        %10298 = vmatprep.subr.mxu0 0.0
        %10299 = vmatpush1.msra.mxu0 0.0
        %10300 = vmatprep.subr.mxu0 0.0
        %v10301 = vand.u32 %v9862, 4294901760
        %10302 = vmatpush1.msra.mxu0 %v10301
        %10303 = vmatprep.subr.mxu0 0.0
        %v10304 = vand.u32 %v9861, 4294901760
        %10305 = vmatpush1.msra.mxu0 %v10304
        %10306 = vmatprep.subr.mxu0 0.0
        %v10307 = vand.u32 %v9860, 4294901760
        %10308 = vmatpush1.msra.mxu0 %v10307
        %10309 = vmatprep.subr.mxu0 0.0
        %v10310 = vand.u32 %v9859, 4294901760
        %10311 = vmatpush1.msra.mxu0 %v10310
        %10312 = vmatprep.subr.mxu0 0.0
        %10313 = vmatpush2.msra.mxu0 0.0
        %10314 = vmatprep.subr.mxu0 0.0
        %10315 = vmatpush2.msra.mxu0 0.0
        %10316 = vmatprep.subr.mxu0 0.0
        %10317 = vmatpush2.msra.mxu0 0.0
        %10318 = vmatprep.subr.mxu0 0.0
        %10319 = vmatpush2.msra.mxu0 0.0
        %10320 = vmatprep.subr.mxu0 0.0
        %10321 = vmatpush2.msra.mxu0 0.0
        %10322 = vmatprep.subr.mxu0 0.0
        %10323 = vmatpush2.msra.mxu0 0.0
        %10324 = vmatprep.subr.mxu0 0.0
        %10325 = vmatpush2.msra.mxu0 0.0
        %10326 = vmatprep.subr.mxu0 0.0
        %10327 = vmatpush2.msra.mxu0 0.0
        %10328 = vmatprep.subr.mxu0 0.0
        %10329 = vmatpush2.msra.mxu0 0.0
        %10330 = vmatprep.subr.mxu0 0.0
        %10331 = vmatpush2.msra.mxu0 0.0
        %10332 = vmatprep.subr.mxu0 0.0
        %10333 = vmatpush2.msra.mxu0 0.0
        %10334 = vmatprep.subr.mxu0 0.0
        %10335 = vmatpush2.msra.mxu0 0.0
        %10336 = vmatprep.subr.mxu0 0.0
        %10337 = vmatpush2.msra.mxu0 0.0
        %10338 = vmatprep.subr.mxu0 0.0
        %10339 = vmatpush2.msra.mxu0 0.0
        %10340 = vmatprep.subr.mxu0 0.0
        %10341 = vmatpush2.msra.mxu0 0.0
        %10342 = vmatprep.subr.mxu0 0.0
        %10343 = vmatpush2.msra.mxu0 0.0
        %10344 = vmatprep.mubr.f32.mxu0 0.0
        %v10345 = vand.u32 %v9864, 4294901760
        %10346 = vmatmul.mubr.f32.gmra.mxu0 %v10345
        %v10347 = vpop.f32.mrf.mxu0
        %v10348 = vadd.f32 %v10273, %v10347
        %v10349 = vpop.f32.mrf.mxu0
        %10350 = vdwg.mxu0
        %v10351 = vxor.u32 %v10348, 2147483648
        %v10352 = vmul.f32 %v10351, 1.442695
        %v10353 = vpow.pop %v10352
        %v10354 = vadd.f32 %v10353, 1.0
        %v10355 = vrcp.pop %v10354
        %v10356 = vmul.f32 1.0, %v10355
        %v10357 = vmul.f32 %v10348, %v10356
        %10359 = vrot.lane.b32.xlu0 %v10348, 64
        %v10360 = vpop.permute.xlu0 %10359
        %v10362 = vmul.f32 %v10357, %v10360
        %v10363 = vld [vmem:[%s8] sm:$0xff]
        %v10364 = vld [vmem:[%s8 + $0x8] sm:$0xff]
        %v10365 = vld [vmem:[%s8 + $0x10] sm:$0xff]
        %v10366 = vld [vmem:[%s8 + $0x18] sm:$0xff]
        %v10367 = vld [vmem:[%s8 + $0x20] sm:$0xff]
        %v10368 = vld [vmem:[%s8 + $0x28] sm:$0xff]
        %v10369 = vld [vmem:[%s8 + $0x30] sm:$0xff]
        %v10370 = vld [vmem:[%s8 + $0x38] sm:$0xff]
        %vm10371 = vcmask 523264
        %v10373 = vsel %vm10371, %v10362, 0
        %10375 = vmatprep.subr.mxu0 0.0
        %10376 = vmatpush1.msra.mxu0 0.0
        %10377 = vmatprep.subr.mxu0 0.0
        %10378 = vmatpush1.msra.mxu0 0.0
        %10379 = vmatprep.subr.mxu0 0.0
        %10380 = vmatpush1.msra.mxu0 0.0
        %10381 = vmatprep.subr.mxu0 0.0
        %10382 = vmatpush1.msra.mxu0 0.0
        %10383 = vmatprep.subr.mxu0 0.0
        %10384 = vmatpush1.msra.mxu0 0.0
        %10385 = vmatprep.subr.mxu0 0.0
        %10386 = vmatpush1.msra.mxu0 0.0
        %10387 = vmatprep.subr.mxu0 0.0
        %10388 = vmatpush1.msra.mxu0 0.0
        %10389 = vmatprep.subr.mxu0 0.0
        %10390 = vmatpush1.msra.mxu0 0.0
        %10391 = vmatprep.subr.mxu0 0.0
        %v10392 = vand.u32 %v10370, 4294901760
        %10393 = vmatpush1.msra.mxu0 %v10392
        %10394 = vmatprep.subr.mxu0 0.0
        %v10395 = vand.u32 %v10369, 4294901760
        %10396 = vmatpush1.msra.mxu0 %v10395
        %10397 = vmatprep.subr.mxu0 0.0
        %v10398 = vand.u32 %v10368, 4294901760
        %10399 = vmatpush1.msra.mxu0 %v10398
        %10400 = vmatprep.subr.mxu0 0.0
        %v10401 = vand.u32 %v10367, 4294901760
        %10402 = vmatpush1.msra.mxu0 %v10401
        %10403 = vmatprep.subr.mxu0 0.0
        %v10404 = vand.u32 %v10366, 4294901760
        %10405 = vmatpush1.msra.mxu0 %v10404
        %10406 = vmatprep.subr.mxu0 0.0
        %v10407 = vand.u32 %v10365, 4294901760
        %10408 = vmatpush1.msra.mxu0 %v10407
        %10409 = vmatprep.subr.mxu0 0.0
        %v10410 = vand.u32 %v10364, 4294901760
        %10411 = vmatpush1.msra.mxu0 %v10410
        %10412 = vmatprep.subr.mxu0 0.0
        %v10413 = vand.u32 %v10363, 4294901760
        %10414 = vmatpush1.msra.mxu0 %v10413
        %10415 = vmatprep.subr.mxu0 0.0
        %10416 = vmatpush2.msra.mxu0 0.0
        %10417 = vmatprep.subr.mxu0 0.0
        %10418 = vmatpush2.msra.mxu0 0.0
        %10419 = vmatprep.subr.mxu0 0.0
        %10420 = vmatpush2.msra.mxu0 0.0
        %10421 = vmatprep.subr.mxu0 0.0
        %10422 = vmatpush2.msra.mxu0 0.0
        %10423 = vmatprep.subr.mxu0 0.0
        %10424 = vmatpush2.msra.mxu0 0.0
        %10425 = vmatprep.subr.mxu0 0.0
        %10426 = vmatpush2.msra.mxu0 0.0
        %10427 = vmatprep.subr.mxu0 0.0
        %10428 = vmatpush2.msra.mxu0 0.0
        %10429 = vmatprep.subr.mxu0 0.0
        %10430 = vmatpush2.msra.mxu0 0.0
        %10431 = vmatprep.subr.mxu0 0.0
        %10432 = vmatpush2.msra.mxu0 0.0
        %10433 = vmatprep.subr.mxu0 0.0
        %10434 = vmatpush2.msra.mxu0 0.0
        %10435 = vmatprep.subr.mxu0 0.0
        %10436 = vmatpush2.msra.mxu0 0.0
        %10437 = vmatprep.subr.mxu0 0.0
        %10438 = vmatpush2.msra.mxu0 0.0
        %10439 = vmatprep.subr.mxu0 0.0
        %10440 = vmatpush2.msra.mxu0 0.0
        %10441 = vmatprep.subr.mxu0 0.0
        %10442 = vmatpush2.msra.mxu0 0.0
        %10443 = vmatprep.subr.mxu0 0.0
        %10444 = vmatpush2.msra.mxu0 0.0
        %10445 = vmatprep.subr.mxu0 0.0
        %10446 = vmatpush2.msra.mxu0 0.0
        %10447 = vmatprep.mubr.f32.mxu0 0.0
        %v10448 = vand.u32 %v10373, 4294901760
        %v10449 = vsub.f32 %v10373, %v10448
        %v10450 = vand.u32 %v10449, 4294901760
        %v10451 = vsub.f32 %v10449, %v10450
        %v10452 = vand.u32 %v10451, 4294901760
        %10453 = vmatmul.mubr.f32.gmra.mxu0 %v10452
        %v10454 = vpop.f32.mrf.mxu0
        %v10455 = vadd.f32 0.0, %v10454
        %v10456 = vpop.f32.mrf.mxu0
        %10457 = vdwg.mxu0
        %10458 = vmatprep.subr.mxu0 0.0
        %10459 = vmatpush1.msra.mxu0 0.0
        %10460 = vmatprep.subr.mxu0 0.0
        %10461 = vmatpush1.msra.mxu0 0.0
        %10462 = vmatprep.subr.mxu0 0.0
        %10463 = vmatpush1.msra.mxu0 0.0
        %10464 = vmatprep.subr.mxu0 0.0
        %10465 = vmatpush1.msra.mxu0 0.0
        %10466 = vmatprep.subr.mxu0 0.0
        %10467 = vmatpush1.msra.mxu0 0.0
        %10468 = vmatprep.subr.mxu0 0.0
        %10469 = vmatpush1.msra.mxu0 0.0
        %10470 = vmatprep.subr.mxu0 0.0
        %10471 = vmatpush1.msra.mxu0 0.0
        %10472 = vmatprep.subr.mxu0 0.0
        %10473 = vmatpush1.msra.mxu0 0.0
        %10474 = vmatprep.subr.mxu0 0.0
        %v10475 = vand.u32 %v10370, 4294901760
        %v10476 = vsub.f32 %v10370, %v10475
        %v10477 = vand.u32 %v10476, 4294901760
        %v10478 = vsub.f32 %v10476, %v10477
        %v10479 = vand.u32 %v10478, 4294901760
        %10480 = vmatpush1.msra.mxu0 %v10479
        %10481 = vmatprep.subr.mxu0 0.0
        %v10482 = vand.u32 %v10369, 4294901760
        %v10483 = vsub.f32 %v10369, %v10482
        %v10484 = vand.u32 %v10483, 4294901760
        %v10485 = vsub.f32 %v10483, %v10484
        %v10486 = vand.u32 %v10485, 4294901760
        %10487 = vmatpush1.msra.mxu0 %v10486
        %10488 = vmatprep.subr.mxu0 0.0
        %v10489 = vand.u32 %v10368, 4294901760
        %v10490 = vsub.f32 %v10368, %v10489
        %v10491 = vand.u32 %v10490, 4294901760
        %v10492 = vsub.f32 %v10490, %v10491
        %v10493 = vand.u32 %v10492, 4294901760
        %10494 = vmatpush1.msra.mxu0 %v10493
        %10495 = vmatprep.subr.mxu0 0.0
        %v10496 = vand.u32 %v10367, 4294901760
        %v10497 = vsub.f32 %v10367, %v10496
        %v10498 = vand.u32 %v10497, 4294901760
        %v10499 = vsub.f32 %v10497, %v10498
        %v10500 = vand.u32 %v10499, 4294901760
        %10501 = vmatpush1.msra.mxu0 %v10500
        %10502 = vmatprep.subr.mxu0 0.0
        %v10503 = vand.u32 %v10366, 4294901760
        %v10504 = vsub.f32 %v10366, %v10503
        %v10505 = vand.u32 %v10504, 4294901760
        %v10506 = vsub.f32 %v10504, %v10505
        %v10507 = vand.u32 %v10506, 4294901760
        %10508 = vmatpush1.msra.mxu0 %v10507
        %10509 = vmatprep.subr.mxu0 0.0
        %v10510 = vand.u32 %v10365, 4294901760
        %v10511 = vsub.f32 %v10365, %v10510
        %v10512 = vand.u32 %v10511, 4294901760
        %v10513 = vsub.f32 %v10511, %v10512
        %v10514 = vand.u32 %v10513, 4294901760
        %10515 = vmatpush1.msra.mxu0 %v10514
        %10516 = vmatprep.subr.mxu0 0.0
        %v10517 = vand.u32 %v10364, 4294901760
        %v10518 = vsub.f32 %v10364, %v10517
        %v10519 = vand.u32 %v10518, 4294901760
        %v10520 = vsub.f32 %v10518, %v10519
        %v10521 = vand.u32 %v10520, 4294901760
        %10522 = vmatpush1.msra.mxu0 %v10521
        %10523 = vmatprep.subr.mxu0 0.0
        %v10524 = vand.u32 %v10363, 4294901760
        %v10525 = vsub.f32 %v10363, %v10524
        %v10526 = vand.u32 %v10525, 4294901760
        %v10527 = vsub.f32 %v10525, %v10526
        %v10528 = vand.u32 %v10527, 4294901760
        %10529 = vmatpush1.msra.mxu0 %v10528
        %10530 = vmatprep.subr.mxu0 0.0
        %10531 = vmatpush2.msra.mxu0 0.0
        %10532 = vmatprep.subr.mxu0 0.0
        %10533 = vmatpush2.msra.mxu0 0.0
        %10534 = vmatprep.subr.mxu0 0.0
        %10535 = vmatpush2.msra.mxu0 0.0
        %10536 = vmatprep.subr.mxu0 0.0
        %10537 = vmatpush2.msra.mxu0 0.0
        %10538 = vmatprep.subr.mxu0 0.0
        %10539 = vmatpush2.msra.mxu0 0.0
        %10540 = vmatprep.subr.mxu0 0.0
        %10541 = vmatpush2.msra.mxu0 0.0
        %10542 = vmatprep.subr.mxu0 0.0
        %10543 = vmatpush2.msra.mxu0 0.0
        %10544 = vmatprep.subr.mxu0 0.0
        %10545 = vmatpush2.msra.mxu0 0.0
        %10546 = vmatprep.subr.mxu0 0.0
        %10547 = vmatpush2.msra.mxu0 0.0
        %10548 = vmatprep.subr.mxu0 0.0
        %10549 = vmatpush2.msra.mxu0 0.0
        %10550 = vmatprep.subr.mxu0 0.0
        %10551 = vmatpush2.msra.mxu0 0.0
        %10552 = vmatprep.subr.mxu0 0.0
        %10553 = vmatpush2.msra.mxu0 0.0
        %10554 = vmatprep.subr.mxu0 0.0
        %10555 = vmatpush2.msra.mxu0 0.0
        %10556 = vmatprep.subr.mxu0 0.0
        %10557 = vmatpush2.msra.mxu0 0.0
        %10558 = vmatprep.subr.mxu0 0.0
        %10559 = vmatpush2.msra.mxu0 0.0
        %10560 = vmatprep.subr.mxu0 0.0
        %10561 = vmatpush2.msra.mxu0 0.0
        %10562 = vmatprep.mubr.f32.mxu0 0.0
        %v10563 = vand.u32 %v10373, 4294901760
        %10564 = vmatmul.mubr.f32.gmra.mxu0 %v10563
        %v10565 = vpop.f32.mrf.mxu0
        %v10566 = vadd.f32 %v10455, %v10565
        %v10567 = vpop.f32.mrf.mxu0
        %10568 = vdwg.mxu0
        %10569 = vmatprep.subr.mxu0 0.0
        %10570 = vmatpush1.msra.mxu0 0.0
        %10571 = vmatprep.subr.mxu0 0.0
        %10572 = vmatpush1.msra.mxu0 0.0
        %10573 = vmatprep.subr.mxu0 0.0
        %10574 = vmatpush1.msra.mxu0 0.0
        %10575 = vmatprep.subr.mxu0 0.0
        %10576 = vmatpush1.msra.mxu0 0.0
        %10577 = vmatprep.subr.mxu0 0.0
        %10578 = vmatpush1.msra.mxu0 0.0
        %10579 = vmatprep.subr.mxu0 0.0
        %10580 = vmatpush1.msra.mxu0 0.0
        %10581 = vmatprep.subr.mxu0 0.0
        %10582 = vmatpush1.msra.mxu0 0.0
        %10583 = vmatprep.subr.mxu0 0.0
        %10584 = vmatpush1.msra.mxu0 0.0
        %10585 = vmatprep.subr.mxu0 0.0
        %v10586 = vand.u32 %v10370, 4294901760
        %v10587 = vsub.f32 %v10370, %v10586
        %10588 = vmatpush1.msra.mxu0 %v10587
        %10589 = vmatprep.subr.mxu0 0.0
        %v10590 = vand.u32 %v10369, 4294901760
        %v10591 = vsub.f32 %v10369, %v10590
        %10592 = vmatpush1.msra.mxu0 %v10591
        %10593 = vmatprep.subr.mxu0 0.0
        %v10594 = vand.u32 %v10368, 4294901760
        %v10595 = vsub.f32 %v10368, %v10594
        %10596 = vmatpush1.msra.mxu0 %v10595
        %10597 = vmatprep.subr.mxu0 0.0
        %v10598 = vand.u32 %v10367, 4294901760
        %v10599 = vsub.f32 %v10367, %v10598
        %10600 = vmatpush1.msra.mxu0 %v10599
        %10601 = vmatprep.subr.mxu0 0.0
        %v10602 = vand.u32 %v10366, 4294901760
        %v10603 = vsub.f32 %v10366, %v10602
        %10604 = vmatpush1.msra.mxu0 %v10603
        %10605 = vmatprep.subr.mxu0 0.0
        %v10606 = vand.u32 %v10365, 4294901760
        %v10607 = vsub.f32 %v10365, %v10606
        %10608 = vmatpush1.msra.mxu0 %v10607
        %10609 = vmatprep.subr.mxu0 0.0
        %v10610 = vand.u32 %v10364, 4294901760
        %v10611 = vsub.f32 %v10364, %v10610
        %10612 = vmatpush1.msra.mxu0 %v10611
        %10613 = vmatprep.subr.mxu0 0.0
        %v10614 = vand.u32 %v10363, 4294901760
        %v10615 = vsub.f32 %v10363, %v10614
        %10616 = vmatpush1.msra.mxu0 %v10615
        %10617 = vmatprep.subr.mxu0 0.0
        %10618 = vmatpush2.msra.mxu0 0.0
        %10619 = vmatprep.subr.mxu0 0.0
        %10620 = vmatpush2.msra.mxu0 0.0
        %10621 = vmatprep.subr.mxu0 0.0
        %10622 = vmatpush2.msra.mxu0 0.0
        %10623 = vmatprep.subr.mxu0 0.0
        %10624 = vmatpush2.msra.mxu0 0.0
        %10625 = vmatprep.subr.mxu0 0.0
        %10626 = vmatpush2.msra.mxu0 0.0
        %10627 = vmatprep.subr.mxu0 0.0
        %10628 = vmatpush2.msra.mxu0 0.0
        %10629 = vmatprep.subr.mxu0 0.0
        %10630 = vmatpush2.msra.mxu0 0.0
        %10631 = vmatprep.subr.mxu0 0.0
        %10632 = vmatpush2.msra.mxu0 0.0
        %10633 = vmatprep.subr.mxu0 0.0
        %10634 = vmatpush2.msra.mxu0 0.0
        %10635 = vmatprep.subr.mxu0 0.0
        %10636 = vmatpush2.msra.mxu0 0.0
        %10637 = vmatprep.subr.mxu0 0.0
        %10638 = vmatpush2.msra.mxu0 0.0
        %10639 = vmatprep.subr.mxu0 0.0
        %10640 = vmatpush2.msra.mxu0 0.0
        %10641 = vmatprep.subr.mxu0 0.0
        %10642 = vmatpush2.msra.mxu0 0.0
        %10643 = vmatprep.subr.mxu0 0.0
        %10644 = vmatpush2.msra.mxu0 0.0
        %10645 = vmatprep.subr.mxu0 0.0
        %10646 = vmatpush2.msra.mxu0 0.0
        %10647 = vmatprep.subr.mxu0 0.0
        %10648 = vmatpush2.msra.mxu0 0.0
        %10649 = vmatprep.mubr.f32.mxu0 0.0
        %v10650 = vand.u32 %v10373, 4294901760
        %v10651 = vsub.f32 %v10373, %v10650
        %10652 = vmatmul.mubr.f32.gmra.mxu0 %v10651
        %v10653 = vpop.f32.mrf.mxu0
        %v10654 = vadd.f32 %v10566, %v10653
        %v10655 = vpop.f32.mrf.mxu0
        %10656 = vdwg.mxu0
        %10657 = vmatprep.subr.mxu0 0.0
        %10658 = vmatpush1.msra.mxu0 0.0
        %10659 = vmatprep.subr.mxu0 0.0
        %10660 = vmatpush1.msra.mxu0 0.0
        %10661 = vmatprep.subr.mxu0 0.0
        %10662 = vmatpush1.msra.mxu0 0.0
        %10663 = vmatprep.subr.mxu0 0.0
        %10664 = vmatpush1.msra.mxu0 0.0
        %10665 = vmatprep.subr.mxu0 0.0
        %10666 = vmatpush1.msra.mxu0 0.0
        %10667 = vmatprep.subr.mxu0 0.0
        %10668 = vmatpush1.msra.mxu0 0.0
        %10669 = vmatprep.subr.mxu0 0.0
        %10670 = vmatpush1.msra.mxu0 0.0
        %10671 = vmatprep.subr.mxu0 0.0
        %10672 = vmatpush1.msra.mxu0 0.0
        %10673 = vmatprep.subr.mxu0 0.0
        %v10674 = vand.u32 %v10370, 4294901760
        %10675 = vmatpush1.msra.mxu0 %v10674
        %10676 = vmatprep.subr.mxu0 0.0
        %v10677 = vand.u32 %v10369, 4294901760
        %10678 = vmatpush1.msra.mxu0 %v10677
        %10679 = vmatprep.subr.mxu0 0.0
        %v10680 = vand.u32 %v10368, 4294901760
        %10681 = vmatpush1.msra.mxu0 %v10680
        %10682 = vmatprep.subr.mxu0 0.0
        %v10683 = vand.u32 %v10367, 4294901760
        %10684 = vmatpush1.msra.mxu0 %v10683
        %10685 = vmatprep.subr.mxu0 0.0
        %v10686 = vand.u32 %v10366, 4294901760
        %10687 = vmatpush1.msra.mxu0 %v10686
        %10688 = vmatprep.subr.mxu0 0.0
        %v10689 = vand.u32 %v10365, 4294901760
        %10690 = vmatpush1.msra.mxu0 %v10689
        %10691 = vmatprep.subr.mxu0 0.0
        %v10692 = vand.u32 %v10364, 4294901760
        %10693 = vmatpush1.msra.mxu0 %v10692
        %10694 = vmatprep.subr.mxu0 0.0
        %v10695 = vand.u32 %v10363, 4294901760
        %10696 = vmatpush1.msra.mxu0 %v10695
        %10697 = vmatprep.subr.mxu0 0.0
        %10698 = vmatpush2.msra.mxu0 0.0
        %10699 = vmatprep.subr.mxu0 0.0
        %10700 = vmatpush2.msra.mxu0 0.0
        %10701 = vmatprep.subr.mxu0 0.0
        %10702 = vmatpush2.msra.mxu0 0.0
        %10703 = vmatprep.subr.mxu0 0.0
        %10704 = vmatpush2.msra.mxu0 0.0
        %10705 = vmatprep.subr.mxu0 0.0
        %10706 = vmatpush2.msra.mxu0 0.0
        %10707 = vmatprep.subr.mxu0 0.0
        %10708 = vmatpush2.msra.mxu0 0.0
        %10709 = vmatprep.subr.mxu0 0.0
        %10710 = vmatpush2.msra.mxu0 0.0
        %10711 = vmatprep.subr.mxu0 0.0
        %10712 = vmatpush2.msra.mxu0 0.0
        %10713 = vmatprep.subr.mxu0 0.0
        %10714 = vmatpush2.msra.mxu0 0.0
        %10715 = vmatprep.subr.mxu0 0.0
        %10716 = vmatpush2.msra.mxu0 0.0
        %10717 = vmatprep.subr.mxu0 0.0
        %10718 = vmatpush2.msra.mxu0 0.0
        %10719 = vmatprep.subr.mxu0 0.0
        %10720 = vmatpush2.msra.mxu0 0.0
        %10721 = vmatprep.subr.mxu0 0.0
        %10722 = vmatpush2.msra.mxu0 0.0
        %10723 = vmatprep.subr.mxu0 0.0
        %10724 = vmatpush2.msra.mxu0 0.0
        %10725 = vmatprep.subr.mxu0 0.0
        %10726 = vmatpush2.msra.mxu0 0.0
        %10727 = vmatprep.subr.mxu0 0.0
        %10728 = vmatpush2.msra.mxu0 0.0
        %10729 = vmatprep.mubr.f32.mxu0 0.0
        %v10730 = vand.u32 %v10373, 4294901760
        %v10731 = vsub.f32 %v10373, %v10730
        %v10732 = vand.u32 %v10731, 4294901760
        %10733 = vmatmul.mubr.f32.gmra.mxu0 %v10732
        %v10734 = vpop.f32.mrf.mxu0
        %v10735 = vadd.f32 %v10654, %v10734
        %v10736 = vpop.f32.mrf.mxu0
        %10737 = vdwg.mxu0
        %10738 = vmatprep.subr.mxu0 0.0
        %10739 = vmatpush1.msra.mxu0 0.0
        %10740 = vmatprep.subr.mxu0 0.0
        %10741 = vmatpush1.msra.mxu0 0.0
        %10742 = vmatprep.subr.mxu0 0.0
        %10743 = vmatpush1.msra.mxu0 0.0
        %10744 = vmatprep.subr.mxu0 0.0
        %10745 = vmatpush1.msra.mxu0 0.0
        %10746 = vmatprep.subr.mxu0 0.0
        %10747 = vmatpush1.msra.mxu0 0.0
        %10748 = vmatprep.subr.mxu0 0.0
        %10749 = vmatpush1.msra.mxu0 0.0
        %10750 = vmatprep.subr.mxu0 0.0
        %10751 = vmatpush1.msra.mxu0 0.0
        %10752 = vmatprep.subr.mxu0 0.0
        %10753 = vmatpush1.msra.mxu0 0.0
        %10754 = vmatprep.subr.mxu0 0.0
        %v10755 = vand.u32 %v10370, 4294901760
        %v10756 = vsub.f32 %v10370, %v10755
        %v10757 = vand.u32 %v10756, 4294901760
        %10758 = vmatpush1.msra.mxu0 %v10757
        %10759 = vmatprep.subr.mxu0 0.0
        %v10760 = vand.u32 %v10369, 4294901760
        %v10761 = vsub.f32 %v10369, %v10760
        %v10762 = vand.u32 %v10761, 4294901760
        %10763 = vmatpush1.msra.mxu0 %v10762
        %10764 = vmatprep.subr.mxu0 0.0
        %v10765 = vand.u32 %v10368, 4294901760
        %v10766 = vsub.f32 %v10368, %v10765
        %v10767 = vand.u32 %v10766, 4294901760
        %10768 = vmatpush1.msra.mxu0 %v10767
        %10769 = vmatprep.subr.mxu0 0.0
        %v10770 = vand.u32 %v10367, 4294901760
        %v10771 = vsub.f32 %v10367, %v10770
        %v10772 = vand.u32 %v10771, 4294901760
        %10773 = vmatpush1.msra.mxu0 %v10772
        %10774 = vmatprep.subr.mxu0 0.0
        %v10775 = vand.u32 %v10366, 4294901760
        %v10776 = vsub.f32 %v10366, %v10775
        %v10777 = vand.u32 %v10776, 4294901760
        %10778 = vmatpush1.msra.mxu0 %v10777
        %10779 = vmatprep.subr.mxu0 0.0
        %v10780 = vand.u32 %v10365, 4294901760
        %v10781 = vsub.f32 %v10365, %v10780
        %v10782 = vand.u32 %v10781, 4294901760
        %10783 = vmatpush1.msra.mxu0 %v10782
        %10784 = vmatprep.subr.mxu0 0.0
        %v10785 = vand.u32 %v10364, 4294901760
        %v10786 = vsub.f32 %v10364, %v10785
        %v10787 = vand.u32 %v10786, 4294901760
        %10788 = vmatpush1.msra.mxu0 %v10787
        %10789 = vmatprep.subr.mxu0 0.0
        %v10790 = vand.u32 %v10363, 4294901760
        %v10791 = vsub.f32 %v10363, %v10790
        %v10792 = vand.u32 %v10791, 4294901760
        %10793 = vmatpush1.msra.mxu0 %v10792
        %10794 = vmatprep.subr.mxu0 0.0
        %10795 = vmatpush2.msra.mxu0 0.0
        %10796 = vmatprep.subr.mxu0 0.0
        %10797 = vmatpush2.msra.mxu0 0.0
        %10798 = vmatprep.subr.mxu0 0.0
        %10799 = vmatpush2.msra.mxu0 0.0
        %10800 = vmatprep.subr.mxu0 0.0
        %10801 = vmatpush2.msra.mxu0 0.0
        %10802 = vmatprep.subr.mxu0 0.0
        %10803 = vmatpush2.msra.mxu0 0.0
        %10804 = vmatprep.subr.mxu0 0.0
        %10805 = vmatpush2.msra.mxu0 0.0
        %10806 = vmatprep.subr.mxu0 0.0
        %10807 = vmatpush2.msra.mxu0 0.0
        %10808 = vmatprep.subr.mxu0 0.0
        %10809 = vmatpush2.msra.mxu0 0.0
        %10810 = vmatprep.subr.mxu0 0.0
        %10811 = vmatpush2.msra.mxu0 0.0
        %10812 = vmatprep.subr.mxu0 0.0
        %10813 = vmatpush2.msra.mxu0 0.0
        %10814 = vmatprep.subr.mxu0 0.0
        %10815 = vmatpush2.msra.mxu0 0.0
        %10816 = vmatprep.subr.mxu0 0.0
        %10817 = vmatpush2.msra.mxu0 0.0
        %10818 = vmatprep.subr.mxu0 0.0
        %10819 = vmatpush2.msra.mxu0 0.0
        %10820 = vmatprep.subr.mxu0 0.0
        %10821 = vmatpush2.msra.mxu0 0.0
        %10822 = vmatprep.subr.mxu0 0.0
        %10823 = vmatpush2.msra.mxu0 0.0
        %10824 = vmatprep.subr.mxu0 0.0
        %10825 = vmatpush2.msra.mxu0 0.0
        %10826 = vmatprep.mubr.f32.mxu0 0.0
        %v10827 = vand.u32 %v10373, 4294901760
        %10828 = vmatmul.mubr.f32.gmra.mxu0 %v10827
        %v10829 = vpop.f32.mrf.mxu0
        %v10830 = vadd.f32 %v10735, %v10829
        %v10831 = vpop.f32.mrf.mxu0
        %10832 = vdwg.mxu0
        %10833 = vmatprep.subr.mxu0 0.0
        %10834 = vmatpush1.msra.mxu0 0.0
        %10835 = vmatprep.subr.mxu0 0.0
        %10836 = vmatpush1.msra.mxu0 0.0
        %10837 = vmatprep.subr.mxu0 0.0
        %10838 = vmatpush1.msra.mxu0 0.0
        %10839 = vmatprep.subr.mxu0 0.0
        %10840 = vmatpush1.msra.mxu0 0.0
        %10841 = vmatprep.subr.mxu0 0.0
        %10842 = vmatpush1.msra.mxu0 0.0
        %10843 = vmatprep.subr.mxu0 0.0
        %10844 = vmatpush1.msra.mxu0 0.0
        %10845 = vmatprep.subr.mxu0 0.0
        %10846 = vmatpush1.msra.mxu0 0.0
        %10847 = vmatprep.subr.mxu0 0.0
        %10848 = vmatpush1.msra.mxu0 0.0
        %10849 = vmatprep.subr.mxu0 0.0
        %v10850 = vand.u32 %v10370, 4294901760
        %10851 = vmatpush1.msra.mxu0 %v10850
        %10852 = vmatprep.subr.mxu0 0.0
        %v10853 = vand.u32 %v10369, 4294901760
        %10854 = vmatpush1.msra.mxu0 %v10853
        %10855 = vmatprep.subr.mxu0 0.0
        %v10856 = vand.u32 %v10368, 4294901760
        %10857 = vmatpush1.msra.mxu0 %v10856
        %10858 = vmatprep.subr.mxu0 0.0
        %v10859 = vand.u32 %v10367, 4294901760
        %10860 = vmatpush1.msra.mxu0 %v10859
        %10861 = vmatprep.subr.mxu0 0.0
        %v10862 = vand.u32 %v10366, 4294901760
        %10863 = vmatpush1.msra.mxu0 %v10862
        %10864 = vmatprep.subr.mxu0 0.0
        %v10865 = vand.u32 %v10365, 4294901760
        %10866 = vmatpush1.msra.mxu0 %v10865
        %10867 = vmatprep.subr.mxu0 0.0
        %v10868 = vand.u32 %v10364, 4294901760
        %10869 = vmatpush1.msra.mxu0 %v10868
        %10870 = vmatprep.subr.mxu0 0.0
        %v10871 = vand.u32 %v10363, 4294901760
        %10872 = vmatpush1.msra.mxu0 %v10871
        %10873 = vmatprep.subr.mxu0 0.0
        %10874 = vmatpush2.msra.mxu0 0.0
        %10875 = vmatprep.subr.mxu0 0.0
        %10876 = vmatpush2.msra.mxu0 0.0
        %10877 = vmatprep.subr.mxu0 0.0
        %10878 = vmatpush2.msra.mxu0 0.0
        %10879 = vmatprep.subr.mxu0 0.0
        %10880 = vmatpush2.msra.mxu0 0.0
        %10881 = vmatprep.subr.mxu0 0.0
        %10882 = vmatpush2.msra.mxu0 0.0
        %10883 = vmatprep.subr.mxu0 0.0
        %10884 = vmatpush2.msra.mxu0 0.0
        %10885 = vmatprep.subr.mxu0 0.0
        %10886 = vmatpush2.msra.mxu0 0.0
        %10887 = vmatprep.subr.mxu0 0.0
        %10888 = vmatpush2.msra.mxu0 0.0
        %10889 = vmatprep.subr.mxu0 0.0
        %10890 = vmatpush2.msra.mxu0 0.0
        %10891 = vmatprep.subr.mxu0 0.0
        %10892 = vmatpush2.msra.mxu0 0.0
        %10893 = vmatprep.subr.mxu0 0.0
        %10894 = vmatpush2.msra.mxu0 0.0
        %10895 = vmatprep.subr.mxu0 0.0
        %10896 = vmatpush2.msra.mxu0 0.0
        %10897 = vmatprep.subr.mxu0 0.0
        %10898 = vmatpush2.msra.mxu0 0.0
        %10899 = vmatprep.subr.mxu0 0.0
        %10900 = vmatpush2.msra.mxu0 0.0
        %10901 = vmatprep.subr.mxu0 0.0
        %10902 = vmatpush2.msra.mxu0 0.0
        %10903 = vmatprep.subr.mxu0 0.0
        %10904 = vmatpush2.msra.mxu0 0.0
        %10905 = vmatprep.mubr.f32.mxu0 0.0
        %v10906 = vand.u32 %v10373, 4294901760
        %10907 = vmatmul.mubr.f32.gmra.mxu0 %v10906
        %v10908 = vpop.f32.mrf.mxu0
        %v10909 = vadd.f32 %v10830, %v10908
        %v10910 = vpop.f32.mrf.mxu0
        %10911 = vdwg.mxu0
        %10912 = vst.msk [vmem:[%s377] sm:$0xff] %vm387, %v10909
        %s10913 = sand.u32 %s269, 1
        %s10914 = scalar_lea.sflag [#allocation3], %s10913
        %s10915 = sand.u32 %s269, 1
        %s10916 = smul.addr %s10915, 8
        %s10917 = scalar_lea.vmem [#allocation2], %s10916
        // Predicated region
        $region65: #{attention_block.1} parent=63 // pred_check
          %p10918 = pneg %p279
        $region66: #{attention_block.1} parent=63 // pred_check_branch
          %10920 = sbr.rel (%p10918) target = $region68
        $region67: #{attention_block.1} parent=63 // pred_region
          %s10922 = ssub.s32 128, 128
          %10923 = vsyncadd %s10914, %s10922
          %s10924 = smul.addr %s25, 128
          %s10925 = scalar_lea.hbm %s11, %s10924
          %s10927 = sshll.u32 %s10917, 4
          %s10928 = int_to_ptr.vmem [resolvable:$true] %s10927
          %10930 = dma.vmem_to_hbm [thread:$0]  %s10928, 128, %s10925, %s10914
        $region68: #{attention_block.1} parent=63 // pred_fallthru
          _
      $region64: #{attention_block.1} parent=5 // pred_fallthru
        _
      %p10931 = scmp.le.s32.totalorder 2, %s20
      // Predicated region
      $region69: #{attention_block.1} parent=5 // pred_check
        %p10932 = pneg %p10931
      $region70: #{attention_block.1} parent=5 // pred_check_branch
        %10934 = sbr.rel (%p10932) target = $region72
      $region71: #{attention_block.1} parent=5 // pred_region
        %s10935 = ssub.s32 %s20, 2
        // Predicated region
        $region73: #{attention_block.1} parent=71 // pred_check
          %p10936 = pneg %p285
        $region74: #{attention_block.1} parent=71 // pred_check_branch
          %10938 = sbr.rel (%p10936) target = $region76
        $region75: #{attention_block.1} parent=71 // pred_region
          %s10939 = sand.u32 %s270, 1
          %s10940 = scalar_lea.sflag [#allocation3], %s10939
          %s10941 = sand.u32 %s270, 1
          %s10942 = smul.addr %s10941, 8
          %s10943 = scalar_lea.vmem [#allocation2], %s10942
          %10944 = dma.done %s10940, 128
        $region76: #{attention_block.1} parent=71 // pred_fallthru
          _
      $region72: #{attention_block.1} parent=5 // pred_fallthru
        _
    $region6: #{attention_block.1} parent=1 // loop_footer
      %s24 = sadd.s32 1, %s20
    $region7: #{attention_block.1} parent=1 // loop_footer_branch
      %19 = sbr.rel target = $region3
    $region8: #{attention_block.1} parent=1 // loop_exit
      _
    %10945 = vsyncpa [#allocation3], 1
    %s10946 = scalar_lea.sflag [#allocation3], 1
    %10947 = vsyncpa %s10946, 1

</llo_original>
